<compile_context>
chip_gen: v5e
topology: v5e:2x2
jax: 0.10.0
libtpu: 0.0.40
codegen_flags: <defaults>
</compile_context>

<pallas_src>
import jax
import jax.numpy as jnp
from jax import lax
from jax.experimental import pallas as pl
from jax.experimental.pallas import tpu as pltpu

EMBEDDING_DIMENSION = 128
HIDDEN_SIZE = 256
VOCAB_TILE = 512          # lane-dim tile for the output projection (x128)
SUBLANE = 8


def _round_up(x, m):
    return -(-x // m) * m


def _sigmoid(x):
    # sigmoid(x) = 0.5*tanh(0.5*x)+0.5: one EUP tanh + one VPU FMA instead of
    # exp + full-precision reciprocal; three of these sit on the serial
    # recurrence critical path per step.
    return 0.5 * jnp.tanh(0.5 * x) + 0.5


# ---------------------------------------------------------------------------
# Kernel A: LSTM recurrence (serial over time, gridless).
# ---------------------------------------------------------------------------
def _lstm_recurrence_kernel(x_ref, h0_ref, c0_ref, wih_ref, whh_ref, b_ref,
                            hs_ref, gx_scr):
    H = HIDDEN_SIZE
    Tp = x_ref.shape[0]

    # Hoisted input projection: gx[t] = x_t @ W_ih^T + (b_ih + b_hh).
    # Parked in VMEM scratch so the time loop only keeps one row live.
    gx_scr[...] = (jnp.dot(x_ref[...], wih_ref[...],
                           preferred_element_type=jnp.float32)
                   + b_ref[...])

    h = h0_ref[...]                                   # (1, H) f32 carry
    c = c0_ref[...]                                   # (1, H) f32 carry

    # TODO(synk): if the bundle dump shows W_hh being re-streamed through the
    # MXU every step, hold the RHS resident via pltpu.matmul_push_rhs (once,
    # before the loop) + pltpu.matmul_acc_lhs / matmul_pop per step.
    # TODO(synk): batch independent sequences to a (B>=8, H) recurrent state
    # for near-linear throughput; the PyTorch forward is single-sequence.
    def _step(gx_row, h, c):
        gates = gx_row + jnp.dot(h.astype(whh_ref.dtype), whh_ref[...],
                                 preferred_element_type=jnp.float32)  # (1,4H)
        i = _sigmoid(gates[:, 0 * H:1 * H])
        f = _sigmoid(gates[:, 1 * H:2 * H])
        g = jnp.tanh(gates[:, 2 * H:3 * H])
        o = _sigmoid(gates[:, 3 * H:4 * H])
        c = f * c + i * g
        h = o * jnp.tanh(c)
        return h, c

    if Tp <= 32:                                      # static unroll, small T
        for t in range(Tp):
            h, c = _step(gx_scr[t:t + 1, :], h, c)
            hs_ref[t:t + 1, :] = h.astype(hs_ref.dtype)
    else:                                             # bounded live ranges
        def body(t, carry):
            h, c = carry
            h, c = _step(gx_scr[pl.ds(t, 1), :], h, c)
            hs_ref[pl.ds(t, 1), :] = h.astype(hs_ref.dtype)
            return (h, c)
        lax.fori_loop(0, Tp, body, (h, c), unroll=8)


# ---------------------------------------------------------------------------
# Kernel B: output projection + log-softmax partials, tiled over vocab.
# ---------------------------------------------------------------------------
def _proj_logsoftmax_kernel(hs_ref, wout_ref, bout_ref,
                            logit_ref, m_ref, s_ref):
    # Padded vocab columns carry a -1e30 bias baked into bout, so they vanish
    # from the exp-sum without any in-kernel iota/select masking.
    logits = (jnp.dot(hs_ref[...], wout_ref[...],
                      preferred_element_type=jnp.float32)
              + bout_ref[...])                        # (Tp, VOCAB_TILE) f32
    logit_ref[...] = logits                           # lane-dense store
    m = jnp.max(logits, axis=-1, keepdims=True)       # (Tp, 1)
    m_ref[0] = m
    s_ref[0] = jnp.sum(jnp.exp(logits - m), axis=-1, keepdims=True)


# ---------------------------------------------------------------------------
# Wrapper.
# ---------------------------------------------------------------------------
def prepare_params(w_ih, w_hh, b_ih, b_hh, w_out, b_out):
    """One-time weight prep: transpose, bf16 cast, vocab lane-pad, and bake
    the vocab-padding mask into the output bias (avoids per-call HBM copies)."""
    H = HIDDEN_SIZE
    V = w_out.shape[0]
    Vp = _round_up(max(V, 1), VOCAB_TILE)
    wih_t = jnp.asarray(w_ih.T, jnp.bfloat16)                       # (E, 4H)
    whh_t = jnp.asarray(w_hh.T, jnp.bfloat16)                       # (H, 4H)
    bias = (b_ih + b_hh).astype(jnp.float32)[None, :]               # (1, 4H)
    wout_p = jnp.zeros((H, Vp), jnp.bfloat16).at[:, :V].set(
        w_out.T.astype(jnp.bfloat16))                               # (H, Vp)
    bout_p = jnp.full((1, Vp), -1e30, jnp.float32).at[0, :V].set(
        b_out.astype(jnp.float32))                                  # (1, Vp)
    return dict(wih_t=wih_t, whh_t=whh_t, bias=bias,
                wout_p=wout_p, bout_p=bout_p, vocab_size=V)


def lstm_model_forward(params, embeddings, h0=None, c0=None):
    """embeddings:(T,E). Returns (T,V) f32 log-probs (== PyTorch forward)."""
    T, E = embeddings.shape
    H = HIDDEN_SIZE
    V = params["vocab_size"]
    Vp = params["wout_p"].shape[1]
    NV = Vp // VOCAB_TILE
    Tp = max(SUBLANE, _round_up(T, SUBLANE))   # length bucket: no recompiles

    emb = jnp.zeros((Tp, E), jnp.bfloat16).at[:T, :].set(
        embeddings.astype(jnp.bfloat16))
    h0 = (jnp.zeros((1, H), jnp.float32) if h0 is None
          else jnp.asarray(h0, jnp.float32).reshape(1, H))
    c0 = (jnp.zeros((1, H), jnp.float32) if c0 is None
          else jnp.asarray(c0, jnp.float32).reshape(1, H))

    vmem = pl.BlockSpec(memory_space=pltpu.MemorySpace.VMEM)

    # --- kernel A: recurrence -> (Tp, H) bf16 hidden states ----------------
    hs = pl.pallas_call(
        _lstm_recurrence_kernel,
        out_shape=jax.ShapeDtypeStruct((Tp, H), jnp.bfloat16),
        in_specs=[vmem] * 6,
        out_specs=vmem,
        scratch_shapes=[pltpu.VMEM((Tp, 4 * H), jnp.float32)],
        compiler_params=pltpu.CompilerParams(vmem_limit_bytes=32 << 20),
    )(emb, h0, c0, params["wih_t"], params["whh_t"], params["bias"])

    # --- kernel B: vocab-tiled projection + log-softmax partials -----------
    logits, mpart, spart = pl.pallas_call(
        _proj_logsoftmax_kernel,
        out_shape=(jax.ShapeDtypeStruct((Tp, Vp), jnp.float32),
                   jax.ShapeDtypeStruct((NV, Tp, 1), jnp.float32),
                   jax.ShapeDtypeStruct((NV, Tp, 1), jnp.float32)),
        grid=(NV,),
        in_specs=[pl.BlockSpec((Tp, H), lambda j: (0, 0)),
                  pl.BlockSpec((H, VOCAB_TILE), lambda j: (0, j)),
                  pl.BlockSpec((1, VOCAB_TILE), lambda j: (0, j))],
        out_specs=(pl.BlockSpec((Tp, VOCAB_TILE), lambda j: (0, j)),
                   pl.BlockSpec((1, Tp, 1), lambda j: (j, 0, 0)),
                   pl.BlockSpec((1, Tp, 1), lambda j: (j, 0, 0))),
        compiler_params=pltpu.CompilerParams(
            dimension_semantics=("parallel",),
            vmem_limit_bytes=32 << 20),
    )(hs, params["wout_p"], params["bout_p"])

    # Combine per-tile partials into the global log-sum-exp and normalize.
    m = jnp.max(mpart, axis=0)                                       # (Tp, 1)
    lse = m + jnp.log(jnp.sum(spart * jnp.exp(mpart - m), axis=0))   # (Tp, 1)
    log_probs = logits - lse
    return log_probs[:T, :V]


# ---------------------------------------------------------------------------
# Vocab / lookup glue mirroring initialize_vocab / get_embedding_lookups.
# ---------------------------------------------------------------------------
def build_vocab(sentences, sep=' '):
    vocabs = {'<s>': 0, '</s>': 1, '<unk>': 2}
    idx = 3
    for sent in sentences:
        tokens = list(sent) if sep == '' else sent.split(sep)
        for t in tokens:
            if t not in vocabs:
                vocabs[t] = idx
                idx += 1
    return vocabs


def get_lookups(sentence, vocabs, sep=' '):
    lookups = [vocabs['<s>']]
    toks = list(sentence) if sep == '' else sentence.split(sep)
    for t in toks:
        lookups.append(vocabs.get(t, vocabs['<unk>']))
    lookups.append(vocabs['</s>'])
    return jnp.asarray(lookups, dtype=jnp.int32)


if __name__ == "__main__":
    sentences = ["the cat sat on the mat", "the dog ran fast"]
    vocabs = build_vocab(sentences)
    vocab_size = len(vocabs)

    # Deterministic PyTorch-style uniform(-1/sqrt(H), 1/sqrt(H)) init.
    key = jax.random.PRNGKey(0)
    k_emb, k_wih, k_whh, k_bih, k_bhh, k_wo, k_bo = jax.random.split(key, 7)
    E, H, V = EMBEDDING_DIMENSION, HIDDEN_SIZE, vocab_size
    bound = 1.0 / (H ** 0.5)

    emb_table = jax.random.normal(k_emb, (V, E), dtype=jnp.float32)
    w_ih = jax.random.uniform(k_wih, (4 * H, E), jnp.float32, -bound, bound)
    w_hh = jax.random.uniform(k_whh, (4 * H, H), jnp.float32, -bound, bound)
    b_ih = jax.random.uniform(k_bih, (4 * H,), jnp.float32, -bound, bound)
    b_hh = jax.random.uniform(k_bhh, (4 * H,), jnp.float32, -bound, bound)
    w_out = jax.random.uniform(k_wo, (V, H), jnp.float32, -bound, bound)
    b_out = jax.random.uniform(k_bo, (V,), jnp.float32, -bound, bound)

    # One-time weight preparation (transpose / cast / pad / mask).
    params = prepare_params(w_ih, w_hh, b_ih, b_hh, w_out, b_out)

    # forward(lookups, hidden_state=None)
    lookups = get_lookups("the cat ran on the mat", vocabs)   # seq len = 8
    T = int(lookups.shape[0])
    embeddings = emb_table[lookups]        # nn.Embedding gather (JAX glue)

    predictions = lstm_model_forward(params, embeddings)      # h0=c0=zeros
    predictions = jax.block_until_ready(predictions)

    assert predictions.shape == (T, V)
    assert bool(jnp.all(jnp.isfinite(predictions)))
    # log_softmax rows must (log-)normalize to ~0
    assert bool(jnp.all(
        jnp.abs(jnp.sum(jnp.exp(predictions), axis=1) - 1.0) < 1e-4))
    print("KERNEL_OK")
</pallas_src>

<mosaic_0001>
module attributes {stable_mosaic.version = 11 : i64} {
  func.func @_lstm_recurrence_kernel(%arg0: memref<8x128xbf16, #tpu.memory_space<vmem>>, %arg1: memref<1x256xf32, #tpu.memory_space<vmem>>, %arg2: memref<1x256xf32, #tpu.memory_space<vmem>>, %arg3: memref<128x1024xbf16, #tpu.memory_space<vmem>>, %arg4: memref<256x1024xbf16, #tpu.memory_space<vmem>>, %arg5: memref<1x1024xf32, #tpu.memory_space<vmem>>, %arg6: memref<8x256xbf16, #tpu.memory_space<vmem>>, %arg7: memref<8x1024xf32, #tpu.memory_space<vmem>>) attributes {dimension_semantics = [], scalar_prefetch = 0 : i64, scratch_operands = 1 : i64, tpu.core_type = #tpu.core_type<tc>} {
    %c0 = arith.constant 0 : index
    %c0_0 = arith.constant 0 : index
    %0 = vector.load %arg0[%c0, %c0_0] : memref<8x128xbf16, #tpu.memory_space<vmem>>, vector<8x128xbf16>
    %c0_1 = arith.constant 0 : index
    %c0_2 = arith.constant 0 : index
    %1 = vector.load %arg3[%c0_1, %c0_2] : memref<128x1024xbf16, #tpu.memory_space<vmem>>, vector<128x1024xbf16>
    %cst = arith.constant dense<0.000000e+00> : vector<8x1024xf32>
    %2 = tpu.matmul %0, %1, %cst {dimension_numbers = #tpu.dot_dimension_numbers<[1], [0], [0], [1], [0, 0, 1, 1], [], []>} : vector<8x128xbf16>, vector<128x1024xbf16>, vector<8x1024xf32> -> vector<8x1024xf32>
    %c0_3 = arith.constant 0 : index
    %c0_4 = arith.constant 0 : index
    %3 = vector.load %arg5[%c0_3, %c0_4] : memref<1x1024xf32, #tpu.memory_space<vmem>>, vector<1x1024xf32>
    %4 = vector.broadcast %3 : vector<1x1024xf32> to vector<8x1024xf32>
    %5 = arith.addf %2, %4 : vector<8x1024xf32>
    %c0_5 = arith.constant 0 : index
    %c0_6 = arith.constant 0 : index
    %6 = vector.load %arg7[%c0_5, %c0_6] : memref<8x1024xf32, #tpu.memory_space<vmem>>, vector<8x1024xf32>
    tpu.vector_store %arg7[%c0_5, %c0_6], %5 {strides = array<i32>} : memref<8x1024xf32, #tpu.memory_space<vmem>>, vector<8x1024xf32>,
    %c0_7 = arith.constant 0 : index
    %c0_8 = arith.constant 0 : index
    %7 = vector.load %arg1[%c0_7, %c0_8] : memref<1x256xf32, #tpu.memory_space<vmem>>, vector<1x256xf32>
    %c0_9 = arith.constant 0 : index
    %c0_10 = arith.constant 0 : index
    %8 = vector.load %arg2[%c0_9, %c0_10] : memref<1x256xf32, #tpu.memory_space<vmem>>, vector<1x256xf32>
    %c0_11 = arith.constant 0 : index
    %c0_12 = arith.constant 0 : index
    %9 = vector.load %arg7[%c0_11, %c0_12] : memref<8x1024xf32, #tpu.memory_space<vmem>>, vector<1x1024xf32>
    %10 = arith.truncf %7 : vector<1x256xf32> to vector<1x256xbf16>
    %c0_13 = arith.constant 0 : index
    %c0_14 = arith.constant 0 : index
    %11 = vector.load %arg4[%c0_13, %c0_14] : memref<256x1024xbf16, #tpu.memory_space<vmem>>, vector<256x1024xbf16>
    %cst_15 = arith.constant dense<0.000000e+00> : vector<1x1024xf32>
    %12 = tpu.matmul %10, %11, %cst_15 {dimension_numbers = #tpu.dot_dimension_numbers<[1], [0], [0], [1], [0, 0, 1, 1], [], []>} : vector<1x256xbf16>, vector<256x1024xbf16>, vector<1x1024xf32> -> vector<1x1024xf32>
    %13 = arith.addf %9, %12 : vector<1x1024xf32>
    %14 = vector.extract_strided_slice %13 {offsets = [0, 0], sizes = [1, 256], strides = [1, 1]} : vector<1x1024xf32> to vector<1x256xf32>
    %cst_16 = arith.constant 5.000000e-01 : f32
    %15 = vector.broadcast %cst_16 : f32 to vector<1x256xf32>
    %16 = arith.mulf %15, %14 : vector<1x256xf32>
    %17 = math.tanh %16 : vector<1x256xf32>
    %cst_17 = arith.constant 5.000000e-01 : f32
    %18 = vector.broadcast %cst_17 : f32 to vector<1x256xf32>
    %19 = arith.mulf %18, %17 : vector<1x256xf32>
    %cst_18 = arith.constant 5.000000e-01 : f32
    %20 = vector.broadcast %cst_18 : f32 to vector<1x256xf32>
    %21 = arith.addf %19, %20 : vector<1x256xf32>
    %22 = vector.extract_strided_slice %13 {offsets = [0, 256], sizes = [1, 256], strides = [1, 1]} : vector<1x1024xf32> to vector<1x256xf32>
    %cst_19 = arith.constant 5.000000e-01 : f32
    %23 = vector.broadcast %cst_19 : f32 to vector<1x256xf32>
    %24 = arith.mulf %23, %22 : vector<1x256xf32>
    %25 = math.tanh %24 : vector<1x256xf32>
    %cst_20 = arith.constant 5.000000e-01 : f32
    %26 = vector.broadcast %cst_20 : f32 to vector<1x256xf32>
    %27 = arith.mulf %26, %25 : vector<1x256xf32>
    %cst_21 = arith.constant 5.000000e-01 : f32
    %28 = vector.broadcast %cst_21 : f32 to vector<1x256xf32>
    %29 = arith.addf %27, %28 : vector<1x256xf32>
    %30 = vector.extract_strided_slice %13 {offsets = [0, 512], sizes = [1, 256], strides = [1, 1]} : vector<1x1024xf32> to vector<1x256xf32>
    %31 = math.tanh %30 : vector<1x256xf32>
    %32 = vector.extract_strided_slice %13 {offsets = [0, 768], sizes = [1, 256], strides = [1, 1]} : vector<1x1024xf32> to vector<1x256xf32>
    %cst_22 = arith.constant 5.000000e-01 : f32
    %33 = vector.broadcast %cst_22 : f32 to vector<1x256xf32>
    %34 = arith.mulf %33, %32 : vector<1x256xf32>
    %35 = math.tanh %34 : vector<1x256xf32>
    %cst_23 = arith.constant 5.000000e-01 : f32
    %36 = vector.broadcast %cst_23 : f32 to vector<1x256xf32>
    %37 = arith.mulf %36, %35 : vector<1x256xf32>
    %cst_24 = arith.constant 5.000000e-01 : f32
    %38 = vector.broadcast %cst_24 : f32 to vector<1x256xf32>
    %39 = arith.addf %37, %38 : vector<1x256xf32>
    %40 = arith.mulf %29, %8 : vector<1x256xf32>
    %41 = arith.mulf %21, %31 : vector<1x256xf32>
    %42 = arith.addf %40, %41 : vector<1x256xf32>
    %43 = math.tanh %42 : vector<1x256xf32>
    %44 = arith.mulf %39, %43 : vector<1x256xf32>
    %45 = arith.truncf %44 : vector<1x256xf32> to vector<1x256xbf16>
    %c0_25 = arith.constant 0 : index
    %c0_26 = arith.constant 0 : index
    %46 = vector.load %arg6[%c0_25, %c0_26] : memref<8x256xbf16, #tpu.memory_space<vmem>>, vector<1x256xbf16>
    tpu.vector_store %arg6[%c0_25, %c0_26], %45 {strides = array<i32>} : memref<8x256xbf16, #tpu.memory_space<vmem>>, vector<1x256xbf16>,
    %c1 = arith.constant 1 : index
    %c0_27 = arith.constant 0 : index
    %47 = vector.load %arg7[%c1, %c0_27] : memref<8x1024xf32, #tpu.memory_space<vmem>>, vector<1x1024xf32>
    %48 = arith.truncf %44 : vector<1x256xf32> to vector<1x256xbf16>
    %c0_28 = arith.constant 0 : index
    %c0_29 = arith.constant 0 : index
    %49 = vector.load %arg4[%c0_28, %c0_29] : memref<256x1024xbf16, #tpu.memory_space<vmem>>, vector<256x1024xbf16>
    %cst_30 = arith.constant dense<0.000000e+00> : vector<1x1024xf32>
    %50 = tpu.matmul %48, %49, %cst_30 {dimension_numbers = #tpu.dot_dimension_numbers<[1], [0], [0], [1], [0, 0, 1, 1], [], []>} : vector<1x256xbf16>, vector<256x1024xbf16>, vector<1x1024xf32> -> vector<1x1024xf32>
    %51 = arith.addf %47, %50 : vector<1x1024xf32>
    %52 = vector.extract_strided_slice %51 {offsets = [0, 0], sizes = [1, 256], strides = [1, 1]} : vector<1x1024xf32> to vector<1x256xf32>
    %cst_31 = arith.constant 5.000000e-01 : f32
    %53 = vector.broadcast %cst_31 : f32 to vector<1x256xf32>
    %54 = arith.mulf %53, %52 : vector<1x256xf32>
    %55 = math.tanh %54 : vector<1x256xf32>
    %cst_32 = arith.constant 5.000000e-01 : f32
    %56 = vector.broadcast %cst_32 : f32 to vector<1x256xf32>
    %57 = arith.mulf %56, %55 : vector<1x256xf32>
    %cst_33 = arith.constant 5.000000e-01 : f32
    %58 = vector.broadcast %cst_33 : f32 to vector<1x256xf32>
    %59 = arith.addf %57, %58 : vector<1x256xf32>
    %60 = vector.extract_strided_slice %51 {offsets = [0, 256], sizes = [1, 256], strides = [1, 1]} : vector<1x1024xf32> to vector<1x256xf32>
    %cst_34 = arith.constant 5.000000e-01 : f32
    %61 = vector.broadcast %cst_34 : f32 to vector<1x256xf32>
    %62 = arith.mulf %61, %60 : vector<1x256xf32>
    %63 = math.tanh %62 : vector<1x256xf32>
    %cst_35 = arith.constant 5.000000e-01 : f32
    %64 = vector.broadcast %cst_35 : f32 to vector<1x256xf32>
    %65 = arith.mulf %64, %63 : vector<1x256xf32>
    %cst_36 = arith.constant 5.000000e-01 : f32
    %66 = vector.broadcast %cst_36 : f32 to vector<1x256xf32>
    %67 = arith.addf %65, %66 : vector<1x256xf32>
    %68 = vector.extract_strided_slice %51 {offsets = [0, 512], sizes = [1, 256], strides = [1, 1]} : vector<1x1024xf32> to vector<1x256xf32>
    %69 = math.tanh %68 : vector<1x256xf32>
    %70 = vector.extract_strided_slice %51 {offsets = [0, 768], sizes = [1, 256], strides = [1, 1]} : vector<1x1024xf32> to vector<1x256xf32>
    %cst_37 = arith.constant 5.000000e-01 : f32
    %71 = vector.broadcast %cst_37 : f32 to vector<1x256xf32>
    %72 = arith.mulf %71, %70 : vector<1x256xf32>
    %73 = math.tanh %72 : vector<1x256xf32>
    %cst_38 = arith.constant 5.000000e-01 : f32
    %74 = vector.broadcast %cst_38 : f32 to vector<1x256xf32>
    %75 = arith.mulf %74, %73 : vector<1x256xf32>
    %cst_39 = arith.constant 5.000000e-01 : f32
    %76 = vector.broadcast %cst_39 : f32 to vector<1x256xf32>
    %77 = arith.addf %75, %76 : vector<1x256xf32>
    %78 = arith.mulf %67, %42 : vector<1x256xf32>
    %79 = arith.mulf %59, %69 : vector<1x256xf32>
    %80 = arith.addf %78, %79 : vector<1x256xf32>
    %81 = math.tanh %80 : vector<1x256xf32>
    %82 = arith.mulf %77, %81 : vector<1x256xf32>
    %83 = arith.truncf %82 : vector<1x256xf32> to vector<1x256xbf16>
    %c1_40 = arith.constant 1 : index
    %c0_41 = arith.constant 0 : index
    %84 = vector.load %arg6[%c1_40, %c0_41] : memref<8x256xbf16, #tpu.memory_space<vmem>>, vector<1x256xbf16>
    tpu.vector_store %arg6[%c1_40, %c0_41], %83 {strides = array<i32>} : memref<8x256xbf16, #tpu.memory_space<vmem>>, vector<1x256xbf16>,
    %c2 = arith.constant 2 : index
    %c0_42 = arith.constant 0 : index
    %85 = vector.load %arg7[%c2, %c0_42] : memref<8x1024xf32, #tpu.memory_space<vmem>>, vector<1x1024xf32>
    %86 = arith.truncf %82 : vector<1x256xf32> to vector<1x256xbf16>
    %c0_43 = arith.constant 0 : index
    %c0_44 = arith.constant 0 : index
    %87 = vector.load %arg4[%c0_43, %c0_44] : memref<256x1024xbf16, #tpu.memory_space<vmem>>, vector<256x1024xbf16>
    %cst_45 = arith.constant dense<0.000000e+00> : vector<1x1024xf32>
    %88 = tpu.matmul %86, %87, %cst_45 {dimension_numbers = #tpu.dot_dimension_numbers<[1], [0], [0], [1], [0, 0, 1, 1], [], []>} : vector<1x256xbf16>, vector<256x1024xbf16>, vector<1x1024xf32> -> vector<1x1024xf32>
    %89 = arith.addf %85, %88 : vector<1x1024xf32>
    %90 = vector.extract_strided_slice %89 {offsets = [0, 0], sizes = [1, 256], strides = [1, 1]} : vector<1x1024xf32> to vector<1x256xf32>
    %cst_46 = arith.constant 5.000000e-01 : f32
    %91 = vector.broadcast %cst_46 : f32 to vector<1x256xf32>
    %92 = arith.mulf %91, %90 : vector<1x256xf32>
    %93 = math.tanh %92 : vector<1x256xf32>
    %cst_47 = arith.constant 5.000000e-01 : f32
    %94 = vector.broadcast %cst_47 : f32 to vector<1x256xf32>
    %95 = arith.mulf %94, %93 : vector<1x256xf32>
    %cst_48 = arith.constant 5.000000e-01 : f32
    %96 = vector.broadcast %cst_48 : f32 to vector<1x256xf32>
    %97 = arith.addf %95, %96 : vector<1x256xf32>
    %98 = vector.extract_strided_slice %89 {offsets = [0, 256], sizes = [1, 256], strides = [1, 1]} : vector<1x1024xf32> to vector<1x256xf32>
    %cst_49 = arith.constant 5.000000e-01 : f32
    %99 = vector.broadcast %cst_49 : f32 to vector<1x256xf32>
    %100 = arith.mulf %99, %98 : vector<1x256xf32>
    %101 = math.tanh %100 : vector<1x256xf32>
    %cst_50 = arith.constant 5.000000e-01 : f32
    %102 = vector.broadcast %cst_50 : f32 to vector<1x256xf32>
    %103 = arith.mulf %102, %101 : vector<1x256xf32>
    %cst_51 = arith.constant 5.000000e-01 : f32
    %104 = vector.broadcast %cst_51 : f32 to vector<1x256xf32>
    %105 = arith.addf %103, %104 : vector<1x256xf32>
    %106 = vector.extract_strided_slice %89 {offsets = [0, 512], sizes = [1, 256], strides = [1, 1]} : vector<1x1024xf32> to vector<1x256xf32>
    %107 = math.tanh %106 : vector<1x256xf32>
    %108 = vector.extract_strided_slice %89 {offsets = [0, 768], sizes = [1, 256], strides = [1, 1]} : vector<1x1024xf32> to vector<1x256xf32>
    %cst_52 = arith.constant 5.000000e-01 : f32
    %109 = vector.broadcast %cst_52 : f32 to vector<1x256xf32>
    %110 = arith.mulf %109, %108 : vector<1x256xf32>
    %111 = math.tanh %110 : vector<1x256xf32>
    %cst_53 = arith.constant 5.000000e-01 : f32
    %112 = vector.broadcast %cst_53 : f32 to vector<1x256xf32>
    %113 = arith.mulf %112, %111 : vector<1x256xf32>
    %cst_54 = arith.constant 5.000000e-01 : f32
    %114 = vector.broadcast %cst_54 : f32 to vector<1x256xf32>
    %115 = arith.addf %113, %114 : vector<1x256xf32>
    %116 = arith.mulf %105, %80 : vector<1x256xf32>
    %117 = arith.mulf %97, %107 : vector<1x256xf32>
    %118 = arith.addf %116, %117 : vector<1x256xf32>
    %119 = math.tanh %118 : vector<1x256xf32>
    %120 = arith.mulf %115, %119 : vector<1x256xf32>
    %121 = arith.truncf %120 : vector<1x256xf32> to vector<1x256xbf16>
    %c2_55 = arith.constant 2 : index
    %c0_56 = arith.constant 0 : index
    %122 = vector.load %arg6[%c2_55, %c0_56] : memref<8x256xbf16, #tpu.memory_space<vmem>>, vector<1x256xbf16>
    tpu.vector_store %arg6[%c2_55, %c0_56], %121 {strides = array<i32>} : memref<8x256xbf16, #tpu.memory_space<vmem>>, vector<1x256xbf16>,
    %c3 = arith.constant 3 : index
    %c0_57 = arith.constant 0 : index
    %123 = vector.load %arg7[%c3, %c0_57] : memref<8x1024xf32, #tpu.memory_space<vmem>>, vector<1x1024xf32>
    %124 = arith.truncf %120 : vector<1x256xf32> to vector<1x256xbf16>
    %c0_58 = arith.constant 0 : index
    %c0_59 = arith.constant 0 : index
    %125 = vector.load %arg4[%c0_58, %c0_59] : memref<256x1024xbf16, #tpu.memory_space<vmem>>, vector<256x1024xbf16>
    %cst_60 = arith.constant dense<0.000000e+00> : vector<1x1024xf32>
    %126 = tpu.matmul %124, %125, %cst_60 {dimension_numbers = #tpu.dot_dimension_numbers<[1], [0], [0], [1], [0, 0, 1, 1], [], []>} : vector<1x256xbf16>, vector<256x1024xbf16>, vector<1x1024xf32> -> vector<1x1024xf32>
    %127 = arith.addf %123, %126 : vector<1x1024xf32>
    %128 = vector.extract_strided_slice %127 {offsets = [0, 0], sizes = [1, 256], strides = [1, 1]} : vector<1x1024xf32> to vector<1x256xf32>
    %cst_61 = arith.constant 5.000000e-01 : f32
    %129 = vector.broadcast %cst_61 : f32 to vector<1x256xf32>
    %130 = arith.mulf %129, %128 : vector<1x256xf32>
    %131 = math.tanh %130 : vector<1x256xf32>
    %cst_62 = arith.constant 5.000000e-01 : f32
    %132 = vector.broadcast %cst_62 : f32 to vector<1x256xf32>
    %133 = arith.mulf %132, %131 : vector<1x256xf32>
    %cst_63 = arith.constant 5.000000e-01 : f32
    %134 = vector.broadcast %cst_63 : f32 to vector<1x256xf32>
    %135 = arith.addf %133, %134 : vector<1x256xf32>
    %136 = vector.extract_strided_slice %127 {offsets = [0, 256], sizes = [1, 256], strides = [1, 1]} : vector<1x1024xf32> to vector<1x256xf32>
    %cst_64 = arith.constant 5.000000e-01 : f32
    %137 = vector.broadcast %cst_64 : f32 to vector<1x256xf32>
    %138 = arith.mulf %137, %136 : vector<1x256xf32>
    %139 = math.tanh %138 : vector<1x256xf32>
    %cst_65 = arith.constant 5.000000e-01 : f32
    %140 = vector.broadcast %cst_65 : f32 to vector<1x256xf32>
    %141 = arith.mulf %140, %139 : vector<1x256xf32>
    %cst_66 = arith.constant 5.000000e-01 : f32
    %142 = vector.broadcast %cst_66 : f32 to vector<1x256xf32>
    %143 = arith.addf %141, %142 : vector<1x256xf32>
    %144 = vector.extract_strided_slice %127 {offsets = [0, 512], sizes = [1, 256], strides = [1, 1]} : vector<1x1024xf32> to vector<1x256xf32>
    %145 = math.tanh %144 : vector<1x256xf32>
    %146 = vector.extract_strided_slice %127 {offsets = [0, 768], sizes = [1, 256], strides = [1, 1]} : vector<1x1024xf32> to vector<1x256xf32>
    %cst_67 = arith.constant 5.000000e-01 : f32
    %147 = vector.broadcast %cst_67 : f32 to vector<1x256xf32>
    %148 = arith.mulf %147, %146 : vector<1x256xf32>
    %149 = math.tanh %148 : vector<1x256xf32>
    %cst_68 = arith.constant 5.000000e-01 : f32
    %150 = vector.broadcast %cst_68 : f32 to vector<1x256xf32>
    %151 = arith.mulf %150, %149 : vector<1x256xf32>
    %cst_69 = arith.constant 5.000000e-01 : f32
    %152 = vector.broadcast %cst_69 : f32 to vector<1x256xf32>
    %153 = arith.addf %151, %152 : vector<1x256xf32>
    %154 = arith.mulf %143, %118 : vector<1x256xf32>
    %155 = arith.mulf %135, %145 : vector<1x256xf32>
    %156 = arith.addf %154, %155 : vector<1x256xf32>
    %157 = math.tanh %156 : vector<1x256xf32>
    %158 = arith.mulf %153, %157 : vector<1x256xf32>
    %159 = arith.truncf %158 : vector<1x256xf32> to vector<1x256xbf16>
    %c3_70 = arith.constant 3 : index
    %c0_71 = arith.constant 0 : index
    %160 = vector.load %arg6[%c3_70, %c0_71] : memref<8x256xbf16, #tpu.memory_space<vmem>>, vector<1x256xbf16>
    tpu.vector_store %arg6[%c3_70, %c0_71], %159 {strides = array<i32>} : memref<8x256xbf16, #tpu.memory_space<vmem>>, vector<1x256xbf16>,
    %c4 = arith.constant 4 : index
    %c0_72 = arith.constant 0 : index
    %161 = vector.load %arg7[%c4, %c0_72] : memref<8x1024xf32, #tpu.memory_space<vmem>>, vector<1x1024xf32>
    %162 = arith.truncf %158 : vector<1x256xf32> to vector<1x256xbf16>
    %c0_73 = arith.constant 0 : index
    %c0_74 = arith.constant 0 : index
    %163 = vector.load %arg4[%c0_73, %c0_74] : memref<256x1024xbf16, #tpu.memory_space<vmem>>, vector<256x1024xbf16>
    %cst_75 = arith.constant dense<0.000000e+00> : vector<1x1024xf32>
    %164 = tpu.matmul %162, %163, %cst_75 {dimension_numbers = #tpu.dot_dimension_numbers<[1], [0], [0], [1], [0, 0, 1, 1], [], []>} : vector<1x256xbf16>, vector<256x1024xbf16>, vector<1x1024xf32> -> vector<1x1024xf32>
    %165 = arith.addf %161, %164 : vector<1x1024xf32>
    %166 = vector.extract_strided_slice %165 {offsets = [0, 0], sizes = [1, 256], strides = [1, 1]} : vector<1x1024xf32> to vector<1x256xf32>
    %cst_76 = arith.constant 5.000000e-01 : f32
    %167 = vector.broadcast %cst_76 : f32 to vector<1x256xf32>
    %168 = arith.mulf %167, %166 : vector<1x256xf32>
    %169 = math.tanh %168 : vector<1x256xf32>
    %cst_77 = arith.constant 5.000000e-01 : f32
    %170 = vector.broadcast %cst_77 : f32 to vector<1x256xf32>
    %171 = arith.mulf %170, %169 : vector<1x256xf32>
    %cst_78 = arith.constant 5.000000e-01 : f32
    %172 = vector.broadcast %cst_78 : f32 to vector<1x256xf32>
    %173 = arith.addf %171, %172 : vector<1x256xf32>
    %174 = vector.extract_strided_slice %165 {offsets = [0, 256], sizes = [1, 256], strides = [1, 1]} : vector<1x1024xf32> to vector<1x256xf32>
    %cst_79 = arith.constant 5.000000e-01 : f32
    %175 = vector.broadcast %cst_79 : f32 to vector<1x256xf32>
    %176 = arith.mulf %175, %174 : vector<1x256xf32>
    %177 = math.tanh %176 : vector<1x256xf32>
    %cst_80 = arith.constant 5.000000e-01 : f32
    %178 = vector.broadcast %cst_80 : f32 to vector<1x256xf32>
    %179 = arith.mulf %178, %177 : vector<1x256xf32>
    %cst_81 = arith.constant 5.000000e-01 : f32
    %180 = vector.broadcast %cst_81 : f32 to vector<1x256xf32>
    %181 = arith.addf %179, %180 : vector<1x256xf32>
    %182 = vector.extract_strided_slice %165 {offsets = [0, 512], sizes = [1, 256], strides = [1, 1]} : vector<1x1024xf32> to vector<1x256xf32>
    %183 = math.tanh %182 : vector<1x256xf32>
    %184 = vector.extract_strided_slice %165 {offsets = [0, 768], sizes = [1, 256], strides = [1, 1]} : vector<1x1024xf32> to vector<1x256xf32>
    %cst_82 = arith.constant 5.000000e-01 : f32
    %185 = vector.broadcast %cst_82 : f32 to vector<1x256xf32>
    %186 = arith.mulf %185, %184 : vector<1x256xf32>
    %187 = math.tanh %186 : vector<1x256xf32>
    %cst_83 = arith.constant 5.000000e-01 : f32
    %188 = vector.broadcast %cst_83 : f32 to vector<1x256xf32>
    %189 = arith.mulf %188, %187 : vector<1x256xf32>
    %cst_84 = arith.constant 5.000000e-01 : f32
    %190 = vector.broadcast %cst_84 : f32 to vector<1x256xf32>
    %191 = arith.addf %189, %190 : vector<1x256xf32>
    %192 = arith.mulf %181, %156 : vector<1x256xf32>
    %193 = arith.mulf %173, %183 : vector<1x256xf32>
    %194 = arith.addf %192, %193 : vector<1x256xf32>
    %195 = math.tanh %194 : vector<1x256xf32>
    %196 = arith.mulf %191, %195 : vector<1x256xf32>
    %197 = arith.truncf %196 : vector<1x256xf32> to vector<1x256xbf16>
    %c4_85 = arith.constant 4 : index
    %c0_86 = arith.constant 0 : index
    %198 = vector.load %arg6[%c4_85, %c0_86] : memref<8x256xbf16, #tpu.memory_space<vmem>>, vector<1x256xbf16>
    tpu.vector_store %arg6[%c4_85, %c0_86], %197 {strides = array<i32>} : memref<8x256xbf16, #tpu.memory_space<vmem>>, vector<1x256xbf16>,
    %c5 = arith.constant 5 : index
    %c0_87 = arith.constant 0 : index
    %199 = vector.load %arg7[%c5, %c0_87] : memref<8x1024xf32, #tpu.memory_space<vmem>>, vector<1x1024xf32>
    %200 = arith.truncf %196 : vector<1x256xf32> to vector<1x256xbf16>
    %c0_88 = arith.constant 0 : index
    %c0_89 = arith.constant 0 : index
    %201 = vector.load %arg4[%c0_88, %c0_89] : memref<256x1024xbf16, #tpu.memory_space<vmem>>, vector<256x1024xbf16>
    %cst_90 = arith.constant dense<0.000000e+00> : vector<1x1024xf32>
    %202 = tpu.matmul %200, %201, %cst_90 {dimension_numbers = #tpu.dot_dimension_numbers<[1], [0], [0], [1], [0, 0, 1, 1], [], []>} : vector<1x256xbf16>, vector<256x1024xbf16>, vector<1x1024xf32> -> vector<1x1024xf32>
    %203 = arith.addf %199, %202 : vector<1x1024xf32>
    %204 = vector.extract_strided_slice %203 {offsets = [0, 0], sizes = [1, 256], strides = [1, 1]} : vector<1x1024xf32> to vector<1x256xf32>
    %cst_91 = arith.constant 5.000000e-01 : f32
    %205 = vector.broadcast %cst_91 : f32 to vector<1x256xf32>
    %206 = arith.mulf %205, %204 : vector<1x256xf32>
    %207 = math.tanh %206 : vector<1x256xf32>
    %cst_92 = arith.constant 5.000000e-01 : f32
    %208 = vector.broadcast %cst_92 : f32 to vector<1x256xf32>
    %209 = arith.mulf %208, %207 : vector<1x256xf32>
    %cst_93 = arith.constant 5.000000e-01 : f32
    %210 = vector.broadcast %cst_93 : f32 to vector<1x256xf32>
    %211 = arith.addf %209, %210 : vector<1x256xf32>
    %212 = vector.extract_strided_slice %203 {offsets = [0, 256], sizes = [1, 256], strides = [1, 1]} : vector<1x1024xf32> to vector<1x256xf32>
    %cst_94 = arith.constant 5.000000e-01 : f32
    %213 = vector.broadcast %cst_94 : f32 to vector<1x256xf32>
    %214 = arith.mulf %213, %212 : vector<1x256xf32>
    %215 = math.tanh %214 : vector<1x256xf32>
    %cst_95 = arith.constant 5.000000e-01 : f32
    %216 = vector.broadcast %cst_95 : f32 to vector<1x256xf32>
    %217 = arith.mulf %216, %215 : vector<1x256xf32>
    %cst_96 = arith.constant 5.000000e-01 : f32
    %218 = vector.broadcast %cst_96 : f32 to vector<1x256xf32>
    %219 = arith.addf %217, %218 : vector<1x256xf32>
    %220 = vector.extract_strided_slice %203 {offsets = [0, 512], sizes = [1, 256], strides = [1, 1]} : vector<1x1024xf32> to vector<1x256xf32>
    %221 = math.tanh %220 : vector<1x256xf32>
    %222 = vector.extract_strided_slice %203 {offsets = [0, 768], sizes = [1, 256], strides = [1, 1]} : vector<1x1024xf32> to vector<1x256xf32>
    %cst_97 = arith.constant 5.000000e-01 : f32
    %223 = vector.broadcast %cst_97 : f32 to vector<1x256xf32>
    %224 = arith.mulf %223, %222 : vector<1x256xf32>
    %225 = math.tanh %224 : vector<1x256xf32>
    %cst_98 = arith.constant 5.000000e-01 : f32
    %226 = vector.broadcast %cst_98 : f32 to vector<1x256xf32>
    %227 = arith.mulf %226, %225 : vector<1x256xf32>
    %cst_99 = arith.constant 5.000000e-01 : f32
    %228 = vector.broadcast %cst_99 : f32 to vector<1x256xf32>
    %229 = arith.addf %227, %228 : vector<1x256xf32>
    %230 = arith.mulf %219, %194 : vector<1x256xf32>
    %231 = arith.mulf %211, %221 : vector<1x256xf32>
    %232 = arith.addf %230, %231 : vector<1x256xf32>
    %233 = math.tanh %232 : vector<1x256xf32>
    %234 = arith.mulf %229, %233 : vector<1x256xf32>
    %235 = arith.truncf %234 : vector<1x256xf32> to vector<1x256xbf16>
    %c5_100 = arith.constant 5 : index
    %c0_101 = arith.constant 0 : index
    %236 = vector.load %arg6[%c5_100, %c0_101] : memref<8x256xbf16, #tpu.memory_space<vmem>>, vector<1x256xbf16>
    tpu.vector_store %arg6[%c5_100, %c0_101], %235 {strides = array<i32>} : memref<8x256xbf16, #tpu.memory_space<vmem>>, vector<1x256xbf16>,
    %c6 = arith.constant 6 : index
    %c0_102 = arith.constant 0 : index
    %237 = vector.load %arg7[%c6, %c0_102] : memref<8x1024xf32, #tpu.memory_space<vmem>>, vector<1x1024xf32>
    %238 = arith.truncf %234 : vector<1x256xf32> to vector<1x256xbf16>
    %c0_103 = arith.constant 0 : index
    %c0_104 = arith.constant 0 : index
    %239 = vector.load %arg4[%c0_103, %c0_104] : memref<256x1024xbf16, #tpu.memory_space<vmem>>, vector<256x1024xbf16>
    %cst_105 = arith.constant dense<0.000000e+00> : vector<1x1024xf32>
    %240 = tpu.matmul %238, %239, %cst_105 {dimension_numbers = #tpu.dot_dimension_numbers<[1], [0], [0], [1], [0, 0, 1, 1], [], []>} : vector<1x256xbf16>, vector<256x1024xbf16>, vector<1x1024xf32> -> vector<1x1024xf32>
    %241 = arith.addf %237, %240 : vector<1x1024xf32>
    %242 = vector.extract_strided_slice %241 {offsets = [0, 0], sizes = [1, 256], strides = [1, 1]} : vector<1x1024xf32> to vector<1x256xf32>
    %cst_106 = arith.constant 5.000000e-01 : f32
    %243 = vector.broadcast %cst_106 : f32 to vector<1x256xf32>
    %244 = arith.mulf %243, %242 : vector<1x256xf32>
    %245 = math.tanh %244 : vector<1x256xf32>
    %cst_107 = arith.constant 5.000000e-01 : f32
    %246 = vector.broadcast %cst_107 : f32 to vector<1x256xf32>
    %247 = arith.mulf %246, %245 : vector<1x256xf32>
    %cst_108 = arith.constant 5.000000e-01 : f32
    %248 = vector.broadcast %cst_108 : f32 to vector<1x256xf32>
    %249 = arith.addf %247, %248 : vector<1x256xf32>
    %250 = vector.extract_strided_slice %241 {offsets = [0, 256], sizes = [1, 256], strides = [1, 1]} : vector<1x1024xf32> to vector<1x256xf32>
    %cst_109 = arith.constant 5.000000e-01 : f32
    %251 = vector.broadcast %cst_109 : f32 to vector<1x256xf32>
    %252 = arith.mulf %251, %250 : vector<1x256xf32>
    %253 = math.tanh %252 : vector<1x256xf32>
    %cst_110 = arith.constant 5.000000e-01 : f32
    %254 = vector.broadcast %cst_110 : f32 to vector<1x256xf32>
    %255 = arith.mulf %254, %253 : vector<1x256xf32>
    %cst_111 = arith.constant 5.000000e-01 : f32
    %256 = vector.broadcast %cst_111 : f32 to vector<1x256xf32>
    %257 = arith.addf %255, %256 : vector<1x256xf32>
    %258 = vector.extract_strided_slice %241 {offsets = [0, 512], sizes = [1, 256], strides = [1, 1]} : vector<1x1024xf32> to vector<1x256xf32>
    %259 = math.tanh %258 : vector<1x256xf32>
    %260 = vector.extract_strided_slice %241 {offsets = [0, 768], sizes = [1, 256], strides = [1, 1]} : vector<1x1024xf32> to vector<1x256xf32>
    %cst_112 = arith.constant 5.000000e-01 : f32
    %261 = vector.broadcast %cst_112 : f32 to vector<1x256xf32>
    %262 = arith.mulf %261, %260 : vector<1x256xf32>
    %263 = math.tanh %262 : vector<1x256xf32>
    %cst_113 = arith.constant 5.000000e-01 : f32
    %264 = vector.broadcast %cst_113 : f32 to vector<1x256xf32>
    %265 = arith.mulf %264, %263 : vector<1x256xf32>
    %cst_114 = arith.constant 5.000000e-01 : f32
    %266 = vector.broadcast %cst_114 : f32 to vector<1x256xf32>
    %267 = arith.addf %265, %266 : vector<1x256xf32>
    %268 = arith.mulf %257, %232 : vector<1x256xf32>
    %269 = arith.mulf %249, %259 : vector<1x256xf32>
    %270 = arith.addf %268, %269 : vector<1x256xf32>
    %271 = math.tanh %270 : vector<1x256xf32>
    %272 = arith.mulf %267, %271 : vector<1x256xf32>
    %273 = arith.truncf %272 : vector<1x256xf32> to vector<1x256xbf16>
    %c6_115 = arith.constant 6 : index
    %c0_116 = arith.constant 0 : index
    %274 = vector.load %arg6[%c6_115, %c0_116] : memref<8x256xbf16, #tpu.memory_space<vmem>>, vector<1x256xbf16>
    tpu.vector_store %arg6[%c6_115, %c0_116], %273 {strides = array<i32>} : memref<8x256xbf16, #tpu.memory_space<vmem>>, vector<1x256xbf16>,
    %c7 = arith.constant 7 : index
    %c0_117 = arith.constant 0 : index
    %275 = vector.load %arg7[%c7, %c0_117] : memref<8x1024xf32, #tpu.memory_space<vmem>>, vector<1x1024xf32>
    %276 = arith.truncf %272 : vector<1x256xf32> to vector<1x256xbf16>
    %c0_118 = arith.constant 0 : index
    %c0_119 = arith.constant 0 : index
    %277 = vector.load %arg4[%c0_118, %c0_119] : memref<256x1024xbf16, #tpu.memory_space<vmem>>, vector<256x1024xbf16>
    %cst_120 = arith.constant dense<0.000000e+00> : vector<1x1024xf32>
    %278 = tpu.matmul %276, %277, %cst_120 {dimension_numbers = #tpu.dot_dimension_numbers<[1], [0], [0], [1], [0, 0, 1, 1], [], []>} : vector<1x256xbf16>, vector<256x1024xbf16>, vector<1x1024xf32> -> vector<1x1024xf32>
    %279 = arith.addf %275, %278 : vector<1x1024xf32>
    %280 = vector.extract_strided_slice %279 {offsets = [0, 0], sizes = [1, 256], strides = [1, 1]} : vector<1x1024xf32> to vector<1x256xf32>
    %cst_121 = arith.constant 5.000000e-01 : f32
    %281 = vector.broadcast %cst_121 : f32 to vector<1x256xf32>
    %282 = arith.mulf %281, %280 : vector<1x256xf32>
    %283 = math.tanh %282 : vector<1x256xf32>
    %cst_122 = arith.constant 5.000000e-01 : f32
    %284 = vector.broadcast %cst_122 : f32 to vector<1x256xf32>
    %285 = arith.mulf %284, %283 : vector<1x256xf32>
    %cst_123 = arith.constant 5.000000e-01 : f32
    %286 = vector.broadcast %cst_123 : f32 to vector<1x256xf32>
    %287 = arith.addf %285, %286 : vector<1x256xf32>
    %288 = vector.extract_strided_slice %279 {offsets = [0, 256], sizes = [1, 256], strides = [1, 1]} : vector<1x1024xf32> to vector<1x256xf32>
    %cst_124 = arith.constant 5.000000e-01 : f32
    %289 = vector.broadcast %cst_124 : f32 to vector<1x256xf32>
    %290 = arith.mulf %289, %288 : vector<1x256xf32>
    %291 = math.tanh %290 : vector<1x256xf32>
    %cst_125 = arith.constant 5.000000e-01 : f32
    %292 = vector.broadcast %cst_125 : f32 to vector<1x256xf32>
    %293 = arith.mulf %292, %291 : vector<1x256xf32>
    %cst_126 = arith.constant 5.000000e-01 : f32
    %294 = vector.broadcast %cst_126 : f32 to vector<1x256xf32>
    %295 = arith.addf %293, %294 : vector<1x256xf32>
    %296 = vector.extract_strided_slice %279 {offsets = [0, 512], sizes = [1, 256], strides = [1, 1]} : vector<1x1024xf32> to vector<1x256xf32>
    %297 = math.tanh %296 : vector<1x256xf32>
    %298 = vector.extract_strided_slice %279 {offsets = [0, 768], sizes = [1, 256], strides = [1, 1]} : vector<1x1024xf32> to vector<1x256xf32>
    %cst_127 = arith.constant 5.000000e-01 : f32
    %299 = vector.broadcast %cst_127 : f32 to vector<1x256xf32>
    %300 = arith.mulf %299, %298 : vector<1x256xf32>
    %301 = math.tanh %300 : vector<1x256xf32>
    %cst_128 = arith.constant 5.000000e-01 : f32
    %302 = vector.broadcast %cst_128 : f32 to vector<1x256xf32>
    %303 = arith.mulf %302, %301 : vector<1x256xf32>
    %cst_129 = arith.constant 5.000000e-01 : f32
    %304 = vector.broadcast %cst_129 : f32 to vector<1x256xf32>
    %305 = arith.addf %303, %304 : vector<1x256xf32>
    %306 = arith.mulf %295, %270 : vector<1x256xf32>
    %307 = arith.mulf %287, %297 : vector<1x256xf32>
    %308 = arith.addf %306, %307 : vector<1x256xf32>
    %309 = math.tanh %308 : vector<1x256xf32>
    %310 = arith.mulf %305, %309 : vector<1x256xf32>
    %311 = arith.truncf %310 : vector<1x256xf32> to vector<1x256xbf16>
    %c7_130 = arith.constant 7 : index
    %c0_131 = arith.constant 0 : index
    %312 = vector.load %arg6[%c7_130, %c0_131] : memref<8x256xbf16, #tpu.memory_space<vmem>>, vector<1x256xbf16>
    tpu.vector_store %arg6[%c7_130, %c0_131], %311 {strides = array<i32>} : memref<8x256xbf16, #tpu.memory_space<vmem>>, vector<1x256xbf16>,
    return
  }
}

</mosaic_0001>

<llo_original>
// kernel: tpu_custom_call.1
$region0: #{tpu_custom_call.1}
  #allocation0 [shape = 'u32[]', space=smem, size = 0x4, offset = 0x4, fixed_abs, tag = 'smem constant byte address 0x4 - core index']
  #allocation1 [shape = 'u32[72,128]{1,0:T(1,128)}', space=vmem, size = 0x9000, scoped, tag = 'internal scratch']
  #allocation2 [shape = 'f32[8,1024]{1,0:T(8,128)}', space=vmem, size = 0x8000, scoped, tag = 'scratch operand']
  %s0 = inlined_call_operand.hbm [shape: bf16[8,128], index: 0, kind: input, shape index: {}]
  %s1 = inlined_call_operand.hbm [shape: f32[1,256], index: 1, kind: input, shape index: {}]
  %s2 = inlined_call_operand.hbm [shape: f32[1,256], index: 2, kind: input, shape index: {}]
  %s3 = inlined_call_operand.hbm [shape: bf16[128,1024], index: 3, kind: input, shape index: {}]
  %s4 = inlined_call_operand.hbm [shape: bf16[256,1024], index: 4, kind: input, shape index: {}]
  %s5 = inlined_call_operand.hbm [shape: f32[1,1024], index: 5, kind: input, shape index: {}]
  %s6 = inlined_call_operand.hbm [shape: bf16[8,256], index: 6, kind: output, shape index: {}]
  %s7 = sld [smem:[#allocation0]]
  $region58: #{tpu_custom_call.1} parent=0
    _
  %s9 = ssub.s32 1, %s7
  %s10 = scalar_select 0, %s9, %s7
  $region1: #{tpu_custom_call.1} parent=0
    #allocation3 [shape = 'u8[2048]{0}', space=vmem, size = 0x800, scoped, tag = 'input window, operand 0, single buffered']
    #allocation4 [shape = 's32[1]{0}', space=sflag, size = 0x4, scoped, tag = 'scoped memory for tpu_custom_call.1']
    #allocation5 [shape = 's32[1]{0}', space=sflag, size = 0x4, scoped, tag = 'scoped memory for tpu_custom_call.1']
    #allocation6 [shape = 'u8[1024]{0}', space=vmem, size = 0x400, scoped, tag = 'input window, operand 1, single buffered']
    #allocation7 [shape = 's32[1]{0}', space=sflag, size = 0x4, scoped, tag = 'scoped memory for tpu_custom_call.1']
    #allocation8 [shape = 'u8[1024]{0}', space=vmem, size = 0x400, scoped, tag = 'input window, operand 2, single buffered']
    #allocation9 [shape = 'u8[262144]{0}', space=vmem, size = 0x40000, scoped, tag = 'input window, operand 3, single buffered']
    #allocation10 [shape = 's32[1]{0}', space=sflag, size = 0x4, scoped, tag = 'scoped memory for tpu_custom_call.1']
    #allocation11 [shape = 'u8[524288]{0}', space=vmem, size = 0x80000, scoped, tag = 'input window, operand 4, single buffered']
    #allocation12 [shape = 'u8[4096]{0}', space=vmem, size = 0x1000, scoped, tag = 'input window, operand 5, single buffered']
    #allocation13 [shape = 's32[1]{0}', space=sflag, size = 0x4, scoped, tag = 'scoped memory for tpu_custom_call.1']
    #allocation14 [shape = 'u8[4096]{0}', space=vmem, size = 0x1000, scoped, tag = 'output window, operand 0, single buffered']
    %11 = vsyncpa [#allocation4], 0
    %12 = vsyncpa [#allocation7], 0
    %13 = vsyncpa [#allocation10], 0
    %14 = vsyncpa [#allocation13], 0
    %15 = vsyncpa [#allocation5], 0
    // Predicated region
    $region2: #{tpu_custom_call.1} parent=1 // pred_check
      _
    $region3: #{tpu_custom_call.1} parent=1 // pred_check_branch
      %17 = sbr.rel (0) target = $region5
    $region4: #{tpu_custom_call.1} parent=1 // pred_region
      %19 = vsyncadd [#allocation4], 0
      %s21 = sshll.u32 %s0, 4
      %s22 = int_to_ptr.hbm [resolvable:$true] %s21
      %s23 = sshll.u32 [#allocation3], 4
      %s24 = int_to_ptr.vmem [resolvable:$true] %s23
      %26 = dma.hbm_to_vmem [thread:$0]  %s22, 64, %s24, [#allocation4]
    $region5: #{tpu_custom_call.1} parent=1 // pred_fallthru
      _
    // Predicated region
    $region6: #{tpu_custom_call.1} parent=1 // pred_check
      _
    $region7: #{tpu_custom_call.1} parent=1 // pred_check_branch
      %28 = sbr.rel (0) target = $region9
    $region8: #{tpu_custom_call.1} parent=1 // pred_region
      %30 = vsyncadd [#allocation7], 0
      %s32 = sshll.u32 %s1, 4
      %s33 = int_to_ptr.hbm [resolvable:$true] %s32
      %s34 = sshll.u32 [#allocation6], 4
      %s35 = int_to_ptr.vmem [resolvable:$true] %s34
      %37 = dma.hbm_to_vmem [thread:$0]  %s33, 32, %s35, [#allocation7]
    $region9: #{tpu_custom_call.1} parent=1 // pred_fallthru
      _
    // Predicated region
    $region10: #{tpu_custom_call.1} parent=1 // pred_check
      _
    $region11: #{tpu_custom_call.1} parent=1 // pred_check_branch
      %39 = sbr.rel (0) target = $region13
    $region12: #{tpu_custom_call.1} parent=1 // pred_region
      %41 = vsyncadd [#allocation7], 0
      %s43 = sshll.u32 %s2, 4
      %s44 = int_to_ptr.hbm [resolvable:$true] %s43
      %s45 = sshll.u32 [#allocation8], 4
      %s46 = int_to_ptr.vmem [resolvable:$true] %s45
      %48 = dma.hbm_to_vmem [thread:$0]  %s44, 32, %s46, [#allocation7]
    $region13: #{tpu_custom_call.1} parent=1 // pred_fallthru
      _
    // Predicated region
    $region14: #{tpu_custom_call.1} parent=1 // pred_check
      _
    $region15: #{tpu_custom_call.1} parent=1 // pred_check_branch
      %50 = sbr.rel (0) target = $region17
    $region16: #{tpu_custom_call.1} parent=1 // pred_region
      %52 = vsyncadd [#allocation10], 0
      %s53 = sshll.u32 %s3, 4
      %s54 = int_to_ptr.hbm [resolvable:$true] %s53
      %s55 = sshll.u32 [#allocation9], 4
      %s56 = int_to_ptr.vmem [resolvable:$true] %s55
      %61 = dma.hbm_to_vmem [thread:$0]  %s54, 8192, %s56, [#allocation10], 512, 512, 32
    $region17: #{tpu_custom_call.1} parent=1 // pred_fallthru
      _
    // Predicated region
    $region18: #{tpu_custom_call.1} parent=1 // pred_check
      _
    $region19: #{tpu_custom_call.1} parent=1 // pred_check_branch
      %63 = sbr.rel (0) target = $region21
    $region20: #{tpu_custom_call.1} parent=1 // pred_region
      %65 = vsyncadd [#allocation10], 0
      %s66 = sshll.u32 %s4, 4
      %s67 = int_to_ptr.hbm [resolvable:$true] %s66
      %s68 = sshll.u32 [#allocation11], 4
      %s69 = int_to_ptr.vmem [resolvable:$true] %s68
      %74 = dma.hbm_to_vmem [thread:$0]  %s67, 16384, %s69, [#allocation10], 512, 512, 32
    $region21: #{tpu_custom_call.1} parent=1 // pred_fallthru
      _
    // Predicated region
    $region22: #{tpu_custom_call.1} parent=1 // pred_check
      _
    $region23: #{tpu_custom_call.1} parent=1 // pred_check_branch
      %76 = sbr.rel (0) target = $region25
    $region24: #{tpu_custom_call.1} parent=1 // pred_region
      %78 = vsyncadd [#allocation13], 0
      %s80 = sshll.u32 %s5, 4
      %s81 = int_to_ptr.hbm [resolvable:$true] %s80
      %s82 = sshll.u32 [#allocation12], 4
      %s83 = int_to_ptr.vmem [resolvable:$true] %s82
      %85 = dma.hbm_to_vmem [thread:$0]  %s81, 128, %s83, [#allocation13]
    $region25: #{tpu_custom_call.1} parent=1 // pred_fallthru
      _
    // Predicated region
    $region26: #{tpu_custom_call.1} parent=1 // pred_check
      _
    $region27: #{tpu_custom_call.1} parent=1 // pred_check_branch
      %87 = sbr.rel (0) target = $region29
    $region28: #{tpu_custom_call.1} parent=1 // pred_region
      %89 = dma.done [#allocation4], 64
    $region29: #{tpu_custom_call.1} parent=1 // pred_fallthru
      _
    // Predicated region
    $region30: #{tpu_custom_call.1} parent=1 // pred_check
      _
    $region31: #{tpu_custom_call.1} parent=1 // pred_check_branch
      %91 = sbr.rel (0) target = $region33
    $region32: #{tpu_custom_call.1} parent=1 // pred_region
      %93 = dma.done [#allocation7], 32
    $region33: #{tpu_custom_call.1} parent=1 // pred_fallthru
      _
    // Predicated region
    $region34: #{tpu_custom_call.1} parent=1 // pred_check
      _
    $region35: #{tpu_custom_call.1} parent=1 // pred_check_branch
      %95 = sbr.rel (0) target = $region37
    $region36: #{tpu_custom_call.1} parent=1 // pred_region
      %97 = dma.done [#allocation7], 32
    $region37: #{tpu_custom_call.1} parent=1 // pred_fallthru
      _
    // Predicated region
    $region38: #{tpu_custom_call.1} parent=1 // pred_check
      _
    $region39: #{tpu_custom_call.1} parent=1 // pred_check_branch
      %99 = sbr.rel (0) target = $region41
    $region40: #{tpu_custom_call.1} parent=1 // pred_region
      %101 = dma.done [#allocation10], 8192
    $region41: #{tpu_custom_call.1} parent=1 // pred_fallthru
      _
    // Predicated region
    $region42: #{tpu_custom_call.1} parent=1 // pred_check
      _
    $region43: #{tpu_custom_call.1} parent=1 // pred_check_branch
      %103 = sbr.rel (0) target = $region45
    $region44: #{tpu_custom_call.1} parent=1 // pred_region
      %105 = dma.done [#allocation10], 16384
    $region45: #{tpu_custom_call.1} parent=1 // pred_fallthru
      _
    // Predicated region
    $region46: #{tpu_custom_call.1} parent=1 // pred_check
      _
    $region47: #{tpu_custom_call.1} parent=1 // pred_check_branch
      %107 = sbr.rel (0) target = $region49
    $region48: #{tpu_custom_call.1} parent=1 // pred_region
      %109 = dma.done [#allocation13], 128
    $region49: #{tpu_custom_call.1} parent=1 // pred_fallthru
      _
    %v110 = vld [vmem:[#allocation3] sm:$0xf]
    %v111 = vld [vmem:[#allocation9] sm:$0xff]
    %v112 = vld [vmem:[#allocation9 + $0x8] sm:$0xff]
    %v113 = vld [vmem:[#allocation9 + $0x10] sm:$0xff]
    %v114 = vld [vmem:[#allocation9 + $0x18] sm:$0xff]
    %v115 = vld [vmem:[#allocation9 + $0x20] sm:$0xff]
    %v116 = vld [vmem:[#allocation9 + $0x28] sm:$0xff]
    %v117 = vld [vmem:[#allocation9 + $0x30] sm:$0xff]
    %v118 = vld [vmem:[#allocation9 + $0x38] sm:$0xff]
    %v119 = vld [vmem:[#allocation9 + $0x40] sm:$0xff]
    %v120 = vld [vmem:[#allocation9 + $0x48] sm:$0xff]
    %v121 = vld [vmem:[#allocation9 + $0x50] sm:$0xff]
    %v122 = vld [vmem:[#allocation9 + $0x58] sm:$0xff]
    %v123 = vld [vmem:[#allocation9 + $0x60] sm:$0xff]
    %v124 = vld [vmem:[#allocation9 + $0x68] sm:$0xff]
    %v125 = vld [vmem:[#allocation9 + $0x70] sm:$0xff]
    %v126 = vld [vmem:[#allocation9 + $0x78] sm:$0xff]
    %v127 = vld [vmem:[#allocation9 + $0x80] sm:$0xff]
    %v128 = vld [vmem:[#allocation9 + $0x88] sm:$0xff]
    %v129 = vld [vmem:[#allocation9 + $0x90] sm:$0xff]
    %v130 = vld [vmem:[#allocation9 + $0x98] sm:$0xff]
    %v131 = vld [vmem:[#allocation9 + $0xa0] sm:$0xff]
    %v132 = vld [vmem:[#allocation9 + $0xa8] sm:$0xff]
    %v133 = vld [vmem:[#allocation9 + $0xb0] sm:$0xff]
    %v134 = vld [vmem:[#allocation9 + $0xb8] sm:$0xff]
    %v135 = vld [vmem:[#allocation9 + $0xc0] sm:$0xff]
    %v136 = vld [vmem:[#allocation9 + $0xc8] sm:$0xff]
    %v137 = vld [vmem:[#allocation9 + $0xd0] sm:$0xff]
    %v138 = vld [vmem:[#allocation9 + $0xd8] sm:$0xff]
    %v139 = vld [vmem:[#allocation9 + $0xe0] sm:$0xff]
    %v140 = vld [vmem:[#allocation9 + $0xe8] sm:$0xff]
    %v141 = vld [vmem:[#allocation9 + $0xf0] sm:$0xff]
    %v142 = vld [vmem:[#allocation9 + $0xf8] sm:$0xff]
    %v143 = vld [vmem:[#allocation9 + $0x100] sm:$0xff]
    %v144 = vld [vmem:[#allocation9 + $0x108] sm:$0xff]
    %v145 = vld [vmem:[#allocation9 + $0x110] sm:$0xff]
    %v146 = vld [vmem:[#allocation9 + $0x118] sm:$0xff]
    %v147 = vld [vmem:[#allocation9 + $0x120] sm:$0xff]
    %v148 = vld [vmem:[#allocation9 + $0x128] sm:$0xff]
    %v149 = vld [vmem:[#allocation9 + $0x130] sm:$0xff]
    %v150 = vld [vmem:[#allocation9 + $0x138] sm:$0xff]
    %v151 = vld [vmem:[#allocation9 + $0x140] sm:$0xff]
    %v152 = vld [vmem:[#allocation9 + $0x148] sm:$0xff]
    %v153 = vld [vmem:[#allocation9 + $0x150] sm:$0xff]
    %v154 = vld [vmem:[#allocation9 + $0x158] sm:$0xff]
    %v155 = vld [vmem:[#allocation9 + $0x160] sm:$0xff]
    %v156 = vld [vmem:[#allocation9 + $0x168] sm:$0xff]
    %v157 = vld [vmem:[#allocation9 + $0x170] sm:$0xff]
    %v158 = vld [vmem:[#allocation9 + $0x178] sm:$0xff]
    %v159 = vld [vmem:[#allocation9 + $0x180] sm:$0xff]
    %v160 = vld [vmem:[#allocation9 + $0x188] sm:$0xff]
    %v161 = vld [vmem:[#allocation9 + $0x190] sm:$0xff]
    %v162 = vld [vmem:[#allocation9 + $0x198] sm:$0xff]
    %v163 = vld [vmem:[#allocation9 + $0x1a0] sm:$0xff]
    %v164 = vld [vmem:[#allocation9 + $0x1a8] sm:$0xff]
    %v165 = vld [vmem:[#allocation9 + $0x1b0] sm:$0xff]
    %v166 = vld [vmem:[#allocation9 + $0x1b8] sm:$0xff]
    %v167 = vld [vmem:[#allocation9 + $0x1c0] sm:$0xff]
    %v168 = vld [vmem:[#allocation9 + $0x1c8] sm:$0xff]
    %v169 = vld [vmem:[#allocation9 + $0x1d0] sm:$0xff]
    %v170 = vld [vmem:[#allocation9 + $0x1d8] sm:$0xff]
    %v171 = vld [vmem:[#allocation9 + $0x1e0] sm:$0xff]
    %v172 = vld [vmem:[#allocation9 + $0x1e8] sm:$0xff]
    %v173 = vld [vmem:[#allocation9 + $0x1f0] sm:$0xff]
    %v174 = vld [vmem:[#allocation9 + $0x1f8] sm:$0xff]
    %v175 = vld [vmem:[#allocation12] sm:$0xff]
    %v177 = vperm.slane %v175, 0
    %v178 = vperm.slane %v175, 1
    %v179 = vperm.slane %v175, 2
    %v180 = vperm.slane %v175, 3
    %v181 = vperm.slane %v175, 4
    %v182 = vperm.slane %v175, 5
    %v183 = vperm.slane %v175, 6
    %v184 = vperm.slane %v175, 7
    %v257 = vunpack.c.l.b16 %v111
    %v258 = vunpack.c.h.b16 %v111
    %v259 = vunpack.c.l.b16 %v112
    %v260 = vunpack.c.h.b16 %v112
    %v261 = vunpack.c.l.b16 %v113
    %v262 = vunpack.c.h.b16 %v113
    %v263 = vunpack.c.l.b16 %v114
    %v264 = vunpack.c.h.b16 %v114
    %v265 = vunpack.c.l.b16 %v115
    %v266 = vunpack.c.h.b16 %v115
    %v267 = vunpack.c.l.b16 %v116
    %v268 = vunpack.c.h.b16 %v116
    %v269 = vunpack.c.l.b16 %v117
    %v270 = vunpack.c.h.b16 %v117
    %v271 = vunpack.c.l.b16 %v118
    %v272 = vunpack.c.h.b16 %v118
    %v273 = vunpack.c.l.b16 %v119
    %v274 = vunpack.c.h.b16 %v119
    %v275 = vunpack.c.l.b16 %v120
    %v276 = vunpack.c.h.b16 %v120
    %v277 = vunpack.c.l.b16 %v121
    %v278 = vunpack.c.h.b16 %v121
    %v279 = vunpack.c.l.b16 %v122
    %v280 = vunpack.c.h.b16 %v122
    %v281 = vunpack.c.l.b16 %v123
    %v282 = vunpack.c.h.b16 %v123
    %v283 = vunpack.c.l.b16 %v124
    %v284 = vunpack.c.h.b16 %v124
    %v285 = vunpack.c.l.b16 %v125
    %v286 = vunpack.c.h.b16 %v125
    %v287 = vunpack.c.l.b16 %v126
    %v288 = vunpack.c.h.b16 %v126
    %v289 = vunpack.c.l.b16 %v127
    %v290 = vunpack.c.h.b16 %v127
    %v291 = vunpack.c.l.b16 %v128
    %v292 = vunpack.c.h.b16 %v128
    %v293 = vunpack.c.l.b16 %v129
    %v294 = vunpack.c.h.b16 %v129
    %v295 = vunpack.c.l.b16 %v130
    %v296 = vunpack.c.h.b16 %v130
    %v297 = vunpack.c.l.b16 %v131
    %v298 = vunpack.c.h.b16 %v131
    %v299 = vunpack.c.l.b16 %v132
    %v300 = vunpack.c.h.b16 %v132
    %v301 = vunpack.c.l.b16 %v133
    %v302 = vunpack.c.h.b16 %v133
    %v303 = vunpack.c.l.b16 %v134
    %v304 = vunpack.c.h.b16 %v134
    %v305 = vunpack.c.l.b16 %v135
    %v306 = vunpack.c.h.b16 %v135
    %v307 = vunpack.c.l.b16 %v136
    %v308 = vunpack.c.h.b16 %v136
    %v309 = vunpack.c.l.b16 %v137
    %v310 = vunpack.c.h.b16 %v137
    %v311 = vunpack.c.l.b16 %v138
    %v312 = vunpack.c.h.b16 %v138
    %v313 = vunpack.c.l.b16 %v139
    %v314 = vunpack.c.h.b16 %v139
    %v315 = vunpack.c.l.b16 %v140
    %v316 = vunpack.c.h.b16 %v140
    %v317 = vunpack.c.l.b16 %v141
    %v318 = vunpack.c.h.b16 %v141
    %v319 = vunpack.c.l.b16 %v142
    %v320 = vunpack.c.h.b16 %v142
    %v321 = vunpack.c.l.b16 %v143
    %v322 = vunpack.c.h.b16 %v143
    %v323 = vunpack.c.l.b16 %v144
    %v324 = vunpack.c.h.b16 %v144
    %v325 = vunpack.c.l.b16 %v145
    %v326 = vunpack.c.h.b16 %v145
    %v327 = vunpack.c.l.b16 %v146
    %v328 = vunpack.c.h.b16 %v146
    %v329 = vunpack.c.l.b16 %v147
    %v330 = vunpack.c.h.b16 %v147
    %v331 = vunpack.c.l.b16 %v148
    %v332 = vunpack.c.h.b16 %v148
    %v333 = vunpack.c.l.b16 %v149
    %v334 = vunpack.c.h.b16 %v149
    %v335 = vunpack.c.l.b16 %v150
    %v336 = vunpack.c.h.b16 %v150
    %v337 = vunpack.c.l.b16 %v151
    %v338 = vunpack.c.h.b16 %v151
    %v339 = vunpack.c.l.b16 %v152
    %v340 = vunpack.c.h.b16 %v152
    %v341 = vunpack.c.l.b16 %v153
    %v342 = vunpack.c.h.b16 %v153
    %v343 = vunpack.c.l.b16 %v154
    %v344 = vunpack.c.h.b16 %v154
    %v345 = vunpack.c.l.b16 %v155
    %v346 = vunpack.c.h.b16 %v155
    %v347 = vunpack.c.l.b16 %v156
    %v348 = vunpack.c.h.b16 %v156
    %v349 = vunpack.c.l.b16 %v157
    %v350 = vunpack.c.h.b16 %v157
    %v351 = vunpack.c.l.b16 %v158
    %v352 = vunpack.c.h.b16 %v158
    %v353 = vunpack.c.l.b16 %v159
    %v354 = vunpack.c.h.b16 %v159
    %v355 = vunpack.c.l.b16 %v160
    %v356 = vunpack.c.h.b16 %v160
    %v357 = vunpack.c.l.b16 %v161
    %v358 = vunpack.c.h.b16 %v161
    %v359 = vunpack.c.l.b16 %v162
    %v360 = vunpack.c.h.b16 %v162
    %v361 = vunpack.c.l.b16 %v163
    %v362 = vunpack.c.h.b16 %v163
    %v363 = vunpack.c.l.b16 %v164
    %v364 = vunpack.c.h.b16 %v164
    %v365 = vunpack.c.l.b16 %v165
    %v366 = vunpack.c.h.b16 %v165
    %v367 = vunpack.c.l.b16 %v166
    %v368 = vunpack.c.h.b16 %v166
    %v369 = vunpack.c.l.b16 %v167
    %v370 = vunpack.c.h.b16 %v167
    %v371 = vunpack.c.l.b16 %v168
    %v372 = vunpack.c.h.b16 %v168
    %v373 = vunpack.c.l.b16 %v169
    %v374 = vunpack.c.h.b16 %v169
    %v375 = vunpack.c.l.b16 %v170
    %v376 = vunpack.c.h.b16 %v170
    %v377 = vunpack.c.l.b16 %v171
    %v378 = vunpack.c.h.b16 %v171
    %v379 = vunpack.c.l.b16 %v172
    %v380 = vunpack.c.h.b16 %v172
    %v381 = vunpack.c.l.b16 %v173
    %v382 = vunpack.c.h.b16 %v173
    %v383 = vunpack.c.l.b16 %v174
    %v384 = vunpack.c.h.b16 %v174
    %v385 = vpack.c.b16 %v265, %v257
    %v386 = vpack.c.b16 %v266, %v258
    %v387 = vpack.c.b16 %v267, %v259
    %v388 = vpack.c.b16 %v268, %v260
    %v389 = vpack.c.b16 %v269, %v261
    %v390 = vpack.c.b16 %v270, %v262
    %v391 = vpack.c.b16 %v271, %v263
    %v392 = vpack.c.b16 %v272, %v264
    %v393 = vpack.c.b16 %v281, %v273
    %v394 = vpack.c.b16 %v282, %v274
    %v395 = vpack.c.b16 %v283, %v275
    %v396 = vpack.c.b16 %v284, %v276
    %v397 = vpack.c.b16 %v285, %v277
    %v398 = vpack.c.b16 %v286, %v278
    %v399 = vpack.c.b16 %v287, %v279
    %v400 = vpack.c.b16 %v288, %v280
    %v401 = vpack.c.b16 %v297, %v289
    %v402 = vpack.c.b16 %v298, %v290
    %v403 = vpack.c.b16 %v299, %v291
    %v404 = vpack.c.b16 %v300, %v292
    %v405 = vpack.c.b16 %v301, %v293
    %v406 = vpack.c.b16 %v302, %v294
    %v407 = vpack.c.b16 %v303, %v295
    %v408 = vpack.c.b16 %v304, %v296
    %v409 = vpack.c.b16 %v313, %v305
    %v410 = vpack.c.b16 %v314, %v306
    %v411 = vpack.c.b16 %v315, %v307
    %v412 = vpack.c.b16 %v316, %v308
    %v413 = vpack.c.b16 %v317, %v309
    %v414 = vpack.c.b16 %v318, %v310
    %v415 = vpack.c.b16 %v319, %v311
    %v416 = vpack.c.b16 %v320, %v312
    %v417 = vpack.c.b16 %v329, %v321
    %v418 = vpack.c.b16 %v330, %v322
    %v419 = vpack.c.b16 %v331, %v323
    %v420 = vpack.c.b16 %v332, %v324
    %v421 = vpack.c.b16 %v333, %v325
    %v422 = vpack.c.b16 %v334, %v326
    %v423 = vpack.c.b16 %v335, %v327
    %v424 = vpack.c.b16 %v336, %v328
    %v425 = vpack.c.b16 %v345, %v337
    %v426 = vpack.c.b16 %v346, %v338
    %v427 = vpack.c.b16 %v347, %v339
    %v428 = vpack.c.b16 %v348, %v340
    %v429 = vpack.c.b16 %v349, %v341
    %v430 = vpack.c.b16 %v350, %v342
    %v431 = vpack.c.b16 %v351, %v343
    %v432 = vpack.c.b16 %v352, %v344
    %v433 = vpack.c.b16 %v361, %v353
    %v434 = vpack.c.b16 %v362, %v354
    %v435 = vpack.c.b16 %v363, %v355
    %v436 = vpack.c.b16 %v364, %v356
    %v437 = vpack.c.b16 %v365, %v357
    %v438 = vpack.c.b16 %v366, %v358
    %v439 = vpack.c.b16 %v367, %v359
    %v440 = vpack.c.b16 %v368, %v360
    %v441 = vpack.c.b16 %v377, %v369
    %v442 = vpack.c.b16 %v378, %v370
    %v443 = vpack.c.b16 %v379, %v371
    %v444 = vpack.c.b16 %v380, %v372
    %v445 = vpack.c.b16 %v381, %v373
    %v446 = vpack.c.b16 %v382, %v374
    %v447 = vpack.c.b16 %v383, %v375
    %v448 = vpack.c.b16 %v384, %v376
    %513 = vmatpush.bf16.msra.mxu0 %v441
    %514 = vmatpush.bf16.msra.mxu0 %v433
    %515 = vmatpush.bf16.msra.mxu0 %v425
    %516 = vmatpush.bf16.msra.mxu0 %v417
    %517 = vmatpush.bf16.msra.mxu0 %v409
    %518 = vmatpush.bf16.msra.mxu0 %v401
    %519 = vmatpush.bf16.msra.mxu0 %v393
    %520 = vmatpush.bf16.msra.mxu0 %v385
    %521 = vmatmul.bf16.gmra.mxu0 %v110
    %v522 = vpop.f32.mrf.mxu0
    %v523 = vadd.f32 %v177, %v522
    %v524 = vpop.f32.mrf.mxu0
    %525 = vdwg.mxu0
    %526 = vmatpush.bf16.msra.mxu0 %v442
    %527 = vmatpush.bf16.msra.mxu0 %v434
    %528 = vmatpush.bf16.msra.mxu0 %v426
    %529 = vmatpush.bf16.msra.mxu0 %v418
    %530 = vmatpush.bf16.msra.mxu0 %v410
    %531 = vmatpush.bf16.msra.mxu0 %v402
    %532 = vmatpush.bf16.msra.mxu0 %v394
    %533 = vmatpush.bf16.msra.mxu0 %v386
    %534 = vmatmul.bf16.gmra.mxu0 %v110
    %v535 = vpop.f32.mrf.mxu0
    %v536 = vadd.f32 %v178, %v535
    %v537 = vpop.f32.mrf.mxu0
    %538 = vdwg.mxu0
    %539 = vmatpush.bf16.msra.mxu0 %v443
    %540 = vmatpush.bf16.msra.mxu0 %v435
    %541 = vmatpush.bf16.msra.mxu0 %v427
    %542 = vmatpush.bf16.msra.mxu0 %v419
    %543 = vmatpush.bf16.msra.mxu0 %v411
    %544 = vmatpush.bf16.msra.mxu0 %v403
    %545 = vmatpush.bf16.msra.mxu0 %v395
    %546 = vmatpush.bf16.msra.mxu0 %v387
    %547 = vmatmul.bf16.gmra.mxu0 %v110
    %v548 = vpop.f32.mrf.mxu0
    %v549 = vadd.f32 %v179, %v548
    %v550 = vpop.f32.mrf.mxu0
    %551 = vdwg.mxu0
    %552 = vmatpush.bf16.msra.mxu0 %v444
    %553 = vmatpush.bf16.msra.mxu0 %v436
    %554 = vmatpush.bf16.msra.mxu0 %v428
    %555 = vmatpush.bf16.msra.mxu0 %v420
    %556 = vmatpush.bf16.msra.mxu0 %v412
    %557 = vmatpush.bf16.msra.mxu0 %v404
    %558 = vmatpush.bf16.msra.mxu0 %v396
    %559 = vmatpush.bf16.msra.mxu0 %v388
    %560 = vmatmul.bf16.gmra.mxu0 %v110
    %v561 = vpop.f32.mrf.mxu0
    %v562 = vadd.f32 %v180, %v561
    %v563 = vpop.f32.mrf.mxu0
    %564 = vdwg.mxu0
    %565 = vmatpush.bf16.msra.mxu0 %v445
    %566 = vmatpush.bf16.msra.mxu0 %v437
    %567 = vmatpush.bf16.msra.mxu0 %v429
    %568 = vmatpush.bf16.msra.mxu0 %v421
    %569 = vmatpush.bf16.msra.mxu0 %v413
    %570 = vmatpush.bf16.msra.mxu0 %v405
    %571 = vmatpush.bf16.msra.mxu0 %v397
    %572 = vmatpush.bf16.msra.mxu0 %v389
    %573 = vmatmul.bf16.gmra.mxu0 %v110
    %v574 = vpop.f32.mrf.mxu0
    %v575 = vadd.f32 %v181, %v574
    %v576 = vpop.f32.mrf.mxu0
    %577 = vdwg.mxu0
    %578 = vmatpush.bf16.msra.mxu0 %v446
    %579 = vmatpush.bf16.msra.mxu0 %v438
    %580 = vmatpush.bf16.msra.mxu0 %v430
    %581 = vmatpush.bf16.msra.mxu0 %v422
    %582 = vmatpush.bf16.msra.mxu0 %v414
    %583 = vmatpush.bf16.msra.mxu0 %v406
    %584 = vmatpush.bf16.msra.mxu0 %v398
    %585 = vmatpush.bf16.msra.mxu0 %v390
    %586 = vmatmul.bf16.gmra.mxu0 %v110
    %v587 = vpop.f32.mrf.mxu0
    %v588 = vadd.f32 %v182, %v587
    %v589 = vpop.f32.mrf.mxu0
    %590 = vdwg.mxu0
    %591 = vmatpush.bf16.msra.mxu0 %v447
    %592 = vmatpush.bf16.msra.mxu0 %v439
    %593 = vmatpush.bf16.msra.mxu0 %v431
    %594 = vmatpush.bf16.msra.mxu0 %v423
    %595 = vmatpush.bf16.msra.mxu0 %v415
    %596 = vmatpush.bf16.msra.mxu0 %v407
    %597 = vmatpush.bf16.msra.mxu0 %v399
    %598 = vmatpush.bf16.msra.mxu0 %v391
    %599 = vmatmul.bf16.gmra.mxu0 %v110
    %v600 = vpop.f32.mrf.mxu0
    %v601 = vadd.f32 %v183, %v600
    %v602 = vpop.f32.mrf.mxu0
    %603 = vdwg.mxu0
    %604 = vmatpush.bf16.msra.mxu0 %v448
    %605 = vmatpush.bf16.msra.mxu0 %v440
    %606 = vmatpush.bf16.msra.mxu0 %v432
    %607 = vmatpush.bf16.msra.mxu0 %v424
    %608 = vmatpush.bf16.msra.mxu0 %v416
    %609 = vmatpush.bf16.msra.mxu0 %v408
    %610 = vmatpush.bf16.msra.mxu0 %v400
    %611 = vmatpush.bf16.msra.mxu0 %v392
    %612 = vmatmul.bf16.gmra.mxu0 %v110
    %v613 = vpop.f32.mrf.mxu0
    %v614 = vadd.f32 %v184, %v613
    %v615 = vpop.f32.mrf.mxu0
    %616 = vdwg.mxu0
    %617 = vst [vmem:[#allocation2] sm:$0xff] %v523
    %618 = vst [vmem:[#allocation2 + $0x8] sm:$0xff] %v536
    %619 = vst [vmem:[#allocation2 + $0x10] sm:$0xff] %v549
    %620 = vst [vmem:[#allocation2 + $0x18] sm:$0xff] %v562
    %621 = vst [vmem:[#allocation2 + $0x20] sm:$0xff] %v575
    %622 = vst [vmem:[#allocation2 + $0x28] sm:$0xff] %v588
    %623 = vst [vmem:[#allocation2 + $0x30] sm:$0xff] %v601
    %624 = vst [vmem:[#allocation2 + $0x38] sm:$0xff] %v614
    %v625 = vld [vmem:[#allocation6] sm:$0x3]
    %v626 = vld [vmem:[#allocation8] sm:$0x3]
    %v627 = vld [vmem:[#allocation2] ss:$8 sm:$0xf]
    %v628 = vld [vmem:[#allocation2] ss:$8 sm:$0xf0]
    %v629 = vor.u32 %v627, %v628
    %v631 = vperm.slane %v625, 0
    %v632 = vperm.slane %v625, 1
    %v635 = vpack.c.bf16 %v631, %v631
    %v636 = vpack.c.bf16 %v632, %v632
    %v637 = vld [vmem:[#allocation11] sm:$0xff]
    %v638 = vld [vmem:[#allocation11 + $0x8] sm:$0xff]
    %v639 = vld [vmem:[#allocation11 + $0x10] sm:$0xff]
    %v640 = vld [vmem:[#allocation11 + $0x18] sm:$0xff]
    %v641 = vld [vmem:[#allocation11 + $0x20] sm:$0xff]
    %v642 = vld [vmem:[#allocation11 + $0x28] sm:$0xff]
    %v643 = vld [vmem:[#allocation11 + $0x30] sm:$0xff]
    %v644 = vld [vmem:[#allocation11 + $0x38] sm:$0xff]
    %v645 = vld [vmem:[#allocation11 + $0x40] sm:$0xff]
    %v646 = vld [vmem:[#allocation11 + $0x48] sm:$0xff]
    %v647 = vld [vmem:[#allocation11 + $0x50] sm:$0xff]
    %v648 = vld [vmem:[#allocation11 + $0x58] sm:$0xff]
    %v649 = vld [vmem:[#allocation11 + $0x60] sm:$0xff]
    %v650 = vld [vmem:[#allocation11 + $0x68] sm:$0xff]
    %v651 = vld [vmem:[#allocation11 + $0x70] sm:$0xff]
    %v652 = vld [vmem:[#allocation11 + $0x78] sm:$0xff]
    %v653 = vld [vmem:[#allocation11 + $0x80] sm:$0xff]
    %v654 = vld [vmem:[#allocation11 + $0x88] sm:$0xff]
    %v655 = vld [vmem:[#allocation11 + $0x90] sm:$0xff]
    %v656 = vld [vmem:[#allocation11 + $0x98] sm:$0xff]
    %v657 = vld [vmem:[#allocation11 + $0xa0] sm:$0xff]
    %v658 = vld [vmem:[#allocation11 + $0xa8] sm:$0xff]
    %v659 = vld [vmem:[#allocation11 + $0xb0] sm:$0xff]
    %v660 = vld [vmem:[#allocation11 + $0xb8] sm:$0xff]
    %v661 = vld [vmem:[#allocation11 + $0xc0] sm:$0xff]
    %v662 = vld [vmem:[#allocation11 + $0xc8] sm:$0xff]
    %v663 = vld [vmem:[#allocation11 + $0xd0] sm:$0xff]
    %v664 = vld [vmem:[#allocation11 + $0xd8] sm:$0xff]
    %v665 = vld [vmem:[#allocation11 + $0xe0] sm:$0xff]
    %v666 = vld [vmem:[#allocation11 + $0xe8] sm:$0xff]
    %v667 = vld [vmem:[#allocation11 + $0xf0] sm:$0xff]
    %v668 = vld [vmem:[#allocation11 + $0xf8] sm:$0xff]
    %v669 = vld [vmem:[#allocation11 + $0x100] sm:$0xff]
    %v670 = vld [vmem:[#allocation11 + $0x108] sm:$0xff]
    %v671 = vld [vmem:[#allocation11 + $0x110] sm:$0xff]
    %v672 = vld [vmem:[#allocation11 + $0x118] sm:$0xff]
    %v673 = vld [vmem:[#allocation11 + $0x120] sm:$0xff]
    %v674 = vld [vmem:[#allocation11 + $0x128] sm:$0xff]
    %v675 = vld [vmem:[#allocation11 + $0x130] sm:$0xff]
    %v676 = vld [vmem:[#allocation11 + $0x138] sm:$0xff]
    %v677 = vld [vmem:[#allocation11 + $0x140] sm:$0xff]
    %v678 = vld [vmem:[#allocation11 + $0x148] sm:$0xff]
    %v679 = vld [vmem:[#allocation11 + $0x150] sm:$0xff]
    %v680 = vld [vmem:[#allocation11 + $0x158] sm:$0xff]
    %v681 = vld [vmem:[#allocation11 + $0x160] sm:$0xff]
    %v682 = vld [vmem:[#allocation11 + $0x168] sm:$0xff]
    %v683 = vld [vmem:[#allocation11 + $0x170] sm:$0xff]
    %v684 = vld [vmem:[#allocation11 + $0x178] sm:$0xff]
    %v685 = vld [vmem:[#allocation11 + $0x180] sm:$0xff]
    %v686 = vld [vmem:[#allocation11 + $0x188] sm:$0xff]
    %v687 = vld [vmem:[#allocation11 + $0x190] sm:$0xff]
    %v688 = vld [vmem:[#allocation11 + $0x198] sm:$0xff]
    %v689 = vld [vmem:[#allocation11 + $0x1a0] sm:$0xff]
    %v690 = vld [vmem:[#allocation11 + $0x1a8] sm:$0xff]
    %v691 = vld [vmem:[#allocation11 + $0x1b0] sm:$0xff]
    %v692 = vld [vmem:[#allocation11 + $0x1b8] sm:$0xff]
    %v693 = vld [vmem:[#allocation11 + $0x1c0] sm:$0xff]
    %v694 = vld [vmem:[#allocation11 + $0x1c8] sm:$0xff]
    %v695 = vld [vmem:[#allocation11 + $0x1d0] sm:$0xff]
    %v696 = vld [vmem:[#allocation11 + $0x1d8] sm:$0xff]
    %v697 = vld [vmem:[#allocation11 + $0x1e0] sm:$0xff]
    %v698 = vld [vmem:[#allocation11 + $0x1e8] sm:$0xff]
    %v699 = vld [vmem:[#allocation11 + $0x1f0] sm:$0xff]
    %v700 = vld [vmem:[#allocation11 + $0x1f8] sm:$0xff]
    %v701 = vld [vmem:[#allocation11 + $0x200] sm:$0xff]
    %v702 = vld [vmem:[#allocation11 + $0x208] sm:$0xff]
    %v703 = vld [vmem:[#allocation11 + $0x210] sm:$0xff]
    %v704 = vld [vmem:[#allocation11 + $0x218] sm:$0xff]
    %v705 = vld [vmem:[#allocation11 + $0x220] sm:$0xff]
    %v706 = vld [vmem:[#allocation11 + $0x228] sm:$0xff]
    %v707 = vld [vmem:[#allocation11 + $0x230] sm:$0xff]
    %v708 = vld [vmem:[#allocation11 + $0x238] sm:$0xff]
    %v709 = vld [vmem:[#allocation11 + $0x240] sm:$0xff]
    %v710 = vld [vmem:[#allocation11 + $0x248] sm:$0xff]
    %v711 = vld [vmem:[#allocation11 + $0x250] sm:$0xff]
    %v712 = vld [vmem:[#allocation11 + $0x258] sm:$0xff]
    %v713 = vld [vmem:[#allocation11 + $0x260] sm:$0xff]
    %v714 = vld [vmem:[#allocation11 + $0x268] sm:$0xff]
    %v715 = vld [vmem:[#allocation11 + $0x270] sm:$0xff]
    %v716 = vld [vmem:[#allocation11 + $0x278] sm:$0xff]
    %v717 = vld [vmem:[#allocation11 + $0x280] sm:$0xff]
    %v718 = vld [vmem:[#allocation11 + $0x288] sm:$0xff]
    %v719 = vld [vmem:[#allocation11 + $0x290] sm:$0xff]
    %v720 = vld [vmem:[#allocation11 + $0x298] sm:$0xff]
    %v721 = vld [vmem:[#allocation11 + $0x2a0] sm:$0xff]
    %v722 = vld [vmem:[#allocation11 + $0x2a8] sm:$0xff]
    %v723 = vld [vmem:[#allocation11 + $0x2b0] sm:$0xff]
    %v724 = vld [vmem:[#allocation11 + $0x2b8] sm:$0xff]
    %v725 = vld [vmem:[#allocation11 + $0x2c0] sm:$0xff]
    %v726 = vld [vmem:[#allocation11 + $0x2c8] sm:$0xff]
    %v727 = vld [vmem:[#allocation11 + $0x2d0] sm:$0xff]
    %v728 = vld [vmem:[#allocation11 + $0x2d8] sm:$0xff]
    %v729 = vld [vmem:[#allocation11 + $0x2e0] sm:$0xff]
    %v730 = vld [vmem:[#allocation11 + $0x2e8] sm:$0xff]
    %v731 = vld [vmem:[#allocation11 + $0x2f0] sm:$0xff]
    %v732 = vld [vmem:[#allocation11 + $0x2f8] sm:$0xff]
    %v733 = vld [vmem:[#allocation11 + $0x300] sm:$0xff]
    %v734 = vld [vmem:[#allocation11 + $0x308] sm:$0xff]
    %v735 = vld [vmem:[#allocation11 + $0x310] sm:$0xff]
    %v736 = vld [vmem:[#allocation11 + $0x318] sm:$0xff]
    %v737 = vld [vmem:[#allocation11 + $0x320] sm:$0xff]
    %v738 = vld [vmem:[#allocation11 + $0x328] sm:$0xff]
    %v739 = vld [vmem:[#allocation11 + $0x330] sm:$0xff]
    %v740 = vld [vmem:[#allocation11 + $0x338] sm:$0xff]
    %v741 = vld [vmem:[#allocation11 + $0x340] sm:$0xff]
    %v742 = vld [vmem:[#allocation11 + $0x348] sm:$0xff]
    %v743 = vld [vmem:[#allocation11 + $0x350] sm:$0xff]
    %v744 = vld [vmem:[#allocation11 + $0x358] sm:$0xff]
    %v745 = vld [vmem:[#allocation11 + $0x360] sm:$0xff]
    %v746 = vld [vmem:[#allocation11 + $0x368] sm:$0xff]
    %v747 = vld [vmem:[#allocation11 + $0x370] sm:$0xff]
    %v748 = vld [vmem:[#allocation11 + $0x378] sm:$0xff]
    %v749 = vld [vmem:[#allocation11 + $0x380] sm:$0xff]
    %v750 = vld [vmem:[#allocation11 + $0x388] sm:$0xff]
    %v751 = vld [vmem:[#allocation11 + $0x390] sm:$0xff]
    %v752 = vld [vmem:[#allocation11 + $0x398] sm:$0xff]
    %v753 = vld [vmem:[#allocation11 + $0x3a0] sm:$0xff]
    %v754 = vld [vmem:[#allocation11 + $0x3a8] sm:$0xff]
    %v755 = vld [vmem:[#allocation11 + $0x3b0] sm:$0xff]
    %v756 = vld [vmem:[#allocation11 + $0x3b8] sm:$0xff]
    %v757 = vld [vmem:[#allocation11 + $0x3c0] sm:$0xff]
    %v758 = vld [vmem:[#allocation11 + $0x3c8] sm:$0xff]
    %v759 = vld [vmem:[#allocation11 + $0x3d0] sm:$0xff]
    %v760 = vld [vmem:[#allocation11 + $0x3d8] sm:$0xff]
    %v761 = vld [vmem:[#allocation11 + $0x3e0] sm:$0xff]
    %v762 = vld [vmem:[#allocation11 + $0x3e8] sm:$0xff]
    %v763 = vld [vmem:[#allocation11 + $0x3f0] sm:$0xff]
    %v764 = vld [vmem:[#allocation11 + $0x3f8] sm:$0xff]
    %v893 = vunpack.c.l.b16 %v637
    %v894 = vunpack.c.h.b16 %v637
    %v895 = vunpack.c.l.b16 %v638
    %v896 = vunpack.c.h.b16 %v638
    %v897 = vunpack.c.l.b16 %v639
    %v898 = vunpack.c.h.b16 %v639
    %v899 = vunpack.c.l.b16 %v640
    %v900 = vunpack.c.h.b16 %v640
    %v901 = vunpack.c.l.b16 %v641
    %v902 = vunpack.c.h.b16 %v641
    %v903 = vunpack.c.l.b16 %v642
    %v904 = vunpack.c.h.b16 %v642
    %v905 = vunpack.c.l.b16 %v643
    %v906 = vunpack.c.h.b16 %v643
    %v907 = vunpack.c.l.b16 %v644
    %v908 = vunpack.c.h.b16 %v644
    %v909 = vunpack.c.l.b16 %v645
    %v910 = vunpack.c.h.b16 %v645
    %v911 = vunpack.c.l.b16 %v646
    %v912 = vunpack.c.h.b16 %v646
    %v913 = vunpack.c.l.b16 %v647
    %v914 = vunpack.c.h.b16 %v647
    %v915 = vunpack.c.l.b16 %v648
    %v916 = vunpack.c.h.b16 %v648
    %v917 = vunpack.c.l.b16 %v649
    %v918 = vunpack.c.h.b16 %v649
    %v919 = vunpack.c.l.b16 %v650
    %v920 = vunpack.c.h.b16 %v650
    %v921 = vunpack.c.l.b16 %v651
    %v922 = vunpack.c.h.b16 %v651
    %v923 = vunpack.c.l.b16 %v652
    %v924 = vunpack.c.h.b16 %v652
    %v925 = vunpack.c.l.b16 %v653
    %v926 = vunpack.c.h.b16 %v653
    %v927 = vunpack.c.l.b16 %v654
    %v928 = vunpack.c.h.b16 %v654
    %v929 = vunpack.c.l.b16 %v655
    %v930 = vunpack.c.h.b16 %v655
    %v931 = vunpack.c.l.b16 %v656
    %v932 = vunpack.c.h.b16 %v656
    %v933 = vunpack.c.l.b16 %v657
    %v934 = vunpack.c.h.b16 %v657
    %v935 = vunpack.c.l.b16 %v658
    %v936 = vunpack.c.h.b16 %v658
    %v937 = vunpack.c.l.b16 %v659
    %v938 = vunpack.c.h.b16 %v659
    %v939 = vunpack.c.l.b16 %v660
    %v940 = vunpack.c.h.b16 %v660
    %v941 = vunpack.c.l.b16 %v661
    %v942 = vunpack.c.h.b16 %v661
    %v943 = vunpack.c.l.b16 %v662
    %v944 = vunpack.c.h.b16 %v662
    %v945 = vunpack.c.l.b16 %v663
    %v946 = vunpack.c.h.b16 %v663
    %v947 = vunpack.c.l.b16 %v664
    %v948 = vunpack.c.h.b16 %v664
    %v949 = vunpack.c.l.b16 %v665
    %v950 = vunpack.c.h.b16 %v665
    %v951 = vunpack.c.l.b16 %v666
    %v952 = vunpack.c.h.b16 %v666
    %v953 = vunpack.c.l.b16 %v667
    %v954 = vunpack.c.h.b16 %v667
    %v955 = vunpack.c.l.b16 %v668
    %v956 = vunpack.c.h.b16 %v668
    %v957 = vunpack.c.l.b16 %v669
    %v958 = vunpack.c.h.b16 %v669
    %v959 = vunpack.c.l.b16 %v670
    %v960 = vunpack.c.h.b16 %v670
    %v961 = vunpack.c.l.b16 %v671
    %v962 = vunpack.c.h.b16 %v671
    %v963 = vunpack.c.l.b16 %v672
    %v964 = vunpack.c.h.b16 %v672
    %v965 = vunpack.c.l.b16 %v673
    %v966 = vunpack.c.h.b16 %v673
    %v967 = vunpack.c.l.b16 %v674
    %v968 = vunpack.c.h.b16 %v674
    %v969 = vunpack.c.l.b16 %v675
    %v970 = vunpack.c.h.b16 %v675
    %v971 = vunpack.c.l.b16 %v676
    %v972 = vunpack.c.h.b16 %v676
    %v973 = vunpack.c.l.b16 %v677
    %v974 = vunpack.c.h.b16 %v677
    %v975 = vunpack.c.l.b16 %v678
    %v976 = vunpack.c.h.b16 %v678
    %v977 = vunpack.c.l.b16 %v679
    %v978 = vunpack.c.h.b16 %v679
    %v979 = vunpack.c.l.b16 %v680
    %v980 = vunpack.c.h.b16 %v680
    %v981 = vunpack.c.l.b16 %v681
    %v982 = vunpack.c.h.b16 %v681
    %v983 = vunpack.c.l.b16 %v682
    %v984 = vunpack.c.h.b16 %v682
    %v985 = vunpack.c.l.b16 %v683
    %v986 = vunpack.c.h.b16 %v683
    %v987 = vunpack.c.l.b16 %v684
    %v988 = vunpack.c.h.b16 %v684
    %v989 = vunpack.c.l.b16 %v685
    %v990 = vunpack.c.h.b16 %v685
    %v991 = vunpack.c.l.b16 %v686
    %v992 = vunpack.c.h.b16 %v686
    %v993 = vunpack.c.l.b16 %v687
    %v994 = vunpack.c.h.b16 %v687
    %v995 = vunpack.c.l.b16 %v688
    %v996 = vunpack.c.h.b16 %v688
    %v997 = vunpack.c.l.b16 %v689
    %v998 = vunpack.c.h.b16 %v689
    %v999 = vunpack.c.l.b16 %v690
    %v1000 = vunpack.c.h.b16 %v690
    %v1001 = vunpack.c.l.b16 %v691
    %v1002 = vunpack.c.h.b16 %v691
    %v1003 = vunpack.c.l.b16 %v692
    %v1004 = vunpack.c.h.b16 %v692
    %v1005 = vunpack.c.l.b16 %v693
    %v1006 = vunpack.c.h.b16 %v693
    %v1007 = vunpack.c.l.b16 %v694
    %v1008 = vunpack.c.h.b16 %v694
    %v1009 = vunpack.c.l.b16 %v695
    %v1010 = vunpack.c.h.b16 %v695
    %v1011 = vunpack.c.l.b16 %v696
    %v1012 = vunpack.c.h.b16 %v696
    %v1013 = vunpack.c.l.b16 %v697
    %v1014 = vunpack.c.h.b16 %v697
    %v1015 = vunpack.c.l.b16 %v698
    %v1016 = vunpack.c.h.b16 %v698
    %v1017 = vunpack.c.l.b16 %v699
    %v1018 = vunpack.c.h.b16 %v699
    %v1019 = vunpack.c.l.b16 %v700
    %v1020 = vunpack.c.h.b16 %v700
    %v1021 = vunpack.c.l.b16 %v701
    %v1022 = vunpack.c.h.b16 %v701
    %v1023 = vunpack.c.l.b16 %v702
    %v1024 = vunpack.c.h.b16 %v702
    %v1025 = vunpack.c.l.b16 %v703
    %v1026 = vunpack.c.h.b16 %v703
    %v1027 = vunpack.c.l.b16 %v704
    %v1028 = vunpack.c.h.b16 %v704
    %v1029 = vunpack.c.l.b16 %v705
    %v1030 = vunpack.c.h.b16 %v705
    %v1031 = vunpack.c.l.b16 %v706
    %v1032 = vunpack.c.h.b16 %v706
    %v1033 = vunpack.c.l.b16 %v707
    %v1034 = vunpack.c.h.b16 %v707
    %v1035 = vunpack.c.l.b16 %v708
    %v1036 = vunpack.c.h.b16 %v708
    %v1037 = vunpack.c.l.b16 %v709
    %v1038 = vunpack.c.h.b16 %v709
    %v1039 = vunpack.c.l.b16 %v710
    %v1040 = vunpack.c.h.b16 %v710
    %v1041 = vunpack.c.l.b16 %v711
    %v1042 = vunpack.c.h.b16 %v711
    %v1043 = vunpack.c.l.b16 %v712
    %v1044 = vunpack.c.h.b16 %v712
    %v1045 = vunpack.c.l.b16 %v713
    %v1046 = vunpack.c.h.b16 %v713
    %v1047 = vunpack.c.l.b16 %v714
    %v1048 = vunpack.c.h.b16 %v714
    %v1049 = vunpack.c.l.b16 %v715
    %v1050 = vunpack.c.h.b16 %v715
    %v1051 = vunpack.c.l.b16 %v716
    %v1052 = vunpack.c.h.b16 %v716
    %v1053 = vunpack.c.l.b16 %v717
    %v1054 = vunpack.c.h.b16 %v717
    %v1055 = vunpack.c.l.b16 %v718
    %v1056 = vunpack.c.h.b16 %v718
    %v1057 = vunpack.c.l.b16 %v719
    %v1058 = vunpack.c.h.b16 %v719
    %v1059 = vunpack.c.l.b16 %v720
    %v1060 = vunpack.c.h.b16 %v720
    %v1061 = vunpack.c.l.b16 %v721
    %v1062 = vunpack.c.h.b16 %v721
    %v1063 = vunpack.c.l.b16 %v722
    %v1064 = vunpack.c.h.b16 %v722
    %v1065 = vunpack.c.l.b16 %v723
    %v1066 = vunpack.c.h.b16 %v723
    %v1067 = vunpack.c.l.b16 %v724
    %v1068 = vunpack.c.h.b16 %v724
    %v1069 = vunpack.c.l.b16 %v725
    %v1070 = vunpack.c.h.b16 %v725
    %v1071 = vunpack.c.l.b16 %v726
    %v1072 = vunpack.c.h.b16 %v726
    %v1073 = vunpack.c.l.b16 %v727
    %v1074 = vunpack.c.h.b16 %v727
    %v1075 = vunpack.c.l.b16 %v728
    %v1076 = vunpack.c.h.b16 %v728
    %v1077 = vunpack.c.l.b16 %v729
    %v1078 = vunpack.c.h.b16 %v729
    %v1079 = vunpack.c.l.b16 %v730
    %v1080 = vunpack.c.h.b16 %v730
    %v1081 = vunpack.c.l.b16 %v731
    %v1082 = vunpack.c.h.b16 %v731
    %v1083 = vunpack.c.l.b16 %v732
    %v1084 = vunpack.c.h.b16 %v732
    %v1085 = vunpack.c.l.b16 %v733
    %v1086 = vunpack.c.h.b16 %v733
    %v1087 = vunpack.c.l.b16 %v734
    %v1088 = vunpack.c.h.b16 %v734
    %v1089 = vunpack.c.l.b16 %v735
    %v1090 = vunpack.c.h.b16 %v735
    %v1091 = vunpack.c.l.b16 %v736
    %v1092 = vunpack.c.h.b16 %v736
    %v1093 = vunpack.c.l.b16 %v737
    %v1094 = vunpack.c.h.b16 %v737
    %v1095 = vunpack.c.l.b16 %v738
    %v1096 = vunpack.c.h.b16 %v738
    %v1097 = vunpack.c.l.b16 %v739
    %v1098 = vunpack.c.h.b16 %v739
    %v1099 = vunpack.c.l.b16 %v740
    %v1100 = vunpack.c.h.b16 %v740
    %v1101 = vunpack.c.l.b16 %v741
    %v1102 = vunpack.c.h.b16 %v741
    %v1103 = vunpack.c.l.b16 %v742
    %v1104 = vunpack.c.h.b16 %v742
    %v1105 = vunpack.c.l.b16 %v743
    %v1106 = vunpack.c.h.b16 %v743
    %v1107 = vunpack.c.l.b16 %v744
    %v1108 = vunpack.c.h.b16 %v744
    %v1109 = vunpack.c.l.b16 %v745
    %v1110 = vunpack.c.h.b16 %v745
    %v1111 = vunpack.c.l.b16 %v746
    %v1112 = vunpack.c.h.b16 %v746
    %v1113 = vunpack.c.l.b16 %v747
    %v1114 = vunpack.c.h.b16 %v747
    %v1115 = vunpack.c.l.b16 %v748
    %v1116 = vunpack.c.h.b16 %v748
    %v1117 = vunpack.c.l.b16 %v749
    %v1118 = vunpack.c.h.b16 %v749
    %v1119 = vunpack.c.l.b16 %v750
    %v1120 = vunpack.c.h.b16 %v750
    %v1121 = vunpack.c.l.b16 %v751
    %v1122 = vunpack.c.h.b16 %v751
    %v1123 = vunpack.c.l.b16 %v752
    %v1124 = vunpack.c.h.b16 %v752
    %v1125 = vunpack.c.l.b16 %v753
    %v1126 = vunpack.c.h.b16 %v753
    %v1127 = vunpack.c.l.b16 %v754
    %v1128 = vunpack.c.h.b16 %v754
    %v1129 = vunpack.c.l.b16 %v755
    %v1130 = vunpack.c.h.b16 %v755
    %v1131 = vunpack.c.l.b16 %v756
    %v1132 = vunpack.c.h.b16 %v756
    %v1133 = vunpack.c.l.b16 %v757
    %v1134 = vunpack.c.h.b16 %v757
    %v1135 = vunpack.c.l.b16 %v758
    %v1136 = vunpack.c.h.b16 %v758
    %v1137 = vunpack.c.l.b16 %v759
    %v1138 = vunpack.c.h.b16 %v759
    %v1139 = vunpack.c.l.b16 %v760
    %v1140 = vunpack.c.h.b16 %v760
    %v1141 = vunpack.c.l.b16 %v761
    %v1142 = vunpack.c.h.b16 %v761
    %v1143 = vunpack.c.l.b16 %v762
    %v1144 = vunpack.c.h.b16 %v762
    %v1145 = vunpack.c.l.b16 %v763
    %v1146 = vunpack.c.h.b16 %v763
    %v1147 = vunpack.c.l.b16 %v764
    %v1148 = vunpack.c.h.b16 %v764
    %v1149 = vpack.c.b16 %v901, %v893
    %v1150 = vpack.c.b16 %v902, %v894
    %v1151 = vpack.c.b16 %v903, %v895
    %v1152 = vpack.c.b16 %v904, %v896
    %v1153 = vpack.c.b16 %v905, %v897
    %v1154 = vpack.c.b16 %v906, %v898
    %v1155 = vpack.c.b16 %v907, %v899
    %v1156 = vpack.c.b16 %v908, %v900
    %v1157 = vpack.c.b16 %v917, %v909
    %v1158 = vpack.c.b16 %v918, %v910
    %v1159 = vpack.c.b16 %v919, %v911
    %v1160 = vpack.c.b16 %v920, %v912
    %v1161 = vpack.c.b16 %v921, %v913
    %v1162 = vpack.c.b16 %v922, %v914
    %v1163 = vpack.c.b16 %v923, %v915
    %v1164 = vpack.c.b16 %v924, %v916
    %v1165 = vpack.c.b16 %v933, %v925
    %v1166 = vpack.c.b16 %v934, %v926
    %v1167 = vpack.c.b16 %v935, %v927
    %v1168 = vpack.c.b16 %v936, %v928
    %v1169 = vpack.c.b16 %v937, %v929
    %v1170 = vpack.c.b16 %v938, %v930
    %v1171 = vpack.c.b16 %v939, %v931
    %v1172 = vpack.c.b16 %v940, %v932
    %v1173 = vpack.c.b16 %v949, %v941
    %v1174 = vpack.c.b16 %v950, %v942
    %v1175 = vpack.c.b16 %v951, %v943
    %v1176 = vpack.c.b16 %v952, %v944
    %v1177 = vpack.c.b16 %v953, %v945
    %v1178 = vpack.c.b16 %v954, %v946
    %v1179 = vpack.c.b16 %v955, %v947
    %v1180 = vpack.c.b16 %v956, %v948
    %v1181 = vpack.c.b16 %v965, %v957
    %v1182 = vpack.c.b16 %v966, %v958
    %v1183 = vpack.c.b16 %v967, %v959
    %v1184 = vpack.c.b16 %v968, %v960
    %v1185 = vpack.c.b16 %v969, %v961
    %v1186 = vpack.c.b16 %v970, %v962
    %v1187 = vpack.c.b16 %v971, %v963
    %v1188 = vpack.c.b16 %v972, %v964
    %v1189 = vpack.c.b16 %v981, %v973
    %v1190 = vpack.c.b16 %v982, %v974
    %v1191 = vpack.c.b16 %v983, %v975
    %v1192 = vpack.c.b16 %v984, %v976
    %v1193 = vpack.c.b16 %v985, %v977
    %v1194 = vpack.c.b16 %v986, %v978
    %v1195 = vpack.c.b16 %v987, %v979
    %v1196 = vpack.c.b16 %v988, %v980
    %v1197 = vpack.c.b16 %v997, %v989
    %v1198 = vpack.c.b16 %v998, %v990
    %v1199 = vpack.c.b16 %v999, %v991
    %v1200 = vpack.c.b16 %v1000, %v992
    %v1201 = vpack.c.b16 %v1001, %v993
    %v1202 = vpack.c.b16 %v1002, %v994
    %v1203 = vpack.c.b16 %v1003, %v995
    %v1204 = vpack.c.b16 %v1004, %v996
    %v1205 = vpack.c.b16 %v1013, %v1005
    %v1206 = vpack.c.b16 %v1014, %v1006
    %v1207 = vpack.c.b16 %v1015, %v1007
    %v1208 = vpack.c.b16 %v1016, %v1008
    %v1209 = vpack.c.b16 %v1017, %v1009
    %v1210 = vpack.c.b16 %v1018, %v1010
    %v1211 = vpack.c.b16 %v1019, %v1011
    %v1212 = vpack.c.b16 %v1020, %v1012
    %v1213 = vpack.c.b16 %v1029, %v1021
    %v1214 = vpack.c.b16 %v1030, %v1022
    %v1215 = vpack.c.b16 %v1031, %v1023
    %v1216 = vpack.c.b16 %v1032, %v1024
    %v1217 = vpack.c.b16 %v1033, %v1025
    %v1218 = vpack.c.b16 %v1034, %v1026
    %v1219 = vpack.c.b16 %v1035, %v1027
    %v1220 = vpack.c.b16 %v1036, %v1028
    %v1221 = vpack.c.b16 %v1045, %v1037
    %v1222 = vpack.c.b16 %v1046, %v1038
    %v1223 = vpack.c.b16 %v1047, %v1039
    %v1224 = vpack.c.b16 %v1048, %v1040
    %v1225 = vpack.c.b16 %v1049, %v1041
    %v1226 = vpack.c.b16 %v1050, %v1042
    %v1227 = vpack.c.b16 %v1051, %v1043
    %v1228 = vpack.c.b16 %v1052, %v1044
    %v1229 = vpack.c.b16 %v1061, %v1053
    %v1230 = vpack.c.b16 %v1062, %v1054
    %v1231 = vpack.c.b16 %v1063, %v1055
    %v1232 = vpack.c.b16 %v1064, %v1056
    %v1233 = vpack.c.b16 %v1065, %v1057
    %v1234 = vpack.c.b16 %v1066, %v1058
    %v1235 = vpack.c.b16 %v1067, %v1059
    %v1236 = vpack.c.b16 %v1068, %v1060
    %v1237 = vpack.c.b16 %v1077, %v1069
    %v1238 = vpack.c.b16 %v1078, %v1070
    %v1239 = vpack.c.b16 %v1079, %v1071
    %v1240 = vpack.c.b16 %v1080, %v1072
    %v1241 = vpack.c.b16 %v1081, %v1073
    %v1242 = vpack.c.b16 %v1082, %v1074
    %v1243 = vpack.c.b16 %v1083, %v1075
    %v1244 = vpack.c.b16 %v1084, %v1076
    %v1245 = vpack.c.b16 %v1093, %v1085
    %v1246 = vpack.c.b16 %v1094, %v1086
    %v1247 = vpack.c.b16 %v1095, %v1087
    %v1248 = vpack.c.b16 %v1096, %v1088
    %v1249 = vpack.c.b16 %v1097, %v1089
    %v1250 = vpack.c.b16 %v1098, %v1090
    %v1251 = vpack.c.b16 %v1099, %v1091
    %v1252 = vpack.c.b16 %v1100, %v1092
    %v1253 = vpack.c.b16 %v1109, %v1101
    %v1254 = vpack.c.b16 %v1110, %v1102
    %v1255 = vpack.c.b16 %v1111, %v1103
    %v1256 = vpack.c.b16 %v1112, %v1104
    %v1257 = vpack.c.b16 %v1113, %v1105
    %v1258 = vpack.c.b16 %v1114, %v1106
    %v1259 = vpack.c.b16 %v1115, %v1107
    %v1260 = vpack.c.b16 %v1116, %v1108
    %v1261 = vpack.c.b16 %v1125, %v1117
    %v1262 = vpack.c.b16 %v1126, %v1118
    %v1263 = vpack.c.b16 %v1127, %v1119
    %v1264 = vpack.c.b16 %v1128, %v1120
    %v1265 = vpack.c.b16 %v1129, %v1121
    %v1266 = vpack.c.b16 %v1130, %v1122
    %v1267 = vpack.c.b16 %v1131, %v1123
    %v1268 = vpack.c.b16 %v1132, %v1124
    %v1269 = vpack.c.b16 %v1141, %v1133
    %v1270 = vpack.c.b16 %v1142, %v1134
    %v1271 = vpack.c.b16 %v1143, %v1135
    %v1272 = vpack.c.b16 %v1144, %v1136
    %v1273 = vpack.c.b16 %v1145, %v1137
    %v1274 = vpack.c.b16 %v1146, %v1138
    %v1275 = vpack.c.b16 %v1147, %v1139
    %v1276 = vpack.c.b16 %v1148, %v1140
    %1405 = vmatpush.bf16.msra.mxu0 %v1205
    %1406 = vmatpush.bf16.msra.mxu0 %v1197
    %1407 = vmatpush.bf16.msra.mxu0 %v1189
    %1408 = vmatpush.bf16.msra.mxu0 %v1181
    %1409 = vmatpush.bf16.msra.mxu0 %v1173
    %1410 = vmatpush.bf16.msra.mxu0 %v1165
    %1411 = vmatpush.bf16.msra.mxu0 %v1157
    %1412 = vmatpush.bf16.msra.mxu0 %v1149
    %1413 = vmatmul.bf16.gmra.mxu0 %v635
    %v1414 = vpop.f32.mrf.mxu0
    %v1415 = vadd.f32 0.0, %v1414
    %v1416 = vpop.f32.mrf.mxu0
    %1417 = vdwg.mxu0
    %1418 = vmatpush.bf16.msra.mxu0 %v1269
    %1419 = vmatpush.bf16.msra.mxu0 %v1261
    %1420 = vmatpush.bf16.msra.mxu0 %v1253
    %1421 = vmatpush.bf16.msra.mxu0 %v1245
    %1422 = vmatpush.bf16.msra.mxu0 %v1237
    %1423 = vmatpush.bf16.msra.mxu0 %v1229
    %1424 = vmatpush.bf16.msra.mxu0 %v1221
    %1425 = vmatpush.bf16.msra.mxu0 %v1213
    %1426 = vmatmul.bf16.gmra.mxu0 %v636
    %v1427 = vpop.f32.mrf.mxu0
    %v1428 = vadd.f32 %v1415, %v1427
    %v1429 = vpop.f32.mrf.mxu0
    %1430 = vdwg.mxu0
    %1431 = vmatpush.bf16.msra.mxu0 %v1206
    %1432 = vmatpush.bf16.msra.mxu0 %v1198
    %1433 = vmatpush.bf16.msra.mxu0 %v1190
    %1434 = vmatpush.bf16.msra.mxu0 %v1182
    %1435 = vmatpush.bf16.msra.mxu0 %v1174
    %1436 = vmatpush.bf16.msra.mxu0 %v1166
    %1437 = vmatpush.bf16.msra.mxu0 %v1158
    %1438 = vmatpush.bf16.msra.mxu0 %v1150
    %1439 = vmatmul.bf16.gmra.mxu0 %v635
    %v1440 = vpop.f32.mrf.mxu0
    %v1441 = vadd.f32 0.0, %v1440
    %v1442 = vpop.f32.mrf.mxu0
    %1443 = vdwg.mxu0
    %1444 = vmatpush.bf16.msra.mxu0 %v1270
    %1445 = vmatpush.bf16.msra.mxu0 %v1262
    %1446 = vmatpush.bf16.msra.mxu0 %v1254
    %1447 = vmatpush.bf16.msra.mxu0 %v1246
    %1448 = vmatpush.bf16.msra.mxu0 %v1238
    %1449 = vmatpush.bf16.msra.mxu0 %v1230
    %1450 = vmatpush.bf16.msra.mxu0 %v1222
    %1451 = vmatpush.bf16.msra.mxu0 %v1214
    %1452 = vmatmul.bf16.gmra.mxu0 %v636
    %v1453 = vpop.f32.mrf.mxu0
    %v1454 = vadd.f32 %v1441, %v1453
    %v1455 = vpop.f32.mrf.mxu0
    %1456 = vdwg.mxu0
    %1457 = vmatpush.bf16.msra.mxu0 %v1207
    %1458 = vmatpush.bf16.msra.mxu0 %v1199
    %1459 = vmatpush.bf16.msra.mxu0 %v1191
    %1460 = vmatpush.bf16.msra.mxu0 %v1183
    %1461 = vmatpush.bf16.msra.mxu0 %v1175
    %1462 = vmatpush.bf16.msra.mxu0 %v1167
    %1463 = vmatpush.bf16.msra.mxu0 %v1159
    %1464 = vmatpush.bf16.msra.mxu0 %v1151
    %1465 = vmatmul.bf16.gmra.mxu0 %v635
    %v1466 = vpop.f32.mrf.mxu0
    %v1467 = vadd.f32 0.0, %v1466
    %v1468 = vpop.f32.mrf.mxu0
    %1469 = vdwg.mxu0
    %1470 = vmatpush.bf16.msra.mxu0 %v1271
    %1471 = vmatpush.bf16.msra.mxu0 %v1263
    %1472 = vmatpush.bf16.msra.mxu0 %v1255
    %1473 = vmatpush.bf16.msra.mxu0 %v1247
    %1474 = vmatpush.bf16.msra.mxu0 %v1239
    %1475 = vmatpush.bf16.msra.mxu0 %v1231
    %1476 = vmatpush.bf16.msra.mxu0 %v1223
    %1477 = vmatpush.bf16.msra.mxu0 %v1215
    %1478 = vmatmul.bf16.gmra.mxu0 %v636
    %v1479 = vpop.f32.mrf.mxu0
    %v1480 = vadd.f32 %v1467, %v1479
    %v1481 = vpop.f32.mrf.mxu0
    %1482 = vdwg.mxu0
    %1483 = vmatpush.bf16.msra.mxu0 %v1208
    %1484 = vmatpush.bf16.msra.mxu0 %v1200
    %1485 = vmatpush.bf16.msra.mxu0 %v1192
    %1486 = vmatpush.bf16.msra.mxu0 %v1184
    %1487 = vmatpush.bf16.msra.mxu0 %v1176
    %1488 = vmatpush.bf16.msra.mxu0 %v1168
    %1489 = vmatpush.bf16.msra.mxu0 %v1160
    %1490 = vmatpush.bf16.msra.mxu0 %v1152
    %1491 = vmatmul.bf16.gmra.mxu0 %v635
    %v1492 = vpop.f32.mrf.mxu0
    %v1493 = vadd.f32 0.0, %v1492
    %v1494 = vpop.f32.mrf.mxu0
    %1495 = vdwg.mxu0
    %1496 = vmatpush.bf16.msra.mxu0 %v1272
    %1497 = vmatpush.bf16.msra.mxu0 %v1264
    %1498 = vmatpush.bf16.msra.mxu0 %v1256
    %1499 = vmatpush.bf16.msra.mxu0 %v1248
    %1500 = vmatpush.bf16.msra.mxu0 %v1240
    %1501 = vmatpush.bf16.msra.mxu0 %v1232
    %1502 = vmatpush.bf16.msra.mxu0 %v1224
    %1503 = vmatpush.bf16.msra.mxu0 %v1216
    %1504 = vmatmul.bf16.gmra.mxu0 %v636
    %v1505 = vpop.f32.mrf.mxu0
    %v1506 = vadd.f32 %v1493, %v1505
    %v1507 = vpop.f32.mrf.mxu0
    %1508 = vdwg.mxu0
    %1509 = vmatpush.bf16.msra.mxu0 %v1209
    %1510 = vmatpush.bf16.msra.mxu0 %v1201
    %1511 = vmatpush.bf16.msra.mxu0 %v1193
    %1512 = vmatpush.bf16.msra.mxu0 %v1185
    %1513 = vmatpush.bf16.msra.mxu0 %v1177
    %1514 = vmatpush.bf16.msra.mxu0 %v1169
    %1515 = vmatpush.bf16.msra.mxu0 %v1161
    %1516 = vmatpush.bf16.msra.mxu0 %v1153
    %1517 = vmatmul.bf16.gmra.mxu0 %v635
    %v1518 = vpop.f32.mrf.mxu0
    %v1519 = vadd.f32 0.0, %v1518
    %v1520 = vpop.f32.mrf.mxu0
    %1521 = vdwg.mxu0
    %1522 = vmatpush.bf16.msra.mxu0 %v1273
    %1523 = vmatpush.bf16.msra.mxu0 %v1265
    %1524 = vmatpush.bf16.msra.mxu0 %v1257
    %1525 = vmatpush.bf16.msra.mxu0 %v1249
    %1526 = vmatpush.bf16.msra.mxu0 %v1241
    %1527 = vmatpush.bf16.msra.mxu0 %v1233
    %1528 = vmatpush.bf16.msra.mxu0 %v1225
    %1529 = vmatpush.bf16.msra.mxu0 %v1217
    %1530 = vmatmul.bf16.gmra.mxu0 %v636
    %v1531 = vpop.f32.mrf.mxu0
    %v1532 = vadd.f32 %v1519, %v1531
    %v1533 = vpop.f32.mrf.mxu0
    %1534 = vdwg.mxu0
    %1535 = vmatpush.bf16.msra.mxu0 %v1210
    %1536 = vmatpush.bf16.msra.mxu0 %v1202
    %1537 = vmatpush.bf16.msra.mxu0 %v1194
    %1538 = vmatpush.bf16.msra.mxu0 %v1186
    %1539 = vmatpush.bf16.msra.mxu0 %v1178
    %1540 = vmatpush.bf16.msra.mxu0 %v1170
    %1541 = vmatpush.bf16.msra.mxu0 %v1162
    %1542 = vmatpush.bf16.msra.mxu0 %v1154
    %1543 = vmatmul.bf16.gmra.mxu0 %v635
    %v1544 = vpop.f32.mrf.mxu0
    %v1545 = vadd.f32 0.0, %v1544
    %v1546 = vpop.f32.mrf.mxu0
    %1547 = vdwg.mxu0
    %1548 = vmatpush.bf16.msra.mxu0 %v1274
    %1549 = vmatpush.bf16.msra.mxu0 %v1266
    %1550 = vmatpush.bf16.msra.mxu0 %v1258
    %1551 = vmatpush.bf16.msra.mxu0 %v1250
    %1552 = vmatpush.bf16.msra.mxu0 %v1242
    %1553 = vmatpush.bf16.msra.mxu0 %v1234
    %1554 = vmatpush.bf16.msra.mxu0 %v1226
    %1555 = vmatpush.bf16.msra.mxu0 %v1218
    %1556 = vmatmul.bf16.gmra.mxu0 %v636
    %v1557 = vpop.f32.mrf.mxu0
    %v1558 = vadd.f32 %v1545, %v1557
    %v1559 = vpop.f32.mrf.mxu0
    %1560 = vdwg.mxu0
    %1561 = vmatpush.bf16.msra.mxu0 %v1211
    %1562 = vmatpush.bf16.msra.mxu0 %v1203
    %1563 = vmatpush.bf16.msra.mxu0 %v1195
    %1564 = vmatpush.bf16.msra.mxu0 %v1187
    %1565 = vmatpush.bf16.msra.mxu0 %v1179
    %1566 = vmatpush.bf16.msra.mxu0 %v1171
    %1567 = vmatpush.bf16.msra.mxu0 %v1163
    %1568 = vmatpush.bf16.msra.mxu0 %v1155
    %1569 = vmatmul.bf16.gmra.mxu0 %v635
    %v1570 = vpop.f32.mrf.mxu0
    %v1571 = vadd.f32 0.0, %v1570
    %v1572 = vpop.f32.mrf.mxu0
    %1573 = vdwg.mxu0
    %1574 = vmatpush.bf16.msra.mxu0 %v1275
    %1575 = vmatpush.bf16.msra.mxu0 %v1267
    %1576 = vmatpush.bf16.msra.mxu0 %v1259
    %1577 = vmatpush.bf16.msra.mxu0 %v1251
    %1578 = vmatpush.bf16.msra.mxu0 %v1243
    %1579 = vmatpush.bf16.msra.mxu0 %v1235
    %1580 = vmatpush.bf16.msra.mxu0 %v1227
    %1581 = vmatpush.bf16.msra.mxu0 %v1219
    %1582 = vmatmul.bf16.gmra.mxu0 %v636
    %v1583 = vpop.f32.mrf.mxu0
    %v1584 = vadd.f32 %v1571, %v1583
    %v1585 = vpop.f32.mrf.mxu0
    %1586 = vdwg.mxu0
    %1587 = vmatpush.bf16.msra.mxu0 %v1212
    %1588 = vmatpush.bf16.msra.mxu0 %v1204
    %1589 = vmatpush.bf16.msra.mxu0 %v1196
    %1590 = vmatpush.bf16.msra.mxu0 %v1188
    %1591 = vmatpush.bf16.msra.mxu0 %v1180
    %1592 = vmatpush.bf16.msra.mxu0 %v1172
    %1593 = vmatpush.bf16.msra.mxu0 %v1164
    %1594 = vmatpush.bf16.msra.mxu0 %v1156
    %1595 = vmatmul.bf16.gmra.mxu0 %v635
    %v1596 = vpop.f32.mrf.mxu0
    %v1597 = vadd.f32 0.0, %v1596
    %v1598 = vpop.f32.mrf.mxu0
    %1599 = vdwg.mxu0
    %1600 = vmatpush.bf16.msra.mxu0 %v1276
    %1601 = vmatpush.bf16.msra.mxu0 %v1268
    %1602 = vmatpush.bf16.msra.mxu0 %v1260
    %1603 = vmatpush.bf16.msra.mxu0 %v1252
    %1604 = vmatpush.bf16.msra.mxu0 %v1244
    %1605 = vmatpush.bf16.msra.mxu0 %v1236
    %1606 = vmatpush.bf16.msra.mxu0 %v1228
    %1607 = vmatpush.bf16.msra.mxu0 %v1220
    %1608 = vmatmul.bf16.gmra.mxu0 %v636
    %v1609 = vpop.f32.mrf.mxu0
    %v1610 = vadd.f32 %v1597, %v1609
    %v1611 = vpop.f32.mrf.mxu0
    %1612 = vdwg.mxu0
    %v1621 = vrot.slane %v1454, 7
    %v1622 = vrot.slane %v1480, 6
    %v1623 = vrot.slane %v1506, 5
    %v1624 = vrot.slane %v1532, 4
    %v1625 = vrot.slane %v1558, 3
    %v1626 = vrot.slane %v1584, 2
    %v1627 = vrot.slane %v1610, 1
    %vm1628 = vcmask 1040384
    %v1629 = vsel %vm1628, %v1428, %v1621
    %vm1630 = vcmask 1042434
    %v1631 = vsel %vm1630, %v1622, %v1623
    %vm1632 = vcmask 1041408
    %v1633 = vsel %vm1632, %v1629, %v1631
    %vm1634 = vcmask 1044484
    %v1635 = vsel %vm1634, %v1624, %v1625
    %vm1636 = vcmask 1046534
    %v1637 = vsel %vm1636, %v1626, %v1627
    %vm1638 = vcmask 1045508
    %v1639 = vsel %vm1638, %v1635, %v1637
    %vm1640 = vcmask 1043456
    %v1641 = vsel %vm1640, %v1633, %v1639
    %v1643 = vadd.f32 %v629, %v1641
    %v1644 = vmul.f32 %v1643, 0.5
    %v1645 = vtanh.pop %v1644
    %v1646 = vmul.f32 %v1645, 0.5
    %v1647 = vadd.f32 %v1646, 0.5
    %v1649 = vrot.slane %v1643, 2
    %v1651 = vmul.f32 %v1649, 0.5
    %v1652 = vtanh.pop %v1651
    %v1653 = vmul.f32 %v1652, 0.5
    %v1654 = vadd.f32 %v1653, 0.5
    %v1655 = vrot.slane %v1643, 4
    %v1657 = vtanh.pop %v1655
    %v1658 = vrot.slane %v1643, 6
    %v1660 = vmul.f32 %v1658, 0.5
    %v1661 = vtanh.pop %v1660
    %v1662 = vmul.f32 %v1661, 0.5
    %v1663 = vadd.f32 %v1662, 0.5
    %v1664 = vmul.f32 %v1654, %v626
    %v1665 = vmul.f32 %v1647, %v1657
    %v1666 = vadd.f32 %v1664, %v1665
    %v1667 = vtanh.pop %v1666
    %v1668 = vmul.f32 %v1663, %v1667
    %v1670 = vperm.slane %v1668, 0
    %v1671 = vperm.slane %v1668, 1
    %v1674 = vpack.c.bf16 %v1671, %v1670
    %vm1675 = vcmask 1040384
    %vm1676 = vsmask.f32 256
    %vm1677 = vmand %vm1675, %vm1676
    %vm1678 = vcmask 1044484
    %vm1679 = vsmask.f32 4352
    %vm1680 = vmand %vm1678, %vm1679
    %vm1681 = vmor %vm1680, %vm1677
    %v1682 = vld [vmem:[#allocation14] sm:$0x11]
    %v1683 = vsel %vm1681, %v1674, %v1682
    %1684 = vst [vmem:[#allocation14] sm:$0x11] %v1683
    %s1685 = scalar_lea.vmem [#allocation2], 1
    %v1686 = vld [vmem:[%s1685] ss:$8 sm:$0xf]
    %v1687 = vld [vmem:[%s1685] ss:$8 sm:$0xf0]
    %v1688 = vor.u32 %v1686, %v1687
    %v1689 = vld [vmem:[#allocation11] sm:$0xff]
    %v1690 = vld [vmem:[#allocation11 + $0x8] sm:$0xff]
    %v1691 = vld [vmem:[#allocation11 + $0x10] sm:$0xff]
    %v1692 = vld [vmem:[#allocation11 + $0x18] sm:$0xff]
    %v1693 = vld [vmem:[#allocation11 + $0x20] sm:$0xff]
    %v1694 = vld [vmem:[#allocation11 + $0x28] sm:$0xff]
    %v1695 = vld [vmem:[#allocation11 + $0x30] sm:$0xff]
    %v1696 = vld [vmem:[#allocation11 + $0x38] sm:$0xff]
    %v1697 = vld [vmem:[#allocation11 + $0x40] sm:$0xff]
    %v1698 = vld [vmem:[#allocation11 + $0x48] sm:$0xff]
    %v1699 = vld [vmem:[#allocation11 + $0x50] sm:$0xff]
    %v1700 = vld [vmem:[#allocation11 + $0x58] sm:$0xff]
    %v1701 = vld [vmem:[#allocation11 + $0x60] sm:$0xff]
    %v1702 = vld [vmem:[#allocation11 + $0x68] sm:$0xff]
    %v1703 = vld [vmem:[#allocation11 + $0x70] sm:$0xff]
    %v1704 = vld [vmem:[#allocation11 + $0x78] sm:$0xff]
    %v1705 = vld [vmem:[#allocation11 + $0x80] sm:$0xff]
    %v1706 = vld [vmem:[#allocation11 + $0x88] sm:$0xff]
    %v1707 = vld [vmem:[#allocation11 + $0x90] sm:$0xff]
    %v1708 = vld [vmem:[#allocation11 + $0x98] sm:$0xff]
    %v1709 = vld [vmem:[#allocation11 + $0xa0] sm:$0xff]
    %v1710 = vld [vmem:[#allocation11 + $0xa8] sm:$0xff]
    %v1711 = vld [vmem:[#allocation11 + $0xb0] sm:$0xff]
    %v1712 = vld [vmem:[#allocation11 + $0xb8] sm:$0xff]
    %v1713 = vld [vmem:[#allocation11 + $0xc0] sm:$0xff]
    %v1714 = vld [vmem:[#allocation11 + $0xc8] sm:$0xff]
    %v1715 = vld [vmem:[#allocation11 + $0xd0] sm:$0xff]
    %v1716 = vld [vmem:[#allocation11 + $0xd8] sm:$0xff]
    %v1717 = vld [vmem:[#allocation11 + $0xe0] sm:$0xff]
    %v1718 = vld [vmem:[#allocation11 + $0xe8] sm:$0xff]
    %v1719 = vld [vmem:[#allocation11 + $0xf0] sm:$0xff]
    %v1720 = vld [vmem:[#allocation11 + $0xf8] sm:$0xff]
    %v1721 = vld [vmem:[#allocation11 + $0x100] sm:$0xff]
    %v1722 = vld [vmem:[#allocation11 + $0x108] sm:$0xff]
    %v1723 = vld [vmem:[#allocation11 + $0x110] sm:$0xff]
    %v1724 = vld [vmem:[#allocation11 + $0x118] sm:$0xff]
    %v1725 = vld [vmem:[#allocation11 + $0x120] sm:$0xff]
    %v1726 = vld [vmem:[#allocation11 + $0x128] sm:$0xff]
    %v1727 = vld [vmem:[#allocation11 + $0x130] sm:$0xff]
    %v1728 = vld [vmem:[#allocation11 + $0x138] sm:$0xff]
    %v1729 = vld [vmem:[#allocation11 + $0x140] sm:$0xff]
    %v1730 = vld [vmem:[#allocation11 + $0x148] sm:$0xff]
    %v1731 = vld [vmem:[#allocation11 + $0x150] sm:$0xff]
    %v1732 = vld [vmem:[#allocation11 + $0x158] sm:$0xff]
    %v1733 = vld [vmem:[#allocation11 + $0x160] sm:$0xff]
    %v1734 = vld [vmem:[#allocation11 + $0x168] sm:$0xff]
    %v1735 = vld [vmem:[#allocation11 + $0x170] sm:$0xff]
    %v1736 = vld [vmem:[#allocation11 + $0x178] sm:$0xff]
    %v1737 = vld [vmem:[#allocation11 + $0x180] sm:$0xff]
    %v1738 = vld [vmem:[#allocation11 + $0x188] sm:$0xff]
    %v1739 = vld [vmem:[#allocation11 + $0x190] sm:$0xff]
    %v1740 = vld [vmem:[#allocation11 + $0x198] sm:$0xff]
    %v1741 = vld [vmem:[#allocation11 + $0x1a0] sm:$0xff]
    %v1742 = vld [vmem:[#allocation11 + $0x1a8] sm:$0xff]
    %v1743 = vld [vmem:[#allocation11 + $0x1b0] sm:$0xff]
    %v1744 = vld [vmem:[#allocation11 + $0x1b8] sm:$0xff]
    %v1745 = vld [vmem:[#allocation11 + $0x1c0] sm:$0xff]
    %v1746 = vld [vmem:[#allocation11 + $0x1c8] sm:$0xff]
    %v1747 = vld [vmem:[#allocation11 + $0x1d0] sm:$0xff]
    %v1748 = vld [vmem:[#allocation11 + $0x1d8] sm:$0xff]
    %v1749 = vld [vmem:[#allocation11 + $0x1e0] sm:$0xff]
    %v1750 = vld [vmem:[#allocation11 + $0x1e8] sm:$0xff]
    %v1751 = vld [vmem:[#allocation11 + $0x1f0] sm:$0xff]
    %v1752 = vld [vmem:[#allocation11 + $0x1f8] sm:$0xff]
    %v1753 = vld [vmem:[#allocation11 + $0x200] sm:$0xff]
    %v1754 = vld [vmem:[#allocation11 + $0x208] sm:$0xff]
    %v1755 = vld [vmem:[#allocation11 + $0x210] sm:$0xff]
    %v1756 = vld [vmem:[#allocation11 + $0x218] sm:$0xff]
    %v1757 = vld [vmem:[#allocation11 + $0x220] sm:$0xff]
    %v1758 = vld [vmem:[#allocation11 + $0x228] sm:$0xff]
    %v1759 = vld [vmem:[#allocation11 + $0x230] sm:$0xff]
    %v1760 = vld [vmem:[#allocation11 + $0x238] sm:$0xff]
    %v1761 = vld [vmem:[#allocation11 + $0x240] sm:$0xff]
    %v1762 = vld [vmem:[#allocation11 + $0x248] sm:$0xff]
    %v1763 = vld [vmem:[#allocation11 + $0x250] sm:$0xff]
    %v1764 = vld [vmem:[#allocation11 + $0x258] sm:$0xff]
    %v1765 = vld [vmem:[#allocation11 + $0x260] sm:$0xff]
    %v1766 = vld [vmem:[#allocation11 + $0x268] sm:$0xff]
    %v1767 = vld [vmem:[#allocation11 + $0x270] sm:$0xff]
    %v1768 = vld [vmem:[#allocation11 + $0x278] sm:$0xff]
    %v1769 = vld [vmem:[#allocation11 + $0x280] sm:$0xff]
    %v1770 = vld [vmem:[#allocation11 + $0x288] sm:$0xff]
    %v1771 = vld [vmem:[#allocation11 + $0x290] sm:$0xff]
    %v1772 = vld [vmem:[#allocation11 + $0x298] sm:$0xff]
    %v1773 = vld [vmem:[#allocation11 + $0x2a0] sm:$0xff]
    %v1774 = vld [vmem:[#allocation11 + $0x2a8] sm:$0xff]
    %v1775 = vld [vmem:[#allocation11 + $0x2b0] sm:$0xff]
    %v1776 = vld [vmem:[#allocation11 + $0x2b8] sm:$0xff]
    %v1777 = vld [vmem:[#allocation11 + $0x2c0] sm:$0xff]
    %v1778 = vld [vmem:[#allocation11 + $0x2c8] sm:$0xff]
    %v1779 = vld [vmem:[#allocation11 + $0x2d0] sm:$0xff]
    %v1780 = vld [vmem:[#allocation11 + $0x2d8] sm:$0xff]
    %v1781 = vld [vmem:[#allocation11 + $0x2e0] sm:$0xff]
    %v1782 = vld [vmem:[#allocation11 + $0x2e8] sm:$0xff]
    %v1783 = vld [vmem:[#allocation11 + $0x2f0] sm:$0xff]
    %v1784 = vld [vmem:[#allocation11 + $0x2f8] sm:$0xff]
    %v1785 = vld [vmem:[#allocation11 + $0x300] sm:$0xff]
    %v1786 = vld [vmem:[#allocation11 + $0x308] sm:$0xff]
    %v1787 = vld [vmem:[#allocation11 + $0x310] sm:$0xff]
    %v1788 = vld [vmem:[#allocation11 + $0x318] sm:$0xff]
    %v1789 = vld [vmem:[#allocation11 + $0x320] sm:$0xff]
    %v1790 = vld [vmem:[#allocation11 + $0x328] sm:$0xff]
    %v1791 = vld [vmem:[#allocation11 + $0x330] sm:$0xff]
    %v1792 = vld [vmem:[#allocation11 + $0x338] sm:$0xff]
    %v1793 = vld [vmem:[#allocation11 + $0x340] sm:$0xff]
    %v1794 = vld [vmem:[#allocation11 + $0x348] sm:$0xff]
    %v1795 = vld [vmem:[#allocation11 + $0x350] sm:$0xff]
    %v1796 = vld [vmem:[#allocation11 + $0x358] sm:$0xff]
    %v1797 = vld [vmem:[#allocation11 + $0x360] sm:$0xff]
    %v1798 = vld [vmem:[#allocation11 + $0x368] sm:$0xff]
    %v1799 = vld [vmem:[#allocation11 + $0x370] sm:$0xff]
    %v1800 = vld [vmem:[#allocation11 + $0x378] sm:$0xff]
    %v1801 = vld [vmem:[#allocation11 + $0x380] sm:$0xff]
    %v1802 = vld [vmem:[#allocation11 + $0x388] sm:$0xff]
    %v1803 = vld [vmem:[#allocation11 + $0x390] sm:$0xff]
    %v1804 = vld [vmem:[#allocation11 + $0x398] sm:$0xff]
    %v1805 = vld [vmem:[#allocation11 + $0x3a0] sm:$0xff]
    %v1806 = vld [vmem:[#allocation11 + $0x3a8] sm:$0xff]
    %v1807 = vld [vmem:[#allocation11 + $0x3b0] sm:$0xff]
    %v1808 = vld [vmem:[#allocation11 + $0x3b8] sm:$0xff]
    %v1809 = vld [vmem:[#allocation11 + $0x3c0] sm:$0xff]
    %v1810 = vld [vmem:[#allocation11 + $0x3c8] sm:$0xff]
    %v1811 = vld [vmem:[#allocation11 + $0x3d0] sm:$0xff]
    %v1812 = vld [vmem:[#allocation11 + $0x3d8] sm:$0xff]
    %v1813 = vld [vmem:[#allocation11 + $0x3e0] sm:$0xff]
    %v1814 = vld [vmem:[#allocation11 + $0x3e8] sm:$0xff]
    %v1815 = vld [vmem:[#allocation11 + $0x3f0] sm:$0xff]
    %v1816 = vld [vmem:[#allocation11 + $0x3f8] sm:$0xff]
    %v1818 = vunpack.c.l.b16 %v1674
    %v1819 = vunpack.c.h.b16 %v1674
    %v1820 = vpack.c.b16 %v1818, %v1818
    %v1821 = vpack.c.b16 %v1819, %v1819
    %v1952 = vunpack.c.l.b16 %v1689
    %v1953 = vunpack.c.h.b16 %v1689
    %v1954 = vunpack.c.l.b16 %v1690
    %v1955 = vunpack.c.h.b16 %v1690
    %v1956 = vunpack.c.l.b16 %v1691
    %v1957 = vunpack.c.h.b16 %v1691
    %v1958 = vunpack.c.l.b16 %v1692
    %v1959 = vunpack.c.h.b16 %v1692
    %v1960 = vunpack.c.l.b16 %v1693
    %v1961 = vunpack.c.h.b16 %v1693
    %v1962 = vunpack.c.l.b16 %v1694
    %v1963 = vunpack.c.h.b16 %v1694
    %v1964 = vunpack.c.l.b16 %v1695
    %v1965 = vunpack.c.h.b16 %v1695
    %v1966 = vunpack.c.l.b16 %v1696
    %v1967 = vunpack.c.h.b16 %v1696
    %v1968 = vunpack.c.l.b16 %v1697
    %v1969 = vunpack.c.h.b16 %v1697
    %v1970 = vunpack.c.l.b16 %v1698
    %v1971 = vunpack.c.h.b16 %v1698
    %v1972 = vunpack.c.l.b16 %v1699
    %v1973 = vunpack.c.h.b16 %v1699
    %v1974 = vunpack.c.l.b16 %v1700
    %v1975 = vunpack.c.h.b16 %v1700
    %v1976 = vunpack.c.l.b16 %v1701
    %v1977 = vunpack.c.h.b16 %v1701
    %v1978 = vunpack.c.l.b16 %v1702
    %v1979 = vunpack.c.h.b16 %v1702
    %v1980 = vunpack.c.l.b16 %v1703
    %v1981 = vunpack.c.h.b16 %v1703
    %v1982 = vunpack.c.l.b16 %v1704
    %v1983 = vunpack.c.h.b16 %v1704
    %v1984 = vunpack.c.l.b16 %v1705
    %v1985 = vunpack.c.h.b16 %v1705
    %v1986 = vunpack.c.l.b16 %v1706
    %v1987 = vunpack.c.h.b16 %v1706
    %v1988 = vunpack.c.l.b16 %v1707
    %v1989 = vunpack.c.h.b16 %v1707
    %v1990 = vunpack.c.l.b16 %v1708
    %v1991 = vunpack.c.h.b16 %v1708
    %v1992 = vunpack.c.l.b16 %v1709
    %v1993 = vunpack.c.h.b16 %v1709
    %v1994 = vunpack.c.l.b16 %v1710
    %v1995 = vunpack.c.h.b16 %v1710
    %v1996 = vunpack.c.l.b16 %v1711
    %v1997 = vunpack.c.h.b16 %v1711
    %v1998 = vunpack.c.l.b16 %v1712
    %v1999 = vunpack.c.h.b16 %v1712
    %v2000 = vunpack.c.l.b16 %v1713
    %v2001 = vunpack.c.h.b16 %v1713
    %v2002 = vunpack.c.l.b16 %v1714
    %v2003 = vunpack.c.h.b16 %v1714
    %v2004 = vunpack.c.l.b16 %v1715
    %v2005 = vunpack.c.h.b16 %v1715
    %v2006 = vunpack.c.l.b16 %v1716
    %v2007 = vunpack.c.h.b16 %v1716
    %v2008 = vunpack.c.l.b16 %v1717
    %v2009 = vunpack.c.h.b16 %v1717
    %v2010 = vunpack.c.l.b16 %v1718
    %v2011 = vunpack.c.h.b16 %v1718
    %v2012 = vunpack.c.l.b16 %v1719
    %v2013 = vunpack.c.h.b16 %v1719
    %v2014 = vunpack.c.l.b16 %v1720
    %v2015 = vunpack.c.h.b16 %v1720
    %v2016 = vunpack.c.l.b16 %v1721
    %v2017 = vunpack.c.h.b16 %v1721
    %v2018 = vunpack.c.l.b16 %v1722
    %v2019 = vunpack.c.h.b16 %v1722
    %v2020 = vunpack.c.l.b16 %v1723
    %v2021 = vunpack.c.h.b16 %v1723
    %v2022 = vunpack.c.l.b16 %v1724
    %v2023 = vunpack.c.h.b16 %v1724
    %v2024 = vunpack.c.l.b16 %v1725
    %v2025 = vunpack.c.h.b16 %v1725
    %v2026 = vunpack.c.l.b16 %v1726
    %v2027 = vunpack.c.h.b16 %v1726
    %v2028 = vunpack.c.l.b16 %v1727
    %v2029 = vunpack.c.h.b16 %v1727
    %v2030 = vunpack.c.l.b16 %v1728
    %v2031 = vunpack.c.h.b16 %v1728
    %v2032 = vunpack.c.l.b16 %v1729
    %v2033 = vunpack.c.h.b16 %v1729
    %v2034 = vunpack.c.l.b16 %v1730
    %v2035 = vunpack.c.h.b16 %v1730
    %v2036 = vunpack.c.l.b16 %v1731
    %v2037 = vunpack.c.h.b16 %v1731
    %v2038 = vunpack.c.l.b16 %v1732
    %v2039 = vunpack.c.h.b16 %v1732
    %v2040 = vunpack.c.l.b16 %v1733
    %v2041 = vunpack.c.h.b16 %v1733
    %v2042 = vunpack.c.l.b16 %v1734
    %v2043 = vunpack.c.h.b16 %v1734
    %v2044 = vunpack.c.l.b16 %v1735
    %v2045 = vunpack.c.h.b16 %v1735
    %v2046 = vunpack.c.l.b16 %v1736
    %v2047 = vunpack.c.h.b16 %v1736
    %v2048 = vunpack.c.l.b16 %v1737
    %v2049 = vunpack.c.h.b16 %v1737
    %v2050 = vunpack.c.l.b16 %v1738
    %v2051 = vunpack.c.h.b16 %v1738
    %v2052 = vunpack.c.l.b16 %v1739
    %v2053 = vunpack.c.h.b16 %v1739
    %v2054 = vunpack.c.l.b16 %v1740
    %v2055 = vunpack.c.h.b16 %v1740
    %v2056 = vunpack.c.l.b16 %v1741
    %v2057 = vunpack.c.h.b16 %v1741
    %v2058 = vunpack.c.l.b16 %v1742
    %v2059 = vunpack.c.h.b16 %v1742
    %v2060 = vunpack.c.l.b16 %v1743
    %v2061 = vunpack.c.h.b16 %v1743
    %v2062 = vunpack.c.l.b16 %v1744
    %v2063 = vunpack.c.h.b16 %v1744
    %v2064 = vunpack.c.l.b16 %v1745
    %v2065 = vunpack.c.h.b16 %v1745
    %v2066 = vunpack.c.l.b16 %v1746
    %v2067 = vunpack.c.h.b16 %v1746
    %v2068 = vunpack.c.l.b16 %v1747
    %v2069 = vunpack.c.h.b16 %v1747
    %v2070 = vunpack.c.l.b16 %v1748
    %v2071 = vunpack.c.h.b16 %v1748
    %v2072 = vunpack.c.l.b16 %v1749
    %v2073 = vunpack.c.h.b16 %v1749
    %v2074 = vunpack.c.l.b16 %v1750
    %v2075 = vunpack.c.h.b16 %v1750
    %v2076 = vunpack.c.l.b16 %v1751
    %v2077 = vunpack.c.h.b16 %v1751
    %v2078 = vunpack.c.l.b16 %v1752
    %v2079 = vunpack.c.h.b16 %v1752
    %v2080 = vunpack.c.l.b16 %v1753
    %v2081 = vunpack.c.h.b16 %v1753
    %v2082 = vunpack.c.l.b16 %v1754
    %v2083 = vunpack.c.h.b16 %v1754
    %v2084 = vunpack.c.l.b16 %v1755
    %v2085 = vunpack.c.h.b16 %v1755
    %v2086 = vunpack.c.l.b16 %v1756
    %v2087 = vunpack.c.h.b16 %v1756
    %v2088 = vunpack.c.l.b16 %v1757
    %v2089 = vunpack.c.h.b16 %v1757
    %v2090 = vunpack.c.l.b16 %v1758
    %v2091 = vunpack.c.h.b16 %v1758
    %v2092 = vunpack.c.l.b16 %v1759
    %v2093 = vunpack.c.h.b16 %v1759
    %v2094 = vunpack.c.l.b16 %v1760
    %v2095 = vunpack.c.h.b16 %v1760
    %v2096 = vunpack.c.l.b16 %v1761
    %v2097 = vunpack.c.h.b16 %v1761
    %v2098 = vunpack.c.l.b16 %v1762
    %v2099 = vunpack.c.h.b16 %v1762
    %v2100 = vunpack.c.l.b16 %v1763
    %v2101 = vunpack.c.h.b16 %v1763
    %v2102 = vunpack.c.l.b16 %v1764
    %v2103 = vunpack.c.h.b16 %v1764
    %v2104 = vunpack.c.l.b16 %v1765
    %v2105 = vunpack.c.h.b16 %v1765
    %v2106 = vunpack.c.l.b16 %v1766
    %v2107 = vunpack.c.h.b16 %v1766
    %v2108 = vunpack.c.l.b16 %v1767
    %v2109 = vunpack.c.h.b16 %v1767
    %v2110 = vunpack.c.l.b16 %v1768
    %v2111 = vunpack.c.h.b16 %v1768
    %v2112 = vunpack.c.l.b16 %v1769
    %v2113 = vunpack.c.h.b16 %v1769
    %v2114 = vunpack.c.l.b16 %v1770
    %v2115 = vunpack.c.h.b16 %v1770
    %v2116 = vunpack.c.l.b16 %v1771
    %v2117 = vunpack.c.h.b16 %v1771
    %v2118 = vunpack.c.l.b16 %v1772
    %v2119 = vunpack.c.h.b16 %v1772
    %v2120 = vunpack.c.l.b16 %v1773
    %v2121 = vunpack.c.h.b16 %v1773
    %v2122 = vunpack.c.l.b16 %v1774
    %v2123 = vunpack.c.h.b16 %v1774
    %v2124 = vunpack.c.l.b16 %v1775
    %v2125 = vunpack.c.h.b16 %v1775
    %v2126 = vunpack.c.l.b16 %v1776
    %v2127 = vunpack.c.h.b16 %v1776
    %v2128 = vunpack.c.l.b16 %v1777
    %v2129 = vunpack.c.h.b16 %v1777
    %v2130 = vunpack.c.l.b16 %v1778
    %v2131 = vunpack.c.h.b16 %v1778
    %v2132 = vunpack.c.l.b16 %v1779
    %v2133 = vunpack.c.h.b16 %v1779
    %v2134 = vunpack.c.l.b16 %v1780
    %v2135 = vunpack.c.h.b16 %v1780
    %v2136 = vunpack.c.l.b16 %v1781
    %v2137 = vunpack.c.h.b16 %v1781
    %v2138 = vunpack.c.l.b16 %v1782
    %v2139 = vunpack.c.h.b16 %v1782
    %v2140 = vunpack.c.l.b16 %v1783
    %v2141 = vunpack.c.h.b16 %v1783
    %v2142 = vunpack.c.l.b16 %v1784
    %v2143 = vunpack.c.h.b16 %v1784
    %v2144 = vunpack.c.l.b16 %v1785
    %v2145 = vunpack.c.h.b16 %v1785
    %v2146 = vunpack.c.l.b16 %v1786
    %v2147 = vunpack.c.h.b16 %v1786
    %v2148 = vunpack.c.l.b16 %v1787
    %v2149 = vunpack.c.h.b16 %v1787
    %v2150 = vunpack.c.l.b16 %v1788
    %v2151 = vunpack.c.h.b16 %v1788
    %v2152 = vunpack.c.l.b16 %v1789
    %v2153 = vunpack.c.h.b16 %v1789
    %v2154 = vunpack.c.l.b16 %v1790
    %v2155 = vunpack.c.h.b16 %v1790
    %v2156 = vunpack.c.l.b16 %v1791
    %v2157 = vunpack.c.h.b16 %v1791
    %v2158 = vunpack.c.l.b16 %v1792
    %v2159 = vunpack.c.h.b16 %v1792
    %v2160 = vunpack.c.l.b16 %v1793
    %v2161 = vunpack.c.h.b16 %v1793
    %v2162 = vunpack.c.l.b16 %v1794
    %v2163 = vunpack.c.h.b16 %v1794
    %v2164 = vunpack.c.l.b16 %v1795
    %v2165 = vunpack.c.h.b16 %v1795
    %v2166 = vunpack.c.l.b16 %v1796
    %v2167 = vunpack.c.h.b16 %v1796
    %v2168 = vunpack.c.l.b16 %v1797
    %v2169 = vunpack.c.h.b16 %v1797
    %v2170 = vunpack.c.l.b16 %v1798
    %v2171 = vunpack.c.h.b16 %v1798
    %v2172 = vunpack.c.l.b16 %v1799
    %v2173 = vunpack.c.h.b16 %v1799
    %v2174 = vunpack.c.l.b16 %v1800
    %v2175 = vunpack.c.h.b16 %v1800
    %v2176 = vunpack.c.l.b16 %v1801
    %v2177 = vunpack.c.h.b16 %v1801
    %v2178 = vunpack.c.l.b16 %v1802
    %v2179 = vunpack.c.h.b16 %v1802
    %v2180 = vunpack.c.l.b16 %v1803
    %v2181 = vunpack.c.h.b16 %v1803
    %v2182 = vunpack.c.l.b16 %v1804
    %v2183 = vunpack.c.h.b16 %v1804
    %v2184 = vunpack.c.l.b16 %v1805
    %v2185 = vunpack.c.h.b16 %v1805
    %v2186 = vunpack.c.l.b16 %v1806
    %v2187 = vunpack.c.h.b16 %v1806
    %v2188 = vunpack.c.l.b16 %v1807
    %v2189 = vunpack.c.h.b16 %v1807
    %v2190 = vunpack.c.l.b16 %v1808
    %v2191 = vunpack.c.h.b16 %v1808
    %v2192 = vunpack.c.l.b16 %v1809
    %v2193 = vunpack.c.h.b16 %v1809
    %v2194 = vunpack.c.l.b16 %v1810
    %v2195 = vunpack.c.h.b16 %v1810
    %v2196 = vunpack.c.l.b16 %v1811
    %v2197 = vunpack.c.h.b16 %v1811
    %v2198 = vunpack.c.l.b16 %v1812
    %v2199 = vunpack.c.h.b16 %v1812
    %v2200 = vunpack.c.l.b16 %v1813
    %v2201 = vunpack.c.h.b16 %v1813
    %v2202 = vunpack.c.l.b16 %v1814
    %v2203 = vunpack.c.h.b16 %v1814
    %v2204 = vunpack.c.l.b16 %v1815
    %v2205 = vunpack.c.h.b16 %v1815
    %v2206 = vunpack.c.l.b16 %v1816
    %v2207 = vunpack.c.h.b16 %v1816
    %v2208 = vpack.c.b16 %v1960, %v1952
    %v2209 = vpack.c.b16 %v1961, %v1953
    %v2210 = vpack.c.b16 %v1962, %v1954
    %v2211 = vpack.c.b16 %v1963, %v1955
    %v2212 = vpack.c.b16 %v1964, %v1956
    %v2213 = vpack.c.b16 %v1965, %v1957
    %v2214 = vpack.c.b16 %v1966, %v1958
    %v2215 = vpack.c.b16 %v1967, %v1959
    %v2216 = vpack.c.b16 %v1976, %v1968
    %v2217 = vpack.c.b16 %v1977, %v1969
    %v2218 = vpack.c.b16 %v1978, %v1970
    %v2219 = vpack.c.b16 %v1979, %v1971
    %v2220 = vpack.c.b16 %v1980, %v1972
    %v2221 = vpack.c.b16 %v1981, %v1973
    %v2222 = vpack.c.b16 %v1982, %v1974
    %v2223 = vpack.c.b16 %v1983, %v1975
    %v2224 = vpack.c.b16 %v1992, %v1984
    %v2225 = vpack.c.b16 %v1993, %v1985
    %v2226 = vpack.c.b16 %v1994, %v1986
    %v2227 = vpack.c.b16 %v1995, %v1987
    %v2228 = vpack.c.b16 %v1996, %v1988
    %v2229 = vpack.c.b16 %v1997, %v1989
    %v2230 = vpack.c.b16 %v1998, %v1990
    %v2231 = vpack.c.b16 %v1999, %v1991
    %v2232 = vpack.c.b16 %v2008, %v2000
    %v2233 = vpack.c.b16 %v2009, %v2001
    %v2234 = vpack.c.b16 %v2010, %v2002
    %v2235 = vpack.c.b16 %v2011, %v2003
    %v2236 = vpack.c.b16 %v2012, %v2004
    %v2237 = vpack.c.b16 %v2013, %v2005
    %v2238 = vpack.c.b16 %v2014, %v2006
    %v2239 = vpack.c.b16 %v2015, %v2007
    %v2240 = vpack.c.b16 %v2024, %v2016
    %v2241 = vpack.c.b16 %v2025, %v2017
    %v2242 = vpack.c.b16 %v2026, %v2018
    %v2243 = vpack.c.b16 %v2027, %v2019
    %v2244 = vpack.c.b16 %v2028, %v2020
    %v2245 = vpack.c.b16 %v2029, %v2021
    %v2246 = vpack.c.b16 %v2030, %v2022
    %v2247 = vpack.c.b16 %v2031, %v2023
    %v2248 = vpack.c.b16 %v2040, %v2032
    %v2249 = vpack.c.b16 %v2041, %v2033
    %v2250 = vpack.c.b16 %v2042, %v2034
    %v2251 = vpack.c.b16 %v2043, %v2035
    %v2252 = vpack.c.b16 %v2044, %v2036
    %v2253 = vpack.c.b16 %v2045, %v2037
    %v2254 = vpack.c.b16 %v2046, %v2038
    %v2255 = vpack.c.b16 %v2047, %v2039
    %v2256 = vpack.c.b16 %v2056, %v2048
    %v2257 = vpack.c.b16 %v2057, %v2049
    %v2258 = vpack.c.b16 %v2058, %v2050
    %v2259 = vpack.c.b16 %v2059, %v2051
    %v2260 = vpack.c.b16 %v2060, %v2052
    %v2261 = vpack.c.b16 %v2061, %v2053
    %v2262 = vpack.c.b16 %v2062, %v2054
    %v2263 = vpack.c.b16 %v2063, %v2055
    %v2264 = vpack.c.b16 %v2072, %v2064
    %v2265 = vpack.c.b16 %v2073, %v2065
    %v2266 = vpack.c.b16 %v2074, %v2066
    %v2267 = vpack.c.b16 %v2075, %v2067
    %v2268 = vpack.c.b16 %v2076, %v2068
    %v2269 = vpack.c.b16 %v2077, %v2069
    %v2270 = vpack.c.b16 %v2078, %v2070
    %v2271 = vpack.c.b16 %v2079, %v2071
    %v2272 = vpack.c.b16 %v2088, %v2080
    %v2273 = vpack.c.b16 %v2089, %v2081
    %v2274 = vpack.c.b16 %v2090, %v2082
    %v2275 = vpack.c.b16 %v2091, %v2083
    %v2276 = vpack.c.b16 %v2092, %v2084
    %v2277 = vpack.c.b16 %v2093, %v2085
    %v2278 = vpack.c.b16 %v2094, %v2086
    %v2279 = vpack.c.b16 %v2095, %v2087
    %v2280 = vpack.c.b16 %v2104, %v2096
    %v2281 = vpack.c.b16 %v2105, %v2097
    %v2282 = vpack.c.b16 %v2106, %v2098
    %v2283 = vpack.c.b16 %v2107, %v2099
    %v2284 = vpack.c.b16 %v2108, %v2100
    %v2285 = vpack.c.b16 %v2109, %v2101
    %v2286 = vpack.c.b16 %v2110, %v2102
    %v2287 = vpack.c.b16 %v2111, %v2103
    %v2288 = vpack.c.b16 %v2120, %v2112
    %v2289 = vpack.c.b16 %v2121, %v2113
    %v2290 = vpack.c.b16 %v2122, %v2114
    %v2291 = vpack.c.b16 %v2123, %v2115
    %v2292 = vpack.c.b16 %v2124, %v2116
    %v2293 = vpack.c.b16 %v2125, %v2117
    %v2294 = vpack.c.b16 %v2126, %v2118
    %v2295 = vpack.c.b16 %v2127, %v2119
    %v2296 = vpack.c.b16 %v2136, %v2128
    %v2297 = vpack.c.b16 %v2137, %v2129
    %v2298 = vpack.c.b16 %v2138, %v2130
    %v2299 = vpack.c.b16 %v2139, %v2131
    %v2300 = vpack.c.b16 %v2140, %v2132
    %v2301 = vpack.c.b16 %v2141, %v2133
    %v2302 = vpack.c.b16 %v2142, %v2134
    %v2303 = vpack.c.b16 %v2143, %v2135
    %v2304 = vpack.c.b16 %v2152, %v2144
    %v2305 = vpack.c.b16 %v2153, %v2145
    %v2306 = vpack.c.b16 %v2154, %v2146
    %v2307 = vpack.c.b16 %v2155, %v2147
    %v2308 = vpack.c.b16 %v2156, %v2148
    %v2309 = vpack.c.b16 %v2157, %v2149
    %v2310 = vpack.c.b16 %v2158, %v2150
    %v2311 = vpack.c.b16 %v2159, %v2151
    %v2312 = vpack.c.b16 %v2168, %v2160
    %v2313 = vpack.c.b16 %v2169, %v2161
    %v2314 = vpack.c.b16 %v2170, %v2162
    %v2315 = vpack.c.b16 %v2171, %v2163
    %v2316 = vpack.c.b16 %v2172, %v2164
    %v2317 = vpack.c.b16 %v2173, %v2165
    %v2318 = vpack.c.b16 %v2174, %v2166
    %v2319 = vpack.c.b16 %v2175, %v2167
    %v2320 = vpack.c.b16 %v2184, %v2176
    %v2321 = vpack.c.b16 %v2185, %v2177
    %v2322 = vpack.c.b16 %v2186, %v2178
    %v2323 = vpack.c.b16 %v2187, %v2179
    %v2324 = vpack.c.b16 %v2188, %v2180
    %v2325 = vpack.c.b16 %v2189, %v2181
    %v2326 = vpack.c.b16 %v2190, %v2182
    %v2327 = vpack.c.b16 %v2191, %v2183
    %v2328 = vpack.c.b16 %v2200, %v2192
    %v2329 = vpack.c.b16 %v2201, %v2193
    %v2330 = vpack.c.b16 %v2202, %v2194
    %v2331 = vpack.c.b16 %v2203, %v2195
    %v2332 = vpack.c.b16 %v2204, %v2196
    %v2333 = vpack.c.b16 %v2205, %v2197
    %v2334 = vpack.c.b16 %v2206, %v2198
    %v2335 = vpack.c.b16 %v2207, %v2199
    %2464 = vmatpush.bf16.msra.mxu0 %v2264
    %2465 = vmatpush.bf16.msra.mxu0 %v2256
    %2466 = vmatpush.bf16.msra.mxu0 %v2248
    %2467 = vmatpush.bf16.msra.mxu0 %v2240
    %2468 = vmatpush.bf16.msra.mxu0 %v2232
    %2469 = vmatpush.bf16.msra.mxu0 %v2224
    %2470 = vmatpush.bf16.msra.mxu0 %v2216
    %2471 = vmatpush.bf16.msra.mxu0 %v2208
    %2472 = vmatmul.bf16.gmra.mxu0 %v1820
    %v2473 = vpop.f32.mrf.mxu0
    %v2474 = vadd.f32 0.0, %v2473
    %v2475 = vpop.f32.mrf.mxu0
    %2476 = vdwg.mxu0
    %2477 = vmatpush.bf16.msra.mxu0 %v2328
    %2478 = vmatpush.bf16.msra.mxu0 %v2320
    %2479 = vmatpush.bf16.msra.mxu0 %v2312
    %2480 = vmatpush.bf16.msra.mxu0 %v2304
    %2481 = vmatpush.bf16.msra.mxu0 %v2296
    %2482 = vmatpush.bf16.msra.mxu0 %v2288
    %2483 = vmatpush.bf16.msra.mxu0 %v2280
    %2484 = vmatpush.bf16.msra.mxu0 %v2272
    %2485 = vmatmul.bf16.gmra.mxu0 %v1821
    %v2486 = vpop.f32.mrf.mxu0
    %v2487 = vadd.f32 %v2474, %v2486
    %v2488 = vpop.f32.mrf.mxu0
    %2489 = vdwg.mxu0
    %2490 = vmatpush.bf16.msra.mxu0 %v2265
    %2491 = vmatpush.bf16.msra.mxu0 %v2257
    %2492 = vmatpush.bf16.msra.mxu0 %v2249
    %2493 = vmatpush.bf16.msra.mxu0 %v2241
    %2494 = vmatpush.bf16.msra.mxu0 %v2233
    %2495 = vmatpush.bf16.msra.mxu0 %v2225
    %2496 = vmatpush.bf16.msra.mxu0 %v2217
    %2497 = vmatpush.bf16.msra.mxu0 %v2209
    %2498 = vmatmul.bf16.gmra.mxu0 %v1820
    %v2499 = vpop.f32.mrf.mxu0
    %v2500 = vadd.f32 0.0, %v2499
    %v2501 = vpop.f32.mrf.mxu0
    %2502 = vdwg.mxu0
    %2503 = vmatpush.bf16.msra.mxu0 %v2329
    %2504 = vmatpush.bf16.msra.mxu0 %v2321
    %2505 = vmatpush.bf16.msra.mxu0 %v2313
    %2506 = vmatpush.bf16.msra.mxu0 %v2305
    %2507 = vmatpush.bf16.msra.mxu0 %v2297
    %2508 = vmatpush.bf16.msra.mxu0 %v2289
    %2509 = vmatpush.bf16.msra.mxu0 %v2281
    %2510 = vmatpush.bf16.msra.mxu0 %v2273
    %2511 = vmatmul.bf16.gmra.mxu0 %v1821
    %v2512 = vpop.f32.mrf.mxu0
    %v2513 = vadd.f32 %v2500, %v2512
    %v2514 = vpop.f32.mrf.mxu0
    %2515 = vdwg.mxu0
    %2516 = vmatpush.bf16.msra.mxu0 %v2266
    %2517 = vmatpush.bf16.msra.mxu0 %v2258
    %2518 = vmatpush.bf16.msra.mxu0 %v2250
    %2519 = vmatpush.bf16.msra.mxu0 %v2242
    %2520 = vmatpush.bf16.msra.mxu0 %v2234
    %2521 = vmatpush.bf16.msra.mxu0 %v2226
    %2522 = vmatpush.bf16.msra.mxu0 %v2218
    %2523 = vmatpush.bf16.msra.mxu0 %v2210
    %2524 = vmatmul.bf16.gmra.mxu0 %v1820
    %v2525 = vpop.f32.mrf.mxu0
    %v2526 = vadd.f32 0.0, %v2525
    %v2527 = vpop.f32.mrf.mxu0
    %2528 = vdwg.mxu0
    %2529 = vmatpush.bf16.msra.mxu0 %v2330
    %2530 = vmatpush.bf16.msra.mxu0 %v2322
    %2531 = vmatpush.bf16.msra.mxu0 %v2314
    %2532 = vmatpush.bf16.msra.mxu0 %v2306
    %2533 = vmatpush.bf16.msra.mxu0 %v2298
    %2534 = vmatpush.bf16.msra.mxu0 %v2290
    %2535 = vmatpush.bf16.msra.mxu0 %v2282
    %2536 = vmatpush.bf16.msra.mxu0 %v2274
    %2537 = vmatmul.bf16.gmra.mxu0 %v1821
    %v2538 = vpop.f32.mrf.mxu0
    %v2539 = vadd.f32 %v2526, %v2538
    %v2540 = vpop.f32.mrf.mxu0
    %2541 = vdwg.mxu0
    %2542 = vmatpush.bf16.msra.mxu0 %v2267
    %2543 = vmatpush.bf16.msra.mxu0 %v2259
    %2544 = vmatpush.bf16.msra.mxu0 %v2251
    %2545 = vmatpush.bf16.msra.mxu0 %v2243
    %2546 = vmatpush.bf16.msra.mxu0 %v2235
    %2547 = vmatpush.bf16.msra.mxu0 %v2227
    %2548 = vmatpush.bf16.msra.mxu0 %v2219
    %2549 = vmatpush.bf16.msra.mxu0 %v2211
    %2550 = vmatmul.bf16.gmra.mxu0 %v1820
    %v2551 = vpop.f32.mrf.mxu0
    %v2552 = vadd.f32 0.0, %v2551
    %v2553 = vpop.f32.mrf.mxu0
    %2554 = vdwg.mxu0
    %2555 = vmatpush.bf16.msra.mxu0 %v2331
    %2556 = vmatpush.bf16.msra.mxu0 %v2323
    %2557 = vmatpush.bf16.msra.mxu0 %v2315
    %2558 = vmatpush.bf16.msra.mxu0 %v2307
    %2559 = vmatpush.bf16.msra.mxu0 %v2299
    %2560 = vmatpush.bf16.msra.mxu0 %v2291
    %2561 = vmatpush.bf16.msra.mxu0 %v2283
    %2562 = vmatpush.bf16.msra.mxu0 %v2275
    %2563 = vmatmul.bf16.gmra.mxu0 %v1821
    %v2564 = vpop.f32.mrf.mxu0
    %v2565 = vadd.f32 %v2552, %v2564
    %v2566 = vpop.f32.mrf.mxu0
    %2567 = vdwg.mxu0
    %2568 = vmatpush.bf16.msra.mxu0 %v2268
    %2569 = vmatpush.bf16.msra.mxu0 %v2260
    %2570 = vmatpush.bf16.msra.mxu0 %v2252
    %2571 = vmatpush.bf16.msra.mxu0 %v2244
    %2572 = vmatpush.bf16.msra.mxu0 %v2236
    %2573 = vmatpush.bf16.msra.mxu0 %v2228
    %2574 = vmatpush.bf16.msra.mxu0 %v2220
    %2575 = vmatpush.bf16.msra.mxu0 %v2212
    %2576 = vmatmul.bf16.gmra.mxu0 %v1820
    %v2577 = vpop.f32.mrf.mxu0
    %v2578 = vadd.f32 0.0, %v2577
    %v2579 = vpop.f32.mrf.mxu0
    %2580 = vdwg.mxu0
    %2581 = vmatpush.bf16.msra.mxu0 %v2332
    %2582 = vmatpush.bf16.msra.mxu0 %v2324
    %2583 = vmatpush.bf16.msra.mxu0 %v2316
    %2584 = vmatpush.bf16.msra.mxu0 %v2308
    %2585 = vmatpush.bf16.msra.mxu0 %v2300
    %2586 = vmatpush.bf16.msra.mxu0 %v2292
    %2587 = vmatpush.bf16.msra.mxu0 %v2284
    %2588 = vmatpush.bf16.msra.mxu0 %v2276
    %2589 = vmatmul.bf16.gmra.mxu0 %v1821
    %v2590 = vpop.f32.mrf.mxu0
    %v2591 = vadd.f32 %v2578, %v2590
    %v2592 = vpop.f32.mrf.mxu0
    %2593 = vdwg.mxu0
    %2594 = vmatpush.bf16.msra.mxu0 %v2269
    %2595 = vmatpush.bf16.msra.mxu0 %v2261
    %2596 = vmatpush.bf16.msra.mxu0 %v2253
    %2597 = vmatpush.bf16.msra.mxu0 %v2245
    %2598 = vmatpush.bf16.msra.mxu0 %v2237
    %2599 = vmatpush.bf16.msra.mxu0 %v2229
    %2600 = vmatpush.bf16.msra.mxu0 %v2221
    %2601 = vmatpush.bf16.msra.mxu0 %v2213
    %2602 = vmatmul.bf16.gmra.mxu0 %v1820
    %v2603 = vpop.f32.mrf.mxu0
    %v2604 = vadd.f32 0.0, %v2603
    %v2605 = vpop.f32.mrf.mxu0
    %2606 = vdwg.mxu0
    %2607 = vmatpush.bf16.msra.mxu0 %v2333
    %2608 = vmatpush.bf16.msra.mxu0 %v2325
    %2609 = vmatpush.bf16.msra.mxu0 %v2317
    %2610 = vmatpush.bf16.msra.mxu0 %v2309
    %2611 = vmatpush.bf16.msra.mxu0 %v2301
    %2612 = vmatpush.bf16.msra.mxu0 %v2293
    %2613 = vmatpush.bf16.msra.mxu0 %v2285
    %2614 = vmatpush.bf16.msra.mxu0 %v2277
    %2615 = vmatmul.bf16.gmra.mxu0 %v1821
    %v2616 = vpop.f32.mrf.mxu0
    %v2617 = vadd.f32 %v2604, %v2616
    %v2618 = vpop.f32.mrf.mxu0
    %2619 = vdwg.mxu0
    %2620 = vmatpush.bf16.msra.mxu0 %v2270
    %2621 = vmatpush.bf16.msra.mxu0 %v2262
    %2622 = vmatpush.bf16.msra.mxu0 %v2254
    %2623 = vmatpush.bf16.msra.mxu0 %v2246
    %2624 = vmatpush.bf16.msra.mxu0 %v2238
    %2625 = vmatpush.bf16.msra.mxu0 %v2230
    %2626 = vmatpush.bf16.msra.mxu0 %v2222
    %2627 = vmatpush.bf16.msra.mxu0 %v2214
    %2628 = vmatmul.bf16.gmra.mxu0 %v1820
    %v2629 = vpop.f32.mrf.mxu0
    %v2630 = vadd.f32 0.0, %v2629
    %v2631 = vpop.f32.mrf.mxu0
    %2632 = vdwg.mxu0
    %2633 = vmatpush.bf16.msra.mxu0 %v2334
    %2634 = vmatpush.bf16.msra.mxu0 %v2326
    %2635 = vmatpush.bf16.msra.mxu0 %v2318
    %2636 = vmatpush.bf16.msra.mxu0 %v2310
    %2637 = vmatpush.bf16.msra.mxu0 %v2302
    %2638 = vmatpush.bf16.msra.mxu0 %v2294
    %2639 = vmatpush.bf16.msra.mxu0 %v2286
    %2640 = vmatpush.bf16.msra.mxu0 %v2278
    %2641 = vmatmul.bf16.gmra.mxu0 %v1821
    %v2642 = vpop.f32.mrf.mxu0
    %v2643 = vadd.f32 %v2630, %v2642
    %v2644 = vpop.f32.mrf.mxu0
    %2645 = vdwg.mxu0
    %2646 = vmatpush.bf16.msra.mxu0 %v2271
    %2647 = vmatpush.bf16.msra.mxu0 %v2263
    %2648 = vmatpush.bf16.msra.mxu0 %v2255
    %2649 = vmatpush.bf16.msra.mxu0 %v2247
    %2650 = vmatpush.bf16.msra.mxu0 %v2239
    %2651 = vmatpush.bf16.msra.mxu0 %v2231
    %2652 = vmatpush.bf16.msra.mxu0 %v2223
    %2653 = vmatpush.bf16.msra.mxu0 %v2215
    %2654 = vmatmul.bf16.gmra.mxu0 %v1820
    %v2655 = vpop.f32.mrf.mxu0
    %v2656 = vadd.f32 0.0, %v2655
    %v2657 = vpop.f32.mrf.mxu0
    %2658 = vdwg.mxu0
    %2659 = vmatpush.bf16.msra.mxu0 %v2335
    %2660 = vmatpush.bf16.msra.mxu0 %v2327
    %2661 = vmatpush.bf16.msra.mxu0 %v2319
    %2662 = vmatpush.bf16.msra.mxu0 %v2311
    %2663 = vmatpush.bf16.msra.mxu0 %v2303
    %2664 = vmatpush.bf16.msra.mxu0 %v2295
    %2665 = vmatpush.bf16.msra.mxu0 %v2287
    %2666 = vmatpush.bf16.msra.mxu0 %v2279
    %2667 = vmatmul.bf16.gmra.mxu0 %v1821
    %v2668 = vpop.f32.mrf.mxu0
    %v2669 = vadd.f32 %v2656, %v2668
    %v2670 = vpop.f32.mrf.mxu0
    %2671 = vdwg.mxu0
    %v2680 = vrot.slane %v2513, 7
    %v2681 = vrot.slane %v2539, 6
    %v2682 = vrot.slane %v2565, 5
    %v2683 = vrot.slane %v2591, 4
    %v2684 = vrot.slane %v2617, 3
    %v2685 = vrot.slane %v2643, 2
    %v2686 = vrot.slane %v2669, 1
    %v2687 = vsel %vm1628, %v2487, %v2680
    %v2688 = vsel %vm1630, %v2681, %v2682
    %v2689 = vsel %vm1632, %v2687, %v2688
    %v2690 = vsel %vm1634, %v2683, %v2684
    %v2691 = vsel %vm1636, %v2685, %v2686
    %v2692 = vsel %vm1638, %v2690, %v2691
    %v2693 = vsel %vm1640, %v2689, %v2692
    %v2695 = vadd.f32 %v1688, %v2693
    %v2696 = vmul.f32 %v2695, 0.5
    %v2697 = vtanh.pop %v2696
    %v2698 = vmul.f32 %v2697, 0.5
    %v2699 = vadd.f32 %v2698, 0.5
    %v2701 = vrot.slane %v2695, 2
    %v2703 = vmul.f32 %v2701, 0.5
    %v2704 = vtanh.pop %v2703
    %v2705 = vmul.f32 %v2704, 0.5
    %v2706 = vadd.f32 %v2705, 0.5
    %v2707 = vrot.slane %v2695, 4
    %v2709 = vtanh.pop %v2707
    %v2710 = vrot.slane %v2695, 6
    %v2712 = vmul.f32 %v2710, 0.5
    %v2713 = vtanh.pop %v2712
    %v2714 = vmul.f32 %v2713, 0.5
    %v2715 = vadd.f32 %v2714, 0.5
    %v2716 = vmul.f32 %v2706, %v1666
    %v2717 = vmul.f32 %v2699, %v2709
    %v2718 = vadd.f32 %v2716, %v2717
    %v2719 = vtanh.pop %v2718
    %v2720 = vmul.f32 %v2715, %v2719
    %v2722 = vperm.slane %v2720, 0
    %v2723 = vperm.slane %v2720, 1
    %v2726 = vpack.c.bf16 %v2723, %v2722
    %v2728 = vshll.u32 %v2726, 16
    %vm2731 = vsmask.f32 7938
    %vm2732 = vmand %vm1675, %vm2731
    %vm2733 = vsmask.f32 7954
    %vm2734 = vmand %vm1678, %vm2733
    %vm2735 = vmor %vm2734, %vm2732
    %v2736 = vld [vmem:[#allocation14] sm:$0x11]
    %v2737 = vsel %vm2735, %v2728, %v2736
    %2738 = vst [vmem:[#allocation14] sm:$0x11] %v2737
    %s2739 = scalar_lea.vmem [#allocation2], 2
    %v2740 = vld [vmem:[%s2739] ss:$8 sm:$0xf]
    %v2741 = vld [vmem:[%s2739] ss:$8 sm:$0xf0]
    %v2742 = vor.u32 %v2740, %v2741
    %v2743 = vld [vmem:[#allocation11] sm:$0xff]
    %v2744 = vld [vmem:[#allocation11 + $0x8] sm:$0xff]
    %v2745 = vld [vmem:[#allocation11 + $0x10] sm:$0xff]
    %v2746 = vld [vmem:[#allocation11 + $0x18] sm:$0xff]
    %v2747 = vld [vmem:[#allocation11 + $0x20] sm:$0xff]
    %v2748 = vld [vmem:[#allocation11 + $0x28] sm:$0xff]
    %v2749 = vld [vmem:[#allocation11 + $0x30] sm:$0xff]
    %v2750 = vld [vmem:[#allocation11 + $0x38] sm:$0xff]
    %v2751 = vld [vmem:[#allocation11 + $0x40] sm:$0xff]
    %v2752 = vld [vmem:[#allocation11 + $0x48] sm:$0xff]
    %v2753 = vld [vmem:[#allocation11 + $0x50] sm:$0xff]
    %v2754 = vld [vmem:[#allocation11 + $0x58] sm:$0xff]
    %v2755 = vld [vmem:[#allocation11 + $0x60] sm:$0xff]
    %v2756 = vld [vmem:[#allocation11 + $0x68] sm:$0xff]
    %v2757 = vld [vmem:[#allocation11 + $0x70] sm:$0xff]
    %v2758 = vld [vmem:[#allocation11 + $0x78] sm:$0xff]
    %v2759 = vld [vmem:[#allocation11 + $0x80] sm:$0xff]
    %v2760 = vld [vmem:[#allocation11 + $0x88] sm:$0xff]
    %v2761 = vld [vmem:[#allocation11 + $0x90] sm:$0xff]
    %v2762 = vld [vmem:[#allocation11 + $0x98] sm:$0xff]
    %v2763 = vld [vmem:[#allocation11 + $0xa0] sm:$0xff]
    %v2764 = vld [vmem:[#allocation11 + $0xa8] sm:$0xff]
    %v2765 = vld [vmem:[#allocation11 + $0xb0] sm:$0xff]
    %v2766 = vld [vmem:[#allocation11 + $0xb8] sm:$0xff]
    %v2767 = vld [vmem:[#allocation11 + $0xc0] sm:$0xff]
    %v2768 = vld [vmem:[#allocation11 + $0xc8] sm:$0xff]
    %v2769 = vld [vmem:[#allocation11 + $0xd0] sm:$0xff]
    %v2770 = vld [vmem:[#allocation11 + $0xd8] sm:$0xff]
    %v2771 = vld [vmem:[#allocation11 + $0xe0] sm:$0xff]
    %v2772 = vld [vmem:[#allocation11 + $0xe8] sm:$0xff]
    %v2773 = vld [vmem:[#allocation11 + $0xf0] sm:$0xff]
    %v2774 = vld [vmem:[#allocation11 + $0xf8] sm:$0xff]
    %v2775 = vld [vmem:[#allocation11 + $0x100] sm:$0xff]
    %v2776 = vld [vmem:[#allocation11 + $0x108] sm:$0xff]
    %v2777 = vld [vmem:[#allocation11 + $0x110] sm:$0xff]
    %v2778 = vld [vmem:[#allocation11 + $0x118] sm:$0xff]
    %v2779 = vld [vmem:[#allocation11 + $0x120] sm:$0xff]
    %v2780 = vld [vmem:[#allocation11 + $0x128] sm:$0xff]
    %v2781 = vld [vmem:[#allocation11 + $0x130] sm:$0xff]
    %v2782 = vld [vmem:[#allocation11 + $0x138] sm:$0xff]
    %v2783 = vld [vmem:[#allocation11 + $0x140] sm:$0xff]
    %v2784 = vld [vmem:[#allocation11 + $0x148] sm:$0xff]
    %v2785 = vld [vmem:[#allocation11 + $0x150] sm:$0xff]
    %v2786 = vld [vmem:[#allocation11 + $0x158] sm:$0xff]
    %v2787 = vld [vmem:[#allocation11 + $0x160] sm:$0xff]
    %v2788 = vld [vmem:[#allocation11 + $0x168] sm:$0xff]
    %v2789 = vld [vmem:[#allocation11 + $0x170] sm:$0xff]
    %v2790 = vld [vmem:[#allocation11 + $0x178] sm:$0xff]
    %v2791 = vld [vmem:[#allocation11 + $0x180] sm:$0xff]
    %v2792 = vld [vmem:[#allocation11 + $0x188] sm:$0xff]
    %v2793 = vld [vmem:[#allocation11 + $0x190] sm:$0xff]
    %v2794 = vld [vmem:[#allocation11 + $0x198] sm:$0xff]
    %v2795 = vld [vmem:[#allocation11 + $0x1a0] sm:$0xff]
    %v2796 = vld [vmem:[#allocation11 + $0x1a8] sm:$0xff]
    %v2797 = vld [vmem:[#allocation11 + $0x1b0] sm:$0xff]
    %v2798 = vld [vmem:[#allocation11 + $0x1b8] sm:$0xff]
    %v2799 = vld [vmem:[#allocation11 + $0x1c0] sm:$0xff]
    %v2800 = vld [vmem:[#allocation11 + $0x1c8] sm:$0xff]
    %v2801 = vld [vmem:[#allocation11 + $0x1d0] sm:$0xff]
    %v2802 = vld [vmem:[#allocation11 + $0x1d8] sm:$0xff]
    %v2803 = vld [vmem:[#allocation11 + $0x1e0] sm:$0xff]
    %v2804 = vld [vmem:[#allocation11 + $0x1e8] sm:$0xff]
    %v2805 = vld [vmem:[#allocation11 + $0x1f0] sm:$0xff]
    %v2806 = vld [vmem:[#allocation11 + $0x1f8] sm:$0xff]
    %v2807 = vld [vmem:[#allocation11 + $0x200] sm:$0xff]
    %v2808 = vld [vmem:[#allocation11 + $0x208] sm:$0xff]
    %v2809 = vld [vmem:[#allocation11 + $0x210] sm:$0xff]
    %v2810 = vld [vmem:[#allocation11 + $0x218] sm:$0xff]
    %v2811 = vld [vmem:[#allocation11 + $0x220] sm:$0xff]
    %v2812 = vld [vmem:[#allocation11 + $0x228] sm:$0xff]
    %v2813 = vld [vmem:[#allocation11 + $0x230] sm:$0xff]
    %v2814 = vld [vmem:[#allocation11 + $0x238] sm:$0xff]
    %v2815 = vld [vmem:[#allocation11 + $0x240] sm:$0xff]
    %v2816 = vld [vmem:[#allocation11 + $0x248] sm:$0xff]
    %v2817 = vld [vmem:[#allocation11 + $0x250] sm:$0xff]
    %v2818 = vld [vmem:[#allocation11 + $0x258] sm:$0xff]
    %v2819 = vld [vmem:[#allocation11 + $0x260] sm:$0xff]
    %v2820 = vld [vmem:[#allocation11 + $0x268] sm:$0xff]
    %v2821 = vld [vmem:[#allocation11 + $0x270] sm:$0xff]
    %v2822 = vld [vmem:[#allocation11 + $0x278] sm:$0xff]
    %v2823 = vld [vmem:[#allocation11 + $0x280] sm:$0xff]
    %v2824 = vld [vmem:[#allocation11 + $0x288] sm:$0xff]
    %v2825 = vld [vmem:[#allocation11 + $0x290] sm:$0xff]
    %v2826 = vld [vmem:[#allocation11 + $0x298] sm:$0xff]
    %v2827 = vld [vmem:[#allocation11 + $0x2a0] sm:$0xff]
    %v2828 = vld [vmem:[#allocation11 + $0x2a8] sm:$0xff]
    %v2829 = vld [vmem:[#allocation11 + $0x2b0] sm:$0xff]
    %v2830 = vld [vmem:[#allocation11 + $0x2b8] sm:$0xff]
    %v2831 = vld [vmem:[#allocation11 + $0x2c0] sm:$0xff]
    %v2832 = vld [vmem:[#allocation11 + $0x2c8] sm:$0xff]
    %v2833 = vld [vmem:[#allocation11 + $0x2d0] sm:$0xff]
    %v2834 = vld [vmem:[#allocation11 + $0x2d8] sm:$0xff]
    %v2835 = vld [vmem:[#allocation11 + $0x2e0] sm:$0xff]
    %v2836 = vld [vmem:[#allocation11 + $0x2e8] sm:$0xff]
    %v2837 = vld [vmem:[#allocation11 + $0x2f0] sm:$0xff]
    %v2838 = vld [vmem:[#allocation11 + $0x2f8] sm:$0xff]
    %v2839 = vld [vmem:[#allocation11 + $0x300] sm:$0xff]
    %v2840 = vld [vmem:[#allocation11 + $0x308] sm:$0xff]
    %v2841 = vld [vmem:[#allocation11 + $0x310] sm:$0xff]
    %v2842 = vld [vmem:[#allocation11 + $0x318] sm:$0xff]
    %v2843 = vld [vmem:[#allocation11 + $0x320] sm:$0xff]
    %v2844 = vld [vmem:[#allocation11 + $0x328] sm:$0xff]
    %v2845 = vld [vmem:[#allocation11 + $0x330] sm:$0xff]
    %v2846 = vld [vmem:[#allocation11 + $0x338] sm:$0xff]
    %v2847 = vld [vmem:[#allocation11 + $0x340] sm:$0xff]
    %v2848 = vld [vmem:[#allocation11 + $0x348] sm:$0xff]
    %v2849 = vld [vmem:[#allocation11 + $0x350] sm:$0xff]
    %v2850 = vld [vmem:[#allocation11 + $0x358] sm:$0xff]
    %v2851 = vld [vmem:[#allocation11 + $0x360] sm:$0xff]
    %v2852 = vld [vmem:[#allocation11 + $0x368] sm:$0xff]
    %v2853 = vld [vmem:[#allocation11 + $0x370] sm:$0xff]
    %v2854 = vld [vmem:[#allocation11 + $0x378] sm:$0xff]
    %v2855 = vld [vmem:[#allocation11 + $0x380] sm:$0xff]
    %v2856 = vld [vmem:[#allocation11 + $0x388] sm:$0xff]
    %v2857 = vld [vmem:[#allocation11 + $0x390] sm:$0xff]
    %v2858 = vld [vmem:[#allocation11 + $0x398] sm:$0xff]
    %v2859 = vld [vmem:[#allocation11 + $0x3a0] sm:$0xff]
    %v2860 = vld [vmem:[#allocation11 + $0x3a8] sm:$0xff]
    %v2861 = vld [vmem:[#allocation11 + $0x3b0] sm:$0xff]
    %v2862 = vld [vmem:[#allocation11 + $0x3b8] sm:$0xff]
    %v2863 = vld [vmem:[#allocation11 + $0x3c0] sm:$0xff]
    %v2864 = vld [vmem:[#allocation11 + $0x3c8] sm:$0xff]
    %v2865 = vld [vmem:[#allocation11 + $0x3d0] sm:$0xff]
    %v2866 = vld [vmem:[#allocation11 + $0x3d8] sm:$0xff]
    %v2867 = vld [vmem:[#allocation11 + $0x3e0] sm:$0xff]
    %v2868 = vld [vmem:[#allocation11 + $0x3e8] sm:$0xff]
    %v2869 = vld [vmem:[#allocation11 + $0x3f0] sm:$0xff]
    %v2870 = vld [vmem:[#allocation11 + $0x3f8] sm:$0xff]
    %v2872 = vunpack.c.l.b16 %v2726
    %v2873 = vunpack.c.h.b16 %v2726
    %v2874 = vpack.c.b16 %v2872, %v2872
    %v2875 = vpack.c.b16 %v2873, %v2873
    %v3006 = vunpack.c.l.b16 %v2743
    %v3007 = vunpack.c.h.b16 %v2743
    %v3008 = vunpack.c.l.b16 %v2744
    %v3009 = vunpack.c.h.b16 %v2744
    %v3010 = vunpack.c.l.b16 %v2745
    %v3011 = vunpack.c.h.b16 %v2745
    %v3012 = vunpack.c.l.b16 %v2746
    %v3013 = vunpack.c.h.b16 %v2746
    %v3014 = vunpack.c.l.b16 %v2747
    %v3015 = vunpack.c.h.b16 %v2747
    %v3016 = vunpack.c.l.b16 %v2748
    %v3017 = vunpack.c.h.b16 %v2748
    %v3018 = vunpack.c.l.b16 %v2749
    %v3019 = vunpack.c.h.b16 %v2749
    %v3020 = vunpack.c.l.b16 %v2750
    %v3021 = vunpack.c.h.b16 %v2750
    %v3022 = vunpack.c.l.b16 %v2751
    %v3023 = vunpack.c.h.b16 %v2751
    %v3024 = vunpack.c.l.b16 %v2752
    %v3025 = vunpack.c.h.b16 %v2752
    %v3026 = vunpack.c.l.b16 %v2753
    %v3027 = vunpack.c.h.b16 %v2753
    %v3028 = vunpack.c.l.b16 %v2754
    %v3029 = vunpack.c.h.b16 %v2754
    %v3030 = vunpack.c.l.b16 %v2755
    %v3031 = vunpack.c.h.b16 %v2755
    %v3032 = vunpack.c.l.b16 %v2756
    %v3033 = vunpack.c.h.b16 %v2756
    %v3034 = vunpack.c.l.b16 %v2757
    %v3035 = vunpack.c.h.b16 %v2757
    %v3036 = vunpack.c.l.b16 %v2758
    %v3037 = vunpack.c.h.b16 %v2758
    %v3038 = vunpack.c.l.b16 %v2759
    %v3039 = vunpack.c.h.b16 %v2759
    %v3040 = vunpack.c.l.b16 %v2760
    %v3041 = vunpack.c.h.b16 %v2760
    %v3042 = vunpack.c.l.b16 %v2761
    %v3043 = vunpack.c.h.b16 %v2761
    %v3044 = vunpack.c.l.b16 %v2762
    %v3045 = vunpack.c.h.b16 %v2762
    %v3046 = vunpack.c.l.b16 %v2763
    %v3047 = vunpack.c.h.b16 %v2763
    %v3048 = vunpack.c.l.b16 %v2764
    %v3049 = vunpack.c.h.b16 %v2764
    %v3050 = vunpack.c.l.b16 %v2765
    %v3051 = vunpack.c.h.b16 %v2765
    %v3052 = vunpack.c.l.b16 %v2766
    %v3053 = vunpack.c.h.b16 %v2766
    %v3054 = vunpack.c.l.b16 %v2767
    %v3055 = vunpack.c.h.b16 %v2767
    %v3056 = vunpack.c.l.b16 %v2768
    %v3057 = vunpack.c.h.b16 %v2768
    %v3058 = vunpack.c.l.b16 %v2769
    %v3059 = vunpack.c.h.b16 %v2769
    %v3060 = vunpack.c.l.b16 %v2770
    %v3061 = vunpack.c.h.b16 %v2770
    %v3062 = vunpack.c.l.b16 %v2771
    %v3063 = vunpack.c.h.b16 %v2771
    %v3064 = vunpack.c.l.b16 %v2772
    %v3065 = vunpack.c.h.b16 %v2772
    %v3066 = vunpack.c.l.b16 %v2773
    %v3067 = vunpack.c.h.b16 %v2773
    %v3068 = vunpack.c.l.b16 %v2774
    %v3069 = vunpack.c.h.b16 %v2774
    %v3070 = vunpack.c.l.b16 %v2775
    %v3071 = vunpack.c.h.b16 %v2775
    %v3072 = vunpack.c.l.b16 %v2776
    %v3073 = vunpack.c.h.b16 %v2776
    %v3074 = vunpack.c.l.b16 %v2777
    %v3075 = vunpack.c.h.b16 %v2777
    %v3076 = vunpack.c.l.b16 %v2778
    %v3077 = vunpack.c.h.b16 %v2778
    %v3078 = vunpack.c.l.b16 %v2779
    %v3079 = vunpack.c.h.b16 %v2779
    %v3080 = vunpack.c.l.b16 %v2780
    %v3081 = vunpack.c.h.b16 %v2780
    %v3082 = vunpack.c.l.b16 %v2781
    %v3083 = vunpack.c.h.b16 %v2781
    %v3084 = vunpack.c.l.b16 %v2782
    %v3085 = vunpack.c.h.b16 %v2782
    %v3086 = vunpack.c.l.b16 %v2783
    %v3087 = vunpack.c.h.b16 %v2783
    %v3088 = vunpack.c.l.b16 %v2784
    %v3089 = vunpack.c.h.b16 %v2784
    %v3090 = vunpack.c.l.b16 %v2785
    %v3091 = vunpack.c.h.b16 %v2785
    %v3092 = vunpack.c.l.b16 %v2786
    %v3093 = vunpack.c.h.b16 %v2786
    %v3094 = vunpack.c.l.b16 %v2787
    %v3095 = vunpack.c.h.b16 %v2787
    %v3096 = vunpack.c.l.b16 %v2788
    %v3097 = vunpack.c.h.b16 %v2788
    %v3098 = vunpack.c.l.b16 %v2789
    %v3099 = vunpack.c.h.b16 %v2789
    %v3100 = vunpack.c.l.b16 %v2790
    %v3101 = vunpack.c.h.b16 %v2790
    %v3102 = vunpack.c.l.b16 %v2791
    %v3103 = vunpack.c.h.b16 %v2791
    %v3104 = vunpack.c.l.b16 %v2792
    %v3105 = vunpack.c.h.b16 %v2792
    %v3106 = vunpack.c.l.b16 %v2793
    %v3107 = vunpack.c.h.b16 %v2793
    %v3108 = vunpack.c.l.b16 %v2794
    %v3109 = vunpack.c.h.b16 %v2794
    %v3110 = vunpack.c.l.b16 %v2795
    %v3111 = vunpack.c.h.b16 %v2795
    %v3112 = vunpack.c.l.b16 %v2796
    %v3113 = vunpack.c.h.b16 %v2796
    %v3114 = vunpack.c.l.b16 %v2797
    %v3115 = vunpack.c.h.b16 %v2797
    %v3116 = vunpack.c.l.b16 %v2798
    %v3117 = vunpack.c.h.b16 %v2798
    %v3118 = vunpack.c.l.b16 %v2799
    %v3119 = vunpack.c.h.b16 %v2799
    %v3120 = vunpack.c.l.b16 %v2800
    %v3121 = vunpack.c.h.b16 %v2800
    %v3122 = vunpack.c.l.b16 %v2801
    %v3123 = vunpack.c.h.b16 %v2801
    %v3124 = vunpack.c.l.b16 %v2802
    %v3125 = vunpack.c.h.b16 %v2802
    %v3126 = vunpack.c.l.b16 %v2803
    %v3127 = vunpack.c.h.b16 %v2803
    %v3128 = vunpack.c.l.b16 %v2804
    %v3129 = vunpack.c.h.b16 %v2804
    %v3130 = vunpack.c.l.b16 %v2805
    %v3131 = vunpack.c.h.b16 %v2805
    %v3132 = vunpack.c.l.b16 %v2806
    %v3133 = vunpack.c.h.b16 %v2806
    %v3134 = vunpack.c.l.b16 %v2807
    %v3135 = vunpack.c.h.b16 %v2807
    %v3136 = vunpack.c.l.b16 %v2808
    %v3137 = vunpack.c.h.b16 %v2808
    %v3138 = vunpack.c.l.b16 %v2809
    %v3139 = vunpack.c.h.b16 %v2809
    %v3140 = vunpack.c.l.b16 %v2810
    %v3141 = vunpack.c.h.b16 %v2810
    %v3142 = vunpack.c.l.b16 %v2811
    %v3143 = vunpack.c.h.b16 %v2811
    %v3144 = vunpack.c.l.b16 %v2812
    %v3145 = vunpack.c.h.b16 %v2812
    %v3146 = vunpack.c.l.b16 %v2813
    %v3147 = vunpack.c.h.b16 %v2813
    %v3148 = vunpack.c.l.b16 %v2814
    %v3149 = vunpack.c.h.b16 %v2814
    %v3150 = vunpack.c.l.b16 %v2815
    %v3151 = vunpack.c.h.b16 %v2815
    %v3152 = vunpack.c.l.b16 %v2816
    %v3153 = vunpack.c.h.b16 %v2816
    %v3154 = vunpack.c.l.b16 %v2817
    %v3155 = vunpack.c.h.b16 %v2817
    %v3156 = vunpack.c.l.b16 %v2818
    %v3157 = vunpack.c.h.b16 %v2818
    %v3158 = vunpack.c.l.b16 %v2819
    %v3159 = vunpack.c.h.b16 %v2819
    %v3160 = vunpack.c.l.b16 %v2820
    %v3161 = vunpack.c.h.b16 %v2820
    %v3162 = vunpack.c.l.b16 %v2821
    %v3163 = vunpack.c.h.b16 %v2821
    %v3164 = vunpack.c.l.b16 %v2822
    %v3165 = vunpack.c.h.b16 %v2822
    %v3166 = vunpack.c.l.b16 %v2823
    %v3167 = vunpack.c.h.b16 %v2823
    %v3168 = vunpack.c.l.b16 %v2824
    %v3169 = vunpack.c.h.b16 %v2824
    %v3170 = vunpack.c.l.b16 %v2825
    %v3171 = vunpack.c.h.b16 %v2825
    %v3172 = vunpack.c.l.b16 %v2826
    %v3173 = vunpack.c.h.b16 %v2826
    %v3174 = vunpack.c.l.b16 %v2827
    %v3175 = vunpack.c.h.b16 %v2827
    %v3176 = vunpack.c.l.b16 %v2828
    %v3177 = vunpack.c.h.b16 %v2828
    %v3178 = vunpack.c.l.b16 %v2829
    %v3179 = vunpack.c.h.b16 %v2829
    %v3180 = vunpack.c.l.b16 %v2830
    %v3181 = vunpack.c.h.b16 %v2830
    %v3182 = vunpack.c.l.b16 %v2831
    %v3183 = vunpack.c.h.b16 %v2831
    %v3184 = vunpack.c.l.b16 %v2832
    %v3185 = vunpack.c.h.b16 %v2832
    %v3186 = vunpack.c.l.b16 %v2833
    %v3187 = vunpack.c.h.b16 %v2833
    %v3188 = vunpack.c.l.b16 %v2834
    %v3189 = vunpack.c.h.b16 %v2834
    %v3190 = vunpack.c.l.b16 %v2835
    %v3191 = vunpack.c.h.b16 %v2835
    %v3192 = vunpack.c.l.b16 %v2836
    %v3193 = vunpack.c.h.b16 %v2836
    %v3194 = vunpack.c.l.b16 %v2837
    %v3195 = vunpack.c.h.b16 %v2837
    %v3196 = vunpack.c.l.b16 %v2838
    %v3197 = vunpack.c.h.b16 %v2838
    %v3198 = vunpack.c.l.b16 %v2839
    %v3199 = vunpack.c.h.b16 %v2839
    %v3200 = vunpack.c.l.b16 %v2840
    %v3201 = vunpack.c.h.b16 %v2840
    %v3202 = vunpack.c.l.b16 %v2841
    %v3203 = vunpack.c.h.b16 %v2841
    %v3204 = vunpack.c.l.b16 %v2842
    %v3205 = vunpack.c.h.b16 %v2842
    %v3206 = vunpack.c.l.b16 %v2843
    %v3207 = vunpack.c.h.b16 %v2843
    %v3208 = vunpack.c.l.b16 %v2844
    %v3209 = vunpack.c.h.b16 %v2844
    %v3210 = vunpack.c.l.b16 %v2845
    %v3211 = vunpack.c.h.b16 %v2845
    %v3212 = vunpack.c.l.b16 %v2846
    %v3213 = vunpack.c.h.b16 %v2846
    %v3214 = vunpack.c.l.b16 %v2847
    %v3215 = vunpack.c.h.b16 %v2847
    %v3216 = vunpack.c.l.b16 %v2848
    %v3217 = vunpack.c.h.b16 %v2848
    %v3218 = vunpack.c.l.b16 %v2849
    %v3219 = vunpack.c.h.b16 %v2849
    %v3220 = vunpack.c.l.b16 %v2850
    %v3221 = vunpack.c.h.b16 %v2850
    %v3222 = vunpack.c.l.b16 %v2851
    %v3223 = vunpack.c.h.b16 %v2851
    %v3224 = vunpack.c.l.b16 %v2852
    %v3225 = vunpack.c.h.b16 %v2852
    %v3226 = vunpack.c.l.b16 %v2853
    %v3227 = vunpack.c.h.b16 %v2853
    %v3228 = vunpack.c.l.b16 %v2854
    %v3229 = vunpack.c.h.b16 %v2854
    %v3230 = vunpack.c.l.b16 %v2855
    %v3231 = vunpack.c.h.b16 %v2855
    %v3232 = vunpack.c.l.b16 %v2856
    %v3233 = vunpack.c.h.b16 %v2856
    %v3234 = vunpack.c.l.b16 %v2857
    %v3235 = vunpack.c.h.b16 %v2857
    %v3236 = vunpack.c.l.b16 %v2858
    %v3237 = vunpack.c.h.b16 %v2858
    %v3238 = vunpack.c.l.b16 %v2859
    %v3239 = vunpack.c.h.b16 %v2859
    %v3240 = vunpack.c.l.b16 %v2860
    %v3241 = vunpack.c.h.b16 %v2860
    %v3242 = vunpack.c.l.b16 %v2861
    %v3243 = vunpack.c.h.b16 %v2861
    %v3244 = vunpack.c.l.b16 %v2862
    %v3245 = vunpack.c.h.b16 %v2862
    %v3246 = vunpack.c.l.b16 %v2863
    %v3247 = vunpack.c.h.b16 %v2863
    %v3248 = vunpack.c.l.b16 %v2864
    %v3249 = vunpack.c.h.b16 %v2864
    %v3250 = vunpack.c.l.b16 %v2865
    %v3251 = vunpack.c.h.b16 %v2865
    %v3252 = vunpack.c.l.b16 %v2866
    %v3253 = vunpack.c.h.b16 %v2866
    %v3254 = vunpack.c.l.b16 %v2867
    %v3255 = vunpack.c.h.b16 %v2867
    %v3256 = vunpack.c.l.b16 %v2868
    %v3257 = vunpack.c.h.b16 %v2868
    %v3258 = vunpack.c.l.b16 %v2869
    %v3259 = vunpack.c.h.b16 %v2869
    %v3260 = vunpack.c.l.b16 %v2870
    %v3261 = vunpack.c.h.b16 %v2870
    %v3262 = vpack.c.b16 %v3014, %v3006
    %v3263 = vpack.c.b16 %v3015, %v3007
    %v3264 = vpack.c.b16 %v3016, %v3008
    %v3265 = vpack.c.b16 %v3017, %v3009
    %v3266 = vpack.c.b16 %v3018, %v3010
    %v3267 = vpack.c.b16 %v3019, %v3011
    %v3268 = vpack.c.b16 %v3020, %v3012
    %v3269 = vpack.c.b16 %v3021, %v3013
    %v3270 = vpack.c.b16 %v3030, %v3022
    %v3271 = vpack.c.b16 %v3031, %v3023
    %v3272 = vpack.c.b16 %v3032, %v3024
    %v3273 = vpack.c.b16 %v3033, %v3025
    %v3274 = vpack.c.b16 %v3034, %v3026
    %v3275 = vpack.c.b16 %v3035, %v3027
    %v3276 = vpack.c.b16 %v3036, %v3028
    %v3277 = vpack.c.b16 %v3037, %v3029
    %v3278 = vpack.c.b16 %v3046, %v3038
    %v3279 = vpack.c.b16 %v3047, %v3039
    %v3280 = vpack.c.b16 %v3048, %v3040
    %v3281 = vpack.c.b16 %v3049, %v3041
    %v3282 = vpack.c.b16 %v3050, %v3042
    %v3283 = vpack.c.b16 %v3051, %v3043
    %v3284 = vpack.c.b16 %v3052, %v3044
    %v3285 = vpack.c.b16 %v3053, %v3045
    %v3286 = vpack.c.b16 %v3062, %v3054
    %v3287 = vpack.c.b16 %v3063, %v3055
    %v3288 = vpack.c.b16 %v3064, %v3056
    %v3289 = vpack.c.b16 %v3065, %v3057
    %v3290 = vpack.c.b16 %v3066, %v3058
    %v3291 = vpack.c.b16 %v3067, %v3059
    %v3292 = vpack.c.b16 %v3068, %v3060
    %v3293 = vpack.c.b16 %v3069, %v3061
    %v3294 = vpack.c.b16 %v3078, %v3070
    %v3295 = vpack.c.b16 %v3079, %v3071
    %v3296 = vpack.c.b16 %v3080, %v3072
    %v3297 = vpack.c.b16 %v3081, %v3073
    %v3298 = vpack.c.b16 %v3082, %v3074
    %v3299 = vpack.c.b16 %v3083, %v3075
    %v3300 = vpack.c.b16 %v3084, %v3076
    %v3301 = vpack.c.b16 %v3085, %v3077
    %v3302 = vpack.c.b16 %v3094, %v3086
    %v3303 = vpack.c.b16 %v3095, %v3087
    %v3304 = vpack.c.b16 %v3096, %v3088
    %v3305 = vpack.c.b16 %v3097, %v3089
    %v3306 = vpack.c.b16 %v3098, %v3090
    %v3307 = vpack.c.b16 %v3099, %v3091
    %v3308 = vpack.c.b16 %v3100, %v3092
    %v3309 = vpack.c.b16 %v3101, %v3093
    %v3310 = vpack.c.b16 %v3110, %v3102
    %v3311 = vpack.c.b16 %v3111, %v3103
    %v3312 = vpack.c.b16 %v3112, %v3104
    %v3313 = vpack.c.b16 %v3113, %v3105
    %v3314 = vpack.c.b16 %v3114, %v3106
    %v3315 = vpack.c.b16 %v3115, %v3107
    %v3316 = vpack.c.b16 %v3116, %v3108
    %v3317 = vpack.c.b16 %v3117, %v3109
    %v3318 = vpack.c.b16 %v3126, %v3118
    %v3319 = vpack.c.b16 %v3127, %v3119
    %v3320 = vpack.c.b16 %v3128, %v3120
    %v3321 = vpack.c.b16 %v3129, %v3121
    %v3322 = vpack.c.b16 %v3130, %v3122
    %v3323 = vpack.c.b16 %v3131, %v3123
    %v3324 = vpack.c.b16 %v3132, %v3124
    %v3325 = vpack.c.b16 %v3133, %v3125
    %v3326 = vpack.c.b16 %v3142, %v3134
    %v3327 = vpack.c.b16 %v3143, %v3135
    %v3328 = vpack.c.b16 %v3144, %v3136
    %v3329 = vpack.c.b16 %v3145, %v3137
    %v3330 = vpack.c.b16 %v3146, %v3138
    %v3331 = vpack.c.b16 %v3147, %v3139
    %v3332 = vpack.c.b16 %v3148, %v3140
    %v3333 = vpack.c.b16 %v3149, %v3141
    %v3334 = vpack.c.b16 %v3158, %v3150
    %v3335 = vpack.c.b16 %v3159, %v3151
    %v3336 = vpack.c.b16 %v3160, %v3152
    %v3337 = vpack.c.b16 %v3161, %v3153
    %v3338 = vpack.c.b16 %v3162, %v3154
    %v3339 = vpack.c.b16 %v3163, %v3155
    %v3340 = vpack.c.b16 %v3164, %v3156
    %v3341 = vpack.c.b16 %v3165, %v3157
    %v3342 = vpack.c.b16 %v3174, %v3166
    %v3343 = vpack.c.b16 %v3175, %v3167
    %v3344 = vpack.c.b16 %v3176, %v3168
    %v3345 = vpack.c.b16 %v3177, %v3169
    %v3346 = vpack.c.b16 %v3178, %v3170
    %v3347 = vpack.c.b16 %v3179, %v3171
    %v3348 = vpack.c.b16 %v3180, %v3172
    %v3349 = vpack.c.b16 %v3181, %v3173
    %v3350 = vpack.c.b16 %v3190, %v3182
    %v3351 = vpack.c.b16 %v3191, %v3183
    %v3352 = vpack.c.b16 %v3192, %v3184
    %v3353 = vpack.c.b16 %v3193, %v3185
    %v3354 = vpack.c.b16 %v3194, %v3186
    %v3355 = vpack.c.b16 %v3195, %v3187
    %v3356 = vpack.c.b16 %v3196, %v3188
    %v3357 = vpack.c.b16 %v3197, %v3189
    %v3358 = vpack.c.b16 %v3206, %v3198
    %v3359 = vpack.c.b16 %v3207, %v3199
    %v3360 = vpack.c.b16 %v3208, %v3200
    %v3361 = vpack.c.b16 %v3209, %v3201
    %v3362 = vpack.c.b16 %v3210, %v3202
    %v3363 = vpack.c.b16 %v3211, %v3203
    %v3364 = vpack.c.b16 %v3212, %v3204
    %v3365 = vpack.c.b16 %v3213, %v3205
    %v3366 = vpack.c.b16 %v3222, %v3214
    %v3367 = vpack.c.b16 %v3223, %v3215
    %v3368 = vpack.c.b16 %v3224, %v3216
    %v3369 = vpack.c.b16 %v3225, %v3217
    %v3370 = vpack.c.b16 %v3226, %v3218
    %v3371 = vpack.c.b16 %v3227, %v3219
    %v3372 = vpack.c.b16 %v3228, %v3220
    %v3373 = vpack.c.b16 %v3229, %v3221
    %v3374 = vpack.c.b16 %v3238, %v3230
    %v3375 = vpack.c.b16 %v3239, %v3231
    %v3376 = vpack.c.b16 %v3240, %v3232
    %v3377 = vpack.c.b16 %v3241, %v3233
    %v3378 = vpack.c.b16 %v3242, %v3234
    %v3379 = vpack.c.b16 %v3243, %v3235
    %v3380 = vpack.c.b16 %v3244, %v3236
    %v3381 = vpack.c.b16 %v3245, %v3237
    %v3382 = vpack.c.b16 %v3254, %v3246
    %v3383 = vpack.c.b16 %v3255, %v3247
    %v3384 = vpack.c.b16 %v3256, %v3248
    %v3385 = vpack.c.b16 %v3257, %v3249
    %v3386 = vpack.c.b16 %v3258, %v3250
    %v3387 = vpack.c.b16 %v3259, %v3251
    %v3388 = vpack.c.b16 %v3260, %v3252
    %v3389 = vpack.c.b16 %v3261, %v3253
    %3518 = vmatpush.bf16.msra.mxu0 %v3318
    %3519 = vmatpush.bf16.msra.mxu0 %v3310
    %3520 = vmatpush.bf16.msra.mxu0 %v3302
    %3521 = vmatpush.bf16.msra.mxu0 %v3294
    %3522 = vmatpush.bf16.msra.mxu0 %v3286
    %3523 = vmatpush.bf16.msra.mxu0 %v3278
    %3524 = vmatpush.bf16.msra.mxu0 %v3270
    %3525 = vmatpush.bf16.msra.mxu0 %v3262
    %3526 = vmatmul.bf16.gmra.mxu0 %v2874
    %v3527 = vpop.f32.mrf.mxu0
    %v3528 = vadd.f32 0.0, %v3527
    %v3529 = vpop.f32.mrf.mxu0
    %3530 = vdwg.mxu0
    %3531 = vmatpush.bf16.msra.mxu0 %v3382
    %3532 = vmatpush.bf16.msra.mxu0 %v3374
    %3533 = vmatpush.bf16.msra.mxu0 %v3366
    %3534 = vmatpush.bf16.msra.mxu0 %v3358
    %3535 = vmatpush.bf16.msra.mxu0 %v3350
    %3536 = vmatpush.bf16.msra.mxu0 %v3342
    %3537 = vmatpush.bf16.msra.mxu0 %v3334
    %3538 = vmatpush.bf16.msra.mxu0 %v3326
    %3539 = vmatmul.bf16.gmra.mxu0 %v2875
    %v3540 = vpop.f32.mrf.mxu0
    %v3541 = vadd.f32 %v3528, %v3540
    %v3542 = vpop.f32.mrf.mxu0
    %3543 = vdwg.mxu0
    %3544 = vmatpush.bf16.msra.mxu0 %v3319
    %3545 = vmatpush.bf16.msra.mxu0 %v3311
    %3546 = vmatpush.bf16.msra.mxu0 %v3303
    %3547 = vmatpush.bf16.msra.mxu0 %v3295
    %3548 = vmatpush.bf16.msra.mxu0 %v3287
    %3549 = vmatpush.bf16.msra.mxu0 %v3279
    %3550 = vmatpush.bf16.msra.mxu0 %v3271
    %3551 = vmatpush.bf16.msra.mxu0 %v3263
    %3552 = vmatmul.bf16.gmra.mxu0 %v2874
    %v3553 = vpop.f32.mrf.mxu0
    %v3554 = vadd.f32 0.0, %v3553
    %v3555 = vpop.f32.mrf.mxu0
    %3556 = vdwg.mxu0
    %3557 = vmatpush.bf16.msra.mxu0 %v3383
    %3558 = vmatpush.bf16.msra.mxu0 %v3375
    %3559 = vmatpush.bf16.msra.mxu0 %v3367
    %3560 = vmatpush.bf16.msra.mxu0 %v3359
    %3561 = vmatpush.bf16.msra.mxu0 %v3351
    %3562 = vmatpush.bf16.msra.mxu0 %v3343
    %3563 = vmatpush.bf16.msra.mxu0 %v3335
    %3564 = vmatpush.bf16.msra.mxu0 %v3327
    %3565 = vmatmul.bf16.gmra.mxu0 %v2875
    %v3566 = vpop.f32.mrf.mxu0
    %v3567 = vadd.f32 %v3554, %v3566
    %v3568 = vpop.f32.mrf.mxu0
    %3569 = vdwg.mxu0
    %3570 = vmatpush.bf16.msra.mxu0 %v3320
    %3571 = vmatpush.bf16.msra.mxu0 %v3312
    %3572 = vmatpush.bf16.msra.mxu0 %v3304
    %3573 = vmatpush.bf16.msra.mxu0 %v3296
    %3574 = vmatpush.bf16.msra.mxu0 %v3288
    %3575 = vmatpush.bf16.msra.mxu0 %v3280
    %3576 = vmatpush.bf16.msra.mxu0 %v3272
    %3577 = vmatpush.bf16.msra.mxu0 %v3264
    %3578 = vmatmul.bf16.gmra.mxu0 %v2874
    %v3579 = vpop.f32.mrf.mxu0
    %v3580 = vadd.f32 0.0, %v3579
    %v3581 = vpop.f32.mrf.mxu0
    %3582 = vdwg.mxu0
    %3583 = vmatpush.bf16.msra.mxu0 %v3384
    %3584 = vmatpush.bf16.msra.mxu0 %v3376
    %3585 = vmatpush.bf16.msra.mxu0 %v3368
    %3586 = vmatpush.bf16.msra.mxu0 %v3360
    %3587 = vmatpush.bf16.msra.mxu0 %v3352
    %3588 = vmatpush.bf16.msra.mxu0 %v3344
    %3589 = vmatpush.bf16.msra.mxu0 %v3336
    %3590 = vmatpush.bf16.msra.mxu0 %v3328
    %3591 = vmatmul.bf16.gmra.mxu0 %v2875
    %v3592 = vpop.f32.mrf.mxu0
    %v3593 = vadd.f32 %v3580, %v3592
    %v3594 = vpop.f32.mrf.mxu0
    %3595 = vdwg.mxu0
    %3596 = vmatpush.bf16.msra.mxu0 %v3321
    %3597 = vmatpush.bf16.msra.mxu0 %v3313
    %3598 = vmatpush.bf16.msra.mxu0 %v3305
    %3599 = vmatpush.bf16.msra.mxu0 %v3297
    %3600 = vmatpush.bf16.msra.mxu0 %v3289
    %3601 = vmatpush.bf16.msra.mxu0 %v3281
    %3602 = vmatpush.bf16.msra.mxu0 %v3273
    %3603 = vmatpush.bf16.msra.mxu0 %v3265
    %3604 = vmatmul.bf16.gmra.mxu0 %v2874
    %v3605 = vpop.f32.mrf.mxu0
    %v3606 = vadd.f32 0.0, %v3605
    %v3607 = vpop.f32.mrf.mxu0
    %3608 = vdwg.mxu0
    %3609 = vmatpush.bf16.msra.mxu0 %v3385
    %3610 = vmatpush.bf16.msra.mxu0 %v3377
    %3611 = vmatpush.bf16.msra.mxu0 %v3369
    %3612 = vmatpush.bf16.msra.mxu0 %v3361
    %3613 = vmatpush.bf16.msra.mxu0 %v3353
    %3614 = vmatpush.bf16.msra.mxu0 %v3345
    %3615 = vmatpush.bf16.msra.mxu0 %v3337
    %3616 = vmatpush.bf16.msra.mxu0 %v3329
    %3617 = vmatmul.bf16.gmra.mxu0 %v2875
    %v3618 = vpop.f32.mrf.mxu0
    %v3619 = vadd.f32 %v3606, %v3618
    %v3620 = vpop.f32.mrf.mxu0
    %3621 = vdwg.mxu0
    %3622 = vmatpush.bf16.msra.mxu0 %v3322
    %3623 = vmatpush.bf16.msra.mxu0 %v3314
    %3624 = vmatpush.bf16.msra.mxu0 %v3306
    %3625 = vmatpush.bf16.msra.mxu0 %v3298
    %3626 = vmatpush.bf16.msra.mxu0 %v3290
    %3627 = vmatpush.bf16.msra.mxu0 %v3282
    %3628 = vmatpush.bf16.msra.mxu0 %v3274
    %3629 = vmatpush.bf16.msra.mxu0 %v3266
    %3630 = vmatmul.bf16.gmra.mxu0 %v2874
    %v3631 = vpop.f32.mrf.mxu0
    %v3632 = vadd.f32 0.0, %v3631
    %v3633 = vpop.f32.mrf.mxu0
    %3634 = vdwg.mxu0
    %3635 = vmatpush.bf16.msra.mxu0 %v3386
    %3636 = vmatpush.bf16.msra.mxu0 %v3378
    %3637 = vmatpush.bf16.msra.mxu0 %v3370
    %3638 = vmatpush.bf16.msra.mxu0 %v3362
    %3639 = vmatpush.bf16.msra.mxu0 %v3354
    %3640 = vmatpush.bf16.msra.mxu0 %v3346
    %3641 = vmatpush.bf16.msra.mxu0 %v3338
    %3642 = vmatpush.bf16.msra.mxu0 %v3330
    %3643 = vmatmul.bf16.gmra.mxu0 %v2875
    %v3644 = vpop.f32.mrf.mxu0
    %v3645 = vadd.f32 %v3632, %v3644
    %v3646 = vpop.f32.mrf.mxu0
    %3647 = vdwg.mxu0
    %3648 = vmatpush.bf16.msra.mxu0 %v3323
    %3649 = vmatpush.bf16.msra.mxu0 %v3315
    %3650 = vmatpush.bf16.msra.mxu0 %v3307
    %3651 = vmatpush.bf16.msra.mxu0 %v3299
    %3652 = vmatpush.bf16.msra.mxu0 %v3291
    %3653 = vmatpush.bf16.msra.mxu0 %v3283
    %3654 = vmatpush.bf16.msra.mxu0 %v3275
    %3655 = vmatpush.bf16.msra.mxu0 %v3267
    %3656 = vmatmul.bf16.gmra.mxu0 %v2874
    %v3657 = vpop.f32.mrf.mxu0
    %v3658 = vadd.f32 0.0, %v3657
    %v3659 = vpop.f32.mrf.mxu0
    %3660 = vdwg.mxu0
    %3661 = vmatpush.bf16.msra.mxu0 %v3387
    %3662 = vmatpush.bf16.msra.mxu0 %v3379
    %3663 = vmatpush.bf16.msra.mxu0 %v3371
    %3664 = vmatpush.bf16.msra.mxu0 %v3363
    %3665 = vmatpush.bf16.msra.mxu0 %v3355
    %3666 = vmatpush.bf16.msra.mxu0 %v3347
    %3667 = vmatpush.bf16.msra.mxu0 %v3339
    %3668 = vmatpush.bf16.msra.mxu0 %v3331
    %3669 = vmatmul.bf16.gmra.mxu0 %v2875
    %v3670 = vpop.f32.mrf.mxu0
    %v3671 = vadd.f32 %v3658, %v3670
    %v3672 = vpop.f32.mrf.mxu0
    %3673 = vdwg.mxu0
    %3674 = vmatpush.bf16.msra.mxu0 %v3324
    %3675 = vmatpush.bf16.msra.mxu0 %v3316
    %3676 = vmatpush.bf16.msra.mxu0 %v3308
    %3677 = vmatpush.bf16.msra.mxu0 %v3300
    %3678 = vmatpush.bf16.msra.mxu0 %v3292
    %3679 = vmatpush.bf16.msra.mxu0 %v3284
    %3680 = vmatpush.bf16.msra.mxu0 %v3276
    %3681 = vmatpush.bf16.msra.mxu0 %v3268
    %3682 = vmatmul.bf16.gmra.mxu0 %v2874
    %v3683 = vpop.f32.mrf.mxu0
    %v3684 = vadd.f32 0.0, %v3683
    %v3685 = vpop.f32.mrf.mxu0
    %3686 = vdwg.mxu0
    %3687 = vmatpush.bf16.msra.mxu0 %v3388
    %3688 = vmatpush.bf16.msra.mxu0 %v3380
    %3689 = vmatpush.bf16.msra.mxu0 %v3372
    %3690 = vmatpush.bf16.msra.mxu0 %v3364
    %3691 = vmatpush.bf16.msra.mxu0 %v3356
    %3692 = vmatpush.bf16.msra.mxu0 %v3348
    %3693 = vmatpush.bf16.msra.mxu0 %v3340
    %3694 = vmatpush.bf16.msra.mxu0 %v3332
    %3695 = vmatmul.bf16.gmra.mxu0 %v2875
    %v3696 = vpop.f32.mrf.mxu0
    %v3697 = vadd.f32 %v3684, %v3696
    %v3698 = vpop.f32.mrf.mxu0
    %3699 = vdwg.mxu0
    %3700 = vmatpush.bf16.msra.mxu0 %v3325
    %3701 = vmatpush.bf16.msra.mxu0 %v3317
    %3702 = vmatpush.bf16.msra.mxu0 %v3309
    %3703 = vmatpush.bf16.msra.mxu0 %v3301
    %3704 = vmatpush.bf16.msra.mxu0 %v3293
    %3705 = vmatpush.bf16.msra.mxu0 %v3285
    %3706 = vmatpush.bf16.msra.mxu0 %v3277
    %3707 = vmatpush.bf16.msra.mxu0 %v3269
    %3708 = vmatmul.bf16.gmra.mxu0 %v2874
    %v3709 = vpop.f32.mrf.mxu0
    %v3710 = vadd.f32 0.0, %v3709
    %v3711 = vpop.f32.mrf.mxu0
    %3712 = vdwg.mxu0
    %3713 = vmatpush.bf16.msra.mxu0 %v3389
    %3714 = vmatpush.bf16.msra.mxu0 %v3381
    %3715 = vmatpush.bf16.msra.mxu0 %v3373
    %3716 = vmatpush.bf16.msra.mxu0 %v3365
    %3717 = vmatpush.bf16.msra.mxu0 %v3357
    %3718 = vmatpush.bf16.msra.mxu0 %v3349
    %3719 = vmatpush.bf16.msra.mxu0 %v3341
    %3720 = vmatpush.bf16.msra.mxu0 %v3333
    %3721 = vmatmul.bf16.gmra.mxu0 %v2875
    %v3722 = vpop.f32.mrf.mxu0
    %v3723 = vadd.f32 %v3710, %v3722
    %v3724 = vpop.f32.mrf.mxu0
    %3725 = vdwg.mxu0
    %v3734 = vrot.slane %v3567, 7
    %v3735 = vrot.slane %v3593, 6
    %v3736 = vrot.slane %v3619, 5
    %v3737 = vrot.slane %v3645, 4
    %v3738 = vrot.slane %v3671, 3
    %v3739 = vrot.slane %v3697, 2
    %v3740 = vrot.slane %v3723, 1
    %v3741 = vsel %vm1628, %v3541, %v3734
    %v3742 = vsel %vm1630, %v3735, %v3736
    %v3743 = vsel %vm1632, %v3741, %v3742
    %v3744 = vsel %vm1634, %v3737, %v3738
    %v3745 = vsel %vm1636, %v3739, %v3740
    %v3746 = vsel %vm1638, %v3744, %v3745
    %v3747 = vsel %vm1640, %v3743, %v3746
    %v3749 = vadd.f32 %v2742, %v3747
    %v3750 = vmul.f32 %v3749, 0.5
    %v3751 = vtanh.pop %v3750
    %v3752 = vmul.f32 %v3751, 0.5
    %v3753 = vadd.f32 %v3752, 0.5
    %v3755 = vrot.slane %v3749, 2
    %v3757 = vmul.f32 %v3755, 0.5
    %v3758 = vtanh.pop %v3757
    %v3759 = vmul.f32 %v3758, 0.5
    %v3760 = vadd.f32 %v3759, 0.5
    %v3761 = vrot.slane %v3749, 4
    %v3763 = vtanh.pop %v3761
    %v3764 = vrot.slane %v3749, 6
    %v3766 = vmul.f32 %v3764, 0.5
    %v3767 = vtanh.pop %v3766
    %v3768 = vmul.f32 %v3767, 0.5
    %v3769 = vadd.f32 %v3768, 0.5
    %v3770 = vmul.f32 %v3760, %v2718
    %v3771 = vmul.f32 %v3753, %v3763
    %v3772 = vadd.f32 %v3770, %v3771
    %v3773 = vtanh.pop %v3772
    %v3774 = vmul.f32 %v3769, %v3773
    %v3776 = vperm.slane %v3774, 0
    %v3777 = vperm.slane %v3774, 1
    %v3780 = vpack.c.bf16 %v3777, %v3776
    %v3782 = vrot.slane %v3780, 7
    %vm3784 = vcmask 1041409
    %vm3785 = vsmask.f32 1280
    %vm3786 = vmand %vm3784, %vm3785
    %vm3787 = vcmask 1045509
    %vm3788 = vsmask.f32 5376
    %vm3789 = vmand %vm3787, %vm3788
    %vm3790 = vmor %vm3789, %vm3786
    %v3791 = vld [vmem:[#allocation14] sm:$0x22]
    %v3792 = vsel %vm3790, %v3782, %v3791
    %3793 = vst [vmem:[#allocation14] sm:$0x22] %v3792
    %s3794 = scalar_lea.vmem [#allocation2], 3
    %v3795 = vld [vmem:[%s3794] ss:$8 sm:$0xf]
    %v3796 = vld [vmem:[%s3794] ss:$8 sm:$0xf0]
    %v3797 = vor.u32 %v3795, %v3796
    %v3798 = vld [vmem:[#allocation11] sm:$0xff]
    %v3799 = vld [vmem:[#allocation11 + $0x8] sm:$0xff]
    %v3800 = vld [vmem:[#allocation11 + $0x10] sm:$0xff]
    %v3801 = vld [vmem:[#allocation11 + $0x18] sm:$0xff]
    %v3802 = vld [vmem:[#allocation11 + $0x20] sm:$0xff]
    %v3803 = vld [vmem:[#allocation11 + $0x28] sm:$0xff]
    %v3804 = vld [vmem:[#allocation11 + $0x30] sm:$0xff]
    %v3805 = vld [vmem:[#allocation11 + $0x38] sm:$0xff]
    %v3806 = vld [vmem:[#allocation11 + $0x40] sm:$0xff]
    %v3807 = vld [vmem:[#allocation11 + $0x48] sm:$0xff]
    %v3808 = vld [vmem:[#allocation11 + $0x50] sm:$0xff]
    %v3809 = vld [vmem:[#allocation11 + $0x58] sm:$0xff]
    %v3810 = vld [vmem:[#allocation11 + $0x60] sm:$0xff]
    %v3811 = vld [vmem:[#allocation11 + $0x68] sm:$0xff]
    %v3812 = vld [vmem:[#allocation11 + $0x70] sm:$0xff]
    %v3813 = vld [vmem:[#allocation11 + $0x78] sm:$0xff]
    %v3814 = vld [vmem:[#allocation11 + $0x80] sm:$0xff]
    %v3815 = vld [vmem:[#allocation11 + $0x88] sm:$0xff]
    %v3816 = vld [vmem:[#allocation11 + $0x90] sm:$0xff]
    %v3817 = vld [vmem:[#allocation11 + $0x98] sm:$0xff]
    %v3818 = vld [vmem:[#allocation11 + $0xa0] sm:$0xff]
    %v3819 = vld [vmem:[#allocation11 + $0xa8] sm:$0xff]
    %v3820 = vld [vmem:[#allocation11 + $0xb0] sm:$0xff]
    %v3821 = vld [vmem:[#allocation11 + $0xb8] sm:$0xff]
    %v3822 = vld [vmem:[#allocation11 + $0xc0] sm:$0xff]
    %v3823 = vld [vmem:[#allocation11 + $0xc8] sm:$0xff]
    %v3824 = vld [vmem:[#allocation11 + $0xd0] sm:$0xff]
    %v3825 = vld [vmem:[#allocation11 + $0xd8] sm:$0xff]
    %v3826 = vld [vmem:[#allocation11 + $0xe0] sm:$0xff]
    %v3827 = vld [vmem:[#allocation11 + $0xe8] sm:$0xff]
    %v3828 = vld [vmem:[#allocation11 + $0xf0] sm:$0xff]
    %v3829 = vld [vmem:[#allocation11 + $0xf8] sm:$0xff]
    %v3830 = vld [vmem:[#allocation11 + $0x100] sm:$0xff]
    %v3831 = vld [vmem:[#allocation11 + $0x108] sm:$0xff]
    %v3832 = vld [vmem:[#allocation11 + $0x110] sm:$0xff]
    %v3833 = vld [vmem:[#allocation11 + $0x118] sm:$0xff]
    %v3834 = vld [vmem:[#allocation11 + $0x120] sm:$0xff]
    %v3835 = vld [vmem:[#allocation11 + $0x128] sm:$0xff]
    %v3836 = vld [vmem:[#allocation11 + $0x130] sm:$0xff]
    %v3837 = vld [vmem:[#allocation11 + $0x138] sm:$0xff]
    %v3838 = vld [vmem:[#allocation11 + $0x140] sm:$0xff]
    %v3839 = vld [vmem:[#allocation11 + $0x148] sm:$0xff]
    %v3840 = vld [vmem:[#allocation11 + $0x150] sm:$0xff]
    %v3841 = vld [vmem:[#allocation11 + $0x158] sm:$0xff]
    %v3842 = vld [vmem:[#allocation11 + $0x160] sm:$0xff]
    %v3843 = vld [vmem:[#allocation11 + $0x168] sm:$0xff]
    %v3844 = vld [vmem:[#allocation11 + $0x170] sm:$0xff]
    %v3845 = vld [vmem:[#allocation11 + $0x178] sm:$0xff]
    %v3846 = vld [vmem:[#allocation11 + $0x180] sm:$0xff]
    %v3847 = vld [vmem:[#allocation11 + $0x188] sm:$0xff]
    %v3848 = vld [vmem:[#allocation11 + $0x190] sm:$0xff]
    %v3849 = vld [vmem:[#allocation11 + $0x198] sm:$0xff]
    %v3850 = vld [vmem:[#allocation11 + $0x1a0] sm:$0xff]
    %v3851 = vld [vmem:[#allocation11 + $0x1a8] sm:$0xff]
    %v3852 = vld [vmem:[#allocation11 + $0x1b0] sm:$0xff]
    %v3853 = vld [vmem:[#allocation11 + $0x1b8] sm:$0xff]
    %v3854 = vld [vmem:[#allocation11 + $0x1c0] sm:$0xff]
    %v3855 = vld [vmem:[#allocation11 + $0x1c8] sm:$0xff]
    %v3856 = vld [vmem:[#allocation11 + $0x1d0] sm:$0xff]
    %v3857 = vld [vmem:[#allocation11 + $0x1d8] sm:$0xff]
    %v3858 = vld [vmem:[#allocation11 + $0x1e0] sm:$0xff]
    %v3859 = vld [vmem:[#allocation11 + $0x1e8] sm:$0xff]
    %v3860 = vld [vmem:[#allocation11 + $0x1f0] sm:$0xff]
    %v3861 = vld [vmem:[#allocation11 + $0x1f8] sm:$0xff]
    %v3862 = vld [vmem:[#allocation11 + $0x200] sm:$0xff]
    %v3863 = vld [vmem:[#allocation11 + $0x208] sm:$0xff]
    %v3864 = vld [vmem:[#allocation11 + $0x210] sm:$0xff]
    %v3865 = vld [vmem:[#allocation11 + $0x218] sm:$0xff]
    %v3866 = vld [vmem:[#allocation11 + $0x220] sm:$0xff]
    %v3867 = vld [vmem:[#allocation11 + $0x228] sm:$0xff]
    %v3868 = vld [vmem:[#allocation11 + $0x230] sm:$0xff]
    %v3869 = vld [vmem:[#allocation11 + $0x238] sm:$0xff]
    %v3870 = vld [vmem:[#allocation11 + $0x240] sm:$0xff]
    %v3871 = vld [vmem:[#allocation11 + $0x248] sm:$0xff]
    %v3872 = vld [vmem:[#allocation11 + $0x250] sm:$0xff]
    %v3873 = vld [vmem:[#allocation11 + $0x258] sm:$0xff]
    %v3874 = vld [vmem:[#allocation11 + $0x260] sm:$0xff]
    %v3875 = vld [vmem:[#allocation11 + $0x268] sm:$0xff]
    %v3876 = vld [vmem:[#allocation11 + $0x270] sm:$0xff]
    %v3877 = vld [vmem:[#allocation11 + $0x278] sm:$0xff]
    %v3878 = vld [vmem:[#allocation11 + $0x280] sm:$0xff]
    %v3879 = vld [vmem:[#allocation11 + $0x288] sm:$0xff]
    %v3880 = vld [vmem:[#allocation11 + $0x290] sm:$0xff]
    %v3881 = vld [vmem:[#allocation11 + $0x298] sm:$0xff]
    %v3882 = vld [vmem:[#allocation11 + $0x2a0] sm:$0xff]
    %v3883 = vld [vmem:[#allocation11 + $0x2a8] sm:$0xff]
    %v3884 = vld [vmem:[#allocation11 + $0x2b0] sm:$0xff]
    %v3885 = vld [vmem:[#allocation11 + $0x2b8] sm:$0xff]
    %v3886 = vld [vmem:[#allocation11 + $0x2c0] sm:$0xff]
    %v3887 = vld [vmem:[#allocation11 + $0x2c8] sm:$0xff]
    %v3888 = vld [vmem:[#allocation11 + $0x2d0] sm:$0xff]
    %v3889 = vld [vmem:[#allocation11 + $0x2d8] sm:$0xff]
    %v3890 = vld [vmem:[#allocation11 + $0x2e0] sm:$0xff]
    %v3891 = vld [vmem:[#allocation11 + $0x2e8] sm:$0xff]
    %v3892 = vld [vmem:[#allocation11 + $0x2f0] sm:$0xff]
    %v3893 = vld [vmem:[#allocation11 + $0x2f8] sm:$0xff]
    %v3894 = vld [vmem:[#allocation11 + $0x300] sm:$0xff]
    %v3895 = vld [vmem:[#allocation11 + $0x308] sm:$0xff]
    %v3896 = vld [vmem:[#allocation11 + $0x310] sm:$0xff]
    %v3897 = vld [vmem:[#allocation11 + $0x318] sm:$0xff]
    %v3898 = vld [vmem:[#allocation11 + $0x320] sm:$0xff]
    %v3899 = vld [vmem:[#allocation11 + $0x328] sm:$0xff]
    %v3900 = vld [vmem:[#allocation11 + $0x330] sm:$0xff]
    %v3901 = vld [vmem:[#allocation11 + $0x338] sm:$0xff]
    %v3902 = vld [vmem:[#allocation11 + $0x340] sm:$0xff]
    %v3903 = vld [vmem:[#allocation11 + $0x348] sm:$0xff]
    %v3904 = vld [vmem:[#allocation11 + $0x350] sm:$0xff]
    %v3905 = vld [vmem:[#allocation11 + $0x358] sm:$0xff]
    %v3906 = vld [vmem:[#allocation11 + $0x360] sm:$0xff]
    %v3907 = vld [vmem:[#allocation11 + $0x368] sm:$0xff]
    %v3908 = vld [vmem:[#allocation11 + $0x370] sm:$0xff]
    %v3909 = vld [vmem:[#allocation11 + $0x378] sm:$0xff]
    %v3910 = vld [vmem:[#allocation11 + $0x380] sm:$0xff]
    %v3911 = vld [vmem:[#allocation11 + $0x388] sm:$0xff]
    %v3912 = vld [vmem:[#allocation11 + $0x390] sm:$0xff]
    %v3913 = vld [vmem:[#allocation11 + $0x398] sm:$0xff]
    %v3914 = vld [vmem:[#allocation11 + $0x3a0] sm:$0xff]
    %v3915 = vld [vmem:[#allocation11 + $0x3a8] sm:$0xff]
    %v3916 = vld [vmem:[#allocation11 + $0x3b0] sm:$0xff]
    %v3917 = vld [vmem:[#allocation11 + $0x3b8] sm:$0xff]
    %v3918 = vld [vmem:[#allocation11 + $0x3c0] sm:$0xff]
    %v3919 = vld [vmem:[#allocation11 + $0x3c8] sm:$0xff]
    %v3920 = vld [vmem:[#allocation11 + $0x3d0] sm:$0xff]
    %v3921 = vld [vmem:[#allocation11 + $0x3d8] sm:$0xff]
    %v3922 = vld [vmem:[#allocation11 + $0x3e0] sm:$0xff]
    %v3923 = vld [vmem:[#allocation11 + $0x3e8] sm:$0xff]
    %v3924 = vld [vmem:[#allocation11 + $0x3f0] sm:$0xff]
    %v3925 = vld [vmem:[#allocation11 + $0x3f8] sm:$0xff]
    %v3926 = vunpack.c.l.b16 %v3780
    %v3927 = vunpack.c.h.b16 %v3780
    %v3928 = vpack.c.b16 %v3926, %v3926
    %v3929 = vpack.c.b16 %v3927, %v3927
    %v4060 = vunpack.c.l.b16 %v3798
    %v4061 = vunpack.c.h.b16 %v3798
    %v4062 = vunpack.c.l.b16 %v3799
    %v4063 = vunpack.c.h.b16 %v3799
    %v4064 = vunpack.c.l.b16 %v3800
    %v4065 = vunpack.c.h.b16 %v3800
    %v4066 = vunpack.c.l.b16 %v3801
    %v4067 = vunpack.c.h.b16 %v3801
    %v4068 = vunpack.c.l.b16 %v3802
    %v4069 = vunpack.c.h.b16 %v3802
    %v4070 = vunpack.c.l.b16 %v3803
    %v4071 = vunpack.c.h.b16 %v3803
    %v4072 = vunpack.c.l.b16 %v3804
    %v4073 = vunpack.c.h.b16 %v3804
    %v4074 = vunpack.c.l.b16 %v3805
    %v4075 = vunpack.c.h.b16 %v3805
    %v4076 = vunpack.c.l.b16 %v3806
    %v4077 = vunpack.c.h.b16 %v3806
    %v4078 = vunpack.c.l.b16 %v3807
    %v4079 = vunpack.c.h.b16 %v3807
    %v4080 = vunpack.c.l.b16 %v3808
    %v4081 = vunpack.c.h.b16 %v3808
    %v4082 = vunpack.c.l.b16 %v3809
    %v4083 = vunpack.c.h.b16 %v3809
    %v4084 = vunpack.c.l.b16 %v3810
    %v4085 = vunpack.c.h.b16 %v3810
    %v4086 = vunpack.c.l.b16 %v3811
    %v4087 = vunpack.c.h.b16 %v3811
    %v4088 = vunpack.c.l.b16 %v3812
    %v4089 = vunpack.c.h.b16 %v3812
    %v4090 = vunpack.c.l.b16 %v3813
    %v4091 = vunpack.c.h.b16 %v3813
    %v4092 = vunpack.c.l.b16 %v3814
    %v4093 = vunpack.c.h.b16 %v3814
    %v4094 = vunpack.c.l.b16 %v3815
    %v4095 = vunpack.c.h.b16 %v3815
    %v4096 = vunpack.c.l.b16 %v3816
    %v4097 = vunpack.c.h.b16 %v3816
    %v4098 = vunpack.c.l.b16 %v3817
    %v4099 = vunpack.c.h.b16 %v3817
    %v4100 = vunpack.c.l.b16 %v3818
    %v4101 = vunpack.c.h.b16 %v3818
    %v4102 = vunpack.c.l.b16 %v3819
    %v4103 = vunpack.c.h.b16 %v3819
    %v4104 = vunpack.c.l.b16 %v3820
    %v4105 = vunpack.c.h.b16 %v3820
    %v4106 = vunpack.c.l.b16 %v3821
    %v4107 = vunpack.c.h.b16 %v3821
    %v4108 = vunpack.c.l.b16 %v3822
    %v4109 = vunpack.c.h.b16 %v3822
    %v4110 = vunpack.c.l.b16 %v3823
    %v4111 = vunpack.c.h.b16 %v3823
    %v4112 = vunpack.c.l.b16 %v3824
    %v4113 = vunpack.c.h.b16 %v3824
    %v4114 = vunpack.c.l.b16 %v3825
    %v4115 = vunpack.c.h.b16 %v3825
    %v4116 = vunpack.c.l.b16 %v3826
    %v4117 = vunpack.c.h.b16 %v3826
    %v4118 = vunpack.c.l.b16 %v3827
    %v4119 = vunpack.c.h.b16 %v3827
    %v4120 = vunpack.c.l.b16 %v3828
    %v4121 = vunpack.c.h.b16 %v3828
    %v4122 = vunpack.c.l.b16 %v3829
    %v4123 = vunpack.c.h.b16 %v3829
    %v4124 = vunpack.c.l.b16 %v3830
    %v4125 = vunpack.c.h.b16 %v3830
    %v4126 = vunpack.c.l.b16 %v3831
    %v4127 = vunpack.c.h.b16 %v3831
    %v4128 = vunpack.c.l.b16 %v3832
    %v4129 = vunpack.c.h.b16 %v3832
    %v4130 = vunpack.c.l.b16 %v3833
    %v4131 = vunpack.c.h.b16 %v3833
    %v4132 = vunpack.c.l.b16 %v3834
    %v4133 = vunpack.c.h.b16 %v3834
    %v4134 = vunpack.c.l.b16 %v3835
    %v4135 = vunpack.c.h.b16 %v3835
    %v4136 = vunpack.c.l.b16 %v3836
    %v4137 = vunpack.c.h.b16 %v3836
    %v4138 = vunpack.c.l.b16 %v3837
    %v4139 = vunpack.c.h.b16 %v3837
    %v4140 = vunpack.c.l.b16 %v3838
    %v4141 = vunpack.c.h.b16 %v3838
    %v4142 = vunpack.c.l.b16 %v3839
    %v4143 = vunpack.c.h.b16 %v3839
    %v4144 = vunpack.c.l.b16 %v3840
    %v4145 = vunpack.c.h.b16 %v3840
    %v4146 = vunpack.c.l.b16 %v3841
    %v4147 = vunpack.c.h.b16 %v3841
    %v4148 = vunpack.c.l.b16 %v3842
    %v4149 = vunpack.c.h.b16 %v3842
    %v4150 = vunpack.c.l.b16 %v3843
    %v4151 = vunpack.c.h.b16 %v3843
    %v4152 = vunpack.c.l.b16 %v3844
    %v4153 = vunpack.c.h.b16 %v3844
    %v4154 = vunpack.c.l.b16 %v3845
    %v4155 = vunpack.c.h.b16 %v3845
    %v4156 = vunpack.c.l.b16 %v3846
    %v4157 = vunpack.c.h.b16 %v3846
    %v4158 = vunpack.c.l.b16 %v3847
    %v4159 = vunpack.c.h.b16 %v3847
    %v4160 = vunpack.c.l.b16 %v3848
    %v4161 = vunpack.c.h.b16 %v3848
    %v4162 = vunpack.c.l.b16 %v3849
    %v4163 = vunpack.c.h.b16 %v3849
    %v4164 = vunpack.c.l.b16 %v3850
    %v4165 = vunpack.c.h.b16 %v3850
    %v4166 = vunpack.c.l.b16 %v3851
    %v4167 = vunpack.c.h.b16 %v3851
    %v4168 = vunpack.c.l.b16 %v3852
    %v4169 = vunpack.c.h.b16 %v3852
    %v4170 = vunpack.c.l.b16 %v3853
    %v4171 = vunpack.c.h.b16 %v3853
    %v4172 = vunpack.c.l.b16 %v3854
    %v4173 = vunpack.c.h.b16 %v3854
    %v4174 = vunpack.c.l.b16 %v3855
    %v4175 = vunpack.c.h.b16 %v3855
    %v4176 = vunpack.c.l.b16 %v3856
    %v4177 = vunpack.c.h.b16 %v3856
    %v4178 = vunpack.c.l.b16 %v3857
    %v4179 = vunpack.c.h.b16 %v3857
    %v4180 = vunpack.c.l.b16 %v3858
    %v4181 = vunpack.c.h.b16 %v3858
    %v4182 = vunpack.c.l.b16 %v3859
    %v4183 = vunpack.c.h.b16 %v3859
    %v4184 = vunpack.c.l.b16 %v3860
    %v4185 = vunpack.c.h.b16 %v3860
    %v4186 = vunpack.c.l.b16 %v3861
    %v4187 = vunpack.c.h.b16 %v3861
    %v4188 = vunpack.c.l.b16 %v3862
    %v4189 = vunpack.c.h.b16 %v3862
    %v4190 = vunpack.c.l.b16 %v3863
    %v4191 = vunpack.c.h.b16 %v3863
    %v4192 = vunpack.c.l.b16 %v3864
    %v4193 = vunpack.c.h.b16 %v3864
    %v4194 = vunpack.c.l.b16 %v3865
    %v4195 = vunpack.c.h.b16 %v3865
    %v4196 = vunpack.c.l.b16 %v3866
    %v4197 = vunpack.c.h.b16 %v3866
    %v4198 = vunpack.c.l.b16 %v3867
    %v4199 = vunpack.c.h.b16 %v3867
    %v4200 = vunpack.c.l.b16 %v3868
    %v4201 = vunpack.c.h.b16 %v3868
    %v4202 = vunpack.c.l.b16 %v3869
    %v4203 = vunpack.c.h.b16 %v3869
    %v4204 = vunpack.c.l.b16 %v3870
    %v4205 = vunpack.c.h.b16 %v3870
    %v4206 = vunpack.c.l.b16 %v3871
    %v4207 = vunpack.c.h.b16 %v3871
    %v4208 = vunpack.c.l.b16 %v3872
    %v4209 = vunpack.c.h.b16 %v3872
    %v4210 = vunpack.c.l.b16 %v3873
    %v4211 = vunpack.c.h.b16 %v3873
    %v4212 = vunpack.c.l.b16 %v3874
    %v4213 = vunpack.c.h.b16 %v3874
    %v4214 = vunpack.c.l.b16 %v3875
    %v4215 = vunpack.c.h.b16 %v3875
    %v4216 = vunpack.c.l.b16 %v3876
    %v4217 = vunpack.c.h.b16 %v3876
    %v4218 = vunpack.c.l.b16 %v3877
    %v4219 = vunpack.c.h.b16 %v3877
    %v4220 = vunpack.c.l.b16 %v3878
    %v4221 = vunpack.c.h.b16 %v3878
    %v4222 = vunpack.c.l.b16 %v3879
    %v4223 = vunpack.c.h.b16 %v3879
    %v4224 = vunpack.c.l.b16 %v3880
    %v4225 = vunpack.c.h.b16 %v3880
    %v4226 = vunpack.c.l.b16 %v3881
    %v4227 = vunpack.c.h.b16 %v3881
    %v4228 = vunpack.c.l.b16 %v3882
    %v4229 = vunpack.c.h.b16 %v3882
    %v4230 = vunpack.c.l.b16 %v3883
    %v4231 = vunpack.c.h.b16 %v3883
    %v4232 = vunpack.c.l.b16 %v3884
    %v4233 = vunpack.c.h.b16 %v3884
    %v4234 = vunpack.c.l.b16 %v3885
    %v4235 = vunpack.c.h.b16 %v3885
    %v4236 = vunpack.c.l.b16 %v3886
    %v4237 = vunpack.c.h.b16 %v3886
    %v4238 = vunpack.c.l.b16 %v3887
    %v4239 = vunpack.c.h.b16 %v3887
    %v4240 = vunpack.c.l.b16 %v3888
    %v4241 = vunpack.c.h.b16 %v3888
    %v4242 = vunpack.c.l.b16 %v3889
    %v4243 = vunpack.c.h.b16 %v3889
    %v4244 = vunpack.c.l.b16 %v3890
    %v4245 = vunpack.c.h.b16 %v3890
    %v4246 = vunpack.c.l.b16 %v3891
    %v4247 = vunpack.c.h.b16 %v3891
    %v4248 = vunpack.c.l.b16 %v3892
    %v4249 = vunpack.c.h.b16 %v3892
    %v4250 = vunpack.c.l.b16 %v3893
    %v4251 = vunpack.c.h.b16 %v3893
    %v4252 = vunpack.c.l.b16 %v3894
    %v4253 = vunpack.c.h.b16 %v3894
    %v4254 = vunpack.c.l.b16 %v3895
    %v4255 = vunpack.c.h.b16 %v3895
    %v4256 = vunpack.c.l.b16 %v3896
    %v4257 = vunpack.c.h.b16 %v3896
    %v4258 = vunpack.c.l.b16 %v3897
    %v4259 = vunpack.c.h.b16 %v3897
    %v4260 = vunpack.c.l.b16 %v3898
    %v4261 = vunpack.c.h.b16 %v3898
    %v4262 = vunpack.c.l.b16 %v3899
    %v4263 = vunpack.c.h.b16 %v3899
    %v4264 = vunpack.c.l.b16 %v3900
    %v4265 = vunpack.c.h.b16 %v3900
    %v4266 = vunpack.c.l.b16 %v3901
    %v4267 = vunpack.c.h.b16 %v3901
    %v4268 = vunpack.c.l.b16 %v3902
    %v4269 = vunpack.c.h.b16 %v3902
    %v4270 = vunpack.c.l.b16 %v3903
    %v4271 = vunpack.c.h.b16 %v3903
    %v4272 = vunpack.c.l.b16 %v3904
    %v4273 = vunpack.c.h.b16 %v3904
    %v4274 = vunpack.c.l.b16 %v3905
    %v4275 = vunpack.c.h.b16 %v3905
    %v4276 = vunpack.c.l.b16 %v3906
    %v4277 = vunpack.c.h.b16 %v3906
    %v4278 = vunpack.c.l.b16 %v3907
    %v4279 = vunpack.c.h.b16 %v3907
    %v4280 = vunpack.c.l.b16 %v3908
    %v4281 = vunpack.c.h.b16 %v3908
    %v4282 = vunpack.c.l.b16 %v3909
    %v4283 = vunpack.c.h.b16 %v3909
    %v4284 = vunpack.c.l.b16 %v3910
    %v4285 = vunpack.c.h.b16 %v3910
    %v4286 = vunpack.c.l.b16 %v3911
    %v4287 = vunpack.c.h.b16 %v3911
    %v4288 = vunpack.c.l.b16 %v3912
    %v4289 = vunpack.c.h.b16 %v3912
    %v4290 = vunpack.c.l.b16 %v3913
    %v4291 = vunpack.c.h.b16 %v3913
    %v4292 = vunpack.c.l.b16 %v3914
    %v4293 = vunpack.c.h.b16 %v3914
    %v4294 = vunpack.c.l.b16 %v3915
    %v4295 = vunpack.c.h.b16 %v3915
    %v4296 = vunpack.c.l.b16 %v3916
    %v4297 = vunpack.c.h.b16 %v3916
    %v4298 = vunpack.c.l.b16 %v3917
    %v4299 = vunpack.c.h.b16 %v3917
    %v4300 = vunpack.c.l.b16 %v3918
    %v4301 = vunpack.c.h.b16 %v3918
    %v4302 = vunpack.c.l.b16 %v3919
    %v4303 = vunpack.c.h.b16 %v3919
    %v4304 = vunpack.c.l.b16 %v3920
    %v4305 = vunpack.c.h.b16 %v3920
    %v4306 = vunpack.c.l.b16 %v3921
    %v4307 = vunpack.c.h.b16 %v3921
    %v4308 = vunpack.c.l.b16 %v3922
    %v4309 = vunpack.c.h.b16 %v3922
    %v4310 = vunpack.c.l.b16 %v3923
    %v4311 = vunpack.c.h.b16 %v3923
    %v4312 = vunpack.c.l.b16 %v3924
    %v4313 = vunpack.c.h.b16 %v3924
    %v4314 = vunpack.c.l.b16 %v3925
    %v4315 = vunpack.c.h.b16 %v3925
    %v4316 = vpack.c.b16 %v4068, %v4060
    %v4317 = vpack.c.b16 %v4069, %v4061
    %v4318 = vpack.c.b16 %v4070, %v4062
    %v4319 = vpack.c.b16 %v4071, %v4063
    %v4320 = vpack.c.b16 %v4072, %v4064
    %v4321 = vpack.c.b16 %v4073, %v4065
    %v4322 = vpack.c.b16 %v4074, %v4066
    %v4323 = vpack.c.b16 %v4075, %v4067
    %v4324 = vpack.c.b16 %v4084, %v4076
    %v4325 = vpack.c.b16 %v4085, %v4077
    %v4326 = vpack.c.b16 %v4086, %v4078
    %v4327 = vpack.c.b16 %v4087, %v4079
    %v4328 = vpack.c.b16 %v4088, %v4080
    %v4329 = vpack.c.b16 %v4089, %v4081
    %v4330 = vpack.c.b16 %v4090, %v4082
    %v4331 = vpack.c.b16 %v4091, %v4083
    %v4332 = vpack.c.b16 %v4100, %v4092
    %v4333 = vpack.c.b16 %v4101, %v4093
    %v4334 = vpack.c.b16 %v4102, %v4094
    %v4335 = vpack.c.b16 %v4103, %v4095
    %v4336 = vpack.c.b16 %v4104, %v4096
    %v4337 = vpack.c.b16 %v4105, %v4097
    %v4338 = vpack.c.b16 %v4106, %v4098
    %v4339 = vpack.c.b16 %v4107, %v4099
    %v4340 = vpack.c.b16 %v4116, %v4108
    %v4341 = vpack.c.b16 %v4117, %v4109
    %v4342 = vpack.c.b16 %v4118, %v4110
    %v4343 = vpack.c.b16 %v4119, %v4111
    %v4344 = vpack.c.b16 %v4120, %v4112
    %v4345 = vpack.c.b16 %v4121, %v4113
    %v4346 = vpack.c.b16 %v4122, %v4114
    %v4347 = vpack.c.b16 %v4123, %v4115
    %v4348 = vpack.c.b16 %v4132, %v4124
    %v4349 = vpack.c.b16 %v4133, %v4125
    %v4350 = vpack.c.b16 %v4134, %v4126
    %v4351 = vpack.c.b16 %v4135, %v4127
    %v4352 = vpack.c.b16 %v4136, %v4128
    %v4353 = vpack.c.b16 %v4137, %v4129
    %v4354 = vpack.c.b16 %v4138, %v4130
    %v4355 = vpack.c.b16 %v4139, %v4131
    %v4356 = vpack.c.b16 %v4148, %v4140
    %v4357 = vpack.c.b16 %v4149, %v4141
    %v4358 = vpack.c.b16 %v4150, %v4142
    %v4359 = vpack.c.b16 %v4151, %v4143
    %v4360 = vpack.c.b16 %v4152, %v4144
    %v4361 = vpack.c.b16 %v4153, %v4145
    %v4362 = vpack.c.b16 %v4154, %v4146
    %v4363 = vpack.c.b16 %v4155, %v4147
    %v4364 = vpack.c.b16 %v4164, %v4156
    %v4365 = vpack.c.b16 %v4165, %v4157
    %v4366 = vpack.c.b16 %v4166, %v4158
    %v4367 = vpack.c.b16 %v4167, %v4159
    %v4368 = vpack.c.b16 %v4168, %v4160
    %v4369 = vpack.c.b16 %v4169, %v4161
    %v4370 = vpack.c.b16 %v4170, %v4162
    %v4371 = vpack.c.b16 %v4171, %v4163
    %v4372 = vpack.c.b16 %v4180, %v4172
    %v4373 = vpack.c.b16 %v4181, %v4173
    %v4374 = vpack.c.b16 %v4182, %v4174
    %v4375 = vpack.c.b16 %v4183, %v4175
    %v4376 = vpack.c.b16 %v4184, %v4176
    %v4377 = vpack.c.b16 %v4185, %v4177
    %v4378 = vpack.c.b16 %v4186, %v4178
    %v4379 = vpack.c.b16 %v4187, %v4179
    %v4380 = vpack.c.b16 %v4196, %v4188
    %v4381 = vpack.c.b16 %v4197, %v4189
    %v4382 = vpack.c.b16 %v4198, %v4190
    %v4383 = vpack.c.b16 %v4199, %v4191
    %v4384 = vpack.c.b16 %v4200, %v4192
    %v4385 = vpack.c.b16 %v4201, %v4193
    %v4386 = vpack.c.b16 %v4202, %v4194
    %v4387 = vpack.c.b16 %v4203, %v4195
    %v4388 = vpack.c.b16 %v4212, %v4204
    %v4389 = vpack.c.b16 %v4213, %v4205
    %v4390 = vpack.c.b16 %v4214, %v4206
    %v4391 = vpack.c.b16 %v4215, %v4207
    %v4392 = vpack.c.b16 %v4216, %v4208
    %v4393 = vpack.c.b16 %v4217, %v4209
    %v4394 = vpack.c.b16 %v4218, %v4210
    %v4395 = vpack.c.b16 %v4219, %v4211
    %v4396 = vpack.c.b16 %v4228, %v4220
    %v4397 = vpack.c.b16 %v4229, %v4221
    %v4398 = vpack.c.b16 %v4230, %v4222
    %v4399 = vpack.c.b16 %v4231, %v4223
    %v4400 = vpack.c.b16 %v4232, %v4224
    %v4401 = vpack.c.b16 %v4233, %v4225
    %v4402 = vpack.c.b16 %v4234, %v4226
    %v4403 = vpack.c.b16 %v4235, %v4227
    %v4404 = vpack.c.b16 %v4244, %v4236
    %v4405 = vpack.c.b16 %v4245, %v4237
    %v4406 = vpack.c.b16 %v4246, %v4238
    %v4407 = vpack.c.b16 %v4247, %v4239
    %v4408 = vpack.c.b16 %v4248, %v4240
    %v4409 = vpack.c.b16 %v4249, %v4241
    %v4410 = vpack.c.b16 %v4250, %v4242
    %v4411 = vpack.c.b16 %v4251, %v4243
    %v4412 = vpack.c.b16 %v4260, %v4252
    %v4413 = vpack.c.b16 %v4261, %v4253
    %v4414 = vpack.c.b16 %v4262, %v4254
    %v4415 = vpack.c.b16 %v4263, %v4255
    %v4416 = vpack.c.b16 %v4264, %v4256
    %v4417 = vpack.c.b16 %v4265, %v4257
    %v4418 = vpack.c.b16 %v4266, %v4258
    %v4419 = vpack.c.b16 %v4267, %v4259
    %v4420 = vpack.c.b16 %v4276, %v4268
    %v4421 = vpack.c.b16 %v4277, %v4269
    %v4422 = vpack.c.b16 %v4278, %v4270
    %v4423 = vpack.c.b16 %v4279, %v4271
    %v4424 = vpack.c.b16 %v4280, %v4272
    %v4425 = vpack.c.b16 %v4281, %v4273
    %v4426 = vpack.c.b16 %v4282, %v4274
    %v4427 = vpack.c.b16 %v4283, %v4275
    %v4428 = vpack.c.b16 %v4292, %v4284
    %v4429 = vpack.c.b16 %v4293, %v4285
    %v4430 = vpack.c.b16 %v4294, %v4286
    %v4431 = vpack.c.b16 %v4295, %v4287
    %v4432 = vpack.c.b16 %v4296, %v4288
    %v4433 = vpack.c.b16 %v4297, %v4289
    %v4434 = vpack.c.b16 %v4298, %v4290
    %v4435 = vpack.c.b16 %v4299, %v4291
    %v4436 = vpack.c.b16 %v4308, %v4300
    %v4437 = vpack.c.b16 %v4309, %v4301
    %v4438 = vpack.c.b16 %v4310, %v4302
    %v4439 = vpack.c.b16 %v4311, %v4303
    %v4440 = vpack.c.b16 %v4312, %v4304
    %v4441 = vpack.c.b16 %v4313, %v4305
    %v4442 = vpack.c.b16 %v4314, %v4306
    %v4443 = vpack.c.b16 %v4315, %v4307
    %4572 = vmatpush.bf16.msra.mxu0 %v4372
    %4573 = vmatpush.bf16.msra.mxu0 %v4364
    %4574 = vmatpush.bf16.msra.mxu0 %v4356
    %4575 = vmatpush.bf16.msra.mxu0 %v4348
    %4576 = vmatpush.bf16.msra.mxu0 %v4340
    %4577 = vmatpush.bf16.msra.mxu0 %v4332
    %4578 = vmatpush.bf16.msra.mxu0 %v4324
    %4579 = vmatpush.bf16.msra.mxu0 %v4316
    %4580 = vmatmul.bf16.gmra.mxu0 %v3928
    %v4581 = vpop.f32.mrf.mxu0
    %v4582 = vadd.f32 0.0, %v4581
    %v4583 = vpop.f32.mrf.mxu0
    %4584 = vdwg.mxu0
    %4585 = vmatpush.bf16.msra.mxu0 %v4436
    %4586 = vmatpush.bf16.msra.mxu0 %v4428
    %4587 = vmatpush.bf16.msra.mxu0 %v4420
    %4588 = vmatpush.bf16.msra.mxu0 %v4412
    %4589 = vmatpush.bf16.msra.mxu0 %v4404
    %4590 = vmatpush.bf16.msra.mxu0 %v4396
    %4591 = vmatpush.bf16.msra.mxu0 %v4388
    %4592 = vmatpush.bf16.msra.mxu0 %v4380
    %4593 = vmatmul.bf16.gmra.mxu0 %v3929
    %v4594 = vpop.f32.mrf.mxu0
    %v4595 = vadd.f32 %v4582, %v4594
    %v4596 = vpop.f32.mrf.mxu0
    %4597 = vdwg.mxu0
    %4598 = vmatpush.bf16.msra.mxu0 %v4373
    %4599 = vmatpush.bf16.msra.mxu0 %v4365
    %4600 = vmatpush.bf16.msra.mxu0 %v4357
    %4601 = vmatpush.bf16.msra.mxu0 %v4349
    %4602 = vmatpush.bf16.msra.mxu0 %v4341
    %4603 = vmatpush.bf16.msra.mxu0 %v4333
    %4604 = vmatpush.bf16.msra.mxu0 %v4325
    %4605 = vmatpush.bf16.msra.mxu0 %v4317
    %4606 = vmatmul.bf16.gmra.mxu0 %v3928
    %v4607 = vpop.f32.mrf.mxu0
    %v4608 = vadd.f32 0.0, %v4607
    %v4609 = vpop.f32.mrf.mxu0
    %4610 = vdwg.mxu0
    %4611 = vmatpush.bf16.msra.mxu0 %v4437
    %4612 = vmatpush.bf16.msra.mxu0 %v4429
    %4613 = vmatpush.bf16.msra.mxu0 %v4421
    %4614 = vmatpush.bf16.msra.mxu0 %v4413
    %4615 = vmatpush.bf16.msra.mxu0 %v4405
    %4616 = vmatpush.bf16.msra.mxu0 %v4397
    %4617 = vmatpush.bf16.msra.mxu0 %v4389
    %4618 = vmatpush.bf16.msra.mxu0 %v4381
    %4619 = vmatmul.bf16.gmra.mxu0 %v3929
    %v4620 = vpop.f32.mrf.mxu0
    %v4621 = vadd.f32 %v4608, %v4620
    %v4622 = vpop.f32.mrf.mxu0
    %4623 = vdwg.mxu0
    %4624 = vmatpush.bf16.msra.mxu0 %v4374
    %4625 = vmatpush.bf16.msra.mxu0 %v4366
    %4626 = vmatpush.bf16.msra.mxu0 %v4358
    %4627 = vmatpush.bf16.msra.mxu0 %v4350
    %4628 = vmatpush.bf16.msra.mxu0 %v4342
    %4629 = vmatpush.bf16.msra.mxu0 %v4334
    %4630 = vmatpush.bf16.msra.mxu0 %v4326
    %4631 = vmatpush.bf16.msra.mxu0 %v4318
    %4632 = vmatmul.bf16.gmra.mxu0 %v3928
    %v4633 = vpop.f32.mrf.mxu0
    %v4634 = vadd.f32 0.0, %v4633
    %v4635 = vpop.f32.mrf.mxu0
    %4636 = vdwg.mxu0
    %4637 = vmatpush.bf16.msra.mxu0 %v4438
    %4638 = vmatpush.bf16.msra.mxu0 %v4430
    %4639 = vmatpush.bf16.msra.mxu0 %v4422
    %4640 = vmatpush.bf16.msra.mxu0 %v4414
    %4641 = vmatpush.bf16.msra.mxu0 %v4406
    %4642 = vmatpush.bf16.msra.mxu0 %v4398
    %4643 = vmatpush.bf16.msra.mxu0 %v4390
    %4644 = vmatpush.bf16.msra.mxu0 %v4382
    %4645 = vmatmul.bf16.gmra.mxu0 %v3929
    %v4646 = vpop.f32.mrf.mxu0
    %v4647 = vadd.f32 %v4634, %v4646
    %v4648 = vpop.f32.mrf.mxu0
    %4649 = vdwg.mxu0
    %4650 = vmatpush.bf16.msra.mxu0 %v4375
    %4651 = vmatpush.bf16.msra.mxu0 %v4367
    %4652 = vmatpush.bf16.msra.mxu0 %v4359
    %4653 = vmatpush.bf16.msra.mxu0 %v4351
    %4654 = vmatpush.bf16.msra.mxu0 %v4343
    %4655 = vmatpush.bf16.msra.mxu0 %v4335
    %4656 = vmatpush.bf16.msra.mxu0 %v4327
    %4657 = vmatpush.bf16.msra.mxu0 %v4319
    %4658 = vmatmul.bf16.gmra.mxu0 %v3928
    %v4659 = vpop.f32.mrf.mxu0
    %v4660 = vadd.f32 0.0, %v4659
    %v4661 = vpop.f32.mrf.mxu0
    %4662 = vdwg.mxu0
    %4663 = vmatpush.bf16.msra.mxu0 %v4439
    %4664 = vmatpush.bf16.msra.mxu0 %v4431
    %4665 = vmatpush.bf16.msra.mxu0 %v4423
    %4666 = vmatpush.bf16.msra.mxu0 %v4415
    %4667 = vmatpush.bf16.msra.mxu0 %v4407
    %4668 = vmatpush.bf16.msra.mxu0 %v4399
    %4669 = vmatpush.bf16.msra.mxu0 %v4391
    %4670 = vmatpush.bf16.msra.mxu0 %v4383
    %4671 = vmatmul.bf16.gmra.mxu0 %v3929
    %v4672 = vpop.f32.mrf.mxu0
    %v4673 = vadd.f32 %v4660, %v4672
    %v4674 = vpop.f32.mrf.mxu0
    %4675 = vdwg.mxu0
    %4676 = vmatpush.bf16.msra.mxu0 %v4376
    %4677 = vmatpush.bf16.msra.mxu0 %v4368
    %4678 = vmatpush.bf16.msra.mxu0 %v4360
    %4679 = vmatpush.bf16.msra.mxu0 %v4352
    %4680 = vmatpush.bf16.msra.mxu0 %v4344
    %4681 = vmatpush.bf16.msra.mxu0 %v4336
    %4682 = vmatpush.bf16.msra.mxu0 %v4328
    %4683 = vmatpush.bf16.msra.mxu0 %v4320
    %4684 = vmatmul.bf16.gmra.mxu0 %v3928
    %v4685 = vpop.f32.mrf.mxu0
    %v4686 = vadd.f32 0.0, %v4685
    %v4687 = vpop.f32.mrf.mxu0
    %4688 = vdwg.mxu0
    %4689 = vmatpush.bf16.msra.mxu0 %v4440
    %4690 = vmatpush.bf16.msra.mxu0 %v4432
    %4691 = vmatpush.bf16.msra.mxu0 %v4424
    %4692 = vmatpush.bf16.msra.mxu0 %v4416
    %4693 = vmatpush.bf16.msra.mxu0 %v4408
    %4694 = vmatpush.bf16.msra.mxu0 %v4400
    %4695 = vmatpush.bf16.msra.mxu0 %v4392
    %4696 = vmatpush.bf16.msra.mxu0 %v4384
    %4697 = vmatmul.bf16.gmra.mxu0 %v3929
    %v4698 = vpop.f32.mrf.mxu0
    %v4699 = vadd.f32 %v4686, %v4698
    %v4700 = vpop.f32.mrf.mxu0
    %4701 = vdwg.mxu0
    %4702 = vmatpush.bf16.msra.mxu0 %v4377
    %4703 = vmatpush.bf16.msra.mxu0 %v4369
    %4704 = vmatpush.bf16.msra.mxu0 %v4361
    %4705 = vmatpush.bf16.msra.mxu0 %v4353
    %4706 = vmatpush.bf16.msra.mxu0 %v4345
    %4707 = vmatpush.bf16.msra.mxu0 %v4337
    %4708 = vmatpush.bf16.msra.mxu0 %v4329
    %4709 = vmatpush.bf16.msra.mxu0 %v4321
    %4710 = vmatmul.bf16.gmra.mxu0 %v3928
    %v4711 = vpop.f32.mrf.mxu0
    %v4712 = vadd.f32 0.0, %v4711
    %v4713 = vpop.f32.mrf.mxu0
    %4714 = vdwg.mxu0
    %4715 = vmatpush.bf16.msra.mxu0 %v4441
    %4716 = vmatpush.bf16.msra.mxu0 %v4433
    %4717 = vmatpush.bf16.msra.mxu0 %v4425
    %4718 = vmatpush.bf16.msra.mxu0 %v4417
    %4719 = vmatpush.bf16.msra.mxu0 %v4409
    %4720 = vmatpush.bf16.msra.mxu0 %v4401
    %4721 = vmatpush.bf16.msra.mxu0 %v4393
    %4722 = vmatpush.bf16.msra.mxu0 %v4385
    %4723 = vmatmul.bf16.gmra.mxu0 %v3929
    %v4724 = vpop.f32.mrf.mxu0
    %v4725 = vadd.f32 %v4712, %v4724
    %v4726 = vpop.f32.mrf.mxu0
    %4727 = vdwg.mxu0
    %4728 = vmatpush.bf16.msra.mxu0 %v4378
    %4729 = vmatpush.bf16.msra.mxu0 %v4370
    %4730 = vmatpush.bf16.msra.mxu0 %v4362
    %4731 = vmatpush.bf16.msra.mxu0 %v4354
    %4732 = vmatpush.bf16.msra.mxu0 %v4346
    %4733 = vmatpush.bf16.msra.mxu0 %v4338
    %4734 = vmatpush.bf16.msra.mxu0 %v4330
    %4735 = vmatpush.bf16.msra.mxu0 %v4322
    %4736 = vmatmul.bf16.gmra.mxu0 %v3928
    %v4737 = vpop.f32.mrf.mxu0
    %v4738 = vadd.f32 0.0, %v4737
    %v4739 = vpop.f32.mrf.mxu0
    %4740 = vdwg.mxu0
    %4741 = vmatpush.bf16.msra.mxu0 %v4442
    %4742 = vmatpush.bf16.msra.mxu0 %v4434
    %4743 = vmatpush.bf16.msra.mxu0 %v4426
    %4744 = vmatpush.bf16.msra.mxu0 %v4418
    %4745 = vmatpush.bf16.msra.mxu0 %v4410
    %4746 = vmatpush.bf16.msra.mxu0 %v4402
    %4747 = vmatpush.bf16.msra.mxu0 %v4394
    %4748 = vmatpush.bf16.msra.mxu0 %v4386
    %4749 = vmatmul.bf16.gmra.mxu0 %v3929
    %v4750 = vpop.f32.mrf.mxu0
    %v4751 = vadd.f32 %v4738, %v4750
    %v4752 = vpop.f32.mrf.mxu0
    %4753 = vdwg.mxu0
    %4754 = vmatpush.bf16.msra.mxu0 %v4379
    %4755 = vmatpush.bf16.msra.mxu0 %v4371
    %4756 = vmatpush.bf16.msra.mxu0 %v4363
    %4757 = vmatpush.bf16.msra.mxu0 %v4355
    %4758 = vmatpush.bf16.msra.mxu0 %v4347
    %4759 = vmatpush.bf16.msra.mxu0 %v4339
    %4760 = vmatpush.bf16.msra.mxu0 %v4331
    %4761 = vmatpush.bf16.msra.mxu0 %v4323
    %4762 = vmatmul.bf16.gmra.mxu0 %v3928
    %v4763 = vpop.f32.mrf.mxu0
    %v4764 = vadd.f32 0.0, %v4763
    %v4765 = vpop.f32.mrf.mxu0
    %4766 = vdwg.mxu0
    %4767 = vmatpush.bf16.msra.mxu0 %v4443
    %4768 = vmatpush.bf16.msra.mxu0 %v4435
    %4769 = vmatpush.bf16.msra.mxu0 %v4427
    %4770 = vmatpush.bf16.msra.mxu0 %v4419
    %4771 = vmatpush.bf16.msra.mxu0 %v4411
    %4772 = vmatpush.bf16.msra.mxu0 %v4403
    %4773 = vmatpush.bf16.msra.mxu0 %v4395
    %4774 = vmatpush.bf16.msra.mxu0 %v4387
    %4775 = vmatmul.bf16.gmra.mxu0 %v3929
    %v4776 = vpop.f32.mrf.mxu0
    %v4777 = vadd.f32 %v4764, %v4776
    %v4778 = vpop.f32.mrf.mxu0
    %4779 = vdwg.mxu0
    %v4788 = vrot.slane %v4621, 7
    %v4789 = vrot.slane %v4647, 6
    %v4790 = vrot.slane %v4673, 5
    %v4791 = vrot.slane %v4699, 4
    %v4792 = vrot.slane %v4725, 3
    %v4793 = vrot.slane %v4751, 2
    %v4794 = vrot.slane %v4777, 1
    %v4795 = vsel %vm1628, %v4595, %v4788
    %v4796 = vsel %vm1630, %v4789, %v4790
    %v4797 = vsel %vm1632, %v4795, %v4796
    %v4798 = vsel %vm1634, %v4791, %v4792
    %v4799 = vsel %vm1636, %v4793, %v4794
    %v4800 = vsel %vm1638, %v4798, %v4799
    %v4801 = vsel %vm1640, %v4797, %v4800
    %v4803 = vadd.f32 %v3797, %v4801
    %v4804 = vmul.f32 %v4803, 0.5
    %v4805 = vtanh.pop %v4804
    %v4806 = vmul.f32 %v4805, 0.5
    %v4807 = vadd.f32 %v4806, 0.5
    %v4809 = vrot.slane %v4803, 2
    %v4811 = vmul.f32 %v4809, 0.5
    %v4812 = vtanh.pop %v4811
    %v4813 = vmul.f32 %v4812, 0.5
    %v4814 = vadd.f32 %v4813, 0.5
    %v4815 = vrot.slane %v4803, 4
    %v4817 = vtanh.pop %v4815
    %v4818 = vrot.slane %v4803, 6
    %v4820 = vmul.f32 %v4818, 0.5
    %v4821 = vtanh.pop %v4820
    %v4822 = vmul.f32 %v4821, 0.5
    %v4823 = vadd.f32 %v4822, 0.5
    %v4824 = vmul.f32 %v4814, %v3772
    %v4825 = vmul.f32 %v4807, %v4817
    %v4826 = vadd.f32 %v4824, %v4825
    %v4827 = vtanh.pop %v4826
    %v4828 = vmul.f32 %v4823, %v4827
    %v4830 = vperm.slane %v4828, 0
    %v4831 = vperm.slane %v4828, 1
    %v4834 = vpack.c.bf16 %v4831, %v4830
    %v4836 = vshll.u32 %v4834, 16
    %v4838 = vrot.slane %v4836, 7
    %vm4840 = vsmask.f32 7942
    %vm4841 = vmand %vm3784, %vm4840
    %vm4842 = vsmask.f32 7958
    %vm4843 = vmand %vm3787, %vm4842
    %vm4844 = vmor %vm4843, %vm4841
    %v4845 = vld [vmem:[#allocation14] sm:$0x22]
    %v4846 = vsel %vm4844, %v4838, %v4845
    %4847 = vst [vmem:[#allocation14] sm:$0x22] %v4846
    %s4848 = scalar_lea.vmem [#allocation2], 4
    %v4849 = vld [vmem:[%s4848] ss:$8 sm:$0xf]
    %v4850 = vld [vmem:[%s4848] ss:$8 sm:$0xf0]
    %v4851 = vor.u32 %v4849, %v4850
    %v4852 = vld [vmem:[#allocation11] sm:$0xff]
    %v4853 = vld [vmem:[#allocation11 + $0x8] sm:$0xff]
    %v4854 = vld [vmem:[#allocation11 + $0x10] sm:$0xff]
    %v4855 = vld [vmem:[#allocation11 + $0x18] sm:$0xff]
    %v4856 = vld [vmem:[#allocation11 + $0x20] sm:$0xff]
    %v4857 = vld [vmem:[#allocation11 + $0x28] sm:$0xff]
    %v4858 = vld [vmem:[#allocation11 + $0x30] sm:$0xff]
    %v4859 = vld [vmem:[#allocation11 + $0x38] sm:$0xff]
    %v4860 = vld [vmem:[#allocation11 + $0x40] sm:$0xff]
    %v4861 = vld [vmem:[#allocation11 + $0x48] sm:$0xff]
    %v4862 = vld [vmem:[#allocation11 + $0x50] sm:$0xff]
    %v4863 = vld [vmem:[#allocation11 + $0x58] sm:$0xff]
    %v4864 = vld [vmem:[#allocation11 + $0x60] sm:$0xff]
    %v4865 = vld [vmem:[#allocation11 + $0x68] sm:$0xff]
    %v4866 = vld [vmem:[#allocation11 + $0x70] sm:$0xff]
    %v4867 = vld [vmem:[#allocation11 + $0x78] sm:$0xff]
    %v4868 = vld [vmem:[#allocation11 + $0x80] sm:$0xff]
    %v4869 = vld [vmem:[#allocation11 + $0x88] sm:$0xff]
    %v4870 = vld [vmem:[#allocation11 + $0x90] sm:$0xff]
    %v4871 = vld [vmem:[#allocation11 + $0x98] sm:$0xff]
    %v4872 = vld [vmem:[#allocation11 + $0xa0] sm:$0xff]
    %v4873 = vld [vmem:[#allocation11 + $0xa8] sm:$0xff]
    %v4874 = vld [vmem:[#allocation11 + $0xb0] sm:$0xff]
    %v4875 = vld [vmem:[#allocation11 + $0xb8] sm:$0xff]
    %v4876 = vld [vmem:[#allocation11 + $0xc0] sm:$0xff]
    %v4877 = vld [vmem:[#allocation11 + $0xc8] sm:$0xff]
    %v4878 = vld [vmem:[#allocation11 + $0xd0] sm:$0xff]
    %v4879 = vld [vmem:[#allocation11 + $0xd8] sm:$0xff]
    %v4880 = vld [vmem:[#allocation11 + $0xe0] sm:$0xff]
    %v4881 = vld [vmem:[#allocation11 + $0xe8] sm:$0xff]
    %v4882 = vld [vmem:[#allocation11 + $0xf0] sm:$0xff]
    %v4883 = vld [vmem:[#allocation11 + $0xf8] sm:$0xff]
    %v4884 = vld [vmem:[#allocation11 + $0x100] sm:$0xff]
    %v4885 = vld [vmem:[#allocation11 + $0x108] sm:$0xff]
    %v4886 = vld [vmem:[#allocation11 + $0x110] sm:$0xff]
    %v4887 = vld [vmem:[#allocation11 + $0x118] sm:$0xff]
    %v4888 = vld [vmem:[#allocation11 + $0x120] sm:$0xff]
    %v4889 = vld [vmem:[#allocation11 + $0x128] sm:$0xff]
    %v4890 = vld [vmem:[#allocation11 + $0x130] sm:$0xff]
    %v4891 = vld [vmem:[#allocation11 + $0x138] sm:$0xff]
    %v4892 = vld [vmem:[#allocation11 + $0x140] sm:$0xff]
    %v4893 = vld [vmem:[#allocation11 + $0x148] sm:$0xff]
    %v4894 = vld [vmem:[#allocation11 + $0x150] sm:$0xff]
    %v4895 = vld [vmem:[#allocation11 + $0x158] sm:$0xff]
    %v4896 = vld [vmem:[#allocation11 + $0x160] sm:$0xff]
    %v4897 = vld [vmem:[#allocation11 + $0x168] sm:$0xff]
    %v4898 = vld [vmem:[#allocation11 + $0x170] sm:$0xff]
    %v4899 = vld [vmem:[#allocation11 + $0x178] sm:$0xff]
    %v4900 = vld [vmem:[#allocation11 + $0x180] sm:$0xff]
    %v4901 = vld [vmem:[#allocation11 + $0x188] sm:$0xff]
    %v4902 = vld [vmem:[#allocation11 + $0x190] sm:$0xff]
    %v4903 = vld [vmem:[#allocation11 + $0x198] sm:$0xff]
    %v4904 = vld [vmem:[#allocation11 + $0x1a0] sm:$0xff]
    %v4905 = vld [vmem:[#allocation11 + $0x1a8] sm:$0xff]
    %v4906 = vld [vmem:[#allocation11 + $0x1b0] sm:$0xff]
    %v4907 = vld [vmem:[#allocation11 + $0x1b8] sm:$0xff]
    %v4908 = vld [vmem:[#allocation11 + $0x1c0] sm:$0xff]
    %v4909 = vld [vmem:[#allocation11 + $0x1c8] sm:$0xff]
    %v4910 = vld [vmem:[#allocation11 + $0x1d0] sm:$0xff]
    %v4911 = vld [vmem:[#allocation11 + $0x1d8] sm:$0xff]
    %v4912 = vld [vmem:[#allocation11 + $0x1e0] sm:$0xff]
    %v4913 = vld [vmem:[#allocation11 + $0x1e8] sm:$0xff]
    %v4914 = vld [vmem:[#allocation11 + $0x1f0] sm:$0xff]
    %v4915 = vld [vmem:[#allocation11 + $0x1f8] sm:$0xff]
    %v4916 = vld [vmem:[#allocation11 + $0x200] sm:$0xff]
    %v4917 = vld [vmem:[#allocation11 + $0x208] sm:$0xff]
    %v4918 = vld [vmem:[#allocation11 + $0x210] sm:$0xff]
    %v4919 = vld [vmem:[#allocation11 + $0x218] sm:$0xff]
    %v4920 = vld [vmem:[#allocation11 + $0x220] sm:$0xff]
    %v4921 = vld [vmem:[#allocation11 + $0x228] sm:$0xff]
    %v4922 = vld [vmem:[#allocation11 + $0x230] sm:$0xff]
    %v4923 = vld [vmem:[#allocation11 + $0x238] sm:$0xff]
    %v4924 = vld [vmem:[#allocation11 + $0x240] sm:$0xff]
    %v4925 = vld [vmem:[#allocation11 + $0x248] sm:$0xff]
    %v4926 = vld [vmem:[#allocation11 + $0x250] sm:$0xff]
    %v4927 = vld [vmem:[#allocation11 + $0x258] sm:$0xff]
    %v4928 = vld [vmem:[#allocation11 + $0x260] sm:$0xff]
    %v4929 = vld [vmem:[#allocation11 + $0x268] sm:$0xff]
    %v4930 = vld [vmem:[#allocation11 + $0x270] sm:$0xff]
    %v4931 = vld [vmem:[#allocation11 + $0x278] sm:$0xff]
    %v4932 = vld [vmem:[#allocation11 + $0x280] sm:$0xff]
    %v4933 = vld [vmem:[#allocation11 + $0x288] sm:$0xff]
    %v4934 = vld [vmem:[#allocation11 + $0x290] sm:$0xff]
    %v4935 = vld [vmem:[#allocation11 + $0x298] sm:$0xff]
    %v4936 = vld [vmem:[#allocation11 + $0x2a0] sm:$0xff]
    %v4937 = vld [vmem:[#allocation11 + $0x2a8] sm:$0xff]
    %v4938 = vld [vmem:[#allocation11 + $0x2b0] sm:$0xff]
    %v4939 = vld [vmem:[#allocation11 + $0x2b8] sm:$0xff]
    %v4940 = vld [vmem:[#allocation11 + $0x2c0] sm:$0xff]
    %v4941 = vld [vmem:[#allocation11 + $0x2c8] sm:$0xff]
    %v4942 = vld [vmem:[#allocation11 + $0x2d0] sm:$0xff]
    %v4943 = vld [vmem:[#allocation11 + $0x2d8] sm:$0xff]
    %v4944 = vld [vmem:[#allocation11 + $0x2e0] sm:$0xff]
    %v4945 = vld [vmem:[#allocation11 + $0x2e8] sm:$0xff]
    %v4946 = vld [vmem:[#allocation11 + $0x2f0] sm:$0xff]
    %v4947 = vld [vmem:[#allocation11 + $0x2f8] sm:$0xff]
    %v4948 = vld [vmem:[#allocation11 + $0x300] sm:$0xff]
    %v4949 = vld [vmem:[#allocation11 + $0x308] sm:$0xff]
    %v4950 = vld [vmem:[#allocation11 + $0x310] sm:$0xff]
    %v4951 = vld [vmem:[#allocation11 + $0x318] sm:$0xff]
    %v4952 = vld [vmem:[#allocation11 + $0x320] sm:$0xff]
    %v4953 = vld [vmem:[#allocation11 + $0x328] sm:$0xff]
    %v4954 = vld [vmem:[#allocation11 + $0x330] sm:$0xff]
    %v4955 = vld [vmem:[#allocation11 + $0x338] sm:$0xff]
    %v4956 = vld [vmem:[#allocation11 + $0x340] sm:$0xff]
    %v4957 = vld [vmem:[#allocation11 + $0x348] sm:$0xff]
    %v4958 = vld [vmem:[#allocation11 + $0x350] sm:$0xff]
    %v4959 = vld [vmem:[#allocation11 + $0x358] sm:$0xff]
    %v4960 = vld [vmem:[#allocation11 + $0x360] sm:$0xff]
    %v4961 = vld [vmem:[#allocation11 + $0x368] sm:$0xff]
    %v4962 = vld [vmem:[#allocation11 + $0x370] sm:$0xff]
    %v4963 = vld [vmem:[#allocation11 + $0x378] sm:$0xff]
    %v4964 = vld [vmem:[#allocation11 + $0x380] sm:$0xff]
    %v4965 = vld [vmem:[#allocation11 + $0x388] sm:$0xff]
    %v4966 = vld [vmem:[#allocation11 + $0x390] sm:$0xff]
    %v4967 = vld [vmem:[#allocation11 + $0x398] sm:$0xff]
    %v4968 = vld [vmem:[#allocation11 + $0x3a0] sm:$0xff]
    %v4969 = vld [vmem:[#allocation11 + $0x3a8] sm:$0xff]
    %v4970 = vld [vmem:[#allocation11 + $0x3b0] sm:$0xff]
    %v4971 = vld [vmem:[#allocation11 + $0x3b8] sm:$0xff]
    %v4972 = vld [vmem:[#allocation11 + $0x3c0] sm:$0xff]
    %v4973 = vld [vmem:[#allocation11 + $0x3c8] sm:$0xff]
    %v4974 = vld [vmem:[#allocation11 + $0x3d0] sm:$0xff]
    %v4975 = vld [vmem:[#allocation11 + $0x3d8] sm:$0xff]
    %v4976 = vld [vmem:[#allocation11 + $0x3e0] sm:$0xff]
    %v4977 = vld [vmem:[#allocation11 + $0x3e8] sm:$0xff]
    %v4978 = vld [vmem:[#allocation11 + $0x3f0] sm:$0xff]
    %v4979 = vld [vmem:[#allocation11 + $0x3f8] sm:$0xff]
    %v4981 = vunpack.c.l.b16 %v4834
    %v4982 = vunpack.c.h.b16 %v4834
    %v4983 = vpack.c.b16 %v4981, %v4981
    %v4984 = vpack.c.b16 %v4982, %v4982
    %v5115 = vunpack.c.l.b16 %v4852
    %v5116 = vunpack.c.h.b16 %v4852
    %v5117 = vunpack.c.l.b16 %v4853
    %v5118 = vunpack.c.h.b16 %v4853
    %v5119 = vunpack.c.l.b16 %v4854
    %v5120 = vunpack.c.h.b16 %v4854
    %v5121 = vunpack.c.l.b16 %v4855
    %v5122 = vunpack.c.h.b16 %v4855
    %v5123 = vunpack.c.l.b16 %v4856
    %v5124 = vunpack.c.h.b16 %v4856
    %v5125 = vunpack.c.l.b16 %v4857
    %v5126 = vunpack.c.h.b16 %v4857
    %v5127 = vunpack.c.l.b16 %v4858
    %v5128 = vunpack.c.h.b16 %v4858
    %v5129 = vunpack.c.l.b16 %v4859
    %v5130 = vunpack.c.h.b16 %v4859
    %v5131 = vunpack.c.l.b16 %v4860
    %v5132 = vunpack.c.h.b16 %v4860
    %v5133 = vunpack.c.l.b16 %v4861
    %v5134 = vunpack.c.h.b16 %v4861
    %v5135 = vunpack.c.l.b16 %v4862
    %v5136 = vunpack.c.h.b16 %v4862
    %v5137 = vunpack.c.l.b16 %v4863
    %v5138 = vunpack.c.h.b16 %v4863
    %v5139 = vunpack.c.l.b16 %v4864
    %v5140 = vunpack.c.h.b16 %v4864
    %v5141 = vunpack.c.l.b16 %v4865
    %v5142 = vunpack.c.h.b16 %v4865
    %v5143 = vunpack.c.l.b16 %v4866
    %v5144 = vunpack.c.h.b16 %v4866
    %v5145 = vunpack.c.l.b16 %v4867
    %v5146 = vunpack.c.h.b16 %v4867
    %v5147 = vunpack.c.l.b16 %v4868
    %v5148 = vunpack.c.h.b16 %v4868
    %v5149 = vunpack.c.l.b16 %v4869
    %v5150 = vunpack.c.h.b16 %v4869
    %v5151 = vunpack.c.l.b16 %v4870
    %v5152 = vunpack.c.h.b16 %v4870
    %v5153 = vunpack.c.l.b16 %v4871
    %v5154 = vunpack.c.h.b16 %v4871
    %v5155 = vunpack.c.l.b16 %v4872
    %v5156 = vunpack.c.h.b16 %v4872
    %v5157 = vunpack.c.l.b16 %v4873
    %v5158 = vunpack.c.h.b16 %v4873
    %v5159 = vunpack.c.l.b16 %v4874
    %v5160 = vunpack.c.h.b16 %v4874
    %v5161 = vunpack.c.l.b16 %v4875
    %v5162 = vunpack.c.h.b16 %v4875
    %v5163 = vunpack.c.l.b16 %v4876
    %v5164 = vunpack.c.h.b16 %v4876
    %v5165 = vunpack.c.l.b16 %v4877
    %v5166 = vunpack.c.h.b16 %v4877
    %v5167 = vunpack.c.l.b16 %v4878
    %v5168 = vunpack.c.h.b16 %v4878
    %v5169 = vunpack.c.l.b16 %v4879
    %v5170 = vunpack.c.h.b16 %v4879
    %v5171 = vunpack.c.l.b16 %v4880
    %v5172 = vunpack.c.h.b16 %v4880
    %v5173 = vunpack.c.l.b16 %v4881
    %v5174 = vunpack.c.h.b16 %v4881
    %v5175 = vunpack.c.l.b16 %v4882
    %v5176 = vunpack.c.h.b16 %v4882
    %v5177 = vunpack.c.l.b16 %v4883
    %v5178 = vunpack.c.h.b16 %v4883
    %v5179 = vunpack.c.l.b16 %v4884
    %v5180 = vunpack.c.h.b16 %v4884
    %v5181 = vunpack.c.l.b16 %v4885
    %v5182 = vunpack.c.h.b16 %v4885
    %v5183 = vunpack.c.l.b16 %v4886
    %v5184 = vunpack.c.h.b16 %v4886
    %v5185 = vunpack.c.l.b16 %v4887
    %v5186 = vunpack.c.h.b16 %v4887
    %v5187 = vunpack.c.l.b16 %v4888
    %v5188 = vunpack.c.h.b16 %v4888
    %v5189 = vunpack.c.l.b16 %v4889
    %v5190 = vunpack.c.h.b16 %v4889
    %v5191 = vunpack.c.l.b16 %v4890
    %v5192 = vunpack.c.h.b16 %v4890
    %v5193 = vunpack.c.l.b16 %v4891
    %v5194 = vunpack.c.h.b16 %v4891
    %v5195 = vunpack.c.l.b16 %v4892
    %v5196 = vunpack.c.h.b16 %v4892
    %v5197 = vunpack.c.l.b16 %v4893
    %v5198 = vunpack.c.h.b16 %v4893
    %v5199 = vunpack.c.l.b16 %v4894
    %v5200 = vunpack.c.h.b16 %v4894
    %v5201 = vunpack.c.l.b16 %v4895
    %v5202 = vunpack.c.h.b16 %v4895
    %v5203 = vunpack.c.l.b16 %v4896
    %v5204 = vunpack.c.h.b16 %v4896
    %v5205 = vunpack.c.l.b16 %v4897
    %v5206 = vunpack.c.h.b16 %v4897
    %v5207 = vunpack.c.l.b16 %v4898
    %v5208 = vunpack.c.h.b16 %v4898
    %v5209 = vunpack.c.l.b16 %v4899
    %v5210 = vunpack.c.h.b16 %v4899
    %v5211 = vunpack.c.l.b16 %v4900
    %v5212 = vunpack.c.h.b16 %v4900
    %v5213 = vunpack.c.l.b16 %v4901
    %v5214 = vunpack.c.h.b16 %v4901
    %v5215 = vunpack.c.l.b16 %v4902
    %v5216 = vunpack.c.h.b16 %v4902
    %v5217 = vunpack.c.l.b16 %v4903
    %v5218 = vunpack.c.h.b16 %v4903
    %v5219 = vunpack.c.l.b16 %v4904
    %v5220 = vunpack.c.h.b16 %v4904
    %v5221 = vunpack.c.l.b16 %v4905
    %v5222 = vunpack.c.h.b16 %v4905
    %v5223 = vunpack.c.l.b16 %v4906
    %v5224 = vunpack.c.h.b16 %v4906
    %v5225 = vunpack.c.l.b16 %v4907
    %v5226 = vunpack.c.h.b16 %v4907
    %v5227 = vunpack.c.l.b16 %v4908
    %v5228 = vunpack.c.h.b16 %v4908
    %v5229 = vunpack.c.l.b16 %v4909
    %v5230 = vunpack.c.h.b16 %v4909
    %v5231 = vunpack.c.l.b16 %v4910
    %v5232 = vunpack.c.h.b16 %v4910
    %v5233 = vunpack.c.l.b16 %v4911
    %v5234 = vunpack.c.h.b16 %v4911
    %v5235 = vunpack.c.l.b16 %v4912
    %v5236 = vunpack.c.h.b16 %v4912
    %v5237 = vunpack.c.l.b16 %v4913
    %v5238 = vunpack.c.h.b16 %v4913
    %v5239 = vunpack.c.l.b16 %v4914
    %v5240 = vunpack.c.h.b16 %v4914
    %v5241 = vunpack.c.l.b16 %v4915
    %v5242 = vunpack.c.h.b16 %v4915
    %v5243 = vunpack.c.l.b16 %v4916
    %v5244 = vunpack.c.h.b16 %v4916
    %v5245 = vunpack.c.l.b16 %v4917
    %v5246 = vunpack.c.h.b16 %v4917
    %v5247 = vunpack.c.l.b16 %v4918
    %v5248 = vunpack.c.h.b16 %v4918
    %v5249 = vunpack.c.l.b16 %v4919
    %v5250 = vunpack.c.h.b16 %v4919
    %v5251 = vunpack.c.l.b16 %v4920
    %v5252 = vunpack.c.h.b16 %v4920
    %v5253 = vunpack.c.l.b16 %v4921
    %v5254 = vunpack.c.h.b16 %v4921
    %v5255 = vunpack.c.l.b16 %v4922
    %v5256 = vunpack.c.h.b16 %v4922
    %v5257 = vunpack.c.l.b16 %v4923
    %v5258 = vunpack.c.h.b16 %v4923
    %v5259 = vunpack.c.l.b16 %v4924
    %v5260 = vunpack.c.h.b16 %v4924
    %v5261 = vunpack.c.l.b16 %v4925
    %v5262 = vunpack.c.h.b16 %v4925
    %v5263 = vunpack.c.l.b16 %v4926
    %v5264 = vunpack.c.h.b16 %v4926
    %v5265 = vunpack.c.l.b16 %v4927
    %v5266 = vunpack.c.h.b16 %v4927
    %v5267 = vunpack.c.l.b16 %v4928
    %v5268 = vunpack.c.h.b16 %v4928
    %v5269 = vunpack.c.l.b16 %v4929
    %v5270 = vunpack.c.h.b16 %v4929
    %v5271 = vunpack.c.l.b16 %v4930
    %v5272 = vunpack.c.h.b16 %v4930
    %v5273 = vunpack.c.l.b16 %v4931
    %v5274 = vunpack.c.h.b16 %v4931
    %v5275 = vunpack.c.l.b16 %v4932
    %v5276 = vunpack.c.h.b16 %v4932
    %v5277 = vunpack.c.l.b16 %v4933
    %v5278 = vunpack.c.h.b16 %v4933
    %v5279 = vunpack.c.l.b16 %v4934
    %v5280 = vunpack.c.h.b16 %v4934
    %v5281 = vunpack.c.l.b16 %v4935
    %v5282 = vunpack.c.h.b16 %v4935
    %v5283 = vunpack.c.l.b16 %v4936
    %v5284 = vunpack.c.h.b16 %v4936
    %v5285 = vunpack.c.l.b16 %v4937
    %v5286 = vunpack.c.h.b16 %v4937
    %v5287 = vunpack.c.l.b16 %v4938
    %v5288 = vunpack.c.h.b16 %v4938
    %v5289 = vunpack.c.l.b16 %v4939
    %v5290 = vunpack.c.h.b16 %v4939
    %v5291 = vunpack.c.l.b16 %v4940
    %v5292 = vunpack.c.h.b16 %v4940
    %v5293 = vunpack.c.l.b16 %v4941
    %v5294 = vunpack.c.h.b16 %v4941
    %v5295 = vunpack.c.l.b16 %v4942
    %v5296 = vunpack.c.h.b16 %v4942
    %v5297 = vunpack.c.l.b16 %v4943
    %v5298 = vunpack.c.h.b16 %v4943
    %v5299 = vunpack.c.l.b16 %v4944
    %v5300 = vunpack.c.h.b16 %v4944
    %v5301 = vunpack.c.l.b16 %v4945
    %v5302 = vunpack.c.h.b16 %v4945
    %v5303 = vunpack.c.l.b16 %v4946
    %v5304 = vunpack.c.h.b16 %v4946
    %v5305 = vunpack.c.l.b16 %v4947
    %v5306 = vunpack.c.h.b16 %v4947
    %v5307 = vunpack.c.l.b16 %v4948
    %v5308 = vunpack.c.h.b16 %v4948
    %v5309 = vunpack.c.l.b16 %v4949
    %v5310 = vunpack.c.h.b16 %v4949
    %v5311 = vunpack.c.l.b16 %v4950
    %v5312 = vunpack.c.h.b16 %v4950
    %v5313 = vunpack.c.l.b16 %v4951
    %v5314 = vunpack.c.h.b16 %v4951
    %v5315 = vunpack.c.l.b16 %v4952
    %v5316 = vunpack.c.h.b16 %v4952
    %v5317 = vunpack.c.l.b16 %v4953
    %v5318 = vunpack.c.h.b16 %v4953
    %v5319 = vunpack.c.l.b16 %v4954
    %v5320 = vunpack.c.h.b16 %v4954
    %v5321 = vunpack.c.l.b16 %v4955
    %v5322 = vunpack.c.h.b16 %v4955
    %v5323 = vunpack.c.l.b16 %v4956
    %v5324 = vunpack.c.h.b16 %v4956
    %v5325 = vunpack.c.l.b16 %v4957
    %v5326 = vunpack.c.h.b16 %v4957
    %v5327 = vunpack.c.l.b16 %v4958
    %v5328 = vunpack.c.h.b16 %v4958
    %v5329 = vunpack.c.l.b16 %v4959
    %v5330 = vunpack.c.h.b16 %v4959
    %v5331 = vunpack.c.l.b16 %v4960
    %v5332 = vunpack.c.h.b16 %v4960
    %v5333 = vunpack.c.l.b16 %v4961
    %v5334 = vunpack.c.h.b16 %v4961
    %v5335 = vunpack.c.l.b16 %v4962
    %v5336 = vunpack.c.h.b16 %v4962
    %v5337 = vunpack.c.l.b16 %v4963
    %v5338 = vunpack.c.h.b16 %v4963
    %v5339 = vunpack.c.l.b16 %v4964
    %v5340 = vunpack.c.h.b16 %v4964
    %v5341 = vunpack.c.l.b16 %v4965
    %v5342 = vunpack.c.h.b16 %v4965
    %v5343 = vunpack.c.l.b16 %v4966
    %v5344 = vunpack.c.h.b16 %v4966
    %v5345 = vunpack.c.l.b16 %v4967
    %v5346 = vunpack.c.h.b16 %v4967
    %v5347 = vunpack.c.l.b16 %v4968
    %v5348 = vunpack.c.h.b16 %v4968
    %v5349 = vunpack.c.l.b16 %v4969
    %v5350 = vunpack.c.h.b16 %v4969
    %v5351 = vunpack.c.l.b16 %v4970
    %v5352 = vunpack.c.h.b16 %v4970
    %v5353 = vunpack.c.l.b16 %v4971
    %v5354 = vunpack.c.h.b16 %v4971
    %v5355 = vunpack.c.l.b16 %v4972
    %v5356 = vunpack.c.h.b16 %v4972
    %v5357 = vunpack.c.l.b16 %v4973
    %v5358 = vunpack.c.h.b16 %v4973
    %v5359 = vunpack.c.l.b16 %v4974
    %v5360 = vunpack.c.h.b16 %v4974
    %v5361 = vunpack.c.l.b16 %v4975
    %v5362 = vunpack.c.h.b16 %v4975
    %v5363 = vunpack.c.l.b16 %v4976
    %v5364 = vunpack.c.h.b16 %v4976
    %v5365 = vunpack.c.l.b16 %v4977
    %v5366 = vunpack.c.h.b16 %v4977
    %v5367 = vunpack.c.l.b16 %v4978
    %v5368 = vunpack.c.h.b16 %v4978
    %v5369 = vunpack.c.l.b16 %v4979
    %v5370 = vunpack.c.h.b16 %v4979
    %v5371 = vpack.c.b16 %v5123, %v5115
    %v5372 = vpack.c.b16 %v5124, %v5116
    %v5373 = vpack.c.b16 %v5125, %v5117
    %v5374 = vpack.c.b16 %v5126, %v5118
    %v5375 = vpack.c.b16 %v5127, %v5119
    %v5376 = vpack.c.b16 %v5128, %v5120
    %v5377 = vpack.c.b16 %v5129, %v5121
    %v5378 = vpack.c.b16 %v5130, %v5122
    %v5379 = vpack.c.b16 %v5139, %v5131
    %v5380 = vpack.c.b16 %v5140, %v5132
    %v5381 = vpack.c.b16 %v5141, %v5133
    %v5382 = vpack.c.b16 %v5142, %v5134
    %v5383 = vpack.c.b16 %v5143, %v5135
    %v5384 = vpack.c.b16 %v5144, %v5136
    %v5385 = vpack.c.b16 %v5145, %v5137
    %v5386 = vpack.c.b16 %v5146, %v5138
    %v5387 = vpack.c.b16 %v5155, %v5147
    %v5388 = vpack.c.b16 %v5156, %v5148
    %v5389 = vpack.c.b16 %v5157, %v5149
    %v5390 = vpack.c.b16 %v5158, %v5150
    %v5391 = vpack.c.b16 %v5159, %v5151
    %v5392 = vpack.c.b16 %v5160, %v5152
    %v5393 = vpack.c.b16 %v5161, %v5153
    %v5394 = vpack.c.b16 %v5162, %v5154
    %v5395 = vpack.c.b16 %v5171, %v5163
    %v5396 = vpack.c.b16 %v5172, %v5164
    %v5397 = vpack.c.b16 %v5173, %v5165
    %v5398 = vpack.c.b16 %v5174, %v5166
    %v5399 = vpack.c.b16 %v5175, %v5167
    %v5400 = vpack.c.b16 %v5176, %v5168
    %v5401 = vpack.c.b16 %v5177, %v5169
    %v5402 = vpack.c.b16 %v5178, %v5170
    %v5403 = vpack.c.b16 %v5187, %v5179
    %v5404 = vpack.c.b16 %v5188, %v5180
    %v5405 = vpack.c.b16 %v5189, %v5181
    %v5406 = vpack.c.b16 %v5190, %v5182
    %v5407 = vpack.c.b16 %v5191, %v5183
    %v5408 = vpack.c.b16 %v5192, %v5184
    %v5409 = vpack.c.b16 %v5193, %v5185
    %v5410 = vpack.c.b16 %v5194, %v5186
    %v5411 = vpack.c.b16 %v5203, %v5195
    %v5412 = vpack.c.b16 %v5204, %v5196
    %v5413 = vpack.c.b16 %v5205, %v5197
    %v5414 = vpack.c.b16 %v5206, %v5198
    %v5415 = vpack.c.b16 %v5207, %v5199
    %v5416 = vpack.c.b16 %v5208, %v5200
    %v5417 = vpack.c.b16 %v5209, %v5201
    %v5418 = vpack.c.b16 %v5210, %v5202
    %v5419 = vpack.c.b16 %v5219, %v5211
    %v5420 = vpack.c.b16 %v5220, %v5212
    %v5421 = vpack.c.b16 %v5221, %v5213
    %v5422 = vpack.c.b16 %v5222, %v5214
    %v5423 = vpack.c.b16 %v5223, %v5215
    %v5424 = vpack.c.b16 %v5224, %v5216
    %v5425 = vpack.c.b16 %v5225, %v5217
    %v5426 = vpack.c.b16 %v5226, %v5218
    %v5427 = vpack.c.b16 %v5235, %v5227
    %v5428 = vpack.c.b16 %v5236, %v5228
    %v5429 = vpack.c.b16 %v5237, %v5229
    %v5430 = vpack.c.b16 %v5238, %v5230
    %v5431 = vpack.c.b16 %v5239, %v5231
    %v5432 = vpack.c.b16 %v5240, %v5232
    %v5433 = vpack.c.b16 %v5241, %v5233
    %v5434 = vpack.c.b16 %v5242, %v5234
    %v5435 = vpack.c.b16 %v5251, %v5243
    %v5436 = vpack.c.b16 %v5252, %v5244
    %v5437 = vpack.c.b16 %v5253, %v5245
    %v5438 = vpack.c.b16 %v5254, %v5246
    %v5439 = vpack.c.b16 %v5255, %v5247
    %v5440 = vpack.c.b16 %v5256, %v5248
    %v5441 = vpack.c.b16 %v5257, %v5249
    %v5442 = vpack.c.b16 %v5258, %v5250
    %v5443 = vpack.c.b16 %v5267, %v5259
    %v5444 = vpack.c.b16 %v5268, %v5260
    %v5445 = vpack.c.b16 %v5269, %v5261
    %v5446 = vpack.c.b16 %v5270, %v5262
    %v5447 = vpack.c.b16 %v5271, %v5263
    %v5448 = vpack.c.b16 %v5272, %v5264
    %v5449 = vpack.c.b16 %v5273, %v5265
    %v5450 = vpack.c.b16 %v5274, %v5266
    %v5451 = vpack.c.b16 %v5283, %v5275
    %v5452 = vpack.c.b16 %v5284, %v5276
    %v5453 = vpack.c.b16 %v5285, %v5277
    %v5454 = vpack.c.b16 %v5286, %v5278
    %v5455 = vpack.c.b16 %v5287, %v5279
    %v5456 = vpack.c.b16 %v5288, %v5280
    %v5457 = vpack.c.b16 %v5289, %v5281
    %v5458 = vpack.c.b16 %v5290, %v5282
    %v5459 = vpack.c.b16 %v5299, %v5291
    %v5460 = vpack.c.b16 %v5300, %v5292
    %v5461 = vpack.c.b16 %v5301, %v5293
    %v5462 = vpack.c.b16 %v5302, %v5294
    %v5463 = vpack.c.b16 %v5303, %v5295
    %v5464 = vpack.c.b16 %v5304, %v5296
    %v5465 = vpack.c.b16 %v5305, %v5297
    %v5466 = vpack.c.b16 %v5306, %v5298
    %v5467 = vpack.c.b16 %v5315, %v5307
    %v5468 = vpack.c.b16 %v5316, %v5308
    %v5469 = vpack.c.b16 %v5317, %v5309
    %v5470 = vpack.c.b16 %v5318, %v5310
    %v5471 = vpack.c.b16 %v5319, %v5311
    %v5472 = vpack.c.b16 %v5320, %v5312
    %v5473 = vpack.c.b16 %v5321, %v5313
    %v5474 = vpack.c.b16 %v5322, %v5314
    %v5475 = vpack.c.b16 %v5331, %v5323
    %v5476 = vpack.c.b16 %v5332, %v5324
    %v5477 = vpack.c.b16 %v5333, %v5325
    %v5478 = vpack.c.b16 %v5334, %v5326
    %v5479 = vpack.c.b16 %v5335, %v5327
    %v5480 = vpack.c.b16 %v5336, %v5328
    %v5481 = vpack.c.b16 %v5337, %v5329
    %v5482 = vpack.c.b16 %v5338, %v5330
    %v5483 = vpack.c.b16 %v5347, %v5339
    %v5484 = vpack.c.b16 %v5348, %v5340
    %v5485 = vpack.c.b16 %v5349, %v5341
    %v5486 = vpack.c.b16 %v5350, %v5342
    %v5487 = vpack.c.b16 %v5351, %v5343
    %v5488 = vpack.c.b16 %v5352, %v5344
    %v5489 = vpack.c.b16 %v5353, %v5345
    %v5490 = vpack.c.b16 %v5354, %v5346
    %v5491 = vpack.c.b16 %v5363, %v5355
    %v5492 = vpack.c.b16 %v5364, %v5356
    %v5493 = vpack.c.b16 %v5365, %v5357
    %v5494 = vpack.c.b16 %v5366, %v5358
    %v5495 = vpack.c.b16 %v5367, %v5359
    %v5496 = vpack.c.b16 %v5368, %v5360
    %v5497 = vpack.c.b16 %v5369, %v5361
    %v5498 = vpack.c.b16 %v5370, %v5362
    %5627 = vmatpush.bf16.msra.mxu0 %v5427
    %5628 = vmatpush.bf16.msra.mxu0 %v5419
    %5629 = vmatpush.bf16.msra.mxu0 %v5411
    %5630 = vmatpush.bf16.msra.mxu0 %v5403
    %5631 = vmatpush.bf16.msra.mxu0 %v5395
    %5632 = vmatpush.bf16.msra.mxu0 %v5387
    %5633 = vmatpush.bf16.msra.mxu0 %v5379
    %5634 = vmatpush.bf16.msra.mxu0 %v5371
    %5635 = vmatmul.bf16.gmra.mxu0 %v4983
    %v5636 = vpop.f32.mrf.mxu0
    %v5637 = vadd.f32 0.0, %v5636
    %v5638 = vpop.f32.mrf.mxu0
    %5639 = vdwg.mxu0
    %5640 = vmatpush.bf16.msra.mxu0 %v5491
    %5641 = vmatpush.bf16.msra.mxu0 %v5483
    %5642 = vmatpush.bf16.msra.mxu0 %v5475
    %5643 = vmatpush.bf16.msra.mxu0 %v5467
    %5644 = vmatpush.bf16.msra.mxu0 %v5459
    %5645 = vmatpush.bf16.msra.mxu0 %v5451
    %5646 = vmatpush.bf16.msra.mxu0 %v5443
    %5647 = vmatpush.bf16.msra.mxu0 %v5435
    %5648 = vmatmul.bf16.gmra.mxu0 %v4984
    %v5649 = vpop.f32.mrf.mxu0
    %v5650 = vadd.f32 %v5637, %v5649
    %v5651 = vpop.f32.mrf.mxu0
    %5652 = vdwg.mxu0
    %5653 = vmatpush.bf16.msra.mxu0 %v5428
    %5654 = vmatpush.bf16.msra.mxu0 %v5420
    %5655 = vmatpush.bf16.msra.mxu0 %v5412
    %5656 = vmatpush.bf16.msra.mxu0 %v5404
    %5657 = vmatpush.bf16.msra.mxu0 %v5396
    %5658 = vmatpush.bf16.msra.mxu0 %v5388
    %5659 = vmatpush.bf16.msra.mxu0 %v5380
    %5660 = vmatpush.bf16.msra.mxu0 %v5372
    %5661 = vmatmul.bf16.gmra.mxu0 %v4983
    %v5662 = vpop.f32.mrf.mxu0
    %v5663 = vadd.f32 0.0, %v5662
    %v5664 = vpop.f32.mrf.mxu0
    %5665 = vdwg.mxu0
    %5666 = vmatpush.bf16.msra.mxu0 %v5492
    %5667 = vmatpush.bf16.msra.mxu0 %v5484
    %5668 = vmatpush.bf16.msra.mxu0 %v5476
    %5669 = vmatpush.bf16.msra.mxu0 %v5468
    %5670 = vmatpush.bf16.msra.mxu0 %v5460
    %5671 = vmatpush.bf16.msra.mxu0 %v5452
    %5672 = vmatpush.bf16.msra.mxu0 %v5444
    %5673 = vmatpush.bf16.msra.mxu0 %v5436
    %5674 = vmatmul.bf16.gmra.mxu0 %v4984
    %v5675 = vpop.f32.mrf.mxu0
    %v5676 = vadd.f32 %v5663, %v5675
    %v5677 = vpop.f32.mrf.mxu0
    %5678 = vdwg.mxu0
    %5679 = vmatpush.bf16.msra.mxu0 %v5429
    %5680 = vmatpush.bf16.msra.mxu0 %v5421
    %5681 = vmatpush.bf16.msra.mxu0 %v5413
    %5682 = vmatpush.bf16.msra.mxu0 %v5405
    %5683 = vmatpush.bf16.msra.mxu0 %v5397
    %5684 = vmatpush.bf16.msra.mxu0 %v5389
    %5685 = vmatpush.bf16.msra.mxu0 %v5381
    %5686 = vmatpush.bf16.msra.mxu0 %v5373
    %5687 = vmatmul.bf16.gmra.mxu0 %v4983
    %v5688 = vpop.f32.mrf.mxu0
    %v5689 = vadd.f32 0.0, %v5688
    %v5690 = vpop.f32.mrf.mxu0
    %5691 = vdwg.mxu0
    %5692 = vmatpush.bf16.msra.mxu0 %v5493
    %5693 = vmatpush.bf16.msra.mxu0 %v5485
    %5694 = vmatpush.bf16.msra.mxu0 %v5477
    %5695 = vmatpush.bf16.msra.mxu0 %v5469
    %5696 = vmatpush.bf16.msra.mxu0 %v5461
    %5697 = vmatpush.bf16.msra.mxu0 %v5453
    %5698 = vmatpush.bf16.msra.mxu0 %v5445
    %5699 = vmatpush.bf16.msra.mxu0 %v5437
    %5700 = vmatmul.bf16.gmra.mxu0 %v4984
    %v5701 = vpop.f32.mrf.mxu0
    %v5702 = vadd.f32 %v5689, %v5701
    %v5703 = vpop.f32.mrf.mxu0
    %5704 = vdwg.mxu0
    %5705 = vmatpush.bf16.msra.mxu0 %v5430
    %5706 = vmatpush.bf16.msra.mxu0 %v5422
    %5707 = vmatpush.bf16.msra.mxu0 %v5414
    %5708 = vmatpush.bf16.msra.mxu0 %v5406
    %5709 = vmatpush.bf16.msra.mxu0 %v5398
    %5710 = vmatpush.bf16.msra.mxu0 %v5390
    %5711 = vmatpush.bf16.msra.mxu0 %v5382
    %5712 = vmatpush.bf16.msra.mxu0 %v5374
    %5713 = vmatmul.bf16.gmra.mxu0 %v4983
    %v5714 = vpop.f32.mrf.mxu0
    %v5715 = vadd.f32 0.0, %v5714
    %v5716 = vpop.f32.mrf.mxu0
    %5717 = vdwg.mxu0
    %5718 = vmatpush.bf16.msra.mxu0 %v5494
    %5719 = vmatpush.bf16.msra.mxu0 %v5486
    %5720 = vmatpush.bf16.msra.mxu0 %v5478
    %5721 = vmatpush.bf16.msra.mxu0 %v5470
    %5722 = vmatpush.bf16.msra.mxu0 %v5462
    %5723 = vmatpush.bf16.msra.mxu0 %v5454
    %5724 = vmatpush.bf16.msra.mxu0 %v5446
    %5725 = vmatpush.bf16.msra.mxu0 %v5438
    %5726 = vmatmul.bf16.gmra.mxu0 %v4984
    %v5727 = vpop.f32.mrf.mxu0
    %v5728 = vadd.f32 %v5715, %v5727
    %v5729 = vpop.f32.mrf.mxu0
    %5730 = vdwg.mxu0
    %5731 = vmatpush.bf16.msra.mxu0 %v5431
    %5732 = vmatpush.bf16.msra.mxu0 %v5423
    %5733 = vmatpush.bf16.msra.mxu0 %v5415
    %5734 = vmatpush.bf16.msra.mxu0 %v5407
    %5735 = vmatpush.bf16.msra.mxu0 %v5399
    %5736 = vmatpush.bf16.msra.mxu0 %v5391
    %5737 = vmatpush.bf16.msra.mxu0 %v5383
    %5738 = vmatpush.bf16.msra.mxu0 %v5375
    %5739 = vmatmul.bf16.gmra.mxu0 %v4983
    %v5740 = vpop.f32.mrf.mxu0
    %v5741 = vadd.f32 0.0, %v5740
    %v5742 = vpop.f32.mrf.mxu0
    %5743 = vdwg.mxu0
    %5744 = vmatpush.bf16.msra.mxu0 %v5495
    %5745 = vmatpush.bf16.msra.mxu0 %v5487
    %5746 = vmatpush.bf16.msra.mxu0 %v5479
    %5747 = vmatpush.bf16.msra.mxu0 %v5471
    %5748 = vmatpush.bf16.msra.mxu0 %v5463
    %5749 = vmatpush.bf16.msra.mxu0 %v5455
    %5750 = vmatpush.bf16.msra.mxu0 %v5447
    %5751 = vmatpush.bf16.msra.mxu0 %v5439
    %5752 = vmatmul.bf16.gmra.mxu0 %v4984
    %v5753 = vpop.f32.mrf.mxu0
    %v5754 = vadd.f32 %v5741, %v5753
    %v5755 = vpop.f32.mrf.mxu0
    %5756 = vdwg.mxu0
    %5757 = vmatpush.bf16.msra.mxu0 %v5432
    %5758 = vmatpush.bf16.msra.mxu0 %v5424
    %5759 = vmatpush.bf16.msra.mxu0 %v5416
    %5760 = vmatpush.bf16.msra.mxu0 %v5408
    %5761 = vmatpush.bf16.msra.mxu0 %v5400
    %5762 = vmatpush.bf16.msra.mxu0 %v5392
    %5763 = vmatpush.bf16.msra.mxu0 %v5384
    %5764 = vmatpush.bf16.msra.mxu0 %v5376
    %5765 = vmatmul.bf16.gmra.mxu0 %v4983
    %v5766 = vpop.f32.mrf.mxu0
    %v5767 = vadd.f32 0.0, %v5766
    %v5768 = vpop.f32.mrf.mxu0
    %5769 = vdwg.mxu0
    %5770 = vmatpush.bf16.msra.mxu0 %v5496
    %5771 = vmatpush.bf16.msra.mxu0 %v5488
    %5772 = vmatpush.bf16.msra.mxu0 %v5480
    %5773 = vmatpush.bf16.msra.mxu0 %v5472
    %5774 = vmatpush.bf16.msra.mxu0 %v5464
    %5775 = vmatpush.bf16.msra.mxu0 %v5456
    %5776 = vmatpush.bf16.msra.mxu0 %v5448
    %5777 = vmatpush.bf16.msra.mxu0 %v5440
    %5778 = vmatmul.bf16.gmra.mxu0 %v4984
    %v5779 = vpop.f32.mrf.mxu0
    %v5780 = vadd.f32 %v5767, %v5779
    %v5781 = vpop.f32.mrf.mxu0
    %5782 = vdwg.mxu0
    %5783 = vmatpush.bf16.msra.mxu0 %v5433
    %5784 = vmatpush.bf16.msra.mxu0 %v5425
    %5785 = vmatpush.bf16.msra.mxu0 %v5417
    %5786 = vmatpush.bf16.msra.mxu0 %v5409
    %5787 = vmatpush.bf16.msra.mxu0 %v5401
    %5788 = vmatpush.bf16.msra.mxu0 %v5393
    %5789 = vmatpush.bf16.msra.mxu0 %v5385
    %5790 = vmatpush.bf16.msra.mxu0 %v5377
    %5791 = vmatmul.bf16.gmra.mxu0 %v4983
    %v5792 = vpop.f32.mrf.mxu0
    %v5793 = vadd.f32 0.0, %v5792
    %v5794 = vpop.f32.mrf.mxu0
    %5795 = vdwg.mxu0
    %5796 = vmatpush.bf16.msra.mxu0 %v5497
    %5797 = vmatpush.bf16.msra.mxu0 %v5489
    %5798 = vmatpush.bf16.msra.mxu0 %v5481
    %5799 = vmatpush.bf16.msra.mxu0 %v5473
    %5800 = vmatpush.bf16.msra.mxu0 %v5465
    %5801 = vmatpush.bf16.msra.mxu0 %v5457
    %5802 = vmatpush.bf16.msra.mxu0 %v5449
    %5803 = vmatpush.bf16.msra.mxu0 %v5441
    %5804 = vmatmul.bf16.gmra.mxu0 %v4984
    %v5805 = vpop.f32.mrf.mxu0
    %v5806 = vadd.f32 %v5793, %v5805
    %v5807 = vpop.f32.mrf.mxu0
    %5808 = vdwg.mxu0
    %5809 = vmatpush.bf16.msra.mxu0 %v5434
    %5810 = vmatpush.bf16.msra.mxu0 %v5426
    %5811 = vmatpush.bf16.msra.mxu0 %v5418
    %5812 = vmatpush.bf16.msra.mxu0 %v5410
    %5813 = vmatpush.bf16.msra.mxu0 %v5402
    %5814 = vmatpush.bf16.msra.mxu0 %v5394
    %5815 = vmatpush.bf16.msra.mxu0 %v5386
    %5816 = vmatpush.bf16.msra.mxu0 %v5378
    %5817 = vmatmul.bf16.gmra.mxu0 %v4983
    %v5818 = vpop.f32.mrf.mxu0
    %v5819 = vadd.f32 0.0, %v5818
    %v5820 = vpop.f32.mrf.mxu0
    %5821 = vdwg.mxu0
    %5822 = vmatpush.bf16.msra.mxu0 %v5498
    %5823 = vmatpush.bf16.msra.mxu0 %v5490
    %5824 = vmatpush.bf16.msra.mxu0 %v5482
    %5825 = vmatpush.bf16.msra.mxu0 %v5474
    %5826 = vmatpush.bf16.msra.mxu0 %v5466
    %5827 = vmatpush.bf16.msra.mxu0 %v5458
    %5828 = vmatpush.bf16.msra.mxu0 %v5450
    %5829 = vmatpush.bf16.msra.mxu0 %v5442
    %5830 = vmatmul.bf16.gmra.mxu0 %v4984
    %v5831 = vpop.f32.mrf.mxu0
    %v5832 = vadd.f32 %v5819, %v5831
    %v5833 = vpop.f32.mrf.mxu0
    %5834 = vdwg.mxu0
    %v5843 = vrot.slane %v5676, 7
    %v5844 = vrot.slane %v5702, 6
    %v5845 = vrot.slane %v5728, 5
    %v5846 = vrot.slane %v5754, 4
    %v5847 = vrot.slane %v5780, 3
    %v5848 = vrot.slane %v5806, 2
    %v5849 = vrot.slane %v5832, 1
    %v5850 = vsel %vm1628, %v5650, %v5843
    %v5851 = vsel %vm1630, %v5844, %v5845
    %v5852 = vsel %vm1632, %v5850, %v5851
    %v5853 = vsel %vm1634, %v5846, %v5847
    %v5854 = vsel %vm1636, %v5848, %v5849
    %v5855 = vsel %vm1638, %v5853, %v5854
    %v5856 = vsel %vm1640, %v5852, %v5855
    %v5858 = vadd.f32 %v4851, %v5856
    %v5859 = vmul.f32 %v5858, 0.5
    %v5860 = vtanh.pop %v5859
    %v5861 = vmul.f32 %v5860, 0.5
    %v5862 = vadd.f32 %v5861, 0.5
    %v5864 = vrot.slane %v5858, 2
    %v5866 = vmul.f32 %v5864, 0.5
    %v5867 = vtanh.pop %v5866
    %v5868 = vmul.f32 %v5867, 0.5
    %v5869 = vadd.f32 %v5868, 0.5
    %v5870 = vrot.slane %v5858, 4
    %v5872 = vtanh.pop %v5870
    %v5873 = vrot.slane %v5858, 6
    %v5875 = vmul.f32 %v5873, 0.5
    %v5876 = vtanh.pop %v5875
    %v5877 = vmul.f32 %v5876, 0.5
    %v5878 = vadd.f32 %v5877, 0.5
    %v5879 = vmul.f32 %v5869, %v4826
    %v5880 = vmul.f32 %v5862, %v5872
    %v5881 = vadd.f32 %v5879, %v5880
    %v5882 = vtanh.pop %v5881
    %v5883 = vmul.f32 %v5878, %v5882
    %v5885 = vperm.slane %v5883, 0
    %v5886 = vperm.slane %v5883, 1
    %v5889 = vpack.c.bf16 %v5886, %v5885
    %v5891 = vrot.slane %v5889, 6
    %vm5893 = vcmask 1042434
    %vm5894 = vsmask.f32 2304
    %vm5895 = vmand %vm5893, %vm5894
    %vm5896 = vcmask 1046534
    %vm5897 = vsmask.f32 6400
    %vm5898 = vmand %vm5896, %vm5897
    %vm5899 = vmor %vm5898, %vm5895
    %v5900 = vld [vmem:[#allocation14] sm:$0x44]
    %v5901 = vsel %vm5899, %v5891, %v5900
    %5902 = vst [vmem:[#allocation14] sm:$0x44] %v5901
    %s5903 = scalar_lea.vmem [#allocation2], 5
    %v5904 = vld [vmem:[%s5903] ss:$8 sm:$0xf]
    %v5905 = vld [vmem:[%s5903] ss:$8 sm:$0xf0]
    %v5906 = vor.u32 %v5904, %v5905
    %v5907 = vld [vmem:[#allocation11] sm:$0xff]
    %v5908 = vld [vmem:[#allocation11 + $0x8] sm:$0xff]
    %v5909 = vld [vmem:[#allocation11 + $0x10] sm:$0xff]
    %v5910 = vld [vmem:[#allocation11 + $0x18] sm:$0xff]
    %v5911 = vld [vmem:[#allocation11 + $0x20] sm:$0xff]
    %v5912 = vld [vmem:[#allocation11 + $0x28] sm:$0xff]
    %v5913 = vld [vmem:[#allocation11 + $0x30] sm:$0xff]
    %v5914 = vld [vmem:[#allocation11 + $0x38] sm:$0xff]
    %v5915 = vld [vmem:[#allocation11 + $0x40] sm:$0xff]
    %v5916 = vld [vmem:[#allocation11 + $0x48] sm:$0xff]
    %v5917 = vld [vmem:[#allocation11 + $0x50] sm:$0xff]
    %v5918 = vld [vmem:[#allocation11 + $0x58] sm:$0xff]
    %v5919 = vld [vmem:[#allocation11 + $0x60] sm:$0xff]
    %v5920 = vld [vmem:[#allocation11 + $0x68] sm:$0xff]
    %v5921 = vld [vmem:[#allocation11 + $0x70] sm:$0xff]
    %v5922 = vld [vmem:[#allocation11 + $0x78] sm:$0xff]
    %v5923 = vld [vmem:[#allocation11 + $0x80] sm:$0xff]
    %v5924 = vld [vmem:[#allocation11 + $0x88] sm:$0xff]
    %v5925 = vld [vmem:[#allocation11 + $0x90] sm:$0xff]
    %v5926 = vld [vmem:[#allocation11 + $0x98] sm:$0xff]
    %v5927 = vld [vmem:[#allocation11 + $0xa0] sm:$0xff]
    %v5928 = vld [vmem:[#allocation11 + $0xa8] sm:$0xff]
    %v5929 = vld [vmem:[#allocation11 + $0xb0] sm:$0xff]
    %v5930 = vld [vmem:[#allocation11 + $0xb8] sm:$0xff]
    %v5931 = vld [vmem:[#allocation11 + $0xc0] sm:$0xff]
    %v5932 = vld [vmem:[#allocation11 + $0xc8] sm:$0xff]
    %v5933 = vld [vmem:[#allocation11 + $0xd0] sm:$0xff]
    %v5934 = vld [vmem:[#allocation11 + $0xd8] sm:$0xff]
    %v5935 = vld [vmem:[#allocation11 + $0xe0] sm:$0xff]
    %v5936 = vld [vmem:[#allocation11 + $0xe8] sm:$0xff]
    %v5937 = vld [vmem:[#allocation11 + $0xf0] sm:$0xff]
    %v5938 = vld [vmem:[#allocation11 + $0xf8] sm:$0xff]
    %v5939 = vld [vmem:[#allocation11 + $0x100] sm:$0xff]
    %v5940 = vld [vmem:[#allocation11 + $0x108] sm:$0xff]
    %v5941 = vld [vmem:[#allocation11 + $0x110] sm:$0xff]
    %v5942 = vld [vmem:[#allocation11 + $0x118] sm:$0xff]
    %v5943 = vld [vmem:[#allocation11 + $0x120] sm:$0xff]
    %v5944 = vld [vmem:[#allocation11 + $0x128] sm:$0xff]
    %v5945 = vld [vmem:[#allocation11 + $0x130] sm:$0xff]
    %v5946 = vld [vmem:[#allocation11 + $0x138] sm:$0xff]
    %v5947 = vld [vmem:[#allocation11 + $0x140] sm:$0xff]
    %v5948 = vld [vmem:[#allocation11 + $0x148] sm:$0xff]
    %v5949 = vld [vmem:[#allocation11 + $0x150] sm:$0xff]
    %v5950 = vld [vmem:[#allocation11 + $0x158] sm:$0xff]
    %v5951 = vld [vmem:[#allocation11 + $0x160] sm:$0xff]
    %v5952 = vld [vmem:[#allocation11 + $0x168] sm:$0xff]
    %v5953 = vld [vmem:[#allocation11 + $0x170] sm:$0xff]
    %v5954 = vld [vmem:[#allocation11 + $0x178] sm:$0xff]
    %v5955 = vld [vmem:[#allocation11 + $0x180] sm:$0xff]
    %v5956 = vld [vmem:[#allocation11 + $0x188] sm:$0xff]
    %v5957 = vld [vmem:[#allocation11 + $0x190] sm:$0xff]
    %v5958 = vld [vmem:[#allocation11 + $0x198] sm:$0xff]
    %v5959 = vld [vmem:[#allocation11 + $0x1a0] sm:$0xff]
    %v5960 = vld [vmem:[#allocation11 + $0x1a8] sm:$0xff]
    %v5961 = vld [vmem:[#allocation11 + $0x1b0] sm:$0xff]
    %v5962 = vld [vmem:[#allocation11 + $0x1b8] sm:$0xff]
    %v5963 = vld [vmem:[#allocation11 + $0x1c0] sm:$0xff]
    %v5964 = vld [vmem:[#allocation11 + $0x1c8] sm:$0xff]
    %v5965 = vld [vmem:[#allocation11 + $0x1d0] sm:$0xff]
    %v5966 = vld [vmem:[#allocation11 + $0x1d8] sm:$0xff]
    %v5967 = vld [vmem:[#allocation11 + $0x1e0] sm:$0xff]
    %v5968 = vld [vmem:[#allocation11 + $0x1e8] sm:$0xff]
    %v5969 = vld [vmem:[#allocation11 + $0x1f0] sm:$0xff]
    %v5970 = vld [vmem:[#allocation11 + $0x1f8] sm:$0xff]
    %v5971 = vld [vmem:[#allocation11 + $0x200] sm:$0xff]
    %v5972 = vld [vmem:[#allocation11 + $0x208] sm:$0xff]
    %v5973 = vld [vmem:[#allocation11 + $0x210] sm:$0xff]
    %v5974 = vld [vmem:[#allocation11 + $0x218] sm:$0xff]
    %v5975 = vld [vmem:[#allocation11 + $0x220] sm:$0xff]
    %v5976 = vld [vmem:[#allocation11 + $0x228] sm:$0xff]
    %v5977 = vld [vmem:[#allocation11 + $0x230] sm:$0xff]
    %v5978 = vld [vmem:[#allocation11 + $0x238] sm:$0xff]
    %v5979 = vld [vmem:[#allocation11 + $0x240] sm:$0xff]
    %v5980 = vld [vmem:[#allocation11 + $0x248] sm:$0xff]
    %v5981 = vld [vmem:[#allocation11 + $0x250] sm:$0xff]
    %v5982 = vld [vmem:[#allocation11 + $0x258] sm:$0xff]
    %v5983 = vld [vmem:[#allocation11 + $0x260] sm:$0xff]
    %v5984 = vld [vmem:[#allocation11 + $0x268] sm:$0xff]
    %v5985 = vld [vmem:[#allocation11 + $0x270] sm:$0xff]
    %v5986 = vld [vmem:[#allocation11 + $0x278] sm:$0xff]
    %v5987 = vld [vmem:[#allocation11 + $0x280] sm:$0xff]
    %v5988 = vld [vmem:[#allocation11 + $0x288] sm:$0xff]
    %v5989 = vld [vmem:[#allocation11 + $0x290] sm:$0xff]
    %v5990 = vld [vmem:[#allocation11 + $0x298] sm:$0xff]
    %v5991 = vld [vmem:[#allocation11 + $0x2a0] sm:$0xff]
    %v5992 = vld [vmem:[#allocation11 + $0x2a8] sm:$0xff]
    %v5993 = vld [vmem:[#allocation11 + $0x2b0] sm:$0xff]
    %v5994 = vld [vmem:[#allocation11 + $0x2b8] sm:$0xff]
    %v5995 = vld [vmem:[#allocation11 + $0x2c0] sm:$0xff]
    %v5996 = vld [vmem:[#allocation11 + $0x2c8] sm:$0xff]
    %v5997 = vld [vmem:[#allocation11 + $0x2d0] sm:$0xff]
    %v5998 = vld [vmem:[#allocation11 + $0x2d8] sm:$0xff]
    %v5999 = vld [vmem:[#allocation11 + $0x2e0] sm:$0xff]
    %v6000 = vld [vmem:[#allocation11 + $0x2e8] sm:$0xff]
    %v6001 = vld [vmem:[#allocation11 + $0x2f0] sm:$0xff]
    %v6002 = vld [vmem:[#allocation11 + $0x2f8] sm:$0xff]
    %v6003 = vld [vmem:[#allocation11 + $0x300] sm:$0xff]
    %v6004 = vld [vmem:[#allocation11 + $0x308] sm:$0xff]
    %v6005 = vld [vmem:[#allocation11 + $0x310] sm:$0xff]
    %v6006 = vld [vmem:[#allocation11 + $0x318] sm:$0xff]
    %v6007 = vld [vmem:[#allocation11 + $0x320] sm:$0xff]
    %v6008 = vld [vmem:[#allocation11 + $0x328] sm:$0xff]
    %v6009 = vld [vmem:[#allocation11 + $0x330] sm:$0xff]
    %v6010 = vld [vmem:[#allocation11 + $0x338] sm:$0xff]
    %v6011 = vld [vmem:[#allocation11 + $0x340] sm:$0xff]
    %v6012 = vld [vmem:[#allocation11 + $0x348] sm:$0xff]
    %v6013 = vld [vmem:[#allocation11 + $0x350] sm:$0xff]
    %v6014 = vld [vmem:[#allocation11 + $0x358] sm:$0xff]
    %v6015 = vld [vmem:[#allocation11 + $0x360] sm:$0xff]
    %v6016 = vld [vmem:[#allocation11 + $0x368] sm:$0xff]
    %v6017 = vld [vmem:[#allocation11 + $0x370] sm:$0xff]
    %v6018 = vld [vmem:[#allocation11 + $0x378] sm:$0xff]
    %v6019 = vld [vmem:[#allocation11 + $0x380] sm:$0xff]
    %v6020 = vld [vmem:[#allocation11 + $0x388] sm:$0xff]
    %v6021 = vld [vmem:[#allocation11 + $0x390] sm:$0xff]
    %v6022 = vld [vmem:[#allocation11 + $0x398] sm:$0xff]
    %v6023 = vld [vmem:[#allocation11 + $0x3a0] sm:$0xff]
    %v6024 = vld [vmem:[#allocation11 + $0x3a8] sm:$0xff]
    %v6025 = vld [vmem:[#allocation11 + $0x3b0] sm:$0xff]
    %v6026 = vld [vmem:[#allocation11 + $0x3b8] sm:$0xff]
    %v6027 = vld [vmem:[#allocation11 + $0x3c0] sm:$0xff]
    %v6028 = vld [vmem:[#allocation11 + $0x3c8] sm:$0xff]
    %v6029 = vld [vmem:[#allocation11 + $0x3d0] sm:$0xff]
    %v6030 = vld [vmem:[#allocation11 + $0x3d8] sm:$0xff]
    %v6031 = vld [vmem:[#allocation11 + $0x3e0] sm:$0xff]
    %v6032 = vld [vmem:[#allocation11 + $0x3e8] sm:$0xff]
    %v6033 = vld [vmem:[#allocation11 + $0x3f0] sm:$0xff]
    %v6034 = vld [vmem:[#allocation11 + $0x3f8] sm:$0xff]
    %v6035 = vunpack.c.l.b16 %v5889
    %v6036 = vunpack.c.h.b16 %v5889
    %v6037 = vpack.c.b16 %v6035, %v6035
    %v6038 = vpack.c.b16 %v6036, %v6036
    %v6169 = vunpack.c.l.b16 %v5907
    %v6170 = vunpack.c.h.b16 %v5907
    %v6171 = vunpack.c.l.b16 %v5908
    %v6172 = vunpack.c.h.b16 %v5908
    %v6173 = vunpack.c.l.b16 %v5909
    %v6174 = vunpack.c.h.b16 %v5909
    %v6175 = vunpack.c.l.b16 %v5910
    %v6176 = vunpack.c.h.b16 %v5910
    %v6177 = vunpack.c.l.b16 %v5911
    %v6178 = vunpack.c.h.b16 %v5911
    %v6179 = vunpack.c.l.b16 %v5912
    %v6180 = vunpack.c.h.b16 %v5912
    %v6181 = vunpack.c.l.b16 %v5913
    %v6182 = vunpack.c.h.b16 %v5913
    %v6183 = vunpack.c.l.b16 %v5914
    %v6184 = vunpack.c.h.b16 %v5914
    %v6185 = vunpack.c.l.b16 %v5915
    %v6186 = vunpack.c.h.b16 %v5915
    %v6187 = vunpack.c.l.b16 %v5916
    %v6188 = vunpack.c.h.b16 %v5916
    %v6189 = vunpack.c.l.b16 %v5917
    %v6190 = vunpack.c.h.b16 %v5917
    %v6191 = vunpack.c.l.b16 %v5918
    %v6192 = vunpack.c.h.b16 %v5918
    %v6193 = vunpack.c.l.b16 %v5919
    %v6194 = vunpack.c.h.b16 %v5919
    %v6195 = vunpack.c.l.b16 %v5920
    %v6196 = vunpack.c.h.b16 %v5920
    %v6197 = vunpack.c.l.b16 %v5921
    %v6198 = vunpack.c.h.b16 %v5921
    %v6199 = vunpack.c.l.b16 %v5922
    %v6200 = vunpack.c.h.b16 %v5922
    %v6201 = vunpack.c.l.b16 %v5923
    %v6202 = vunpack.c.h.b16 %v5923
    %v6203 = vunpack.c.l.b16 %v5924
    %v6204 = vunpack.c.h.b16 %v5924
    %v6205 = vunpack.c.l.b16 %v5925
    %v6206 = vunpack.c.h.b16 %v5925
    %v6207 = vunpack.c.l.b16 %v5926
    %v6208 = vunpack.c.h.b16 %v5926
    %v6209 = vunpack.c.l.b16 %v5927
    %v6210 = vunpack.c.h.b16 %v5927
    %v6211 = vunpack.c.l.b16 %v5928
    %v6212 = vunpack.c.h.b16 %v5928
    %v6213 = vunpack.c.l.b16 %v5929
    %v6214 = vunpack.c.h.b16 %v5929
    %v6215 = vunpack.c.l.b16 %v5930
    %v6216 = vunpack.c.h.b16 %v5930
    %v6217 = vunpack.c.l.b16 %v5931
    %v6218 = vunpack.c.h.b16 %v5931
    %v6219 = vunpack.c.l.b16 %v5932
    %v6220 = vunpack.c.h.b16 %v5932
    %v6221 = vunpack.c.l.b16 %v5933
    %v6222 = vunpack.c.h.b16 %v5933
    %v6223 = vunpack.c.l.b16 %v5934
    %v6224 = vunpack.c.h.b16 %v5934
    %v6225 = vunpack.c.l.b16 %v5935
    %v6226 = vunpack.c.h.b16 %v5935
    %v6227 = vunpack.c.l.b16 %v5936
    %v6228 = vunpack.c.h.b16 %v5936
    %v6229 = vunpack.c.l.b16 %v5937
    %v6230 = vunpack.c.h.b16 %v5937
    %v6231 = vunpack.c.l.b16 %v5938
    %v6232 = vunpack.c.h.b16 %v5938
    %v6233 = vunpack.c.l.b16 %v5939
    %v6234 = vunpack.c.h.b16 %v5939
    %v6235 = vunpack.c.l.b16 %v5940
    %v6236 = vunpack.c.h.b16 %v5940
    %v6237 = vunpack.c.l.b16 %v5941
    %v6238 = vunpack.c.h.b16 %v5941
    %v6239 = vunpack.c.l.b16 %v5942
    %v6240 = vunpack.c.h.b16 %v5942
    %v6241 = vunpack.c.l.b16 %v5943
    %v6242 = vunpack.c.h.b16 %v5943
    %v6243 = vunpack.c.l.b16 %v5944
    %v6244 = vunpack.c.h.b16 %v5944
    %v6245 = vunpack.c.l.b16 %v5945
    %v6246 = vunpack.c.h.b16 %v5945
    %v6247 = vunpack.c.l.b16 %v5946
    %v6248 = vunpack.c.h.b16 %v5946
    %v6249 = vunpack.c.l.b16 %v5947
    %v6250 = vunpack.c.h.b16 %v5947
    %v6251 = vunpack.c.l.b16 %v5948
    %v6252 = vunpack.c.h.b16 %v5948
    %v6253 = vunpack.c.l.b16 %v5949
    %v6254 = vunpack.c.h.b16 %v5949
    %v6255 = vunpack.c.l.b16 %v5950
    %v6256 = vunpack.c.h.b16 %v5950
    %v6257 = vunpack.c.l.b16 %v5951
    %v6258 = vunpack.c.h.b16 %v5951
    %v6259 = vunpack.c.l.b16 %v5952
    %v6260 = vunpack.c.h.b16 %v5952
    %v6261 = vunpack.c.l.b16 %v5953
    %v6262 = vunpack.c.h.b16 %v5953
    %v6263 = vunpack.c.l.b16 %v5954
    %v6264 = vunpack.c.h.b16 %v5954
    %v6265 = vunpack.c.l.b16 %v5955
    %v6266 = vunpack.c.h.b16 %v5955
    %v6267 = vunpack.c.l.b16 %v5956
    %v6268 = vunpack.c.h.b16 %v5956
    %v6269 = vunpack.c.l.b16 %v5957
    %v6270 = vunpack.c.h.b16 %v5957
    %v6271 = vunpack.c.l.b16 %v5958
    %v6272 = vunpack.c.h.b16 %v5958
    %v6273 = vunpack.c.l.b16 %v5959
    %v6274 = vunpack.c.h.b16 %v5959
    %v6275 = vunpack.c.l.b16 %v5960
    %v6276 = vunpack.c.h.b16 %v5960
    %v6277 = vunpack.c.l.b16 %v5961
    %v6278 = vunpack.c.h.b16 %v5961
    %v6279 = vunpack.c.l.b16 %v5962
    %v6280 = vunpack.c.h.b16 %v5962
    %v6281 = vunpack.c.l.b16 %v5963
    %v6282 = vunpack.c.h.b16 %v5963
    %v6283 = vunpack.c.l.b16 %v5964
    %v6284 = vunpack.c.h.b16 %v5964
    %v6285 = vunpack.c.l.b16 %v5965
    %v6286 = vunpack.c.h.b16 %v5965
    %v6287 = vunpack.c.l.b16 %v5966
    %v6288 = vunpack.c.h.b16 %v5966
    %v6289 = vunpack.c.l.b16 %v5967
    %v6290 = vunpack.c.h.b16 %v5967
    %v6291 = vunpack.c.l.b16 %v5968
    %v6292 = vunpack.c.h.b16 %v5968
    %v6293 = vunpack.c.l.b16 %v5969
    %v6294 = vunpack.c.h.b16 %v5969
    %v6295 = vunpack.c.l.b16 %v5970
    %v6296 = vunpack.c.h.b16 %v5970
    %v6297 = vunpack.c.l.b16 %v5971
    %v6298 = vunpack.c.h.b16 %v5971
    %v6299 = vunpack.c.l.b16 %v5972
    %v6300 = vunpack.c.h.b16 %v5972
    %v6301 = vunpack.c.l.b16 %v5973
    %v6302 = vunpack.c.h.b16 %v5973
    %v6303 = vunpack.c.l.b16 %v5974
    %v6304 = vunpack.c.h.b16 %v5974
    %v6305 = vunpack.c.l.b16 %v5975
    %v6306 = vunpack.c.h.b16 %v5975
    %v6307 = vunpack.c.l.b16 %v5976
    %v6308 = vunpack.c.h.b16 %v5976
    %v6309 = vunpack.c.l.b16 %v5977
    %v6310 = vunpack.c.h.b16 %v5977
    %v6311 = vunpack.c.l.b16 %v5978
    %v6312 = vunpack.c.h.b16 %v5978
    %v6313 = vunpack.c.l.b16 %v5979
    %v6314 = vunpack.c.h.b16 %v5979
    %v6315 = vunpack.c.l.b16 %v5980
    %v6316 = vunpack.c.h.b16 %v5980
    %v6317 = vunpack.c.l.b16 %v5981
    %v6318 = vunpack.c.h.b16 %v5981
    %v6319 = vunpack.c.l.b16 %v5982
    %v6320 = vunpack.c.h.b16 %v5982
    %v6321 = vunpack.c.l.b16 %v5983
    %v6322 = vunpack.c.h.b16 %v5983
    %v6323 = vunpack.c.l.b16 %v5984
    %v6324 = vunpack.c.h.b16 %v5984
    %v6325 = vunpack.c.l.b16 %v5985
    %v6326 = vunpack.c.h.b16 %v5985
    %v6327 = vunpack.c.l.b16 %v5986
    %v6328 = vunpack.c.h.b16 %v5986
    %v6329 = vunpack.c.l.b16 %v5987
    %v6330 = vunpack.c.h.b16 %v5987
    %v6331 = vunpack.c.l.b16 %v5988
    %v6332 = vunpack.c.h.b16 %v5988
    %v6333 = vunpack.c.l.b16 %v5989
    %v6334 = vunpack.c.h.b16 %v5989
    %v6335 = vunpack.c.l.b16 %v5990
    %v6336 = vunpack.c.h.b16 %v5990
    %v6337 = vunpack.c.l.b16 %v5991
    %v6338 = vunpack.c.h.b16 %v5991
    %v6339 = vunpack.c.l.b16 %v5992
    %v6340 = vunpack.c.h.b16 %v5992
    %v6341 = vunpack.c.l.b16 %v5993
    %v6342 = vunpack.c.h.b16 %v5993
    %v6343 = vunpack.c.l.b16 %v5994
    %v6344 = vunpack.c.h.b16 %v5994
    %v6345 = vunpack.c.l.b16 %v5995
    %v6346 = vunpack.c.h.b16 %v5995
    %v6347 = vunpack.c.l.b16 %v5996
    %v6348 = vunpack.c.h.b16 %v5996
    %v6349 = vunpack.c.l.b16 %v5997
    %v6350 = vunpack.c.h.b16 %v5997
    %v6351 = vunpack.c.l.b16 %v5998
    %v6352 = vunpack.c.h.b16 %v5998
    %v6353 = vunpack.c.l.b16 %v5999
    %v6354 = vunpack.c.h.b16 %v5999
    %v6355 = vunpack.c.l.b16 %v6000
    %v6356 = vunpack.c.h.b16 %v6000
    %v6357 = vunpack.c.l.b16 %v6001
    %v6358 = vunpack.c.h.b16 %v6001
    %v6359 = vunpack.c.l.b16 %v6002
    %v6360 = vunpack.c.h.b16 %v6002
    %v6361 = vunpack.c.l.b16 %v6003
    %v6362 = vunpack.c.h.b16 %v6003
    %v6363 = vunpack.c.l.b16 %v6004
    %v6364 = vunpack.c.h.b16 %v6004
    %v6365 = vunpack.c.l.b16 %v6005
    %v6366 = vunpack.c.h.b16 %v6005
    %v6367 = vunpack.c.l.b16 %v6006
    %v6368 = vunpack.c.h.b16 %v6006
    %v6369 = vunpack.c.l.b16 %v6007
    %v6370 = vunpack.c.h.b16 %v6007
    %v6371 = vunpack.c.l.b16 %v6008
    %v6372 = vunpack.c.h.b16 %v6008
    %v6373 = vunpack.c.l.b16 %v6009
    %v6374 = vunpack.c.h.b16 %v6009
    %v6375 = vunpack.c.l.b16 %v6010
    %v6376 = vunpack.c.h.b16 %v6010
    %v6377 = vunpack.c.l.b16 %v6011
    %v6378 = vunpack.c.h.b16 %v6011
    %v6379 = vunpack.c.l.b16 %v6012
    %v6380 = vunpack.c.h.b16 %v6012
    %v6381 = vunpack.c.l.b16 %v6013
    %v6382 = vunpack.c.h.b16 %v6013
    %v6383 = vunpack.c.l.b16 %v6014
    %v6384 = vunpack.c.h.b16 %v6014
    %v6385 = vunpack.c.l.b16 %v6015
    %v6386 = vunpack.c.h.b16 %v6015
    %v6387 = vunpack.c.l.b16 %v6016
    %v6388 = vunpack.c.h.b16 %v6016
    %v6389 = vunpack.c.l.b16 %v6017
    %v6390 = vunpack.c.h.b16 %v6017
    %v6391 = vunpack.c.l.b16 %v6018
    %v6392 = vunpack.c.h.b16 %v6018
    %v6393 = vunpack.c.l.b16 %v6019
    %v6394 = vunpack.c.h.b16 %v6019
    %v6395 = vunpack.c.l.b16 %v6020
    %v6396 = vunpack.c.h.b16 %v6020
    %v6397 = vunpack.c.l.b16 %v6021
    %v6398 = vunpack.c.h.b16 %v6021
    %v6399 = vunpack.c.l.b16 %v6022
    %v6400 = vunpack.c.h.b16 %v6022
    %v6401 = vunpack.c.l.b16 %v6023
    %v6402 = vunpack.c.h.b16 %v6023
    %v6403 = vunpack.c.l.b16 %v6024
    %v6404 = vunpack.c.h.b16 %v6024
    %v6405 = vunpack.c.l.b16 %v6025
    %v6406 = vunpack.c.h.b16 %v6025
    %v6407 = vunpack.c.l.b16 %v6026
    %v6408 = vunpack.c.h.b16 %v6026
    %v6409 = vunpack.c.l.b16 %v6027
    %v6410 = vunpack.c.h.b16 %v6027
    %v6411 = vunpack.c.l.b16 %v6028
    %v6412 = vunpack.c.h.b16 %v6028
    %v6413 = vunpack.c.l.b16 %v6029
    %v6414 = vunpack.c.h.b16 %v6029
    %v6415 = vunpack.c.l.b16 %v6030
    %v6416 = vunpack.c.h.b16 %v6030
    %v6417 = vunpack.c.l.b16 %v6031
    %v6418 = vunpack.c.h.b16 %v6031
    %v6419 = vunpack.c.l.b16 %v6032
    %v6420 = vunpack.c.h.b16 %v6032
    %v6421 = vunpack.c.l.b16 %v6033
    %v6422 = vunpack.c.h.b16 %v6033
    %v6423 = vunpack.c.l.b16 %v6034
    %v6424 = vunpack.c.h.b16 %v6034
    %v6425 = vpack.c.b16 %v6177, %v6169
    %v6426 = vpack.c.b16 %v6178, %v6170
    %v6427 = vpack.c.b16 %v6179, %v6171
    %v6428 = vpack.c.b16 %v6180, %v6172
    %v6429 = vpack.c.b16 %v6181, %v6173
    %v6430 = vpack.c.b16 %v6182, %v6174
    %v6431 = vpack.c.b16 %v6183, %v6175
    %v6432 = vpack.c.b16 %v6184, %v6176
    %v6433 = vpack.c.b16 %v6193, %v6185
    %v6434 = vpack.c.b16 %v6194, %v6186
    %v6435 = vpack.c.b16 %v6195, %v6187
    %v6436 = vpack.c.b16 %v6196, %v6188
    %v6437 = vpack.c.b16 %v6197, %v6189
    %v6438 = vpack.c.b16 %v6198, %v6190
    %v6439 = vpack.c.b16 %v6199, %v6191
    %v6440 = vpack.c.b16 %v6200, %v6192
    %v6441 = vpack.c.b16 %v6209, %v6201
    %v6442 = vpack.c.b16 %v6210, %v6202
    %v6443 = vpack.c.b16 %v6211, %v6203
    %v6444 = vpack.c.b16 %v6212, %v6204
    %v6445 = vpack.c.b16 %v6213, %v6205
    %v6446 = vpack.c.b16 %v6214, %v6206
    %v6447 = vpack.c.b16 %v6215, %v6207
    %v6448 = vpack.c.b16 %v6216, %v6208
    %v6449 = vpack.c.b16 %v6225, %v6217
    %v6450 = vpack.c.b16 %v6226, %v6218
    %v6451 = vpack.c.b16 %v6227, %v6219
    %v6452 = vpack.c.b16 %v6228, %v6220
    %v6453 = vpack.c.b16 %v6229, %v6221
    %v6454 = vpack.c.b16 %v6230, %v6222
    %v6455 = vpack.c.b16 %v6231, %v6223
    %v6456 = vpack.c.b16 %v6232, %v6224
    %v6457 = vpack.c.b16 %v6241, %v6233
    %v6458 = vpack.c.b16 %v6242, %v6234
    %v6459 = vpack.c.b16 %v6243, %v6235
    %v6460 = vpack.c.b16 %v6244, %v6236
    %v6461 = vpack.c.b16 %v6245, %v6237
    %v6462 = vpack.c.b16 %v6246, %v6238
    %v6463 = vpack.c.b16 %v6247, %v6239
    %v6464 = vpack.c.b16 %v6248, %v6240
    %v6465 = vpack.c.b16 %v6257, %v6249
    %v6466 = vpack.c.b16 %v6258, %v6250
    %v6467 = vpack.c.b16 %v6259, %v6251
    %v6468 = vpack.c.b16 %v6260, %v6252
    %v6469 = vpack.c.b16 %v6261, %v6253
    %v6470 = vpack.c.b16 %v6262, %v6254
    %v6471 = vpack.c.b16 %v6263, %v6255
    %v6472 = vpack.c.b16 %v6264, %v6256
    %v6473 = vpack.c.b16 %v6273, %v6265
    %v6474 = vpack.c.b16 %v6274, %v6266
    %v6475 = vpack.c.b16 %v6275, %v6267
    %v6476 = vpack.c.b16 %v6276, %v6268
    %v6477 = vpack.c.b16 %v6277, %v6269
    %v6478 = vpack.c.b16 %v6278, %v6270
    %v6479 = vpack.c.b16 %v6279, %v6271
    %v6480 = vpack.c.b16 %v6280, %v6272
    %v6481 = vpack.c.b16 %v6289, %v6281
    %v6482 = vpack.c.b16 %v6290, %v6282
    %v6483 = vpack.c.b16 %v6291, %v6283
    %v6484 = vpack.c.b16 %v6292, %v6284
    %v6485 = vpack.c.b16 %v6293, %v6285
    %v6486 = vpack.c.b16 %v6294, %v6286
    %v6487 = vpack.c.b16 %v6295, %v6287
    %v6488 = vpack.c.b16 %v6296, %v6288
    %v6489 = vpack.c.b16 %v6305, %v6297
    %v6490 = vpack.c.b16 %v6306, %v6298
    %v6491 = vpack.c.b16 %v6307, %v6299
    %v6492 = vpack.c.b16 %v6308, %v6300
    %v6493 = vpack.c.b16 %v6309, %v6301
    %v6494 = vpack.c.b16 %v6310, %v6302
    %v6495 = vpack.c.b16 %v6311, %v6303
    %v6496 = vpack.c.b16 %v6312, %v6304
    %v6497 = vpack.c.b16 %v6321, %v6313
    %v6498 = vpack.c.b16 %v6322, %v6314
    %v6499 = vpack.c.b16 %v6323, %v6315
    %v6500 = vpack.c.b16 %v6324, %v6316
    %v6501 = vpack.c.b16 %v6325, %v6317
    %v6502 = vpack.c.b16 %v6326, %v6318
    %v6503 = vpack.c.b16 %v6327, %v6319
    %v6504 = vpack.c.b16 %v6328, %v6320
    %v6505 = vpack.c.b16 %v6337, %v6329
    %v6506 = vpack.c.b16 %v6338, %v6330
    %v6507 = vpack.c.b16 %v6339, %v6331
    %v6508 = vpack.c.b16 %v6340, %v6332
    %v6509 = vpack.c.b16 %v6341, %v6333
    %v6510 = vpack.c.b16 %v6342, %v6334
    %v6511 = vpack.c.b16 %v6343, %v6335
    %v6512 = vpack.c.b16 %v6344, %v6336
    %v6513 = vpack.c.b16 %v6353, %v6345
    %v6514 = vpack.c.b16 %v6354, %v6346
    %v6515 = vpack.c.b16 %v6355, %v6347
    %v6516 = vpack.c.b16 %v6356, %v6348
    %v6517 = vpack.c.b16 %v6357, %v6349
    %v6518 = vpack.c.b16 %v6358, %v6350
    %v6519 = vpack.c.b16 %v6359, %v6351
    %v6520 = vpack.c.b16 %v6360, %v6352
    %v6521 = vpack.c.b16 %v6369, %v6361
    %v6522 = vpack.c.b16 %v6370, %v6362
    %v6523 = vpack.c.b16 %v6371, %v6363
    %v6524 = vpack.c.b16 %v6372, %v6364
    %v6525 = vpack.c.b16 %v6373, %v6365
    %v6526 = vpack.c.b16 %v6374, %v6366
    %v6527 = vpack.c.b16 %v6375, %v6367
    %v6528 = vpack.c.b16 %v6376, %v6368
    %v6529 = vpack.c.b16 %v6385, %v6377
    %v6530 = vpack.c.b16 %v6386, %v6378
    %v6531 = vpack.c.b16 %v6387, %v6379
    %v6532 = vpack.c.b16 %v6388, %v6380
    %v6533 = vpack.c.b16 %v6389, %v6381
    %v6534 = vpack.c.b16 %v6390, %v6382
    %v6535 = vpack.c.b16 %v6391, %v6383
    %v6536 = vpack.c.b16 %v6392, %v6384
    %v6537 = vpack.c.b16 %v6401, %v6393
    %v6538 = vpack.c.b16 %v6402, %v6394
    %v6539 = vpack.c.b16 %v6403, %v6395
    %v6540 = vpack.c.b16 %v6404, %v6396
    %v6541 = vpack.c.b16 %v6405, %v6397
    %v6542 = vpack.c.b16 %v6406, %v6398
    %v6543 = vpack.c.b16 %v6407, %v6399
    %v6544 = vpack.c.b16 %v6408, %v6400
    %v6545 = vpack.c.b16 %v6417, %v6409
    %v6546 = vpack.c.b16 %v6418, %v6410
    %v6547 = vpack.c.b16 %v6419, %v6411
    %v6548 = vpack.c.b16 %v6420, %v6412
    %v6549 = vpack.c.b16 %v6421, %v6413
    %v6550 = vpack.c.b16 %v6422, %v6414
    %v6551 = vpack.c.b16 %v6423, %v6415
    %v6552 = vpack.c.b16 %v6424, %v6416
    %6681 = vmatpush.bf16.msra.mxu0 %v6481
    %6682 = vmatpush.bf16.msra.mxu0 %v6473
    %6683 = vmatpush.bf16.msra.mxu0 %v6465
    %6684 = vmatpush.bf16.msra.mxu0 %v6457
    %6685 = vmatpush.bf16.msra.mxu0 %v6449
    %6686 = vmatpush.bf16.msra.mxu0 %v6441
    %6687 = vmatpush.bf16.msra.mxu0 %v6433
    %6688 = vmatpush.bf16.msra.mxu0 %v6425
    %6689 = vmatmul.bf16.gmra.mxu0 %v6037
    %v6690 = vpop.f32.mrf.mxu0
    %v6691 = vadd.f32 0.0, %v6690
    %v6692 = vpop.f32.mrf.mxu0
    %6693 = vdwg.mxu0
    %6694 = vmatpush.bf16.msra.mxu0 %v6545
    %6695 = vmatpush.bf16.msra.mxu0 %v6537
    %6696 = vmatpush.bf16.msra.mxu0 %v6529
    %6697 = vmatpush.bf16.msra.mxu0 %v6521
    %6698 = vmatpush.bf16.msra.mxu0 %v6513
    %6699 = vmatpush.bf16.msra.mxu0 %v6505
    %6700 = vmatpush.bf16.msra.mxu0 %v6497
    %6701 = vmatpush.bf16.msra.mxu0 %v6489
    %6702 = vmatmul.bf16.gmra.mxu0 %v6038
    %v6703 = vpop.f32.mrf.mxu0
    %v6704 = vadd.f32 %v6691, %v6703
    %v6705 = vpop.f32.mrf.mxu0
    %6706 = vdwg.mxu0
    %6707 = vmatpush.bf16.msra.mxu0 %v6482
    %6708 = vmatpush.bf16.msra.mxu0 %v6474
    %6709 = vmatpush.bf16.msra.mxu0 %v6466
    %6710 = vmatpush.bf16.msra.mxu0 %v6458
    %6711 = vmatpush.bf16.msra.mxu0 %v6450
    %6712 = vmatpush.bf16.msra.mxu0 %v6442
    %6713 = vmatpush.bf16.msra.mxu0 %v6434
    %6714 = vmatpush.bf16.msra.mxu0 %v6426
    %6715 = vmatmul.bf16.gmra.mxu0 %v6037
    %v6716 = vpop.f32.mrf.mxu0
    %v6717 = vadd.f32 0.0, %v6716
    %v6718 = vpop.f32.mrf.mxu0
    %6719 = vdwg.mxu0
    %6720 = vmatpush.bf16.msra.mxu0 %v6546
    %6721 = vmatpush.bf16.msra.mxu0 %v6538
    %6722 = vmatpush.bf16.msra.mxu0 %v6530
    %6723 = vmatpush.bf16.msra.mxu0 %v6522
    %6724 = vmatpush.bf16.msra.mxu0 %v6514
    %6725 = vmatpush.bf16.msra.mxu0 %v6506
    %6726 = vmatpush.bf16.msra.mxu0 %v6498
    %6727 = vmatpush.bf16.msra.mxu0 %v6490
    %6728 = vmatmul.bf16.gmra.mxu0 %v6038
    %v6729 = vpop.f32.mrf.mxu0
    %v6730 = vadd.f32 %v6717, %v6729
    %v6731 = vpop.f32.mrf.mxu0
    %6732 = vdwg.mxu0
    %6733 = vmatpush.bf16.msra.mxu0 %v6483
    %6734 = vmatpush.bf16.msra.mxu0 %v6475
    %6735 = vmatpush.bf16.msra.mxu0 %v6467
    %6736 = vmatpush.bf16.msra.mxu0 %v6459
    %6737 = vmatpush.bf16.msra.mxu0 %v6451
    %6738 = vmatpush.bf16.msra.mxu0 %v6443
    %6739 = vmatpush.bf16.msra.mxu0 %v6435
    %6740 = vmatpush.bf16.msra.mxu0 %v6427
    %6741 = vmatmul.bf16.gmra.mxu0 %v6037
    %v6742 = vpop.f32.mrf.mxu0
    %v6743 = vadd.f32 0.0, %v6742
    %v6744 = vpop.f32.mrf.mxu0
    %6745 = vdwg.mxu0
    %6746 = vmatpush.bf16.msra.mxu0 %v6547
    %6747 = vmatpush.bf16.msra.mxu0 %v6539
    %6748 = vmatpush.bf16.msra.mxu0 %v6531
    %6749 = vmatpush.bf16.msra.mxu0 %v6523
    %6750 = vmatpush.bf16.msra.mxu0 %v6515
    %6751 = vmatpush.bf16.msra.mxu0 %v6507
    %6752 = vmatpush.bf16.msra.mxu0 %v6499
    %6753 = vmatpush.bf16.msra.mxu0 %v6491
    %6754 = vmatmul.bf16.gmra.mxu0 %v6038
    %v6755 = vpop.f32.mrf.mxu0
    %v6756 = vadd.f32 %v6743, %v6755
    %v6757 = vpop.f32.mrf.mxu0
    %6758 = vdwg.mxu0
    %6759 = vmatpush.bf16.msra.mxu0 %v6484
    %6760 = vmatpush.bf16.msra.mxu0 %v6476
    %6761 = vmatpush.bf16.msra.mxu0 %v6468
    %6762 = vmatpush.bf16.msra.mxu0 %v6460
    %6763 = vmatpush.bf16.msra.mxu0 %v6452
    %6764 = vmatpush.bf16.msra.mxu0 %v6444
    %6765 = vmatpush.bf16.msra.mxu0 %v6436
    %6766 = vmatpush.bf16.msra.mxu0 %v6428
    %6767 = vmatmul.bf16.gmra.mxu0 %v6037
    %v6768 = vpop.f32.mrf.mxu0
    %v6769 = vadd.f32 0.0, %v6768
    %v6770 = vpop.f32.mrf.mxu0
    %6771 = vdwg.mxu0
    %6772 = vmatpush.bf16.msra.mxu0 %v6548
    %6773 = vmatpush.bf16.msra.mxu0 %v6540
    %6774 = vmatpush.bf16.msra.mxu0 %v6532
    %6775 = vmatpush.bf16.msra.mxu0 %v6524
    %6776 = vmatpush.bf16.msra.mxu0 %v6516
    %6777 = vmatpush.bf16.msra.mxu0 %v6508
    %6778 = vmatpush.bf16.msra.mxu0 %v6500
    %6779 = vmatpush.bf16.msra.mxu0 %v6492
    %6780 = vmatmul.bf16.gmra.mxu0 %v6038
    %v6781 = vpop.f32.mrf.mxu0
    %v6782 = vadd.f32 %v6769, %v6781
    %v6783 = vpop.f32.mrf.mxu0
    %6784 = vdwg.mxu0
    %6785 = vmatpush.bf16.msra.mxu0 %v6485
    %6786 = vmatpush.bf16.msra.mxu0 %v6477
    %6787 = vmatpush.bf16.msra.mxu0 %v6469
    %6788 = vmatpush.bf16.msra.mxu0 %v6461
    %6789 = vmatpush.bf16.msra.mxu0 %v6453
    %6790 = vmatpush.bf16.msra.mxu0 %v6445
    %6791 = vmatpush.bf16.msra.mxu0 %v6437
    %6792 = vmatpush.bf16.msra.mxu0 %v6429
    %6793 = vmatmul.bf16.gmra.mxu0 %v6037
    %v6794 = vpop.f32.mrf.mxu0
    %v6795 = vadd.f32 0.0, %v6794
    %v6796 = vpop.f32.mrf.mxu0
    %6797 = vdwg.mxu0
    %6798 = vmatpush.bf16.msra.mxu0 %v6549
    %6799 = vmatpush.bf16.msra.mxu0 %v6541
    %6800 = vmatpush.bf16.msra.mxu0 %v6533
    %6801 = vmatpush.bf16.msra.mxu0 %v6525
    %6802 = vmatpush.bf16.msra.mxu0 %v6517
    %6803 = vmatpush.bf16.msra.mxu0 %v6509
    %6804 = vmatpush.bf16.msra.mxu0 %v6501
    %6805 = vmatpush.bf16.msra.mxu0 %v6493
    %6806 = vmatmul.bf16.gmra.mxu0 %v6038
    %v6807 = vpop.f32.mrf.mxu0
    %v6808 = vadd.f32 %v6795, %v6807
    %v6809 = vpop.f32.mrf.mxu0
    %6810 = vdwg.mxu0
    %6811 = vmatpush.bf16.msra.mxu0 %v6486
    %6812 = vmatpush.bf16.msra.mxu0 %v6478
    %6813 = vmatpush.bf16.msra.mxu0 %v6470
    %6814 = vmatpush.bf16.msra.mxu0 %v6462
    %6815 = vmatpush.bf16.msra.mxu0 %v6454
    %6816 = vmatpush.bf16.msra.mxu0 %v6446
    %6817 = vmatpush.bf16.msra.mxu0 %v6438
    %6818 = vmatpush.bf16.msra.mxu0 %v6430
    %6819 = vmatmul.bf16.gmra.mxu0 %v6037
    %v6820 = vpop.f32.mrf.mxu0
    %v6821 = vadd.f32 0.0, %v6820
    %v6822 = vpop.f32.mrf.mxu0
    %6823 = vdwg.mxu0
    %6824 = vmatpush.bf16.msra.mxu0 %v6550
    %6825 = vmatpush.bf16.msra.mxu0 %v6542
    %6826 = vmatpush.bf16.msra.mxu0 %v6534
    %6827 = vmatpush.bf16.msra.mxu0 %v6526
    %6828 = vmatpush.bf16.msra.mxu0 %v6518
    %6829 = vmatpush.bf16.msra.mxu0 %v6510
    %6830 = vmatpush.bf16.msra.mxu0 %v6502
    %6831 = vmatpush.bf16.msra.mxu0 %v6494
    %6832 = vmatmul.bf16.gmra.mxu0 %v6038
    %v6833 = vpop.f32.mrf.mxu0
    %v6834 = vadd.f32 %v6821, %v6833
    %v6835 = vpop.f32.mrf.mxu0
    %6836 = vdwg.mxu0
    %6837 = vmatpush.bf16.msra.mxu0 %v6487
    %6838 = vmatpush.bf16.msra.mxu0 %v6479
    %6839 = vmatpush.bf16.msra.mxu0 %v6471
    %6840 = vmatpush.bf16.msra.mxu0 %v6463
    %6841 = vmatpush.bf16.msra.mxu0 %v6455
    %6842 = vmatpush.bf16.msra.mxu0 %v6447
    %6843 = vmatpush.bf16.msra.mxu0 %v6439
    %6844 = vmatpush.bf16.msra.mxu0 %v6431
    %6845 = vmatmul.bf16.gmra.mxu0 %v6037
    %v6846 = vpop.f32.mrf.mxu0
    %v6847 = vadd.f32 0.0, %v6846
    %v6848 = vpop.f32.mrf.mxu0
    %6849 = vdwg.mxu0
    %6850 = vmatpush.bf16.msra.mxu0 %v6551
    %6851 = vmatpush.bf16.msra.mxu0 %v6543
    %6852 = vmatpush.bf16.msra.mxu0 %v6535
    %6853 = vmatpush.bf16.msra.mxu0 %v6527
    %6854 = vmatpush.bf16.msra.mxu0 %v6519
    %6855 = vmatpush.bf16.msra.mxu0 %v6511
    %6856 = vmatpush.bf16.msra.mxu0 %v6503
    %6857 = vmatpush.bf16.msra.mxu0 %v6495
    %6858 = vmatmul.bf16.gmra.mxu0 %v6038
    %v6859 = vpop.f32.mrf.mxu0
    %v6860 = vadd.f32 %v6847, %v6859
    %v6861 = vpop.f32.mrf.mxu0
    %6862 = vdwg.mxu0
    %6863 = vmatpush.bf16.msra.mxu0 %v6488
    %6864 = vmatpush.bf16.msra.mxu0 %v6480
    %6865 = vmatpush.bf16.msra.mxu0 %v6472
    %6866 = vmatpush.bf16.msra.mxu0 %v6464
    %6867 = vmatpush.bf16.msra.mxu0 %v6456
    %6868 = vmatpush.bf16.msra.mxu0 %v6448
    %6869 = vmatpush.bf16.msra.mxu0 %v6440
    %6870 = vmatpush.bf16.msra.mxu0 %v6432
    %6871 = vmatmul.bf16.gmra.mxu0 %v6037
    %v6872 = vpop.f32.mrf.mxu0
    %v6873 = vadd.f32 0.0, %v6872
    %v6874 = vpop.f32.mrf.mxu0
    %6875 = vdwg.mxu0
    %6876 = vmatpush.bf16.msra.mxu0 %v6552
    %6877 = vmatpush.bf16.msra.mxu0 %v6544
    %6878 = vmatpush.bf16.msra.mxu0 %v6536
    %6879 = vmatpush.bf16.msra.mxu0 %v6528
    %6880 = vmatpush.bf16.msra.mxu0 %v6520
    %6881 = vmatpush.bf16.msra.mxu0 %v6512
    %6882 = vmatpush.bf16.msra.mxu0 %v6504
    %6883 = vmatpush.bf16.msra.mxu0 %v6496
    %6884 = vmatmul.bf16.gmra.mxu0 %v6038
    %v6885 = vpop.f32.mrf.mxu0
    %v6886 = vadd.f32 %v6873, %v6885
    %v6887 = vpop.f32.mrf.mxu0
    %6888 = vdwg.mxu0
    %v6897 = vrot.slane %v6730, 7
    %v6898 = vrot.slane %v6756, 6
    %v6899 = vrot.slane %v6782, 5
    %v6900 = vrot.slane %v6808, 4
    %v6901 = vrot.slane %v6834, 3
    %v6902 = vrot.slane %v6860, 2
    %v6903 = vrot.slane %v6886, 1
    %v6904 = vsel %vm1628, %v6704, %v6897
    %v6905 = vsel %vm1630, %v6898, %v6899
    %v6906 = vsel %vm1632, %v6904, %v6905
    %v6907 = vsel %vm1634, %v6900, %v6901
    %v6908 = vsel %vm1636, %v6902, %v6903
    %v6909 = vsel %vm1638, %v6907, %v6908
    %v6910 = vsel %vm1640, %v6906, %v6909
    %v6912 = vadd.f32 %v5906, %v6910
    %v6913 = vmul.f32 %v6912, 0.5
    %v6914 = vtanh.pop %v6913
    %v6915 = vmul.f32 %v6914, 0.5
    %v6916 = vadd.f32 %v6915, 0.5
    %v6918 = vrot.slane %v6912, 2
    %v6920 = vmul.f32 %v6918, 0.5
    %v6921 = vtanh.pop %v6920
    %v6922 = vmul.f32 %v6921, 0.5
    %v6923 = vadd.f32 %v6922, 0.5
    %v6924 = vrot.slane %v6912, 4
    %v6926 = vtanh.pop %v6924
    %v6927 = vrot.slane %v6912, 6
    %v6929 = vmul.f32 %v6927, 0.5
    %v6930 = vtanh.pop %v6929
    %v6931 = vmul.f32 %v6930, 0.5
    %v6932 = vadd.f32 %v6931, 0.5
    %v6933 = vmul.f32 %v6923, %v5881
    %v6934 = vmul.f32 %v6916, %v6926
    %v6935 = vadd.f32 %v6933, %v6934
    %v6936 = vtanh.pop %v6935
    %v6937 = vmul.f32 %v6932, %v6936
    %v6939 = vperm.slane %v6937, 0
    %v6940 = vperm.slane %v6937, 1
    %v6943 = vpack.c.bf16 %v6940, %v6939
    %v6945 = vshll.u32 %v6943, 16
    %v6947 = vrot.slane %v6945, 6
    %vm6949 = vsmask.f32 7946
    %vm6950 = vmand %vm5893, %vm6949
    %vm6951 = vsmask.f32 7962
    %vm6952 = vmand %vm5896, %vm6951
    %vm6953 = vmor %vm6952, %vm6950
    %v6954 = vld [vmem:[#allocation14] sm:$0x44]
    %v6955 = vsel %vm6953, %v6947, %v6954
    %6956 = vst [vmem:[#allocation14] sm:$0x44] %v6955
    %s6957 = scalar_lea.vmem [#allocation2], 6
    %v6958 = vld [vmem:[%s6957] ss:$8 sm:$0xf]
    %v6959 = vld [vmem:[%s6957] ss:$8 sm:$0xf0]
    %v6960 = vor.u32 %v6958, %v6959
    %v6961 = vld [vmem:[#allocation11] sm:$0xff]
    %v6962 = vld [vmem:[#allocation11 + $0x8] sm:$0xff]
    %v6963 = vld [vmem:[#allocation11 + $0x10] sm:$0xff]
    %v6964 = vld [vmem:[#allocation11 + $0x18] sm:$0xff]
    %v6965 = vld [vmem:[#allocation11 + $0x20] sm:$0xff]
    %v6966 = vld [vmem:[#allocation11 + $0x28] sm:$0xff]
    %v6967 = vld [vmem:[#allocation11 + $0x30] sm:$0xff]
    %v6968 = vld [vmem:[#allocation11 + $0x38] sm:$0xff]
    %v6969 = vld [vmem:[#allocation11 + $0x40] sm:$0xff]
    %v6970 = vld [vmem:[#allocation11 + $0x48] sm:$0xff]
    %v6971 = vld [vmem:[#allocation11 + $0x50] sm:$0xff]
    %v6972 = vld [vmem:[#allocation11 + $0x58] sm:$0xff]
    %v6973 = vld [vmem:[#allocation11 + $0x60] sm:$0xff]
    %v6974 = vld [vmem:[#allocation11 + $0x68] sm:$0xff]
    %v6975 = vld [vmem:[#allocation11 + $0x70] sm:$0xff]
    %v6976 = vld [vmem:[#allocation11 + $0x78] sm:$0xff]
    %v6977 = vld [vmem:[#allocation11 + $0x80] sm:$0xff]
    %v6978 = vld [vmem:[#allocation11 + $0x88] sm:$0xff]
    %v6979 = vld [vmem:[#allocation11 + $0x90] sm:$0xff]
    %v6980 = vld [vmem:[#allocation11 + $0x98] sm:$0xff]
    %v6981 = vld [vmem:[#allocation11 + $0xa0] sm:$0xff]
    %v6982 = vld [vmem:[#allocation11 + $0xa8] sm:$0xff]
    %v6983 = vld [vmem:[#allocation11 + $0xb0] sm:$0xff]
    %v6984 = vld [vmem:[#allocation11 + $0xb8] sm:$0xff]
    %v6985 = vld [vmem:[#allocation11 + $0xc0] sm:$0xff]
    %v6986 = vld [vmem:[#allocation11 + $0xc8] sm:$0xff]
    %v6987 = vld [vmem:[#allocation11 + $0xd0] sm:$0xff]
    %v6988 = vld [vmem:[#allocation11 + $0xd8] sm:$0xff]
    %v6989 = vld [vmem:[#allocation11 + $0xe0] sm:$0xff]
    %v6990 = vld [vmem:[#allocation11 + $0xe8] sm:$0xff]
    %v6991 = vld [vmem:[#allocation11 + $0xf0] sm:$0xff]
    %v6992 = vld [vmem:[#allocation11 + $0xf8] sm:$0xff]
    %v6993 = vld [vmem:[#allocation11 + $0x100] sm:$0xff]
    %v6994 = vld [vmem:[#allocation11 + $0x108] sm:$0xff]
    %v6995 = vld [vmem:[#allocation11 + $0x110] sm:$0xff]
    %v6996 = vld [vmem:[#allocation11 + $0x118] sm:$0xff]
    %v6997 = vld [vmem:[#allocation11 + $0x120] sm:$0xff]
    %v6998 = vld [vmem:[#allocation11 + $0x128] sm:$0xff]
    %v6999 = vld [vmem:[#allocation11 + $0x130] sm:$0xff]
    %v7000 = vld [vmem:[#allocation11 + $0x138] sm:$0xff]
    %v7001 = vld [vmem:[#allocation11 + $0x140] sm:$0xff]
    %v7002 = vld [vmem:[#allocation11 + $0x148] sm:$0xff]
    %v7003 = vld [vmem:[#allocation11 + $0x150] sm:$0xff]
    %v7004 = vld [vmem:[#allocation11 + $0x158] sm:$0xff]
    %v7005 = vld [vmem:[#allocation11 + $0x160] sm:$0xff]
    %v7006 = vld [vmem:[#allocation11 + $0x168] sm:$0xff]
    %v7007 = vld [vmem:[#allocation11 + $0x170] sm:$0xff]
    %v7008 = vld [vmem:[#allocation11 + $0x178] sm:$0xff]
    %v7009 = vld [vmem:[#allocation11 + $0x180] sm:$0xff]
    %v7010 = vld [vmem:[#allocation11 + $0x188] sm:$0xff]
    %v7011 = vld [vmem:[#allocation11 + $0x190] sm:$0xff]
    %v7012 = vld [vmem:[#allocation11 + $0x198] sm:$0xff]
    %v7013 = vld [vmem:[#allocation11 + $0x1a0] sm:$0xff]
    %v7014 = vld [vmem:[#allocation11 + $0x1a8] sm:$0xff]
    %v7015 = vld [vmem:[#allocation11 + $0x1b0] sm:$0xff]
    %v7016 = vld [vmem:[#allocation11 + $0x1b8] sm:$0xff]
    %v7017 = vld [vmem:[#allocation11 + $0x1c0] sm:$0xff]
    %v7018 = vld [vmem:[#allocation11 + $0x1c8] sm:$0xff]
    %v7019 = vld [vmem:[#allocation11 + $0x1d0] sm:$0xff]
    %v7020 = vld [vmem:[#allocation11 + $0x1d8] sm:$0xff]
    %v7021 = vld [vmem:[#allocation11 + $0x1e0] sm:$0xff]
    %v7022 = vld [vmem:[#allocation11 + $0x1e8] sm:$0xff]
    %v7023 = vld [vmem:[#allocation11 + $0x1f0] sm:$0xff]
    %v7024 = vld [vmem:[#allocation11 + $0x1f8] sm:$0xff]
    %v7025 = vld [vmem:[#allocation11 + $0x200] sm:$0xff]
    %v7026 = vld [vmem:[#allocation11 + $0x208] sm:$0xff]
    %v7027 = vld [vmem:[#allocation11 + $0x210] sm:$0xff]
    %v7028 = vld [vmem:[#allocation11 + $0x218] sm:$0xff]
    %v7029 = vld [vmem:[#allocation11 + $0x220] sm:$0xff]
    %v7030 = vld [vmem:[#allocation11 + $0x228] sm:$0xff]
    %v7031 = vld [vmem:[#allocation11 + $0x230] sm:$0xff]
    %v7032 = vld [vmem:[#allocation11 + $0x238] sm:$0xff]
    %v7033 = vld [vmem:[#allocation11 + $0x240] sm:$0xff]
    %v7034 = vld [vmem:[#allocation11 + $0x248] sm:$0xff]
    %v7035 = vld [vmem:[#allocation11 + $0x250] sm:$0xff]
    %v7036 = vld [vmem:[#allocation11 + $0x258] sm:$0xff]
    %v7037 = vld [vmem:[#allocation11 + $0x260] sm:$0xff]
    %v7038 = vld [vmem:[#allocation11 + $0x268] sm:$0xff]
    %v7039 = vld [vmem:[#allocation11 + $0x270] sm:$0xff]
    %v7040 = vld [vmem:[#allocation11 + $0x278] sm:$0xff]
    %v7041 = vld [vmem:[#allocation11 + $0x280] sm:$0xff]
    %v7042 = vld [vmem:[#allocation11 + $0x288] sm:$0xff]
    %v7043 = vld [vmem:[#allocation11 + $0x290] sm:$0xff]
    %v7044 = vld [vmem:[#allocation11 + $0x298] sm:$0xff]
    %v7045 = vld [vmem:[#allocation11 + $0x2a0] sm:$0xff]
    %v7046 = vld [vmem:[#allocation11 + $0x2a8] sm:$0xff]
    %v7047 = vld [vmem:[#allocation11 + $0x2b0] sm:$0xff]
    %v7048 = vld [vmem:[#allocation11 + $0x2b8] sm:$0xff]
    %v7049 = vld [vmem:[#allocation11 + $0x2c0] sm:$0xff]
    %v7050 = vld [vmem:[#allocation11 + $0x2c8] sm:$0xff]
    %v7051 = vld [vmem:[#allocation11 + $0x2d0] sm:$0xff]
    %v7052 = vld [vmem:[#allocation11 + $0x2d8] sm:$0xff]
    %v7053 = vld [vmem:[#allocation11 + $0x2e0] sm:$0xff]
    %v7054 = vld [vmem:[#allocation11 + $0x2e8] sm:$0xff]
    %v7055 = vld [vmem:[#allocation11 + $0x2f0] sm:$0xff]
    %v7056 = vld [vmem:[#allocation11 + $0x2f8] sm:$0xff]
    %v7057 = vld [vmem:[#allocation11 + $0x300] sm:$0xff]
    %v7058 = vld [vmem:[#allocation11 + $0x308] sm:$0xff]
    %v7059 = vld [vmem:[#allocation11 + $0x310] sm:$0xff]
    %v7060 = vld [vmem:[#allocation11 + $0x318] sm:$0xff]
    %v7061 = vld [vmem:[#allocation11 + $0x320] sm:$0xff]
    %v7062 = vld [vmem:[#allocation11 + $0x328] sm:$0xff]
    %v7063 = vld [vmem:[#allocation11 + $0x330] sm:$0xff]
    %v7064 = vld [vmem:[#allocation11 + $0x338] sm:$0xff]
    %v7065 = vld [vmem:[#allocation11 + $0x340] sm:$0xff]
    %v7066 = vld [vmem:[#allocation11 + $0x348] sm:$0xff]
    %v7067 = vld [vmem:[#allocation11 + $0x350] sm:$0xff]
    %v7068 = vld [vmem:[#allocation11 + $0x358] sm:$0xff]
    %v7069 = vld [vmem:[#allocation11 + $0x360] sm:$0xff]
    %v7070 = vld [vmem:[#allocation11 + $0x368] sm:$0xff]
    %v7071 = vld [vmem:[#allocation11 + $0x370] sm:$0xff]
    %v7072 = vld [vmem:[#allocation11 + $0x378] sm:$0xff]
    %v7073 = vld [vmem:[#allocation11 + $0x380] sm:$0xff]
    %v7074 = vld [vmem:[#allocation11 + $0x388] sm:$0xff]
    %v7075 = vld [vmem:[#allocation11 + $0x390] sm:$0xff]
    %v7076 = vld [vmem:[#allocation11 + $0x398] sm:$0xff]
    %v7077 = vld [vmem:[#allocation11 + $0x3a0] sm:$0xff]
    %v7078 = vld [vmem:[#allocation11 + $0x3a8] sm:$0xff]
    %v7079 = vld [vmem:[#allocation11 + $0x3b0] sm:$0xff]
    %v7080 = vld [vmem:[#allocation11 + $0x3b8] sm:$0xff]
    %v7081 = vld [vmem:[#allocation11 + $0x3c0] sm:$0xff]
    %v7082 = vld [vmem:[#allocation11 + $0x3c8] sm:$0xff]
    %v7083 = vld [vmem:[#allocation11 + $0x3d0] sm:$0xff]
    %v7084 = vld [vmem:[#allocation11 + $0x3d8] sm:$0xff]
    %v7085 = vld [vmem:[#allocation11 + $0x3e0] sm:$0xff]
    %v7086 = vld [vmem:[#allocation11 + $0x3e8] sm:$0xff]
    %v7087 = vld [vmem:[#allocation11 + $0x3f0] sm:$0xff]
    %v7088 = vld [vmem:[#allocation11 + $0x3f8] sm:$0xff]
    %v7090 = vunpack.c.l.b16 %v6943
    %v7091 = vunpack.c.h.b16 %v6943
    %v7092 = vpack.c.b16 %v7090, %v7090
    %v7093 = vpack.c.b16 %v7091, %v7091
    %v7224 = vunpack.c.l.b16 %v6961
    %v7225 = vunpack.c.h.b16 %v6961
    %v7226 = vunpack.c.l.b16 %v6962
    %v7227 = vunpack.c.h.b16 %v6962
    %v7228 = vunpack.c.l.b16 %v6963
    %v7229 = vunpack.c.h.b16 %v6963
    %v7230 = vunpack.c.l.b16 %v6964
    %v7231 = vunpack.c.h.b16 %v6964
    %v7232 = vunpack.c.l.b16 %v6965
    %v7233 = vunpack.c.h.b16 %v6965
    %v7234 = vunpack.c.l.b16 %v6966
    %v7235 = vunpack.c.h.b16 %v6966
    %v7236 = vunpack.c.l.b16 %v6967
    %v7237 = vunpack.c.h.b16 %v6967
    %v7238 = vunpack.c.l.b16 %v6968
    %v7239 = vunpack.c.h.b16 %v6968
    %v7240 = vunpack.c.l.b16 %v6969
    %v7241 = vunpack.c.h.b16 %v6969
    %v7242 = vunpack.c.l.b16 %v6970
    %v7243 = vunpack.c.h.b16 %v6970
    %v7244 = vunpack.c.l.b16 %v6971
    %v7245 = vunpack.c.h.b16 %v6971
    %v7246 = vunpack.c.l.b16 %v6972
    %v7247 = vunpack.c.h.b16 %v6972
    %v7248 = vunpack.c.l.b16 %v6973
    %v7249 = vunpack.c.h.b16 %v6973
    %v7250 = vunpack.c.l.b16 %v6974
    %v7251 = vunpack.c.h.b16 %v6974
    %v7252 = vunpack.c.l.b16 %v6975
    %v7253 = vunpack.c.h.b16 %v6975
    %v7254 = vunpack.c.l.b16 %v6976
    %v7255 = vunpack.c.h.b16 %v6976
    %v7256 = vunpack.c.l.b16 %v6977
    %v7257 = vunpack.c.h.b16 %v6977
    %v7258 = vunpack.c.l.b16 %v6978
    %v7259 = vunpack.c.h.b16 %v6978
    %v7260 = vunpack.c.l.b16 %v6979
    %v7261 = vunpack.c.h.b16 %v6979
    %v7262 = vunpack.c.l.b16 %v6980
    %v7263 = vunpack.c.h.b16 %v6980
    %v7264 = vunpack.c.l.b16 %v6981
    %v7265 = vunpack.c.h.b16 %v6981
    %v7266 = vunpack.c.l.b16 %v6982
    %v7267 = vunpack.c.h.b16 %v6982
    %v7268 = vunpack.c.l.b16 %v6983
    %v7269 = vunpack.c.h.b16 %v6983
    %v7270 = vunpack.c.l.b16 %v6984
    %v7271 = vunpack.c.h.b16 %v6984
    %v7272 = vunpack.c.l.b16 %v6985
    %v7273 = vunpack.c.h.b16 %v6985
    %v7274 = vunpack.c.l.b16 %v6986
    %v7275 = vunpack.c.h.b16 %v6986
    %v7276 = vunpack.c.l.b16 %v6987
    %v7277 = vunpack.c.h.b16 %v6987
    %v7278 = vunpack.c.l.b16 %v6988
    %v7279 = vunpack.c.h.b16 %v6988
    %v7280 = vunpack.c.l.b16 %v6989
    %v7281 = vunpack.c.h.b16 %v6989
    %v7282 = vunpack.c.l.b16 %v6990
    %v7283 = vunpack.c.h.b16 %v6990
    %v7284 = vunpack.c.l.b16 %v6991
    %v7285 = vunpack.c.h.b16 %v6991
    %v7286 = vunpack.c.l.b16 %v6992
    %v7287 = vunpack.c.h.b16 %v6992
    %v7288 = vunpack.c.l.b16 %v6993
    %v7289 = vunpack.c.h.b16 %v6993
    %v7290 = vunpack.c.l.b16 %v6994
    %v7291 = vunpack.c.h.b16 %v6994
    %v7292 = vunpack.c.l.b16 %v6995
    %v7293 = vunpack.c.h.b16 %v6995
    %v7294 = vunpack.c.l.b16 %v6996
    %v7295 = vunpack.c.h.b16 %v6996
    %v7296 = vunpack.c.l.b16 %v6997
    %v7297 = vunpack.c.h.b16 %v6997
    %v7298 = vunpack.c.l.b16 %v6998
    %v7299 = vunpack.c.h.b16 %v6998
    %v7300 = vunpack.c.l.b16 %v6999
    %v7301 = vunpack.c.h.b16 %v6999
    %v7302 = vunpack.c.l.b16 %v7000
    %v7303 = vunpack.c.h.b16 %v7000
    %v7304 = vunpack.c.l.b16 %v7001
    %v7305 = vunpack.c.h.b16 %v7001
    %v7306 = vunpack.c.l.b16 %v7002
    %v7307 = vunpack.c.h.b16 %v7002
    %v7308 = vunpack.c.l.b16 %v7003
    %v7309 = vunpack.c.h.b16 %v7003
    %v7310 = vunpack.c.l.b16 %v7004
    %v7311 = vunpack.c.h.b16 %v7004
    %v7312 = vunpack.c.l.b16 %v7005
    %v7313 = vunpack.c.h.b16 %v7005
    %v7314 = vunpack.c.l.b16 %v7006
    %v7315 = vunpack.c.h.b16 %v7006
    %v7316 = vunpack.c.l.b16 %v7007
    %v7317 = vunpack.c.h.b16 %v7007
    %v7318 = vunpack.c.l.b16 %v7008
    %v7319 = vunpack.c.h.b16 %v7008
    %v7320 = vunpack.c.l.b16 %v7009
    %v7321 = vunpack.c.h.b16 %v7009
    %v7322 = vunpack.c.l.b16 %v7010
    %v7323 = vunpack.c.h.b16 %v7010
    %v7324 = vunpack.c.l.b16 %v7011
    %v7325 = vunpack.c.h.b16 %v7011
    %v7326 = vunpack.c.l.b16 %v7012
    %v7327 = vunpack.c.h.b16 %v7012
    %v7328 = vunpack.c.l.b16 %v7013
    %v7329 = vunpack.c.h.b16 %v7013
    %v7330 = vunpack.c.l.b16 %v7014
    %v7331 = vunpack.c.h.b16 %v7014
    %v7332 = vunpack.c.l.b16 %v7015
    %v7333 = vunpack.c.h.b16 %v7015
    %v7334 = vunpack.c.l.b16 %v7016
    %v7335 = vunpack.c.h.b16 %v7016
    %v7336 = vunpack.c.l.b16 %v7017
    %v7337 = vunpack.c.h.b16 %v7017
    %v7338 = vunpack.c.l.b16 %v7018
    %v7339 = vunpack.c.h.b16 %v7018
    %v7340 = vunpack.c.l.b16 %v7019
    %v7341 = vunpack.c.h.b16 %v7019
    %v7342 = vunpack.c.l.b16 %v7020
    %v7343 = vunpack.c.h.b16 %v7020
    %v7344 = vunpack.c.l.b16 %v7021
    %v7345 = vunpack.c.h.b16 %v7021
    %v7346 = vunpack.c.l.b16 %v7022
    %v7347 = vunpack.c.h.b16 %v7022
    %v7348 = vunpack.c.l.b16 %v7023
    %v7349 = vunpack.c.h.b16 %v7023
    %v7350 = vunpack.c.l.b16 %v7024
    %v7351 = vunpack.c.h.b16 %v7024
    %v7352 = vunpack.c.l.b16 %v7025
    %v7353 = vunpack.c.h.b16 %v7025
    %v7354 = vunpack.c.l.b16 %v7026
    %v7355 = vunpack.c.h.b16 %v7026
    %v7356 = vunpack.c.l.b16 %v7027
    %v7357 = vunpack.c.h.b16 %v7027
    %v7358 = vunpack.c.l.b16 %v7028
    %v7359 = vunpack.c.h.b16 %v7028
    %v7360 = vunpack.c.l.b16 %v7029
    %v7361 = vunpack.c.h.b16 %v7029
    %v7362 = vunpack.c.l.b16 %v7030
    %v7363 = vunpack.c.h.b16 %v7030
    %v7364 = vunpack.c.l.b16 %v7031
    %v7365 = vunpack.c.h.b16 %v7031
    %v7366 = vunpack.c.l.b16 %v7032
    %v7367 = vunpack.c.h.b16 %v7032
    %v7368 = vunpack.c.l.b16 %v7033
    %v7369 = vunpack.c.h.b16 %v7033
    %v7370 = vunpack.c.l.b16 %v7034
    %v7371 = vunpack.c.h.b16 %v7034
    %v7372 = vunpack.c.l.b16 %v7035
    %v7373 = vunpack.c.h.b16 %v7035
    %v7374 = vunpack.c.l.b16 %v7036
    %v7375 = vunpack.c.h.b16 %v7036
    %v7376 = vunpack.c.l.b16 %v7037
    %v7377 = vunpack.c.h.b16 %v7037
    %v7378 = vunpack.c.l.b16 %v7038
    %v7379 = vunpack.c.h.b16 %v7038
    %v7380 = vunpack.c.l.b16 %v7039
    %v7381 = vunpack.c.h.b16 %v7039
    %v7382 = vunpack.c.l.b16 %v7040
    %v7383 = vunpack.c.h.b16 %v7040
    %v7384 = vunpack.c.l.b16 %v7041
    %v7385 = vunpack.c.h.b16 %v7041
    %v7386 = vunpack.c.l.b16 %v7042
    %v7387 = vunpack.c.h.b16 %v7042
    %v7388 = vunpack.c.l.b16 %v7043
    %v7389 = vunpack.c.h.b16 %v7043
    %v7390 = vunpack.c.l.b16 %v7044
    %v7391 = vunpack.c.h.b16 %v7044
    %v7392 = vunpack.c.l.b16 %v7045
    %v7393 = vunpack.c.h.b16 %v7045
    %v7394 = vunpack.c.l.b16 %v7046
    %v7395 = vunpack.c.h.b16 %v7046
    %v7396 = vunpack.c.l.b16 %v7047
    %v7397 = vunpack.c.h.b16 %v7047
    %v7398 = vunpack.c.l.b16 %v7048
    %v7399 = vunpack.c.h.b16 %v7048
    %v7400 = vunpack.c.l.b16 %v7049
    %v7401 = vunpack.c.h.b16 %v7049
    %v7402 = vunpack.c.l.b16 %v7050
    %v7403 = vunpack.c.h.b16 %v7050
    %v7404 = vunpack.c.l.b16 %v7051
    %v7405 = vunpack.c.h.b16 %v7051
    %v7406 = vunpack.c.l.b16 %v7052
    %v7407 = vunpack.c.h.b16 %v7052
    %v7408 = vunpack.c.l.b16 %v7053
    %v7409 = vunpack.c.h.b16 %v7053
    %v7410 = vunpack.c.l.b16 %v7054
    %v7411 = vunpack.c.h.b16 %v7054
    %v7412 = vunpack.c.l.b16 %v7055
    %v7413 = vunpack.c.h.b16 %v7055
    %v7414 = vunpack.c.l.b16 %v7056
    %v7415 = vunpack.c.h.b16 %v7056
    %v7416 = vunpack.c.l.b16 %v7057
    %v7417 = vunpack.c.h.b16 %v7057
    %v7418 = vunpack.c.l.b16 %v7058
    %v7419 = vunpack.c.h.b16 %v7058
    %v7420 = vunpack.c.l.b16 %v7059
    %v7421 = vunpack.c.h.b16 %v7059
    %v7422 = vunpack.c.l.b16 %v7060
    %v7423 = vunpack.c.h.b16 %v7060
    %v7424 = vunpack.c.l.b16 %v7061
    %v7425 = vunpack.c.h.b16 %v7061
    %v7426 = vunpack.c.l.b16 %v7062
    %v7427 = vunpack.c.h.b16 %v7062
    %v7428 = vunpack.c.l.b16 %v7063
    %v7429 = vunpack.c.h.b16 %v7063
    %v7430 = vunpack.c.l.b16 %v7064
    %v7431 = vunpack.c.h.b16 %v7064
    %v7432 = vunpack.c.l.b16 %v7065
    %v7433 = vunpack.c.h.b16 %v7065
    %v7434 = vunpack.c.l.b16 %v7066
    %v7435 = vunpack.c.h.b16 %v7066
    %v7436 = vunpack.c.l.b16 %v7067
    %v7437 = vunpack.c.h.b16 %v7067
    %v7438 = vunpack.c.l.b16 %v7068
    %v7439 = vunpack.c.h.b16 %v7068
    %v7440 = vunpack.c.l.b16 %v7069
    %v7441 = vunpack.c.h.b16 %v7069
    %v7442 = vunpack.c.l.b16 %v7070
    %v7443 = vunpack.c.h.b16 %v7070
    %v7444 = vunpack.c.l.b16 %v7071
    %v7445 = vunpack.c.h.b16 %v7071
    %v7446 = vunpack.c.l.b16 %v7072
    %v7447 = vunpack.c.h.b16 %v7072
    %v7448 = vunpack.c.l.b16 %v7073
    %v7449 = vunpack.c.h.b16 %v7073
    %v7450 = vunpack.c.l.b16 %v7074
    %v7451 = vunpack.c.h.b16 %v7074
    %v7452 = vunpack.c.l.b16 %v7075
    %v7453 = vunpack.c.h.b16 %v7075
    %v7454 = vunpack.c.l.b16 %v7076
    %v7455 = vunpack.c.h.b16 %v7076
    %v7456 = vunpack.c.l.b16 %v7077
    %v7457 = vunpack.c.h.b16 %v7077
    %v7458 = vunpack.c.l.b16 %v7078
    %v7459 = vunpack.c.h.b16 %v7078
    %v7460 = vunpack.c.l.b16 %v7079
    %v7461 = vunpack.c.h.b16 %v7079
    %v7462 = vunpack.c.l.b16 %v7080
    %v7463 = vunpack.c.h.b16 %v7080
    %v7464 = vunpack.c.l.b16 %v7081
    %v7465 = vunpack.c.h.b16 %v7081
    %v7466 = vunpack.c.l.b16 %v7082
    %v7467 = vunpack.c.h.b16 %v7082
    %v7468 = vunpack.c.l.b16 %v7083
    %v7469 = vunpack.c.h.b16 %v7083
    %v7470 = vunpack.c.l.b16 %v7084
    %v7471 = vunpack.c.h.b16 %v7084
    %v7472 = vunpack.c.l.b16 %v7085
    %v7473 = vunpack.c.h.b16 %v7085
    %v7474 = vunpack.c.l.b16 %v7086
    %v7475 = vunpack.c.h.b16 %v7086
    %v7476 = vunpack.c.l.b16 %v7087
    %v7477 = vunpack.c.h.b16 %v7087
    %v7478 = vunpack.c.l.b16 %v7088
    %v7479 = vunpack.c.h.b16 %v7088
    %v7480 = vpack.c.b16 %v7232, %v7224
    %v7481 = vpack.c.b16 %v7233, %v7225
    %v7482 = vpack.c.b16 %v7234, %v7226
    %v7483 = vpack.c.b16 %v7235, %v7227
    %v7484 = vpack.c.b16 %v7236, %v7228
    %v7485 = vpack.c.b16 %v7237, %v7229
    %v7486 = vpack.c.b16 %v7238, %v7230
    %v7487 = vpack.c.b16 %v7239, %v7231
    %v7488 = vpack.c.b16 %v7248, %v7240
    %v7489 = vpack.c.b16 %v7249, %v7241
    %v7490 = vpack.c.b16 %v7250, %v7242
    %v7491 = vpack.c.b16 %v7251, %v7243
    %v7492 = vpack.c.b16 %v7252, %v7244
    %v7493 = vpack.c.b16 %v7253, %v7245
    %v7494 = vpack.c.b16 %v7254, %v7246
    %v7495 = vpack.c.b16 %v7255, %v7247
    %v7496 = vpack.c.b16 %v7264, %v7256
    %v7497 = vpack.c.b16 %v7265, %v7257
    %v7498 = vpack.c.b16 %v7266, %v7258
    %v7499 = vpack.c.b16 %v7267, %v7259
    %v7500 = vpack.c.b16 %v7268, %v7260
    %v7501 = vpack.c.b16 %v7269, %v7261
    %v7502 = vpack.c.b16 %v7270, %v7262
    %v7503 = vpack.c.b16 %v7271, %v7263
    %v7504 = vpack.c.b16 %v7280, %v7272
    %v7505 = vpack.c.b16 %v7281, %v7273
    %v7506 = vpack.c.b16 %v7282, %v7274
    %v7507 = vpack.c.b16 %v7283, %v7275
    %v7508 = vpack.c.b16 %v7284, %v7276
    %v7509 = vpack.c.b16 %v7285, %v7277
    %v7510 = vpack.c.b16 %v7286, %v7278
    %v7511 = vpack.c.b16 %v7287, %v7279
    %v7512 = vpack.c.b16 %v7296, %v7288
    %v7513 = vpack.c.b16 %v7297, %v7289
    %v7514 = vpack.c.b16 %v7298, %v7290
    %v7515 = vpack.c.b16 %v7299, %v7291
    %v7516 = vpack.c.b16 %v7300, %v7292
    %v7517 = vpack.c.b16 %v7301, %v7293
    %v7518 = vpack.c.b16 %v7302, %v7294
    %v7519 = vpack.c.b16 %v7303, %v7295
    %v7520 = vpack.c.b16 %v7312, %v7304
    %v7521 = vpack.c.b16 %v7313, %v7305
    %v7522 = vpack.c.b16 %v7314, %v7306
    %v7523 = vpack.c.b16 %v7315, %v7307
    %v7524 = vpack.c.b16 %v7316, %v7308
    %v7525 = vpack.c.b16 %v7317, %v7309
    %v7526 = vpack.c.b16 %v7318, %v7310
    %v7527 = vpack.c.b16 %v7319, %v7311
    %v7528 = vpack.c.b16 %v7328, %v7320
    %v7529 = vpack.c.b16 %v7329, %v7321
    %v7530 = vpack.c.b16 %v7330, %v7322
    %v7531 = vpack.c.b16 %v7331, %v7323
    %v7532 = vpack.c.b16 %v7332, %v7324
    %v7533 = vpack.c.b16 %v7333, %v7325
    %v7534 = vpack.c.b16 %v7334, %v7326
    %v7535 = vpack.c.b16 %v7335, %v7327
    %v7536 = vpack.c.b16 %v7344, %v7336
    %v7537 = vpack.c.b16 %v7345, %v7337
    %v7538 = vpack.c.b16 %v7346, %v7338
    %v7539 = vpack.c.b16 %v7347, %v7339
    %v7540 = vpack.c.b16 %v7348, %v7340
    %v7541 = vpack.c.b16 %v7349, %v7341
    %v7542 = vpack.c.b16 %v7350, %v7342
    %v7543 = vpack.c.b16 %v7351, %v7343
    %v7544 = vpack.c.b16 %v7360, %v7352
    %v7545 = vpack.c.b16 %v7361, %v7353
    %v7546 = vpack.c.b16 %v7362, %v7354
    %v7547 = vpack.c.b16 %v7363, %v7355
    %v7548 = vpack.c.b16 %v7364, %v7356
    %v7549 = vpack.c.b16 %v7365, %v7357
    %v7550 = vpack.c.b16 %v7366, %v7358
    %v7551 = vpack.c.b16 %v7367, %v7359
    %v7552 = vpack.c.b16 %v7376, %v7368
    %v7553 = vpack.c.b16 %v7377, %v7369
    %v7554 = vpack.c.b16 %v7378, %v7370
    %v7555 = vpack.c.b16 %v7379, %v7371
    %v7556 = vpack.c.b16 %v7380, %v7372
    %v7557 = vpack.c.b16 %v7381, %v7373
    %v7558 = vpack.c.b16 %v7382, %v7374
    %v7559 = vpack.c.b16 %v7383, %v7375
    %v7560 = vpack.c.b16 %v7392, %v7384
    %v7561 = vpack.c.b16 %v7393, %v7385
    %v7562 = vpack.c.b16 %v7394, %v7386
    %v7563 = vpack.c.b16 %v7395, %v7387
    %v7564 = vpack.c.b16 %v7396, %v7388
    %v7565 = vpack.c.b16 %v7397, %v7389
    %v7566 = vpack.c.b16 %v7398, %v7390
    %v7567 = vpack.c.b16 %v7399, %v7391
    %v7568 = vpack.c.b16 %v7408, %v7400
    %v7569 = vpack.c.b16 %v7409, %v7401
    %v7570 = vpack.c.b16 %v7410, %v7402
    %v7571 = vpack.c.b16 %v7411, %v7403
    %v7572 = vpack.c.b16 %v7412, %v7404
    %v7573 = vpack.c.b16 %v7413, %v7405
    %v7574 = vpack.c.b16 %v7414, %v7406
    %v7575 = vpack.c.b16 %v7415, %v7407
    %v7576 = vpack.c.b16 %v7424, %v7416
    %v7577 = vpack.c.b16 %v7425, %v7417
    %v7578 = vpack.c.b16 %v7426, %v7418
    %v7579 = vpack.c.b16 %v7427, %v7419
    %v7580 = vpack.c.b16 %v7428, %v7420
    %v7581 = vpack.c.b16 %v7429, %v7421
    %v7582 = vpack.c.b16 %v7430, %v7422
    %v7583 = vpack.c.b16 %v7431, %v7423
    %v7584 = vpack.c.b16 %v7440, %v7432
    %v7585 = vpack.c.b16 %v7441, %v7433
    %v7586 = vpack.c.b16 %v7442, %v7434
    %v7587 = vpack.c.b16 %v7443, %v7435
    %v7588 = vpack.c.b16 %v7444, %v7436
    %v7589 = vpack.c.b16 %v7445, %v7437
    %v7590 = vpack.c.b16 %v7446, %v7438
    %v7591 = vpack.c.b16 %v7447, %v7439
    %v7592 = vpack.c.b16 %v7456, %v7448
    %v7593 = vpack.c.b16 %v7457, %v7449
    %v7594 = vpack.c.b16 %v7458, %v7450
    %v7595 = vpack.c.b16 %v7459, %v7451
    %v7596 = vpack.c.b16 %v7460, %v7452
    %v7597 = vpack.c.b16 %v7461, %v7453
    %v7598 = vpack.c.b16 %v7462, %v7454
    %v7599 = vpack.c.b16 %v7463, %v7455
    %v7600 = vpack.c.b16 %v7472, %v7464
    %v7601 = vpack.c.b16 %v7473, %v7465
    %v7602 = vpack.c.b16 %v7474, %v7466
    %v7603 = vpack.c.b16 %v7475, %v7467
    %v7604 = vpack.c.b16 %v7476, %v7468
    %v7605 = vpack.c.b16 %v7477, %v7469
    %v7606 = vpack.c.b16 %v7478, %v7470
    %v7607 = vpack.c.b16 %v7479, %v7471
    %7736 = vmatpush.bf16.msra.mxu0 %v7536
    %7737 = vmatpush.bf16.msra.mxu0 %v7528
    %7738 = vmatpush.bf16.msra.mxu0 %v7520
    %7739 = vmatpush.bf16.msra.mxu0 %v7512
    %7740 = vmatpush.bf16.msra.mxu0 %v7504
    %7741 = vmatpush.bf16.msra.mxu0 %v7496
    %7742 = vmatpush.bf16.msra.mxu0 %v7488
    %7743 = vmatpush.bf16.msra.mxu0 %v7480
    %7744 = vmatmul.bf16.gmra.mxu0 %v7092
    %v7745 = vpop.f32.mrf.mxu0
    %v7746 = vadd.f32 0.0, %v7745
    %v7747 = vpop.f32.mrf.mxu0
    %7748 = vdwg.mxu0
    %7749 = vmatpush.bf16.msra.mxu0 %v7600
    %7750 = vmatpush.bf16.msra.mxu0 %v7592
    %7751 = vmatpush.bf16.msra.mxu0 %v7584
    %7752 = vmatpush.bf16.msra.mxu0 %v7576
    %7753 = vmatpush.bf16.msra.mxu0 %v7568
    %7754 = vmatpush.bf16.msra.mxu0 %v7560
    %7755 = vmatpush.bf16.msra.mxu0 %v7552
    %7756 = vmatpush.bf16.msra.mxu0 %v7544
    %7757 = vmatmul.bf16.gmra.mxu0 %v7093
    %v7758 = vpop.f32.mrf.mxu0
    %v7759 = vadd.f32 %v7746, %v7758
    %v7760 = vpop.f32.mrf.mxu0
    %7761 = vdwg.mxu0
    %7762 = vmatpush.bf16.msra.mxu0 %v7537
    %7763 = vmatpush.bf16.msra.mxu0 %v7529
    %7764 = vmatpush.bf16.msra.mxu0 %v7521
    %7765 = vmatpush.bf16.msra.mxu0 %v7513
    %7766 = vmatpush.bf16.msra.mxu0 %v7505
    %7767 = vmatpush.bf16.msra.mxu0 %v7497
    %7768 = vmatpush.bf16.msra.mxu0 %v7489
    %7769 = vmatpush.bf16.msra.mxu0 %v7481
    %7770 = vmatmul.bf16.gmra.mxu0 %v7092
    %v7771 = vpop.f32.mrf.mxu0
    %v7772 = vadd.f32 0.0, %v7771
    %v7773 = vpop.f32.mrf.mxu0
    %7774 = vdwg.mxu0
    %7775 = vmatpush.bf16.msra.mxu0 %v7601
    %7776 = vmatpush.bf16.msra.mxu0 %v7593
    %7777 = vmatpush.bf16.msra.mxu0 %v7585
    %7778 = vmatpush.bf16.msra.mxu0 %v7577
    %7779 = vmatpush.bf16.msra.mxu0 %v7569
    %7780 = vmatpush.bf16.msra.mxu0 %v7561
    %7781 = vmatpush.bf16.msra.mxu0 %v7553
    %7782 = vmatpush.bf16.msra.mxu0 %v7545
    %7783 = vmatmul.bf16.gmra.mxu0 %v7093
    %v7784 = vpop.f32.mrf.mxu0
    %v7785 = vadd.f32 %v7772, %v7784
    %v7786 = vpop.f32.mrf.mxu0
    %7787 = vdwg.mxu0
    %7788 = vmatpush.bf16.msra.mxu0 %v7538
    %7789 = vmatpush.bf16.msra.mxu0 %v7530
    %7790 = vmatpush.bf16.msra.mxu0 %v7522
    %7791 = vmatpush.bf16.msra.mxu0 %v7514
    %7792 = vmatpush.bf16.msra.mxu0 %v7506
    %7793 = vmatpush.bf16.msra.mxu0 %v7498
    %7794 = vmatpush.bf16.msra.mxu0 %v7490
    %7795 = vmatpush.bf16.msra.mxu0 %v7482
    %7796 = vmatmul.bf16.gmra.mxu0 %v7092
    %v7797 = vpop.f32.mrf.mxu0
    %v7798 = vadd.f32 0.0, %v7797
    %v7799 = vpop.f32.mrf.mxu0
    %7800 = vdwg.mxu0
    %7801 = vmatpush.bf16.msra.mxu0 %v7602
    %7802 = vmatpush.bf16.msra.mxu0 %v7594
    %7803 = vmatpush.bf16.msra.mxu0 %v7586
    %7804 = vmatpush.bf16.msra.mxu0 %v7578
    %7805 = vmatpush.bf16.msra.mxu0 %v7570
    %7806 = vmatpush.bf16.msra.mxu0 %v7562
    %7807 = vmatpush.bf16.msra.mxu0 %v7554
    %7808 = vmatpush.bf16.msra.mxu0 %v7546
    %7809 = vmatmul.bf16.gmra.mxu0 %v7093
    %v7810 = vpop.f32.mrf.mxu0
    %v7811 = vadd.f32 %v7798, %v7810
    %v7812 = vpop.f32.mrf.mxu0
    %7813 = vdwg.mxu0
    %7814 = vmatpush.bf16.msra.mxu0 %v7539
    %7815 = vmatpush.bf16.msra.mxu0 %v7531
    %7816 = vmatpush.bf16.msra.mxu0 %v7523
    %7817 = vmatpush.bf16.msra.mxu0 %v7515
    %7818 = vmatpush.bf16.msra.mxu0 %v7507
    %7819 = vmatpush.bf16.msra.mxu0 %v7499
    %7820 = vmatpush.bf16.msra.mxu0 %v7491
    %7821 = vmatpush.bf16.msra.mxu0 %v7483
    %7822 = vmatmul.bf16.gmra.mxu0 %v7092
    %v7823 = vpop.f32.mrf.mxu0
    %v7824 = vadd.f32 0.0, %v7823
    %v7825 = vpop.f32.mrf.mxu0
    %7826 = vdwg.mxu0
    %7827 = vmatpush.bf16.msra.mxu0 %v7603
    %7828 = vmatpush.bf16.msra.mxu0 %v7595
    %7829 = vmatpush.bf16.msra.mxu0 %v7587
    %7830 = vmatpush.bf16.msra.mxu0 %v7579
    %7831 = vmatpush.bf16.msra.mxu0 %v7571
    %7832 = vmatpush.bf16.msra.mxu0 %v7563
    %7833 = vmatpush.bf16.msra.mxu0 %v7555
    %7834 = vmatpush.bf16.msra.mxu0 %v7547
    %7835 = vmatmul.bf16.gmra.mxu0 %v7093
    %v7836 = vpop.f32.mrf.mxu0
    %v7837 = vadd.f32 %v7824, %v7836
    %v7838 = vpop.f32.mrf.mxu0
    %7839 = vdwg.mxu0
    %7840 = vmatpush.bf16.msra.mxu0 %v7540
    %7841 = vmatpush.bf16.msra.mxu0 %v7532
    %7842 = vmatpush.bf16.msra.mxu0 %v7524
    %7843 = vmatpush.bf16.msra.mxu0 %v7516
    %7844 = vmatpush.bf16.msra.mxu0 %v7508
    %7845 = vmatpush.bf16.msra.mxu0 %v7500
    %7846 = vmatpush.bf16.msra.mxu0 %v7492
    %7847 = vmatpush.bf16.msra.mxu0 %v7484
    %7848 = vmatmul.bf16.gmra.mxu0 %v7092
    %v7849 = vpop.f32.mrf.mxu0
    %v7850 = vadd.f32 0.0, %v7849
    %v7851 = vpop.f32.mrf.mxu0
    %7852 = vdwg.mxu0
    %7853 = vmatpush.bf16.msra.mxu0 %v7604
    %7854 = vmatpush.bf16.msra.mxu0 %v7596
    %7855 = vmatpush.bf16.msra.mxu0 %v7588
    %7856 = vmatpush.bf16.msra.mxu0 %v7580
    %7857 = vmatpush.bf16.msra.mxu0 %v7572
    %7858 = vmatpush.bf16.msra.mxu0 %v7564
    %7859 = vmatpush.bf16.msra.mxu0 %v7556
    %7860 = vmatpush.bf16.msra.mxu0 %v7548
    %7861 = vmatmul.bf16.gmra.mxu0 %v7093
    %v7862 = vpop.f32.mrf.mxu0
    %v7863 = vadd.f32 %v7850, %v7862
    %v7864 = vpop.f32.mrf.mxu0
    %7865 = vdwg.mxu0
    %7866 = vmatpush.bf16.msra.mxu0 %v7541
    %7867 = vmatpush.bf16.msra.mxu0 %v7533
    %7868 = vmatpush.bf16.msra.mxu0 %v7525
    %7869 = vmatpush.bf16.msra.mxu0 %v7517
    %7870 = vmatpush.bf16.msra.mxu0 %v7509
    %7871 = vmatpush.bf16.msra.mxu0 %v7501
    %7872 = vmatpush.bf16.msra.mxu0 %v7493
    %7873 = vmatpush.bf16.msra.mxu0 %v7485
    %7874 = vmatmul.bf16.gmra.mxu0 %v7092
    %v7875 = vpop.f32.mrf.mxu0
    %v7876 = vadd.f32 0.0, %v7875
    %v7877 = vpop.f32.mrf.mxu0
    %7878 = vdwg.mxu0
    %7879 = vmatpush.bf16.msra.mxu0 %v7605
    %7880 = vmatpush.bf16.msra.mxu0 %v7597
    %7881 = vmatpush.bf16.msra.mxu0 %v7589
    %7882 = vmatpush.bf16.msra.mxu0 %v7581
    %7883 = vmatpush.bf16.msra.mxu0 %v7573
    %7884 = vmatpush.bf16.msra.mxu0 %v7565
    %7885 = vmatpush.bf16.msra.mxu0 %v7557
    %7886 = vmatpush.bf16.msra.mxu0 %v7549
    %7887 = vmatmul.bf16.gmra.mxu0 %v7093
    %v7888 = vpop.f32.mrf.mxu0
    %v7889 = vadd.f32 %v7876, %v7888
    %v7890 = vpop.f32.mrf.mxu0
    %7891 = vdwg.mxu0
    %7892 = vmatpush.bf16.msra.mxu0 %v7542
    %7893 = vmatpush.bf16.msra.mxu0 %v7534
    %7894 = vmatpush.bf16.msra.mxu0 %v7526
    %7895 = vmatpush.bf16.msra.mxu0 %v7518
    %7896 = vmatpush.bf16.msra.mxu0 %v7510
    %7897 = vmatpush.bf16.msra.mxu0 %v7502
    %7898 = vmatpush.bf16.msra.mxu0 %v7494
    %7899 = vmatpush.bf16.msra.mxu0 %v7486
    %7900 = vmatmul.bf16.gmra.mxu0 %v7092
    %v7901 = vpop.f32.mrf.mxu0
    %v7902 = vadd.f32 0.0, %v7901
    %v7903 = vpop.f32.mrf.mxu0
    %7904 = vdwg.mxu0
    %7905 = vmatpush.bf16.msra.mxu0 %v7606
    %7906 = vmatpush.bf16.msra.mxu0 %v7598
    %7907 = vmatpush.bf16.msra.mxu0 %v7590
    %7908 = vmatpush.bf16.msra.mxu0 %v7582
    %7909 = vmatpush.bf16.msra.mxu0 %v7574
    %7910 = vmatpush.bf16.msra.mxu0 %v7566
    %7911 = vmatpush.bf16.msra.mxu0 %v7558
    %7912 = vmatpush.bf16.msra.mxu0 %v7550
    %7913 = vmatmul.bf16.gmra.mxu0 %v7093
    %v7914 = vpop.f32.mrf.mxu0
    %v7915 = vadd.f32 %v7902, %v7914
    %v7916 = vpop.f32.mrf.mxu0
    %7917 = vdwg.mxu0
    %7918 = vmatpush.bf16.msra.mxu0 %v7543
    %7919 = vmatpush.bf16.msra.mxu0 %v7535
    %7920 = vmatpush.bf16.msra.mxu0 %v7527
    %7921 = vmatpush.bf16.msra.mxu0 %v7519
    %7922 = vmatpush.bf16.msra.mxu0 %v7511
    %7923 = vmatpush.bf16.msra.mxu0 %v7503
    %7924 = vmatpush.bf16.msra.mxu0 %v7495
    %7925 = vmatpush.bf16.msra.mxu0 %v7487
    %7926 = vmatmul.bf16.gmra.mxu0 %v7092
    %v7927 = vpop.f32.mrf.mxu0
    %v7928 = vadd.f32 0.0, %v7927
    %v7929 = vpop.f32.mrf.mxu0
    %7930 = vdwg.mxu0
    %7931 = vmatpush.bf16.msra.mxu0 %v7607
    %7932 = vmatpush.bf16.msra.mxu0 %v7599
    %7933 = vmatpush.bf16.msra.mxu0 %v7591
    %7934 = vmatpush.bf16.msra.mxu0 %v7583
    %7935 = vmatpush.bf16.msra.mxu0 %v7575
    %7936 = vmatpush.bf16.msra.mxu0 %v7567
    %7937 = vmatpush.bf16.msra.mxu0 %v7559
    %7938 = vmatpush.bf16.msra.mxu0 %v7551
    %7939 = vmatmul.bf16.gmra.mxu0 %v7093
    %v7940 = vpop.f32.mrf.mxu0
    %v7941 = vadd.f32 %v7928, %v7940
    %v7942 = vpop.f32.mrf.mxu0
    %7943 = vdwg.mxu0
    %v7952 = vrot.slane %v7785, 7
    %v7953 = vrot.slane %v7811, 6
    %v7954 = vrot.slane %v7837, 5
    %v7955 = vrot.slane %v7863, 4
    %v7956 = vrot.slane %v7889, 3
    %v7957 = vrot.slane %v7915, 2
    %v7958 = vrot.slane %v7941, 1
    %v7959 = vsel %vm1628, %v7759, %v7952
    %v7960 = vsel %vm1630, %v7953, %v7954
    %v7961 = vsel %vm1632, %v7959, %v7960
    %v7962 = vsel %vm1634, %v7955, %v7956
    %v7963 = vsel %vm1636, %v7957, %v7958
    %v7964 = vsel %vm1638, %v7962, %v7963
    %v7965 = vsel %vm1640, %v7961, %v7964
    %v7967 = vadd.f32 %v6960, %v7965
    %v7968 = vmul.f32 %v7967, 0.5
    %v7969 = vtanh.pop %v7968
    %v7970 = vmul.f32 %v7969, 0.5
    %v7971 = vadd.f32 %v7970, 0.5
    %v7973 = vrot.slane %v7967, 2
    %v7975 = vmul.f32 %v7973, 0.5
    %v7976 = vtanh.pop %v7975
    %v7977 = vmul.f32 %v7976, 0.5
    %v7978 = vadd.f32 %v7977, 0.5
    %v7979 = vrot.slane %v7967, 4
    %v7981 = vtanh.pop %v7979
    %v7982 = vrot.slane %v7967, 6
    %v7984 = vmul.f32 %v7982, 0.5
    %v7985 = vtanh.pop %v7984
    %v7986 = vmul.f32 %v7985, 0.5
    %v7987 = vadd.f32 %v7986, 0.5
    %v7988 = vmul.f32 %v7978, %v6935
    %v7989 = vmul.f32 %v7971, %v7981
    %v7990 = vadd.f32 %v7988, %v7989
    %v7991 = vtanh.pop %v7990
    %v7992 = vmul.f32 %v7987, %v7991
    %v7994 = vperm.slane %v7992, 0
    %v7995 = vperm.slane %v7992, 1
    %v7998 = vpack.c.bf16 %v7995, %v7994
    %v8000 = vrot.slane %v7998, 5
    %vm8002 = vcmask 1043459
    %vm8003 = vsmask.f32 3328
    %vm8004 = vmand %vm8002, %vm8003
    %vm8005 = vcmask 1047559
    %vm8006 = vsmask.f32 7424
    %vm8007 = vmand %vm8005, %vm8006
    %vm8008 = vmor %vm8007, %vm8004
    %v8009 = vld [vmem:[#allocation14] sm:$0x88]
    %v8010 = vsel %vm8008, %v8000, %v8009
    %8011 = vst [vmem:[#allocation14] sm:$0x88] %v8010
    %s8012 = scalar_lea.vmem [#allocation2], 7
    %v8013 = vld [vmem:[%s8012] ss:$8 sm:$0xf]
    %v8014 = vld [vmem:[%s8012] ss:$8 sm:$0xf0]
    %v8015 = vor.u32 %v8013, %v8014
    %v8016 = vld [vmem:[#allocation11] sm:$0xff]
    %v8017 = vld [vmem:[#allocation11 + $0x8] sm:$0xff]
    %v8018 = vld [vmem:[#allocation11 + $0x10] sm:$0xff]
    %v8019 = vld [vmem:[#allocation11 + $0x18] sm:$0xff]
    %v8020 = vld [vmem:[#allocation11 + $0x20] sm:$0xff]
    %v8021 = vld [vmem:[#allocation11 + $0x28] sm:$0xff]
    %v8022 = vld [vmem:[#allocation11 + $0x30] sm:$0xff]
    %v8023 = vld [vmem:[#allocation11 + $0x38] sm:$0xff]
    %v8024 = vld [vmem:[#allocation11 + $0x40] sm:$0xff]
    %v8025 = vld [vmem:[#allocation11 + $0x48] sm:$0xff]
    %v8026 = vld [vmem:[#allocation11 + $0x50] sm:$0xff]
    %v8027 = vld [vmem:[#allocation11 + $0x58] sm:$0xff]
    %v8028 = vld [vmem:[#allocation11 + $0x60] sm:$0xff]
    %v8029 = vld [vmem:[#allocation11 + $0x68] sm:$0xff]
    %v8030 = vld [vmem:[#allocation11 + $0x70] sm:$0xff]
    %v8031 = vld [vmem:[#allocation11 + $0x78] sm:$0xff]
    %v8032 = vld [vmem:[#allocation11 + $0x80] sm:$0xff]
    %v8033 = vld [vmem:[#allocation11 + $0x88] sm:$0xff]
    %v8034 = vld [vmem:[#allocation11 + $0x90] sm:$0xff]
    %v8035 = vld [vmem:[#allocation11 + $0x98] sm:$0xff]
    %v8036 = vld [vmem:[#allocation11 + $0xa0] sm:$0xff]
    %v8037 = vld [vmem:[#allocation11 + $0xa8] sm:$0xff]
    %v8038 = vld [vmem:[#allocation11 + $0xb0] sm:$0xff]
    %v8039 = vld [vmem:[#allocation11 + $0xb8] sm:$0xff]
    %v8040 = vld [vmem:[#allocation11 + $0xc0] sm:$0xff]
    %v8041 = vld [vmem:[#allocation11 + $0xc8] sm:$0xff]
    %v8042 = vld [vmem:[#allocation11 + $0xd0] sm:$0xff]
    %v8043 = vld [vmem:[#allocation11 + $0xd8] sm:$0xff]
    %v8044 = vld [vmem:[#allocation11 + $0xe0] sm:$0xff]
    %v8045 = vld [vmem:[#allocation11 + $0xe8] sm:$0xff]
    %v8046 = vld [vmem:[#allocation11 + $0xf0] sm:$0xff]
    %v8047 = vld [vmem:[#allocation11 + $0xf8] sm:$0xff]
    %v8048 = vld [vmem:[#allocation11 + $0x100] sm:$0xff]
    %v8049 = vld [vmem:[#allocation11 + $0x108] sm:$0xff]
    %v8050 = vld [vmem:[#allocation11 + $0x110] sm:$0xff]
    %v8051 = vld [vmem:[#allocation11 + $0x118] sm:$0xff]
    %v8052 = vld [vmem:[#allocation11 + $0x120] sm:$0xff]
    %v8053 = vld [vmem:[#allocation11 + $0x128] sm:$0xff]
    %v8054 = vld [vmem:[#allocation11 + $0x130] sm:$0xff]
    %v8055 = vld [vmem:[#allocation11 + $0x138] sm:$0xff]
    %v8056 = vld [vmem:[#allocation11 + $0x140] sm:$0xff]
    %v8057 = vld [vmem:[#allocation11 + $0x148] sm:$0xff]
    %v8058 = vld [vmem:[#allocation11 + $0x150] sm:$0xff]
    %v8059 = vld [vmem:[#allocation11 + $0x158] sm:$0xff]
    %v8060 = vld [vmem:[#allocation11 + $0x160] sm:$0xff]
    %v8061 = vld [vmem:[#allocation11 + $0x168] sm:$0xff]
    %v8062 = vld [vmem:[#allocation11 + $0x170] sm:$0xff]
    %v8063 = vld [vmem:[#allocation11 + $0x178] sm:$0xff]
    %v8064 = vld [vmem:[#allocation11 + $0x180] sm:$0xff]
    %v8065 = vld [vmem:[#allocation11 + $0x188] sm:$0xff]
    %v8066 = vld [vmem:[#allocation11 + $0x190] sm:$0xff]
    %v8067 = vld [vmem:[#allocation11 + $0x198] sm:$0xff]
    %v8068 = vld [vmem:[#allocation11 + $0x1a0] sm:$0xff]
    %v8069 = vld [vmem:[#allocation11 + $0x1a8] sm:$0xff]
    %v8070 = vld [vmem:[#allocation11 + $0x1b0] sm:$0xff]
    %v8071 = vld [vmem:[#allocation11 + $0x1b8] sm:$0xff]
    %v8072 = vld [vmem:[#allocation11 + $0x1c0] sm:$0xff]
    %v8073 = vld [vmem:[#allocation11 + $0x1c8] sm:$0xff]
    %v8074 = vld [vmem:[#allocation11 + $0x1d0] sm:$0xff]
    %v8075 = vld [vmem:[#allocation11 + $0x1d8] sm:$0xff]
    %v8076 = vld [vmem:[#allocation11 + $0x1e0] sm:$0xff]
    %v8077 = vld [vmem:[#allocation11 + $0x1e8] sm:$0xff]
    %v8078 = vld [vmem:[#allocation11 + $0x1f0] sm:$0xff]
    %v8079 = vld [vmem:[#allocation11 + $0x1f8] sm:$0xff]
    %v8080 = vld [vmem:[#allocation11 + $0x200] sm:$0xff]
    %v8081 = vld [vmem:[#allocation11 + $0x208] sm:$0xff]
    %v8082 = vld [vmem:[#allocation11 + $0x210] sm:$0xff]
    %v8083 = vld [vmem:[#allocation11 + $0x218] sm:$0xff]
    %v8084 = vld [vmem:[#allocation11 + $0x220] sm:$0xff]
    %v8085 = vld [vmem:[#allocation11 + $0x228] sm:$0xff]
    %v8086 = vld [vmem:[#allocation11 + $0x230] sm:$0xff]
    %v8087 = vld [vmem:[#allocation11 + $0x238] sm:$0xff]
    %v8088 = vld [vmem:[#allocation11 + $0x240] sm:$0xff]
    %v8089 = vld [vmem:[#allocation11 + $0x248] sm:$0xff]
    %v8090 = vld [vmem:[#allocation11 + $0x250] sm:$0xff]
    %v8091 = vld [vmem:[#allocation11 + $0x258] sm:$0xff]
    %v8092 = vld [vmem:[#allocation11 + $0x260] sm:$0xff]
    %v8093 = vld [vmem:[#allocation11 + $0x268] sm:$0xff]
    %v8094 = vld [vmem:[#allocation11 + $0x270] sm:$0xff]
    %v8095 = vld [vmem:[#allocation11 + $0x278] sm:$0xff]
    %v8096 = vld [vmem:[#allocation11 + $0x280] sm:$0xff]
    %v8097 = vld [vmem:[#allocation11 + $0x288] sm:$0xff]
    %v8098 = vld [vmem:[#allocation11 + $0x290] sm:$0xff]
    %v8099 = vld [vmem:[#allocation11 + $0x298] sm:$0xff]
    %v8100 = vld [vmem:[#allocation11 + $0x2a0] sm:$0xff]
    %v8101 = vld [vmem:[#allocation11 + $0x2a8] sm:$0xff]
    %v8102 = vld [vmem:[#allocation11 + $0x2b0] sm:$0xff]
    %v8103 = vld [vmem:[#allocation11 + $0x2b8] sm:$0xff]
    %v8104 = vld [vmem:[#allocation11 + $0x2c0] sm:$0xff]
    %v8105 = vld [vmem:[#allocation11 + $0x2c8] sm:$0xff]
    %v8106 = vld [vmem:[#allocation11 + $0x2d0] sm:$0xff]
    %v8107 = vld [vmem:[#allocation11 + $0x2d8] sm:$0xff]
    %v8108 = vld [vmem:[#allocation11 + $0x2e0] sm:$0xff]
    %v8109 = vld [vmem:[#allocation11 + $0x2e8] sm:$0xff]
    %v8110 = vld [vmem:[#allocation11 + $0x2f0] sm:$0xff]
    %v8111 = vld [vmem:[#allocation11 + $0x2f8] sm:$0xff]
    %v8112 = vld [vmem:[#allocation11 + $0x300] sm:$0xff]
    %v8113 = vld [vmem:[#allocation11 + $0x308] sm:$0xff]
    %v8114 = vld [vmem:[#allocation11 + $0x310] sm:$0xff]
    %v8115 = vld [vmem:[#allocation11 + $0x318] sm:$0xff]
    %v8116 = vld [vmem:[#allocation11 + $0x320] sm:$0xff]
    %v8117 = vld [vmem:[#allocation11 + $0x328] sm:$0xff]
    %v8118 = vld [vmem:[#allocation11 + $0x330] sm:$0xff]
    %v8119 = vld [vmem:[#allocation11 + $0x338] sm:$0xff]
    %v8120 = vld [vmem:[#allocation11 + $0x340] sm:$0xff]
    %v8121 = vld [vmem:[#allocation11 + $0x348] sm:$0xff]
    %v8122 = vld [vmem:[#allocation11 + $0x350] sm:$0xff]
    %v8123 = vld [vmem:[#allocation11 + $0x358] sm:$0xff]
    %v8124 = vld [vmem:[#allocation11 + $0x360] sm:$0xff]
    %v8125 = vld [vmem:[#allocation11 + $0x368] sm:$0xff]
    %v8126 = vld [vmem:[#allocation11 + $0x370] sm:$0xff]
    %v8127 = vld [vmem:[#allocation11 + $0x378] sm:$0xff]
    %v8128 = vld [vmem:[#allocation11 + $0x380] sm:$0xff]
    %v8129 = vld [vmem:[#allocation11 + $0x388] sm:$0xff]
    %v8130 = vld [vmem:[#allocation11 + $0x390] sm:$0xff]
    %v8131 = vld [vmem:[#allocation11 + $0x398] sm:$0xff]
    %v8132 = vld [vmem:[#allocation11 + $0x3a0] sm:$0xff]
    %v8133 = vld [vmem:[#allocation11 + $0x3a8] sm:$0xff]
    %v8134 = vld [vmem:[#allocation11 + $0x3b0] sm:$0xff]
    %v8135 = vld [vmem:[#allocation11 + $0x3b8] sm:$0xff]
    %v8136 = vld [vmem:[#allocation11 + $0x3c0] sm:$0xff]
    %v8137 = vld [vmem:[#allocation11 + $0x3c8] sm:$0xff]
    %v8138 = vld [vmem:[#allocation11 + $0x3d0] sm:$0xff]
    %v8139 = vld [vmem:[#allocation11 + $0x3d8] sm:$0xff]
    %v8140 = vld [vmem:[#allocation11 + $0x3e0] sm:$0xff]
    %v8141 = vld [vmem:[#allocation11 + $0x3e8] sm:$0xff]
    %v8142 = vld [vmem:[#allocation11 + $0x3f0] sm:$0xff]
    %v8143 = vld [vmem:[#allocation11 + $0x3f8] sm:$0xff]
    %v8144 = vunpack.c.l.b16 %v7998
    %v8145 = vunpack.c.h.b16 %v7998
    %v8146 = vpack.c.b16 %v8144, %v8144
    %v8147 = vpack.c.b16 %v8145, %v8145
    %v8278 = vunpack.c.l.b16 %v8016
    %v8279 = vunpack.c.h.b16 %v8016
    %v8280 = vunpack.c.l.b16 %v8017
    %v8281 = vunpack.c.h.b16 %v8017
    %v8282 = vunpack.c.l.b16 %v8018
    %v8283 = vunpack.c.h.b16 %v8018
    %v8284 = vunpack.c.l.b16 %v8019
    %v8285 = vunpack.c.h.b16 %v8019
    %v8286 = vunpack.c.l.b16 %v8020
    %v8287 = vunpack.c.h.b16 %v8020
    %v8288 = vunpack.c.l.b16 %v8021
    %v8289 = vunpack.c.h.b16 %v8021
    %v8290 = vunpack.c.l.b16 %v8022
    %v8291 = vunpack.c.h.b16 %v8022
    %v8292 = vunpack.c.l.b16 %v8023
    %v8293 = vunpack.c.h.b16 %v8023
    %v8294 = vunpack.c.l.b16 %v8024
    %v8295 = vunpack.c.h.b16 %v8024
    %v8296 = vunpack.c.l.b16 %v8025
    %v8297 = vunpack.c.h.b16 %v8025
    %v8298 = vunpack.c.l.b16 %v8026
    %v8299 = vunpack.c.h.b16 %v8026
    %v8300 = vunpack.c.l.b16 %v8027
    %v8301 = vunpack.c.h.b16 %v8027
    %v8302 = vunpack.c.l.b16 %v8028
    %v8303 = vunpack.c.h.b16 %v8028
    %v8304 = vunpack.c.l.b16 %v8029
    %v8305 = vunpack.c.h.b16 %v8029
    %v8306 = vunpack.c.l.b16 %v8030
    %v8307 = vunpack.c.h.b16 %v8030
    %v8308 = vunpack.c.l.b16 %v8031
    %v8309 = vunpack.c.h.b16 %v8031
    %v8310 = vunpack.c.l.b16 %v8032
    %v8311 = vunpack.c.h.b16 %v8032
    %v8312 = vunpack.c.l.b16 %v8033
    %v8313 = vunpack.c.h.b16 %v8033
    %v8314 = vunpack.c.l.b16 %v8034
    %v8315 = vunpack.c.h.b16 %v8034
    %v8316 = vunpack.c.l.b16 %v8035
    %v8317 = vunpack.c.h.b16 %v8035
    %v8318 = vunpack.c.l.b16 %v8036
    %v8319 = vunpack.c.h.b16 %v8036
    %v8320 = vunpack.c.l.b16 %v8037
    %v8321 = vunpack.c.h.b16 %v8037
    %v8322 = vunpack.c.l.b16 %v8038
    %v8323 = vunpack.c.h.b16 %v8038
    %v8324 = vunpack.c.l.b16 %v8039
    %v8325 = vunpack.c.h.b16 %v8039
    %v8326 = vunpack.c.l.b16 %v8040
    %v8327 = vunpack.c.h.b16 %v8040
    %v8328 = vunpack.c.l.b16 %v8041
    %v8329 = vunpack.c.h.b16 %v8041
    %v8330 = vunpack.c.l.b16 %v8042
    %v8331 = vunpack.c.h.b16 %v8042
    %v8332 = vunpack.c.l.b16 %v8043
    %v8333 = vunpack.c.h.b16 %v8043
    %v8334 = vunpack.c.l.b16 %v8044
    %v8335 = vunpack.c.h.b16 %v8044
    %v8336 = vunpack.c.l.b16 %v8045
    %v8337 = vunpack.c.h.b16 %v8045
    %v8338 = vunpack.c.l.b16 %v8046
    %v8339 = vunpack.c.h.b16 %v8046
    %v8340 = vunpack.c.l.b16 %v8047
    %v8341 = vunpack.c.h.b16 %v8047
    %v8342 = vunpack.c.l.b16 %v8048
    %v8343 = vunpack.c.h.b16 %v8048
    %v8344 = vunpack.c.l.b16 %v8049
    %v8345 = vunpack.c.h.b16 %v8049
    %v8346 = vunpack.c.l.b16 %v8050
    %v8347 = vunpack.c.h.b16 %v8050
    %v8348 = vunpack.c.l.b16 %v8051
    %v8349 = vunpack.c.h.b16 %v8051
    %v8350 = vunpack.c.l.b16 %v8052
    %v8351 = vunpack.c.h.b16 %v8052
    %v8352 = vunpack.c.l.b16 %v8053
    %v8353 = vunpack.c.h.b16 %v8053
    %v8354 = vunpack.c.l.b16 %v8054
    %v8355 = vunpack.c.h.b16 %v8054
    %v8356 = vunpack.c.l.b16 %v8055
    %v8357 = vunpack.c.h.b16 %v8055
    %v8358 = vunpack.c.l.b16 %v8056
    %v8359 = vunpack.c.h.b16 %v8056
    %v8360 = vunpack.c.l.b16 %v8057
    %v8361 = vunpack.c.h.b16 %v8057
    %v8362 = vunpack.c.l.b16 %v8058
    %v8363 = vunpack.c.h.b16 %v8058
    %v8364 = vunpack.c.l.b16 %v8059
    %v8365 = vunpack.c.h.b16 %v8059
    %v8366 = vunpack.c.l.b16 %v8060
    %v8367 = vunpack.c.h.b16 %v8060
    %v8368 = vunpack.c.l.b16 %v8061
    %v8369 = vunpack.c.h.b16 %v8061
    %v8370 = vunpack.c.l.b16 %v8062
    %v8371 = vunpack.c.h.b16 %v8062
    %v8372 = vunpack.c.l.b16 %v8063
    %v8373 = vunpack.c.h.b16 %v8063
    %v8374 = vunpack.c.l.b16 %v8064
    %v8375 = vunpack.c.h.b16 %v8064
    %v8376 = vunpack.c.l.b16 %v8065
    %v8377 = vunpack.c.h.b16 %v8065
    %v8378 = vunpack.c.l.b16 %v8066
    %v8379 = vunpack.c.h.b16 %v8066
    %v8380 = vunpack.c.l.b16 %v8067
    %v8381 = vunpack.c.h.b16 %v8067
    %v8382 = vunpack.c.l.b16 %v8068
    %v8383 = vunpack.c.h.b16 %v8068
    %v8384 = vunpack.c.l.b16 %v8069
    %v8385 = vunpack.c.h.b16 %v8069
    %v8386 = vunpack.c.l.b16 %v8070
    %v8387 = vunpack.c.h.b16 %v8070
    %v8388 = vunpack.c.l.b16 %v8071
    %v8389 = vunpack.c.h.b16 %v8071
    %v8390 = vunpack.c.l.b16 %v8072
    %v8391 = vunpack.c.h.b16 %v8072
    %v8392 = vunpack.c.l.b16 %v8073
    %v8393 = vunpack.c.h.b16 %v8073
    %v8394 = vunpack.c.l.b16 %v8074
    %v8395 = vunpack.c.h.b16 %v8074
    %v8396 = vunpack.c.l.b16 %v8075
    %v8397 = vunpack.c.h.b16 %v8075
    %v8398 = vunpack.c.l.b16 %v8076
    %v8399 = vunpack.c.h.b16 %v8076
    %v8400 = vunpack.c.l.b16 %v8077
    %v8401 = vunpack.c.h.b16 %v8077
    %v8402 = vunpack.c.l.b16 %v8078
    %v8403 = vunpack.c.h.b16 %v8078
    %v8404 = vunpack.c.l.b16 %v8079
    %v8405 = vunpack.c.h.b16 %v8079
    %v8406 = vunpack.c.l.b16 %v8080
    %v8407 = vunpack.c.h.b16 %v8080
    %v8408 = vunpack.c.l.b16 %v8081
    %v8409 = vunpack.c.h.b16 %v8081
    %v8410 = vunpack.c.l.b16 %v8082
    %v8411 = vunpack.c.h.b16 %v8082
    %v8412 = vunpack.c.l.b16 %v8083
    %v8413 = vunpack.c.h.b16 %v8083
    %v8414 = vunpack.c.l.b16 %v8084
    %v8415 = vunpack.c.h.b16 %v8084
    %v8416 = vunpack.c.l.b16 %v8085
    %v8417 = vunpack.c.h.b16 %v8085
    %v8418 = vunpack.c.l.b16 %v8086
    %v8419 = vunpack.c.h.b16 %v8086
    %v8420 = vunpack.c.l.b16 %v8087
    %v8421 = vunpack.c.h.b16 %v8087
    %v8422 = vunpack.c.l.b16 %v8088
    %v8423 = vunpack.c.h.b16 %v8088
    %v8424 = vunpack.c.l.b16 %v8089
    %v8425 = vunpack.c.h.b16 %v8089
    %v8426 = vunpack.c.l.b16 %v8090
    %v8427 = vunpack.c.h.b16 %v8090
    %v8428 = vunpack.c.l.b16 %v8091
    %v8429 = vunpack.c.h.b16 %v8091
    %v8430 = vunpack.c.l.b16 %v8092
    %v8431 = vunpack.c.h.b16 %v8092
    %v8432 = vunpack.c.l.b16 %v8093
    %v8433 = vunpack.c.h.b16 %v8093
    %v8434 = vunpack.c.l.b16 %v8094
    %v8435 = vunpack.c.h.b16 %v8094
    %v8436 = vunpack.c.l.b16 %v8095
    %v8437 = vunpack.c.h.b16 %v8095
    %v8438 = vunpack.c.l.b16 %v8096
    %v8439 = vunpack.c.h.b16 %v8096
    %v8440 = vunpack.c.l.b16 %v8097
    %v8441 = vunpack.c.h.b16 %v8097
    %v8442 = vunpack.c.l.b16 %v8098
    %v8443 = vunpack.c.h.b16 %v8098
    %v8444 = vunpack.c.l.b16 %v8099
    %v8445 = vunpack.c.h.b16 %v8099
    %v8446 = vunpack.c.l.b16 %v8100
    %v8447 = vunpack.c.h.b16 %v8100
    %v8448 = vunpack.c.l.b16 %v8101
    %v8449 = vunpack.c.h.b16 %v8101
    %v8450 = vunpack.c.l.b16 %v8102
    %v8451 = vunpack.c.h.b16 %v8102
    %v8452 = vunpack.c.l.b16 %v8103
    %v8453 = vunpack.c.h.b16 %v8103
    %v8454 = vunpack.c.l.b16 %v8104
    %v8455 = vunpack.c.h.b16 %v8104
    %v8456 = vunpack.c.l.b16 %v8105
    %v8457 = vunpack.c.h.b16 %v8105
    %v8458 = vunpack.c.l.b16 %v8106
    %v8459 = vunpack.c.h.b16 %v8106
    %v8460 = vunpack.c.l.b16 %v8107
    %v8461 = vunpack.c.h.b16 %v8107
    %v8462 = vunpack.c.l.b16 %v8108
    %v8463 = vunpack.c.h.b16 %v8108
    %v8464 = vunpack.c.l.b16 %v8109
    %v8465 = vunpack.c.h.b16 %v8109
    %v8466 = vunpack.c.l.b16 %v8110
    %v8467 = vunpack.c.h.b16 %v8110
    %v8468 = vunpack.c.l.b16 %v8111
    %v8469 = vunpack.c.h.b16 %v8111
    %v8470 = vunpack.c.l.b16 %v8112
    %v8471 = vunpack.c.h.b16 %v8112
    %v8472 = vunpack.c.l.b16 %v8113
    %v8473 = vunpack.c.h.b16 %v8113
    %v8474 = vunpack.c.l.b16 %v8114
    %v8475 = vunpack.c.h.b16 %v8114
    %v8476 = vunpack.c.l.b16 %v8115
    %v8477 = vunpack.c.h.b16 %v8115
    %v8478 = vunpack.c.l.b16 %v8116
    %v8479 = vunpack.c.h.b16 %v8116
    %v8480 = vunpack.c.l.b16 %v8117
    %v8481 = vunpack.c.h.b16 %v8117
    %v8482 = vunpack.c.l.b16 %v8118
    %v8483 = vunpack.c.h.b16 %v8118
    %v8484 = vunpack.c.l.b16 %v8119
    %v8485 = vunpack.c.h.b16 %v8119
    %v8486 = vunpack.c.l.b16 %v8120
    %v8487 = vunpack.c.h.b16 %v8120
    %v8488 = vunpack.c.l.b16 %v8121
    %v8489 = vunpack.c.h.b16 %v8121
    %v8490 = vunpack.c.l.b16 %v8122
    %v8491 = vunpack.c.h.b16 %v8122
    %v8492 = vunpack.c.l.b16 %v8123
    %v8493 = vunpack.c.h.b16 %v8123
    %v8494 = vunpack.c.l.b16 %v8124
    %v8495 = vunpack.c.h.b16 %v8124
    %v8496 = vunpack.c.l.b16 %v8125
    %v8497 = vunpack.c.h.b16 %v8125
    %v8498 = vunpack.c.l.b16 %v8126
    %v8499 = vunpack.c.h.b16 %v8126
    %v8500 = vunpack.c.l.b16 %v8127
    %v8501 = vunpack.c.h.b16 %v8127
    %v8502 = vunpack.c.l.b16 %v8128
    %v8503 = vunpack.c.h.b16 %v8128
    %v8504 = vunpack.c.l.b16 %v8129
    %v8505 = vunpack.c.h.b16 %v8129
    %v8506 = vunpack.c.l.b16 %v8130
    %v8507 = vunpack.c.h.b16 %v8130
    %v8508 = vunpack.c.l.b16 %v8131
    %v8509 = vunpack.c.h.b16 %v8131
    %v8510 = vunpack.c.l.b16 %v8132
    %v8511 = vunpack.c.h.b16 %v8132
    %v8512 = vunpack.c.l.b16 %v8133
    %v8513 = vunpack.c.h.b16 %v8133
    %v8514 = vunpack.c.l.b16 %v8134
    %v8515 = vunpack.c.h.b16 %v8134
    %v8516 = vunpack.c.l.b16 %v8135
    %v8517 = vunpack.c.h.b16 %v8135
    %v8518 = vunpack.c.l.b16 %v8136
    %v8519 = vunpack.c.h.b16 %v8136
    %v8520 = vunpack.c.l.b16 %v8137
    %v8521 = vunpack.c.h.b16 %v8137
    %v8522 = vunpack.c.l.b16 %v8138
    %v8523 = vunpack.c.h.b16 %v8138
    %v8524 = vunpack.c.l.b16 %v8139
    %v8525 = vunpack.c.h.b16 %v8139
    %v8526 = vunpack.c.l.b16 %v8140
    %v8527 = vunpack.c.h.b16 %v8140
    %v8528 = vunpack.c.l.b16 %v8141
    %v8529 = vunpack.c.h.b16 %v8141
    %v8530 = vunpack.c.l.b16 %v8142
    %v8531 = vunpack.c.h.b16 %v8142
    %v8532 = vunpack.c.l.b16 %v8143
    %v8533 = vunpack.c.h.b16 %v8143
    %v8534 = vpack.c.b16 %v8286, %v8278
    %v8535 = vpack.c.b16 %v8287, %v8279
    %v8536 = vpack.c.b16 %v8288, %v8280
    %v8537 = vpack.c.b16 %v8289, %v8281
    %v8538 = vpack.c.b16 %v8290, %v8282
    %v8539 = vpack.c.b16 %v8291, %v8283
    %v8540 = vpack.c.b16 %v8292, %v8284
    %v8541 = vpack.c.b16 %v8293, %v8285
    %v8542 = vpack.c.b16 %v8302, %v8294
    %v8543 = vpack.c.b16 %v8303, %v8295
    %v8544 = vpack.c.b16 %v8304, %v8296
    %v8545 = vpack.c.b16 %v8305, %v8297
    %v8546 = vpack.c.b16 %v8306, %v8298
    %v8547 = vpack.c.b16 %v8307, %v8299
    %v8548 = vpack.c.b16 %v8308, %v8300
    %v8549 = vpack.c.b16 %v8309, %v8301
    %v8550 = vpack.c.b16 %v8318, %v8310
    %v8551 = vpack.c.b16 %v8319, %v8311
    %v8552 = vpack.c.b16 %v8320, %v8312
    %v8553 = vpack.c.b16 %v8321, %v8313
    %v8554 = vpack.c.b16 %v8322, %v8314
    %v8555 = vpack.c.b16 %v8323, %v8315
    %v8556 = vpack.c.b16 %v8324, %v8316
    %v8557 = vpack.c.b16 %v8325, %v8317
    %v8558 = vpack.c.b16 %v8334, %v8326
    %v8559 = vpack.c.b16 %v8335, %v8327
    %v8560 = vpack.c.b16 %v8336, %v8328
    %v8561 = vpack.c.b16 %v8337, %v8329
    %v8562 = vpack.c.b16 %v8338, %v8330
    %v8563 = vpack.c.b16 %v8339, %v8331
    %v8564 = vpack.c.b16 %v8340, %v8332
    %v8565 = vpack.c.b16 %v8341, %v8333
    %v8566 = vpack.c.b16 %v8350, %v8342
    %v8567 = vpack.c.b16 %v8351, %v8343
    %v8568 = vpack.c.b16 %v8352, %v8344
    %v8569 = vpack.c.b16 %v8353, %v8345
    %v8570 = vpack.c.b16 %v8354, %v8346
    %v8571 = vpack.c.b16 %v8355, %v8347
    %v8572 = vpack.c.b16 %v8356, %v8348
    %v8573 = vpack.c.b16 %v8357, %v8349
    %v8574 = vpack.c.b16 %v8366, %v8358
    %v8575 = vpack.c.b16 %v8367, %v8359
    %v8576 = vpack.c.b16 %v8368, %v8360
    %v8577 = vpack.c.b16 %v8369, %v8361
    %v8578 = vpack.c.b16 %v8370, %v8362
    %v8579 = vpack.c.b16 %v8371, %v8363
    %v8580 = vpack.c.b16 %v8372, %v8364
    %v8581 = vpack.c.b16 %v8373, %v8365
    %v8582 = vpack.c.b16 %v8382, %v8374
    %v8583 = vpack.c.b16 %v8383, %v8375
    %v8584 = vpack.c.b16 %v8384, %v8376
    %v8585 = vpack.c.b16 %v8385, %v8377
    %v8586 = vpack.c.b16 %v8386, %v8378
    %v8587 = vpack.c.b16 %v8387, %v8379
    %v8588 = vpack.c.b16 %v8388, %v8380
    %v8589 = vpack.c.b16 %v8389, %v8381
    %v8590 = vpack.c.b16 %v8398, %v8390
    %v8591 = vpack.c.b16 %v8399, %v8391
    %v8592 = vpack.c.b16 %v8400, %v8392
    %v8593 = vpack.c.b16 %v8401, %v8393
    %v8594 = vpack.c.b16 %v8402, %v8394
    %v8595 = vpack.c.b16 %v8403, %v8395
    %v8596 = vpack.c.b16 %v8404, %v8396
    %v8597 = vpack.c.b16 %v8405, %v8397
    %v8598 = vpack.c.b16 %v8414, %v8406
    %v8599 = vpack.c.b16 %v8415, %v8407
    %v8600 = vpack.c.b16 %v8416, %v8408
    %v8601 = vpack.c.b16 %v8417, %v8409
    %v8602 = vpack.c.b16 %v8418, %v8410
    %v8603 = vpack.c.b16 %v8419, %v8411
    %v8604 = vpack.c.b16 %v8420, %v8412
    %v8605 = vpack.c.b16 %v8421, %v8413
    %v8606 = vpack.c.b16 %v8430, %v8422
    %v8607 = vpack.c.b16 %v8431, %v8423
    %v8608 = vpack.c.b16 %v8432, %v8424
    %v8609 = vpack.c.b16 %v8433, %v8425
    %v8610 = vpack.c.b16 %v8434, %v8426
    %v8611 = vpack.c.b16 %v8435, %v8427
    %v8612 = vpack.c.b16 %v8436, %v8428
    %v8613 = vpack.c.b16 %v8437, %v8429
    %v8614 = vpack.c.b16 %v8446, %v8438
    %v8615 = vpack.c.b16 %v8447, %v8439
    %v8616 = vpack.c.b16 %v8448, %v8440
    %v8617 = vpack.c.b16 %v8449, %v8441
    %v8618 = vpack.c.b16 %v8450, %v8442
    %v8619 = vpack.c.b16 %v8451, %v8443
    %v8620 = vpack.c.b16 %v8452, %v8444
    %v8621 = vpack.c.b16 %v8453, %v8445
    %v8622 = vpack.c.b16 %v8462, %v8454
    %v8623 = vpack.c.b16 %v8463, %v8455
    %v8624 = vpack.c.b16 %v8464, %v8456
    %v8625 = vpack.c.b16 %v8465, %v8457
    %v8626 = vpack.c.b16 %v8466, %v8458
    %v8627 = vpack.c.b16 %v8467, %v8459
    %v8628 = vpack.c.b16 %v8468, %v8460
    %v8629 = vpack.c.b16 %v8469, %v8461
    %v8630 = vpack.c.b16 %v8478, %v8470
    %v8631 = vpack.c.b16 %v8479, %v8471
    %v8632 = vpack.c.b16 %v8480, %v8472
    %v8633 = vpack.c.b16 %v8481, %v8473
    %v8634 = vpack.c.b16 %v8482, %v8474
    %v8635 = vpack.c.b16 %v8483, %v8475
    %v8636 = vpack.c.b16 %v8484, %v8476
    %v8637 = vpack.c.b16 %v8485, %v8477
    %v8638 = vpack.c.b16 %v8494, %v8486
    %v8639 = vpack.c.b16 %v8495, %v8487
    %v8640 = vpack.c.b16 %v8496, %v8488
    %v8641 = vpack.c.b16 %v8497, %v8489
    %v8642 = vpack.c.b16 %v8498, %v8490
    %v8643 = vpack.c.b16 %v8499, %v8491
    %v8644 = vpack.c.b16 %v8500, %v8492
    %v8645 = vpack.c.b16 %v8501, %v8493
    %v8646 = vpack.c.b16 %v8510, %v8502
    %v8647 = vpack.c.b16 %v8511, %v8503
    %v8648 = vpack.c.b16 %v8512, %v8504
    %v8649 = vpack.c.b16 %v8513, %v8505
    %v8650 = vpack.c.b16 %v8514, %v8506
    %v8651 = vpack.c.b16 %v8515, %v8507
    %v8652 = vpack.c.b16 %v8516, %v8508
    %v8653 = vpack.c.b16 %v8517, %v8509
    %v8654 = vpack.c.b16 %v8526, %v8518
    %v8655 = vpack.c.b16 %v8527, %v8519
    %v8656 = vpack.c.b16 %v8528, %v8520
    %v8657 = vpack.c.b16 %v8529, %v8521
    %v8658 = vpack.c.b16 %v8530, %v8522
    %v8659 = vpack.c.b16 %v8531, %v8523
    %v8660 = vpack.c.b16 %v8532, %v8524
    %v8661 = vpack.c.b16 %v8533, %v8525
    %8790 = vmatpush.bf16.msra.mxu0 %v8590
    %8791 = vmatpush.bf16.msra.mxu0 %v8582
    %8792 = vmatpush.bf16.msra.mxu0 %v8574
    %8793 = vmatpush.bf16.msra.mxu0 %v8566
    %8794 = vmatpush.bf16.msra.mxu0 %v8558
    %8795 = vmatpush.bf16.msra.mxu0 %v8550
    %8796 = vmatpush.bf16.msra.mxu0 %v8542
    %8797 = vmatpush.bf16.msra.mxu0 %v8534
    %8798 = vmatmul.bf16.gmra.mxu0 %v8146
    %v8799 = vpop.f32.mrf.mxu0
    %v8800 = vadd.f32 0.0, %v8799
    %v8801 = vpop.f32.mrf.mxu0
    %8802 = vdwg.mxu0
    %8803 = vmatpush.bf16.msra.mxu0 %v8654
    %8804 = vmatpush.bf16.msra.mxu0 %v8646
    %8805 = vmatpush.bf16.msra.mxu0 %v8638
    %8806 = vmatpush.bf16.msra.mxu0 %v8630
    %8807 = vmatpush.bf16.msra.mxu0 %v8622
    %8808 = vmatpush.bf16.msra.mxu0 %v8614
    %8809 = vmatpush.bf16.msra.mxu0 %v8606
    %8810 = vmatpush.bf16.msra.mxu0 %v8598
    %8811 = vmatmul.bf16.gmra.mxu0 %v8147
    %v8812 = vpop.f32.mrf.mxu0
    %v8813 = vadd.f32 %v8800, %v8812
    %v8814 = vpop.f32.mrf.mxu0
    %8815 = vdwg.mxu0
    %8816 = vmatpush.bf16.msra.mxu0 %v8591
    %8817 = vmatpush.bf16.msra.mxu0 %v8583
    %8818 = vmatpush.bf16.msra.mxu0 %v8575
    %8819 = vmatpush.bf16.msra.mxu0 %v8567
    %8820 = vmatpush.bf16.msra.mxu0 %v8559
    %8821 = vmatpush.bf16.msra.mxu0 %v8551
    %8822 = vmatpush.bf16.msra.mxu0 %v8543
    %8823 = vmatpush.bf16.msra.mxu0 %v8535
    %8824 = vmatmul.bf16.gmra.mxu0 %v8146
    %v8825 = vpop.f32.mrf.mxu0
    %v8826 = vadd.f32 0.0, %v8825
    %v8827 = vpop.f32.mrf.mxu0
    %8828 = vdwg.mxu0
    %8829 = vmatpush.bf16.msra.mxu0 %v8655
    %8830 = vmatpush.bf16.msra.mxu0 %v8647
    %8831 = vmatpush.bf16.msra.mxu0 %v8639
    %8832 = vmatpush.bf16.msra.mxu0 %v8631
    %8833 = vmatpush.bf16.msra.mxu0 %v8623
    %8834 = vmatpush.bf16.msra.mxu0 %v8615
    %8835 = vmatpush.bf16.msra.mxu0 %v8607
    %8836 = vmatpush.bf16.msra.mxu0 %v8599
    %8837 = vmatmul.bf16.gmra.mxu0 %v8147
    %v8838 = vpop.f32.mrf.mxu0
    %v8839 = vadd.f32 %v8826, %v8838
    %v8840 = vpop.f32.mrf.mxu0
    %8841 = vdwg.mxu0
    %8842 = vmatpush.bf16.msra.mxu0 %v8592
    %8843 = vmatpush.bf16.msra.mxu0 %v8584
    %8844 = vmatpush.bf16.msra.mxu0 %v8576
    %8845 = vmatpush.bf16.msra.mxu0 %v8568
    %8846 = vmatpush.bf16.msra.mxu0 %v8560
    %8847 = vmatpush.bf16.msra.mxu0 %v8552
    %8848 = vmatpush.bf16.msra.mxu0 %v8544
    %8849 = vmatpush.bf16.msra.mxu0 %v8536
    %8850 = vmatmul.bf16.gmra.mxu0 %v8146
    %v8851 = vpop.f32.mrf.mxu0
    %v8852 = vadd.f32 0.0, %v8851
    %v8853 = vpop.f32.mrf.mxu0
    %8854 = vdwg.mxu0
    %8855 = vmatpush.bf16.msra.mxu0 %v8656
    %8856 = vmatpush.bf16.msra.mxu0 %v8648
    %8857 = vmatpush.bf16.msra.mxu0 %v8640
    %8858 = vmatpush.bf16.msra.mxu0 %v8632
    %8859 = vmatpush.bf16.msra.mxu0 %v8624
    %8860 = vmatpush.bf16.msra.mxu0 %v8616
    %8861 = vmatpush.bf16.msra.mxu0 %v8608
    %8862 = vmatpush.bf16.msra.mxu0 %v8600
    %8863 = vmatmul.bf16.gmra.mxu0 %v8147
    %v8864 = vpop.f32.mrf.mxu0
    %v8865 = vadd.f32 %v8852, %v8864
    %v8866 = vpop.f32.mrf.mxu0
    %8867 = vdwg.mxu0
    %8868 = vmatpush.bf16.msra.mxu0 %v8593
    %8869 = vmatpush.bf16.msra.mxu0 %v8585
    %8870 = vmatpush.bf16.msra.mxu0 %v8577
    %8871 = vmatpush.bf16.msra.mxu0 %v8569
    %8872 = vmatpush.bf16.msra.mxu0 %v8561
    %8873 = vmatpush.bf16.msra.mxu0 %v8553
    %8874 = vmatpush.bf16.msra.mxu0 %v8545
    %8875 = vmatpush.bf16.msra.mxu0 %v8537
    %8876 = vmatmul.bf16.gmra.mxu0 %v8146
    %v8877 = vpop.f32.mrf.mxu0
    %v8878 = vadd.f32 0.0, %v8877
    %v8879 = vpop.f32.mrf.mxu0
    %8880 = vdwg.mxu0
    %8881 = vmatpush.bf16.msra.mxu0 %v8657
    %8882 = vmatpush.bf16.msra.mxu0 %v8649
    %8883 = vmatpush.bf16.msra.mxu0 %v8641
    %8884 = vmatpush.bf16.msra.mxu0 %v8633
    %8885 = vmatpush.bf16.msra.mxu0 %v8625
    %8886 = vmatpush.bf16.msra.mxu0 %v8617
    %8887 = vmatpush.bf16.msra.mxu0 %v8609
    %8888 = vmatpush.bf16.msra.mxu0 %v8601
    %8889 = vmatmul.bf16.gmra.mxu0 %v8147
    %v8890 = vpop.f32.mrf.mxu0
    %v8891 = vadd.f32 %v8878, %v8890
    %v8892 = vpop.f32.mrf.mxu0
    %8893 = vdwg.mxu0
    %8894 = vmatpush.bf16.msra.mxu0 %v8594
    %8895 = vmatpush.bf16.msra.mxu0 %v8586
    %8896 = vmatpush.bf16.msra.mxu0 %v8578
    %8897 = vmatpush.bf16.msra.mxu0 %v8570
    %8898 = vmatpush.bf16.msra.mxu0 %v8562
    %8899 = vmatpush.bf16.msra.mxu0 %v8554
    %8900 = vmatpush.bf16.msra.mxu0 %v8546
    %8901 = vmatpush.bf16.msra.mxu0 %v8538
    %8902 = vmatmul.bf16.gmra.mxu0 %v8146
    %v8903 = vpop.f32.mrf.mxu0
    %v8904 = vadd.f32 0.0, %v8903
    %v8905 = vpop.f32.mrf.mxu0
    %8906 = vdwg.mxu0
    %8907 = vmatpush.bf16.msra.mxu0 %v8658
    %8908 = vmatpush.bf16.msra.mxu0 %v8650
    %8909 = vmatpush.bf16.msra.mxu0 %v8642
    %8910 = vmatpush.bf16.msra.mxu0 %v8634
    %8911 = vmatpush.bf16.msra.mxu0 %v8626
    %8912 = vmatpush.bf16.msra.mxu0 %v8618
    %8913 = vmatpush.bf16.msra.mxu0 %v8610
    %8914 = vmatpush.bf16.msra.mxu0 %v8602
    %8915 = vmatmul.bf16.gmra.mxu0 %v8147
    %v8916 = vpop.f32.mrf.mxu0
    %v8917 = vadd.f32 %v8904, %v8916
    %v8918 = vpop.f32.mrf.mxu0
    %8919 = vdwg.mxu0
    %8920 = vmatpush.bf16.msra.mxu0 %v8595
    %8921 = vmatpush.bf16.msra.mxu0 %v8587
    %8922 = vmatpush.bf16.msra.mxu0 %v8579
    %8923 = vmatpush.bf16.msra.mxu0 %v8571
    %8924 = vmatpush.bf16.msra.mxu0 %v8563
    %8925 = vmatpush.bf16.msra.mxu0 %v8555
    %8926 = vmatpush.bf16.msra.mxu0 %v8547
    %8927 = vmatpush.bf16.msra.mxu0 %v8539
    %8928 = vmatmul.bf16.gmra.mxu0 %v8146
    %v8929 = vpop.f32.mrf.mxu0
    %v8930 = vadd.f32 0.0, %v8929
    %v8931 = vpop.f32.mrf.mxu0
    %8932 = vdwg.mxu0
    %8933 = vmatpush.bf16.msra.mxu0 %v8659
    %8934 = vmatpush.bf16.msra.mxu0 %v8651
    %8935 = vmatpush.bf16.msra.mxu0 %v8643
    %8936 = vmatpush.bf16.msra.mxu0 %v8635
    %8937 = vmatpush.bf16.msra.mxu0 %v8627
    %8938 = vmatpush.bf16.msra.mxu0 %v8619
    %8939 = vmatpush.bf16.msra.mxu0 %v8611
    %8940 = vmatpush.bf16.msra.mxu0 %v8603
    %8941 = vmatmul.bf16.gmra.mxu0 %v8147
    %v8942 = vpop.f32.mrf.mxu0
    %v8943 = vadd.f32 %v8930, %v8942
    %v8944 = vpop.f32.mrf.mxu0
    %8945 = vdwg.mxu0
    %8946 = vmatpush.bf16.msra.mxu0 %v8596
    %8947 = vmatpush.bf16.msra.mxu0 %v8588
    %8948 = vmatpush.bf16.msra.mxu0 %v8580
    %8949 = vmatpush.bf16.msra.mxu0 %v8572
    %8950 = vmatpush.bf16.msra.mxu0 %v8564
    %8951 = vmatpush.bf16.msra.mxu0 %v8556
    %8952 = vmatpush.bf16.msra.mxu0 %v8548
    %8953 = vmatpush.bf16.msra.mxu0 %v8540
    %8954 = vmatmul.bf16.gmra.mxu0 %v8146
    %v8955 = vpop.f32.mrf.mxu0
    %v8956 = vadd.f32 0.0, %v8955
    %v8957 = vpop.f32.mrf.mxu0
    %8958 = vdwg.mxu0
    %8959 = vmatpush.bf16.msra.mxu0 %v8660
    %8960 = vmatpush.bf16.msra.mxu0 %v8652
    %8961 = vmatpush.bf16.msra.mxu0 %v8644
    %8962 = vmatpush.bf16.msra.mxu0 %v8636
    %8963 = vmatpush.bf16.msra.mxu0 %v8628
    %8964 = vmatpush.bf16.msra.mxu0 %v8620
    %8965 = vmatpush.bf16.msra.mxu0 %v8612
    %8966 = vmatpush.bf16.msra.mxu0 %v8604
    %8967 = vmatmul.bf16.gmra.mxu0 %v8147
    %v8968 = vpop.f32.mrf.mxu0
    %v8969 = vadd.f32 %v8956, %v8968
    %v8970 = vpop.f32.mrf.mxu0
    %8971 = vdwg.mxu0
    %8972 = vmatpush.bf16.msra.mxu0 %v8597
    %8973 = vmatpush.bf16.msra.mxu0 %v8589
    %8974 = vmatpush.bf16.msra.mxu0 %v8581
    %8975 = vmatpush.bf16.msra.mxu0 %v8573
    %8976 = vmatpush.bf16.msra.mxu0 %v8565
    %8977 = vmatpush.bf16.msra.mxu0 %v8557
    %8978 = vmatpush.bf16.msra.mxu0 %v8549
    %8979 = vmatpush.bf16.msra.mxu0 %v8541
    %8980 = vmatmul.bf16.gmra.mxu0 %v8146
    %v8981 = vpop.f32.mrf.mxu0
    %v8982 = vadd.f32 0.0, %v8981
    %v8983 = vpop.f32.mrf.mxu0
    %8984 = vdwg.mxu0
    %8985 = vmatpush.bf16.msra.mxu0 %v8661
    %8986 = vmatpush.bf16.msra.mxu0 %v8653
    %8987 = vmatpush.bf16.msra.mxu0 %v8645
    %8988 = vmatpush.bf16.msra.mxu0 %v8637
    %8989 = vmatpush.bf16.msra.mxu0 %v8629
    %8990 = vmatpush.bf16.msra.mxu0 %v8621
    %8991 = vmatpush.bf16.msra.mxu0 %v8613
    %8992 = vmatpush.bf16.msra.mxu0 %v8605
    %8993 = vmatmul.bf16.gmra.mxu0 %v8147
    %v8994 = vpop.f32.mrf.mxu0
    %v8995 = vadd.f32 %v8982, %v8994
    %v8996 = vpop.f32.mrf.mxu0
    %8997 = vdwg.mxu0
    %v9006 = vrot.slane %v8839, 7
    %v9007 = vrot.slane %v8865, 6
    %v9008 = vrot.slane %v8891, 5
    %v9009 = vrot.slane %v8917, 4
    %v9010 = vrot.slane %v8943, 3
    %v9011 = vrot.slane %v8969, 2
    %v9012 = vrot.slane %v8995, 1
    %v9013 = vsel %vm1628, %v8813, %v9006
    %v9014 = vsel %vm1630, %v9007, %v9008
    %v9015 = vsel %vm1632, %v9013, %v9014
    %v9016 = vsel %vm1634, %v9009, %v9010
    %v9017 = vsel %vm1636, %v9011, %v9012
    %v9018 = vsel %vm1638, %v9016, %v9017
    %v9019 = vsel %vm1640, %v9015, %v9018
    %v9021 = vadd.f32 %v8015, %v9019
    %v9022 = vmul.f32 %v9021, 0.5
    %v9023 = vtanh.pop %v9022
    %v9024 = vmul.f32 %v9023, 0.5
    %v9025 = vadd.f32 %v9024, 0.5
    %v9027 = vrot.slane %v9021, 2
    %v9029 = vmul.f32 %v9027, 0.5
    %v9030 = vtanh.pop %v9029
    %v9031 = vmul.f32 %v9030, 0.5
    %v9032 = vadd.f32 %v9031, 0.5
    %v9033 = vrot.slane %v9021, 4
    %v9035 = vtanh.pop %v9033
    %v9036 = vrot.slane %v9021, 6
    %v9038 = vmul.f32 %v9036, 0.5
    %v9039 = vtanh.pop %v9038
    %v9040 = vmul.f32 %v9039, 0.5
    %v9041 = vadd.f32 %v9040, 0.5
    %v9042 = vmul.f32 %v9032, %v7990
    %v9043 = vmul.f32 %v9025, %v9035
    %v9044 = vadd.f32 %v9042, %v9043
    %v9045 = vtanh.pop %v9044
    %v9046 = vmul.f32 %v9041, %v9045
    %v9048 = vperm.slane %v9046, 0
    %v9049 = vperm.slane %v9046, 1
    %v9052 = vpack.c.bf16 %v9049, %v9048
    %v9054 = vshll.u32 %v9052, 16
    %v9056 = vrot.slane %v9054, 5
    %vm9058 = vsmask.f32 7950
    %vm9059 = vmand %vm8002, %vm9058
    %vm9060 = vsmask.f32 7966
    %vm9061 = vmand %vm8005, %vm9060
    %vm9062 = vmor %vm9061, %vm9059
    %v9063 = vld [vmem:[#allocation14] sm:$0x88]
    %v9064 = vsel %vm9062, %v9056, %v9063
    %9065 = vst [vmem:[#allocation14] sm:$0x88] %v9064
    // Predicated region
    $region50: #{tpu_custom_call.1} parent=1 // pred_check
      _
    $region51: #{tpu_custom_call.1} parent=1 // pred_check_branch
      %9067 = sbr.rel (0) target = $region53
    $region52: #{tpu_custom_call.1} parent=1 // pred_region
      %9069 = vsyncadd [#allocation5], 0
      %s9071 = sshll.u32 [#allocation14], 4
      %s9072 = int_to_ptr.vmem [resolvable:$true] %s9071
      %s9073 = sshll.u32 %s6, 4
      %s9074 = int_to_ptr.hbm [resolvable:$true] %s9073
      %9076 = dma.vmem_to_hbm [thread:$0]  %s9072, 128, %s9074, [#allocation5]
    $region53: #{tpu_custom_call.1} parent=1 // pred_fallthru
      _
    // Predicated region
    $region54: #{tpu_custom_call.1} parent=1 // pred_check
      _
    $region55: #{tpu_custom_call.1} parent=1 // pred_check_branch
      %9078 = sbr.rel (0) target = $region57
    $region56: #{tpu_custom_call.1} parent=1 // pred_region
      %9080 = dma.done [#allocation5], 128
    $region57: #{tpu_custom_call.1} parent=1 // pred_fallthru
      _
    %9081 = vsyncpa [#allocation4], 1
    %9082 = vsyncpa [#allocation7], 1
    %9083 = vsyncpa [#allocation10], 1
    %9084 = vsyncpa [#allocation13], 1
    %9085 = vsyncpa [#allocation5], 1

</llo_original>
